<compile_context>
chip_gen: v5e
topology: v5e:2x2
jax: 0.10.0
libtpu: 0.0.40
codegen_flags: <defaults>
</compile_context>

<pallas_src>
import functools

import numpy as np
import jax
import jax.numpy as jnp
from jax.experimental import pallas as pl
from jax.experimental.pallas import tpu as pltpu


# ----------------------------------------------------------------------------- #
# Configurations (copied from the PyTorch file)
# ----------------------------------------------------------------------------- #
class ModelConfigurationBikeNYC:
    res_repetation = 2
    res_nbfilter = 16
    res_bn = True
    res_split_mode = 'split'
    first_extnn_inter_channels = 30
    first_extnn_dropout = 0.5
    merge_mode = 'fuse'
    lstm_channels = 16
    lstm_dropout = 0.5
    extnn = True


class DataConf:
    """Small synthetic data configuration (BikeNYC-style)."""
    name = 'BikeNYC'
    len_close, len_period, len_trend = 3, 2, 1
    len_all_close, len_all_period, len_all_trend = 3, 2, 1
    cpt = [3, 2, 1]
    len_seq = 6                  # = sum(cpt)
    ext_dim = 8
    dim_h = 8
    dim_w = 8


# ----------------------------------------------------------------------------- #
# Host-side conv constants: tap shifts + boundary masks (precomputed, no iota
# / div / mod inside the kernels)
# ----------------------------------------------------------------------------- #
def make_conv_consts(N, H, W):
    """Returns (shifts, masks).  masks: (9, 1, N*H*W) f32.

    Activations are laid out (channels, p) with p = n*H*W + h*W + w.  Tap
    (dh, dw) reads x[p + dh*W + dw]; positions whose (h+dh, w+dw) fall outside
    the image are zeroed by the mask (this also kills roll wrap-around and any
    cross-batch / cross-image contamination).
    """
    NHW = N * H * W
    p = np.arange(NHW)
    hh = (p // W) % H
    ww = p % W
    shifts, masks = [], []
    for dh in (-1, 0, 1):
        for dw in (-1, 0, 1):
            shifts.append(dh * W + dw)
            valid = ((hh + dh >= 0) & (hh + dh < H) &
                     (ww + dw >= 0) & (ww + dw < W))
            masks.append(valid.astype(np.float32))
    # roll+mask boundary scheme requires |tap shift| < H*W per image
    assert all(abs(s) < H * W for s in shifts)
    return tuple(shifts), jnp.asarray(np.stack(masks)[:, None, :])


# ----------------------------------------------------------------------------- #
# In-kernel helpers: consolidated 3x3 conv (one matmul) and LSTM cell update
# ----------------------------------------------------------------------------- #
def _stage_taps(x, mrows, shifts, NHW):
    """x: (Cin, NHW) -> staged (9*Cin, NHW) bf16 tile (tap-major rows).

    Rows [k*Cin:(k+1)*Cin] hold the lane-rolled + boundary-masked copy for tap k.
    Masking / rolling done in f32 (v5e-safe), one bf16 cast on the staged tile.
    """
    x = x.astype(jnp.float32)
    parts = []
    for k, s in enumerate(shifts):
        if s == 0:
            parts.append(x)                              # center tap: mask == 1
        else:
            # rolled[p] = x[(p + s) mod NHW]; wrap / out-of-image lanes masked.
            parts.append(pltpu.roll(x, shift=(-s) % NHW, axis=1) * mrows[k])
    return jnp.concatenate(parts, axis=0).astype(jnp.bfloat16)


def _conv3x3(x, w, mrows, shifts, NHW, b=None, relu=False):
    """x: (Cin, NHW); w: (Cout, 9*Cin) bf16; b: (Cout, 1) f32 or None."""
    staged = _stage_taps(x, mrows, shifts, NHW)
    acc = jnp.dot(w, staged, preferred_element_type=jnp.float32)
    if b is not None:
        acc = acc + b
    if relu:
        acc = jnp.maximum(acc, 0.0)
    return acc


def _hsigmoid(x):
    # sigmoid(x) == 0.5*(1 + tanh(x/2)): one EUP tanh instead of exp + reciprocal.
    return 0.5 * (1.0 + jnp.tanh(0.5 * x))


def _lstm_update(g, c, C):
    # TODO(synk): ConvLSTM source not provided; gate ordering assumed (i, f, g, o).
    i = _hsigmoid(g[0 * C:1 * C])
    f = _hsigmoid(g[1 * C:2 * C])
    gg = jnp.tanh(g[2 * C:3 * C])
    o = _hsigmoid(g[3 * C:4 * C])
    c_new = f * c + i * gg
    h_new = o * jnp.tanh(c_new)
    return h_new, c_new


# ----------------------------------------------------------------------------- #
# Parameter initialization (deterministic, synthetic; kernel-ready layouts)
# ----------------------------------------------------------------------------- #
def _consolidate(w9):
    """(9, Cout, Cin) f32 -> (Cout, 9*Cin) bf16 tap-major consolidated weight."""
    cout = w9.shape[1]
    return jnp.transpose(w9, (1, 0, 2)).reshape(cout, -1).astype(jnp.bfloat16)


def _init_conv(key, cout, cin, scale=0.1):
    w9 = jax.random.normal(key, (9, cout, cin), jnp.float32) * scale
    return {"w": _consolidate(w9), "b": jnp.zeros((cout, 1), jnp.float32)}


def _init_linear(key, fin, fout, scale=0.1):
    return {"w": jax.random.normal(key, (fin, fout), jnp.float32) * scale,
            "b": jnp.zeros((fout,), jnp.float32)}


def _cin_pad(cpt):
    return ((max(2 * L for L in cpt) + 7) // 8) * 8


def _init_resnn(key, cpt, nbfilter, rep, C, scale=0.1):
    # TODO(synk): ResNN source not provided; reconstructed as split-mode ST-ResNet
    # (one branch per cpt segment: conv_in -> res units -> relu -> conv_out),
    # BatchNorm treated as identity (eval statistics).
    cpt = [L for L in cpt if L > 0]
    cin_pad = _cin_pad(cpt)
    lmax = max(cpt)
    w_in, b_in, w_u, b_u, w_out, b_out = [], [], [], [], [], []
    for L, bk in zip(cpt, jax.random.split(key, len(cpt))):
        ks = jax.random.split(bk, 2 + 2 * rep)
        w9 = jax.random.normal(ks[0], (9, nbfilter, 2 * L), jnp.float32) * scale
        w9 = jnp.pad(w9, ((0, 0), (0, 0), (0, cin_pad - 2 * L)))       # pad Cin
        w_in.append(_consolidate(w9))
        b_in.append(jnp.zeros((nbfilter, 1), jnp.float32))
        wu, bu = [], []
        for r in range(2 * rep):
            c = _init_conv(ks[1 + r], nbfilter, nbfilter, scale)
            wu.append(c["w"]); bu.append(c["b"])
        w_u.append(jnp.stack(wu)); b_u.append(jnp.stack(bu))
        w9o = jax.random.normal(ks[1 + 2 * rep], (9, C * L, nbfilter),
                                jnp.float32) * scale
        w9o = jnp.pad(w9o, ((0, 0), (0, C * (lmax - L)), (0, 0)))      # pad Cout
        w_out.append(_consolidate(w9o))
        b_out.append(jnp.zeros((C * lmax, 1), jnp.float32))
    return {"w_in": jnp.stack(w_in), "b_in": jnp.stack(b_in),
            "w_units": jnp.stack(w_u), "b_units": jnp.stack(b_u),
            "w_out": jnp.stack(w_out), "b_out": jnp.stack(b_out)}


def _init_convlstm(key, C, last_conv=False, conv_channels=2, scale=0.1):
    # wx / wh kept separate so the x-path conv can be hoisted out of the recurrence.
    k1, k2, k3 = jax.random.split(key, 3)
    p = {"wx": _consolidate(jax.random.normal(k1, (9, 4 * C, C), jnp.float32) * scale),
         "wh": _consolidate(jax.random.normal(k2, (9, 4 * C, C), jnp.float32) * scale),
         "b": jnp.zeros((4 * C, 1), jnp.float32)}
    if last_conv:
        p["last"] = _init_conv(k3, conv_channels, C, scale)
    return p


def _init_concat_conv(key, C, seq_len, scale=0.1):
    # TODO(synk): ConcatConv source not provided; reconstructed as
    # concat(features, hidden) -> conv3x3(->C) -> ReLU -> conv3x3(->C*seq_len);
    # conv1 weights are pre-split into a features half and a hidden half so the
    # kernel never materializes the channel concat.
    k1, k2, k3 = jax.random.split(key, 3)
    c2 = _init_conv(k3, C * seq_len, C, scale)
    return {"w1f": _consolidate(jax.random.normal(k1, (9, C, C * seq_len),
                                                  jnp.float32) * scale),
            "w1h": _consolidate(jax.random.normal(k2, (9, C, C * seq_len),
                                                  jnp.float32) * scale),
            "b1": jnp.zeros((C, 1), jnp.float32),
            "w2": c2["w"], "b2": c2["b"]}


def init_model_params(key, dconf, mconf):
    C = mconf.lstm_channels
    H, W = dconf.dim_h, dconf.dim_w
    len_local = dconf.len_all_close
    len_global = dconf.len_all_period + dconf.len_all_trend
    ks = jax.random.split(key, 10)
    cc_c = _init_concat_conv(ks[4], C, len_local)
    cc_t = _init_concat_conv(ks[5], C, len_global)
    ml_c = _init_convlstm(ks[6], C, last_conv=True, conv_channels=2)
    ml_t = _init_convlstm(ks[7], C, last_conv=True, conv_channels=2)
    branch = {
        "c1wf": jnp.stack([cc_c["w1f"], cc_t["w1f"]]),
        "c1wh": jnp.stack([cc_c["w1h"], cc_t["w1h"]]),
        "c1b":  jnp.stack([cc_c["b1"],  cc_t["b1"]]),
        "c2w":  jnp.stack([cc_c["w2"],  cc_t["w2"]]),
        "c2b":  jnp.stack([cc_c["b2"],  cc_t["b2"]]),
        "lwx":  jnp.stack([ml_c["wx"],  ml_t["wx"]]),
        "lwh":  jnp.stack([ml_c["wh"],  ml_t["wh"]]),
        "lb":   jnp.stack([ml_c["b"],   ml_t["b"]]),
        "pw":   jnp.stack([ml_c["last"]["w"], ml_t["last"]["w"]]),
        "pb":   jnp.stack([ml_c["last"]["b"], ml_t["last"]["b"]]),
    }
    return {
        "resnn": _init_resnn(ks[0], dconf.cpt, mconf.res_nbfilter,
                             mconf.res_repetation, C),
        "extnn": {"l1": _init_linear(ks[1], dconf.ext_dim,
                                     mconf.first_extnn_inter_channels),
                  "l2": _init_linear(ks[2], mconf.first_extnn_inter_channels,
                                     C * H * W)},
        "cpt_lstm": _init_convlstm(ks[3], C, last_conv=False),
        "branch": branch,
        "time_aware_extnn": {"l1": _init_linear(ks[8], dconf.ext_dim, 32),
                             "l2": _init_linear(ks[9], 32, 1)},
    }


# ----------------------------------------------------------------------------- #
# BlockSpec helpers
# ----------------------------------------------------------------------------- #
def _full_spec(a):
    nd = a.ndim
    return pl.BlockSpec(a.shape, lambda i: (0,) * nd)


def _branch_spec(a):
    tail = a.shape[1:]
    nd = a.ndim - 1
    return pl.BlockSpec((1,) + tail, lambda i: (i,) + (0,) * nd)


# ----------------------------------------------------------------------------- #
# Pallas kernel 1: ResNN (grid-parallel over cpt branches) + external-feature add
# ----------------------------------------------------------------------------- #
def resnn_extnn_pallas(resp, masks, shifts, x_stacked, ext_stacked, rep, NHW):
    n_br = x_stacked.shape[0]
    rows_pad = ext_stacked.shape[1]

    def kernel(masks_ref, x_ref, ext_ref, w_in_ref, b_in_ref,
               w_u_ref, b_u_ref, w_out_ref, b_out_ref, out_ref):
        mrows = [masks_ref[k] for k in range(9)]               # 9 x (1, NHW) f32
        h = _conv3x3(x_ref[0], w_in_ref[0], mrows, shifts, NHW, b=b_in_ref[0])
        for r in range(rep):
            # TODO(synk): BatchNorm (res_bn=True) treated as identity in eval mode.
            z = jnp.maximum(h, 0.0)
            z = _conv3x3(z, w_u_ref[0, 2 * r], mrows, shifts, NHW,
                         b=b_u_ref[0, 2 * r], relu=True)
            z = _conv3x3(z, w_u_ref[0, 2 * r + 1], mrows, shifts, NHW,
                         b=b_u_ref[0, 2 * r + 1])
            h = h + z
        h = jnp.maximum(h, 0.0)
        ob = _conv3x3(h, w_out_ref[0], mrows, shifts, NHW, b=b_out_ref[0])
        out_ref[0] = ob + ext_ref[0]

    inputs = (masks, x_stacked, ext_stacked, resp["w_in"], resp["b_in"],
              resp["w_units"], resp["b_units"], resp["w_out"], resp["b_out"])
    in_specs = [_full_spec(masks)] + [_branch_spec(a) for a in inputs[1:]]

    return pl.pallas_call(
        kernel,
        out_shape=jax.ShapeDtypeStruct((n_br, rows_pad, NHW), jnp.float32),
        grid=(n_br,),
        in_specs=in_specs,
        out_specs=pl.BlockSpec((1, rows_pad, NHW), lambda i: (i, 0, 0)),
        compiler_params=pltpu.CompilerParams(
            dimension_semantics=("parallel",)),
    )(*inputs)


# ----------------------------------------------------------------------------- #
# Pallas kernel 2 (fused): shared 'cpt' ConvLSTM + attention + phase +
# merge ConvLSTM + time gating, grid-parallel over the two branches
# ----------------------------------------------------------------------------- #
def branch_fused_pallas(params, masks, shifts, features, gates, C, T_seg, NHW):
    cl = params["cpt_lstm"]
    br = params["branch"]
    seg_rows = T_seg * C
    n_out_ch = br["pw"].shape[1]                                 # = 2

    def kernel(masks_ref, feat_ref, gate_ref, wx0_ref, wh0_ref, b0_ref,
               c1wf_ref, c1wh_ref, c1b_ref, c2w_ref, c2b_ref,
               lwx_ref, lwh_ref, lb_ref, pw_ref, pb_ref, out_ref):
        mrows = [masks_ref[k] for k in range(9)]
        feat = feat_ref[...]                                     # (T*C, NHW) f32

        # ---- shared 'cpt' ConvLSTM; x-path convs hoisted out of the recurrence --
        wx0 = wx0_ref[...]; wh0 = wh0_ref[...]; b0 = b0_ref[...]
        gx = [_conv3x3(feat[t * C:(t + 1) * C], wx0, mrows, shifts, NHW, b=b0)
              for t in range(T_seg)]
        h = jnp.zeros((C, NHW), jnp.float32)
        c = jnp.zeros((C, NHW), jnp.float32)
        hid = []
        for t in range(T_seg):
            g = gx[t] + _conv3x3(h, wh0, mrows, shifts, NHW)
            h, c = _lstm_update(g, c, C)
            hid.append(h)
        hidden = jnp.concatenate(hid, axis=0)                    # (T*C, NHW), VMEM

        # ---- attention (ConcatConv): conv1 split into feat/hidden halves --------
        a = (jnp.dot(c1wf_ref[0], _stage_taps(feat, mrows, shifts, NHW),
                     preferred_element_type=jnp.float32)
             + jnp.dot(c1wh_ref[0], _stage_taps(hidden, mrows, shifts, NHW),
                       preferred_element_type=jnp.float32)
             + c1b_ref[0])
        a = jnp.maximum(a, 0.0)
        att = _conv3x3(a, c2w_ref[0], mrows, shifts, NHW, b=c2b_ref[0])
        phase = feat * (1.0 + att)

        # ---- merge-mode ConvLSTM; x-path convs hoisted --------------------------
        lwx = lwx_ref[0]; lwh = lwh_ref[0]; lb = lb_ref[0]
        gx2 = [_conv3x3(phase[t * C:(t + 1) * C], lwx, mrows, shifts, NHW, b=lb)
               for t in range(T_seg)]
        h = jnp.zeros((C, NHW), jnp.float32)
        c = jnp.zeros((C, NHW), jnp.float32)
        for t in range(T_seg):
            g = gx2[t] + _conv3x3(h, lwh, mrows, shifts, NHW)
            h, c = _lstm_update(g, c, C)
        pred = _conv3x3(h, pw_ref[0], mrows, shifts, NHW, b=pb_ref[0])   # (2, NHW)

        out_ref[0] = pred * gate_ref[0]                          # time-aware gate

    in_arrays = (masks, features, gates, cl["wx"], cl["wh"], cl["b"],
                 br["c1wf"], br["c1wh"], br["c1b"], br["c2w"], br["c2b"],
                 br["lwx"], br["lwh"], br["lb"], br["pw"], br["pb"])
    in_specs = ([_full_spec(masks),
                 pl.BlockSpec((seg_rows, NHW), lambda i: (i, 0)),
                 _branch_spec(gates),
                 _full_spec(cl["wx"]), _full_spec(cl["wh"]), _full_spec(cl["b"])]
                + [_branch_spec(a) for a in in_arrays[6:]])

    return pl.pallas_call(
        kernel,
        out_shape=jax.ShapeDtypeStruct((2, n_out_ch, NHW), jnp.float32),
        grid=(2,),
        in_specs=in_specs,
        out_specs=pl.BlockSpec((1, n_out_ch, NHW), lambda i: (i, 0, 0)),
        compiler_params=pltpu.CompilerParams(
            dimension_semantics=("parallel",)),
    )(*in_arrays)


# ----------------------------------------------------------------------------- #
# Top-level model forward (mirrors ModelAttentionWithTimeaware.forward)
# ----------------------------------------------------------------------------- #
def model_forward(params, x, x_ext, y_ext, dconf, mconf):
    C = mconf.lstm_channels
    H, W = dconf.dim_h, dconf.dim_w
    N = x.shape[0]
    HW = H * W
    NHW = N * HW
    T = dconf.len_seq
    rep = mconf.res_repetation
    cpt = [L for L in dconf.cpt if L > 0]
    lmax = max(cpt)
    cin_pad = _cin_pad(cpt)
    len_local = dconf.len_all_close
    len_global = dconf.len_all_period + dconf.len_all_trend
    # TODO(synk): fused branch grid assumes len_local == len_global (true here);
    # unequal lengths would need per-branch kernels.
    assert len_local == len_global
    T_seg = len_local

    shifts, masks = make_conv_consts(N, H, W)

    # --- ExtNN 'inter' / 'last' MLPs: a few hundred FLOPs, left to XLA.
    e = params["extnn"]
    eh = jnp.maximum(x_ext.reshape(N * T, -1) @ e["l1"]["w"] + e["l1"]["b"], 0.0)
    # TODO(synk): dropout(0.5) is identity in eval mode.
    eh = jnp.maximum(eh @ e["l2"]["w"] + e["l2"]["b"], 0.0)              # (N*T, C*H*W)
    ext_t = eh.reshape(N, T, C, HW).transpose(1, 2, 0, 3).reshape(T * C, NHW)

    ta = params["time_aware_extnn"]
    th = jnp.maximum(y_ext @ ta["l1"]["w"] + ta["l1"]["b"], 0.0)
    time_aware = th @ ta["l2"]["w"] + ta["l2"]["b"]                       # (N, 1)
    t_lane = jnp.repeat(time_aware.reshape(-1), HW)[None, :]              # (1, NHW)
    gates = jnp.stack([jax.nn.sigmoid(t_lane), jax.nn.sigmoid(-t_lane)], axis=0)

    # --- Per-branch padded/stacked ResNN inputs and external features.
    x_br, ext_br = [], []
    ch, row = 0, 0
    for L in cpt:
        xb = x[:, ch:ch + 2 * L].transpose(1, 0, 2, 3).reshape(2 * L, NHW)
        x_br.append(jnp.pad(xb, ((0, cin_pad - 2 * L), (0, 0))))
        ch += 2 * L
        eb = ext_t[row:row + C * L]
        ext_br.append(jnp.pad(eb, ((0, C * (lmax - L)), (0, 0))))
        row += C * L
    x_stacked = jnp.stack(x_br).astype(jnp.float32)          # (n_br, cin_pad, NHW)
    ext_stacked = jnp.stack(ext_br)                           # (n_br, C*lmax, NHW)

    # --- Pallas kernel 1: ResNN (branch-parallel grid) + ext add
    res_out = resnn_extnn_pallas(params["resnn"], masks, shifts,
                                 x_stacked, ext_stacked, rep, NHW)
    features = jnp.concatenate(
        [res_out[b, :C * L] for b, L in enumerate(cpt)], axis=0)   # (T*C, NHW)

    # --- Pallas kernel 2 (fused): cpt ConvLSTM + attention + merge ConvLSTM + gate
    branch_out = branch_fused_pallas(params, masks, shifts, features, gates,
                                     C, T_seg, NHW)                # (2, 2, NHW)

    # pred = sigmoid(t)*pred_c + sigmoid(-t)*pred_t ; h = tanh(pred)
    pred = jnp.tanh(branch_out[0] + branch_out[1])                  # (2, NHW)
    return pred.reshape(-1, N, H, W).transpose(1, 0, 2, 3)          # (N, 2, H, W)


# ----------------------------------------------------------------------------- #
# Main
# ----------------------------------------------------------------------------- #
if __name__ == "__main__":
    dconf = DataConf()
    mconf = ModelConfigurationBikeNYC()

    root = jax.random.PRNGKey(0)
    kp, kx, ke, ky = jax.random.split(root, 4)

    params = init_model_params(kp, dconf, mconf)

    N = 2
    x = jax.random.normal(kx, (N, 2 * dconf.len_seq, dconf.dim_h, dconf.dim_w),
                          jnp.float32)
    x_ext = jax.random.normal(ke, (N, dconf.len_seq, dconf.ext_dim), jnp.float32)
    y_ext = jax.random.normal(ky, (N, dconf.ext_dim), jnp.float32)

    run = jax.jit(functools.partial(model_forward, dconf=dconf, mconf=mconf))
    out = jax.block_until_ready(run(params, x, x_ext, y_ext))

    assert out.shape == (N, 2, dconf.dim_h, dconf.dim_w), out.shape
    assert bool(jnp.all(jnp.isfinite(out)))
    assert bool(jnp.all(jnp.abs(out) <= 1.0))   # tanh output range
    print("KERNEL_OK")
</pallas_src>

<mosaic_0001>
module attributes {stable_mosaic.version = 11 : i64} {
  func.func @kernel(%arg0: i32, %arg1: memref<9x1x128xf32, #tpu.memory_space<vmem>>, %arg2: memref<1x8x128xf32, #tpu.memory_space<vmem>>, %arg3: memref<1x48x128xf32, #tpu.memory_space<vmem>>, %arg4: memref<1x16x72xbf16, #tpu.memory_space<vmem>>, %arg5: memref<1x16x1xf32, #tpu.memory_space<vmem>>, %arg6: memref<1x4x16x144xbf16, #tpu.memory_space<vmem>>, %arg7: memref<1x4x16x1xf32, #tpu.memory_space<vmem>>, %arg8: memref<1x48x144xbf16, #tpu.memory_space<vmem>>, %arg9: memref<1x48x1xf32, #tpu.memory_space<vmem>>, %arg10: memref<1x48x128xf32, #tpu.memory_space<vmem>>) attributes {dimension_semantics = [#tpu.dimension_semantics<parallel>], iteration_bounds = array<i64: 3>, scalar_prefetch = 0 : i64, scratch_operands = 0 : i64, tpu.core_type = #tpu.core_type<tc>, window_params = [{pipeline_mode = #tpu.pipeline_mode<synchronous>, transform_indices = @transform_0, window_bounds = array<i64: 9, 1, 128>}, {transform_indices = @transform_1, window_bounds = array<i64: 1, 8, 128>}, {transform_indices = @transform_2, window_bounds = array<i64: 1, 48, 128>}, {transform_indices = @transform_3, window_bounds = array<i64: 1, 16, 72>}, {transform_indices = @transform_4, window_bounds = array<i64: 1, 16, 1>}, {transform_indices = @transform_5, window_bounds = array<i64: 1, 4, 16, 144>}, {transform_indices = @transform_6, window_bounds = array<i64: 1, 4, 16, 1>}, {transform_indices = @transform_7, window_bounds = array<i64: 1, 48, 144>}, {transform_indices = @transform_8, window_bounds = array<i64: 1, 48, 1>}, {transform_indices = @transform_9, window_bounds = array<i64: 1, 48, 128>}]} {
    %c0 = arith.constant 0 : index
    %c0_0 = arith.constant 0 : index
    %c0_1 = arith.constant 0 : index
    %0 = vector.load %arg1[%c0, %c0_0, %c0_1] : memref<9x1x128xf32, #tpu.memory_space<vmem>>, vector<1x1x128xf32>
    %1 = vector.shape_cast %0 : vector<1x1x128xf32> to vector<1x128xf32>
    %c1 = arith.constant 1 : index
    %c0_2 = arith.constant 0 : index
    %c0_3 = arith.constant 0 : index
    %2 = vector.load %arg1[%c1, %c0_2, %c0_3] : memref<9x1x128xf32, #tpu.memory_space<vmem>>, vector<1x1x128xf32>
    %3 = vector.shape_cast %2 : vector<1x1x128xf32> to vector<1x128xf32>
    %c2 = arith.constant 2 : index
    %c0_4 = arith.constant 0 : index
    %c0_5 = arith.constant 0 : index
    %4 = vector.load %arg1[%c2, %c0_4, %c0_5] : memref<9x1x128xf32, #tpu.memory_space<vmem>>, vector<1x1x128xf32>
    %5 = vector.shape_cast %4 : vector<1x1x128xf32> to vector<1x128xf32>
    %c3 = arith.constant 3 : index
    %c0_6 = arith.constant 0 : index
    %c0_7 = arith.constant 0 : index
    %6 = vector.load %arg1[%c3, %c0_6, %c0_7] : memref<9x1x128xf32, #tpu.memory_space<vmem>>, vector<1x1x128xf32>
    %7 = vector.shape_cast %6 : vector<1x1x128xf32> to vector<1x128xf32>
    %c5 = arith.constant 5 : index
    %c0_8 = arith.constant 0 : index
    %c0_9 = arith.constant 0 : index
    %8 = vector.load %arg1[%c5, %c0_8, %c0_9] : memref<9x1x128xf32, #tpu.memory_space<vmem>>, vector<1x1x128xf32>
    %9 = vector.shape_cast %8 : vector<1x1x128xf32> to vector<1x128xf32>
    %c6 = arith.constant 6 : index
    %c0_10 = arith.constant 0 : index
    %c0_11 = arith.constant 0 : index
    %10 = vector.load %arg1[%c6, %c0_10, %c0_11] : memref<9x1x128xf32, #tpu.memory_space<vmem>>, vector<1x1x128xf32>
    %11 = vector.shape_cast %10 : vector<1x1x128xf32> to vector<1x128xf32>
    %c7 = arith.constant 7 : index
    %c0_12 = arith.constant 0 : index
    %c0_13 = arith.constant 0 : index
    %12 = vector.load %arg1[%c7, %c0_12, %c0_13] : memref<9x1x128xf32, #tpu.memory_space<vmem>>, vector<1x1x128xf32>
    %13 = vector.shape_cast %12 : vector<1x1x128xf32> to vector<1x128xf32>
    %c8 = arith.constant 8 : index
    %c0_14 = arith.constant 0 : index
    %c0_15 = arith.constant 0 : index
    %14 = vector.load %arg1[%c8, %c0_14, %c0_15] : memref<9x1x128xf32, #tpu.memory_space<vmem>>, vector<1x1x128xf32>
    %15 = vector.shape_cast %14 : vector<1x1x128xf32> to vector<1x128xf32>
    %c0_16 = arith.constant 0 : index
    %c0_17 = arith.constant 0 : index
    %c0_18 = arith.constant 0 : index
    %16 = vector.load %arg2[%c0_16, %c0_17, %c0_18] : memref<1x8x128xf32, #tpu.memory_space<vmem>>, vector<1x8x128xf32>
    %17 = vector.shape_cast %16 : vector<1x8x128xf32> to vector<8x128xf32>
    %c0_19 = arith.constant 0 : index
    %c0_20 = arith.constant 0 : index
    %c0_21 = arith.constant 0 : index
    %18 = vector.load %arg4[%c0_19, %c0_20, %c0_21] : memref<1x16x72xbf16, #tpu.memory_space<vmem>>, vector<1x16x72xbf16>
    %19 = vector.shape_cast %18 : vector<1x16x72xbf16> to vector<16x72xbf16>
    %c0_22 = arith.constant 0 : index
    %c0_23 = arith.constant 0 : index
    %c0_24 = arith.constant 0 : index
    %20 = vector.load %arg5[%c0_22, %c0_23, %c0_24] : memref<1x16x1xf32, #tpu.memory_space<vmem>>, vector<1x16x1xf32>
    %21 = vector.shape_cast %20 : vector<1x16x1xf32> to vector<16x1xf32>
    %c9_i32 = arith.constant 9 : i32
    %22 = tpu.dynamic_rotate %17 by %c9_i32 dim 1 : vector<8x128xf32>, i32 -> vector<8x128xf32>
    %23 = vector.broadcast %1 : vector<1x128xf32> to vector<8x128xf32>
    %24 = arith.mulf %22, %23 : vector<8x128xf32>
    %c8_i32 = arith.constant 8 : i32
    %25 = tpu.dynamic_rotate %17 by %c8_i32 dim 1 : vector<8x128xf32>, i32 -> vector<8x128xf32>
    %26 = vector.broadcast %3 : vector<1x128xf32> to vector<8x128xf32>
    %27 = arith.mulf %25, %26 : vector<8x128xf32>
    %c7_i32 = arith.constant 7 : i32
    %28 = tpu.dynamic_rotate %17 by %c7_i32 dim 1 : vector<8x128xf32>, i32 -> vector<8x128xf32>
    %29 = vector.broadcast %5 : vector<1x128xf32> to vector<8x128xf32>
    %30 = arith.mulf %28, %29 : vector<8x128xf32>
    %c1_i32 = arith.constant 1 : i32
    %31 = tpu.dynamic_rotate %17 by %c1_i32 dim 1 : vector<8x128xf32>, i32 -> vector<8x128xf32>
    %32 = vector.broadcast %7 : vector<1x128xf32> to vector<8x128xf32>
    %33 = arith.mulf %31, %32 : vector<8x128xf32>
    %c127_i32 = arith.constant 127 : i32
    %34 = tpu.dynamic_rotate %17 by %c127_i32 dim 1 : vector<8x128xf32>, i32 -> vector<8x128xf32>
    %35 = vector.broadcast %9 : vector<1x128xf32> to vector<8x128xf32>
    %36 = arith.mulf %34, %35 : vector<8x128xf32>
    %c121_i32 = arith.constant 121 : i32
    %37 = tpu.dynamic_rotate %17 by %c121_i32 dim 1 : vector<8x128xf32>, i32 -> vector<8x128xf32>
    %38 = vector.broadcast %11 : vector<1x128xf32> to vector<8x128xf32>
    %39 = arith.mulf %37, %38 : vector<8x128xf32>
    %c120_i32 = arith.constant 120 : i32
    %40 = tpu.dynamic_rotate %17 by %c120_i32 dim 1 : vector<8x128xf32>, i32 -> vector<8x128xf32>
    %41 = vector.broadcast %13 : vector<1x128xf32> to vector<8x128xf32>
    %42 = arith.mulf %40, %41 : vector<8x128xf32>
    %c119_i32 = arith.constant 119 : i32
    %43 = tpu.dynamic_rotate %17 by %c119_i32 dim 1 : vector<8x128xf32>, i32 -> vector<8x128xf32>
    %44 = vector.broadcast %15 : vector<1x128xf32> to vector<8x128xf32>
    %45 = arith.mulf %43, %44 : vector<8x128xf32>
    %46 = tpu.concatenate %24, %27, %30, %33, %17, %36, %39, %42, %45 in 0 : vector<8x128xf32>, vector<8x128xf32>, vector<8x128xf32>, vector<8x128xf32>, vector<8x128xf32>, vector<8x128xf32>, vector<8x128xf32>, vector<8x128xf32>, vector<8x128xf32> -> vector<72x128xf32>
    %47 = arith.truncf %46 : vector<72x128xf32> to vector<72x128xbf16>
    %cst = arith.constant dense<0.000000e+00> : vector<16x128xf32>
    %48 = tpu.matmul %19, %47, %cst {dimension_numbers = #tpu.dot_dimension_numbers<[1], [0], [0], [1], [0, 0, 1, 1], [], []>} : vector<16x72xbf16>, vector<72x128xbf16>, vector<16x128xf32> -> vector<16x128xf32>
    %49 = vector.broadcast %21 : vector<16x1xf32> to vector<16x128xf32>
    %50 = arith.addf %48, %49 : vector<16x128xf32>
    %cst_25 = arith.constant 0.000000e+00 : f32
    %51 = vector.broadcast %cst_25 : f32 to vector<16x128xf32>
    %52 = arith.maximumf %50, %51 : vector<16x128xf32>
    %c0_26 = arith.constant 0 : index
    %c0_27 = arith.constant 0 : index
    %c0_28 = arith.constant 0 : index
    %c0_29 = arith.constant 0 : index
    %53 = vector.load %arg6[%c0_26, %c0_27, %c0_28, %c0_29] : memref<1x4x16x144xbf16, #tpu.memory_space<vmem>>, vector<1x1x16x144xbf16>
    %54 = vector.shape_cast %53 : vector<1x1x16x144xbf16> to vector<16x144xbf16>
    %c0_30 = arith.constant 0 : index
    %c0_31 = arith.constant 0 : index
    %c0_32 = arith.constant 0 : index
    %c0_33 = arith.constant 0 : index
    %55 = vector.load %arg7[%c0_30, %c0_31, %c0_32, %c0_33] : memref<1x4x16x1xf32, #tpu.memory_space<vmem>>, vector<1x1x16x1xf32>
    %56 = vector.shape_cast %55 : vector<1x1x16x1xf32> to vector<16x1xf32>
    %c9_i32_34 = arith.constant 9 : i32
    %57 = tpu.dynamic_rotate %52 by %c9_i32_34 dim 1 : vector<16x128xf32>, i32 -> vector<16x128xf32>
    %58 = vector.broadcast %1 : vector<1x128xf32> to vector<16x128xf32>
    %59 = arith.mulf %57, %58 : vector<16x128xf32>
    %c8_i32_35 = arith.constant 8 : i32
    %60 = tpu.dynamic_rotate %52 by %c8_i32_35 dim 1 : vector<16x128xf32>, i32 -> vector<16x128xf32>
    %61 = vector.broadcast %3 : vector<1x128xf32> to vector<16x128xf32>
    %62 = arith.mulf %60, %61 : vector<16x128xf32>
    %c7_i32_36 = arith.constant 7 : i32
    %63 = tpu.dynamic_rotate %52 by %c7_i32_36 dim 1 : vector<16x128xf32>, i32 -> vector<16x128xf32>
    %64 = vector.broadcast %5 : vector<1x128xf32> to vector<16x128xf32>
    %65 = arith.mulf %63, %64 : vector<16x128xf32>
    %c1_i32_37 = arith.constant 1 : i32
    %66 = tpu.dynamic_rotate %52 by %c1_i32_37 dim 1 : vector<16x128xf32>, i32 -> vector<16x128xf32>
    %67 = vector.broadcast %7 : vector<1x128xf32> to vector<16x128xf32>
    %68 = arith.mulf %66, %67 : vector<16x128xf32>
    %c127_i32_38 = arith.constant 127 : i32
    %69 = tpu.dynamic_rotate %52 by %c127_i32_38 dim 1 : vector<16x128xf32>, i32 -> vector<16x128xf32>
    %70 = vector.broadcast %9 : vector<1x128xf32> to vector<16x128xf32>
    %71 = arith.mulf %69, %70 : vector<16x128xf32>
    %c121_i32_39 = arith.constant 121 : i32
    %72 = tpu.dynamic_rotate %52 by %c121_i32_39 dim 1 : vector<16x128xf32>, i32 -> vector<16x128xf32>
    %73 = vector.broadcast %11 : vector<1x128xf32> to vector<16x128xf32>
    %74 = arith.mulf %72, %73 : vector<16x128xf32>
    %c120_i32_40 = arith.constant 120 : i32
    %75 = tpu.dynamic_rotate %52 by %c120_i32_40 dim 1 : vector<16x128xf32>, i32 -> vector<16x128xf32>
    %76 = vector.broadcast %13 : vector<1x128xf32> to vector<16x128xf32>
    %77 = arith.mulf %75, %76 : vector<16x128xf32>
    %c119_i32_41 = arith.constant 119 : i32
    %78 = tpu.dynamic_rotate %52 by %c119_i32_41 dim 1 : vector<16x128xf32>, i32 -> vector<16x128xf32>
    %79 = vector.broadcast %15 : vector<1x128xf32> to vector<16x128xf32>
    %80 = arith.mulf %78, %79 : vector<16x128xf32>
    %81 = tpu.concatenate %59, %62, %65, %68, %52, %71, %74, %77, %80 in 0 : vector<16x128xf32>, vector<16x128xf32>, vector<16x128xf32>, vector<16x128xf32>, vector<16x128xf32>, vector<16x128xf32>, vector<16x128xf32>, vector<16x128xf32>, vector<16x128xf32> -> vector<144x128xf32>
    %82 = arith.truncf %81 : vector<144x128xf32> to vector<144x128xbf16>
    %cst_42 = arith.constant dense<0.000000e+00> : vector<16x128xf32>
    %83 = tpu.matmul %54, %82, %cst_42 {dimension_numbers = #tpu.dot_dimension_numbers<[1], [0], [0], [1], [0, 0, 1, 1], [], []>} : vector<16x144xbf16>, vector<144x128xbf16>, vector<16x128xf32> -> vector<16x128xf32>
    %84 = vector.broadcast %56 : vector<16x1xf32> to vector<16x128xf32>
    %85 = arith.addf %83, %84 : vector<16x128xf32>
    %cst_43 = arith.constant 0.000000e+00 : f32
    %86 = vector.broadcast %cst_43 : f32 to vector<16x128xf32>
    %87 = arith.maximumf %85, %86 : vector<16x128xf32>
    %c0_44 = arith.constant 0 : index
    %c1_45 = arith.constant 1 : index
    %c0_46 = arith.constant 0 : index
    %c0_47 = arith.constant 0 : index
    %88 = vector.load %arg6[%c0_44, %c1_45, %c0_46, %c0_47] : memref<1x4x16x144xbf16, #tpu.memory_space<vmem>>, vector<1x1x16x144xbf16>
    %89 = vector.shape_cast %88 : vector<1x1x16x144xbf16> to vector<16x144xbf16>
    %c0_48 = arith.constant 0 : index
    %c1_49 = arith.constant 1 : index
    %c0_50 = arith.constant 0 : index
    %c0_51 = arith.constant 0 : index
    %90 = vector.load %arg7[%c0_48, %c1_49, %c0_50, %c0_51] : memref<1x4x16x1xf32, #tpu.memory_space<vmem>>, vector<1x1x16x1xf32>
    %91 = vector.shape_cast %90 : vector<1x1x16x1xf32> to vector<16x1xf32>
    %c9_i32_52 = arith.constant 9 : i32
    %92 = tpu.dynamic_rotate %87 by %c9_i32_52 dim 1 : vector<16x128xf32>, i32 -> vector<16x128xf32>
    %93 = vector.broadcast %1 : vector<1x128xf32> to vector<16x128xf32>
    %94 = arith.mulf %92, %93 : vector<16x128xf32>
    %c8_i32_53 = arith.constant 8 : i32
    %95 = tpu.dynamic_rotate %87 by %c8_i32_53 dim 1 : vector<16x128xf32>, i32 -> vector<16x128xf32>
    %96 = vector.broadcast %3 : vector<1x128xf32> to vector<16x128xf32>
    %97 = arith.mulf %95, %96 : vector<16x128xf32>
    %c7_i32_54 = arith.constant 7 : i32
    %98 = tpu.dynamic_rotate %87 by %c7_i32_54 dim 1 : vector<16x128xf32>, i32 -> vector<16x128xf32>
    %99 = vector.broadcast %5 : vector<1x128xf32> to vector<16x128xf32>
    %100 = arith.mulf %98, %99 : vector<16x128xf32>
    %c1_i32_55 = arith.constant 1 : i32
    %101 = tpu.dynamic_rotate %87 by %c1_i32_55 dim 1 : vector<16x128xf32>, i32 -> vector<16x128xf32>
    %102 = vector.broadcast %7 : vector<1x128xf32> to vector<16x128xf32>
    %103 = arith.mulf %101, %102 : vector<16x128xf32>
    %c127_i32_56 = arith.constant 127 : i32
    %104 = tpu.dynamic_rotate %87 by %c127_i32_56 dim 1 : vector<16x128xf32>, i32 -> vector<16x128xf32>
    %105 = vector.broadcast %9 : vector<1x128xf32> to vector<16x128xf32>
    %106 = arith.mulf %104, %105 : vector<16x128xf32>
    %c121_i32_57 = arith.constant 121 : i32
    %107 = tpu.dynamic_rotate %87 by %c121_i32_57 dim 1 : vector<16x128xf32>, i32 -> vector<16x128xf32>
    %108 = vector.broadcast %11 : vector<1x128xf32> to vector<16x128xf32>
    %109 = arith.mulf %107, %108 : vector<16x128xf32>
    %c120_i32_58 = arith.constant 120 : i32
    %110 = tpu.dynamic_rotate %87 by %c120_i32_58 dim 1 : vector<16x128xf32>, i32 -> vector<16x128xf32>
    %111 = vector.broadcast %13 : vector<1x128xf32> to vector<16x128xf32>
    %112 = arith.mulf %110, %111 : vector<16x128xf32>
    %c119_i32_59 = arith.constant 119 : i32
    %113 = tpu.dynamic_rotate %87 by %c119_i32_59 dim 1 : vector<16x128xf32>, i32 -> vector<16x128xf32>
    %114 = vector.broadcast %15 : vector<1x128xf32> to vector<16x128xf32>
    %115 = arith.mulf %113, %114 : vector<16x128xf32>
    %116 = tpu.concatenate %94, %97, %100, %103, %87, %106, %109, %112, %115 in 0 : vector<16x128xf32>, vector<16x128xf32>, vector<16x128xf32>, vector<16x128xf32>, vector<16x128xf32>, vector<16x128xf32>, vector<16x128xf32>, vector<16x128xf32>, vector<16x128xf32> -> vector<144x128xf32>
    %117 = arith.truncf %116 : vector<144x128xf32> to vector<144x128xbf16>
    %cst_60 = arith.constant dense<0.000000e+00> : vector<16x128xf32>
    %118 = tpu.matmul %89, %117, %cst_60 {dimension_numbers = #tpu.dot_dimension_numbers<[1], [0], [0], [1], [0, 0, 1, 1], [], []>} : vector<16x144xbf16>, vector<144x128xbf16>, vector<16x128xf32> -> vector<16x128xf32>
    %119 = vector.broadcast %91 : vector<16x1xf32> to vector<16x128xf32>
    %120 = arith.addf %118, %119 : vector<16x128xf32>
    %121 = arith.addf %50, %120 : vector<16x128xf32>
    %cst_61 = arith.constant 0.000000e+00 : f32
    %122 = vector.broadcast %cst_61 : f32 to vector<16x128xf32>
    %123 = arith.maximumf %121, %122 : vector<16x128xf32>
    %c0_62 = arith.constant 0 : index
    %c2_63 = arith.constant 2 : index
    %c0_64 = arith.constant 0 : index
    %c0_65 = arith.constant 0 : index
    %124 = vector.load %arg6[%c0_62, %c2_63, %c0_64, %c0_65] : memref<1x4x16x144xbf16, #tpu.memory_space<vmem>>, vector<1x1x16x144xbf16>
    %125 = vector.shape_cast %124 : vector<1x1x16x144xbf16> to vector<16x144xbf16>
    %c0_66 = arith.constant 0 : index
    %c2_67 = arith.constant 2 : index
    %c0_68 = arith.constant 0 : index
    %c0_69 = arith.constant 0 : index
    %126 = vector.load %arg7[%c0_66, %c2_67, %c0_68, %c0_69] : memref<1x4x16x1xf32, #tpu.memory_space<vmem>>, vector<1x1x16x1xf32>
    %127 = vector.shape_cast %126 : vector<1x1x16x1xf32> to vector<16x1xf32>
    %c9_i32_70 = arith.constant 9 : i32
    %128 = tpu.dynamic_rotate %123 by %c9_i32_70 dim 1 : vector<16x128xf32>, i32 -> vector<16x128xf32>
    %129 = vector.broadcast %1 : vector<1x128xf32> to vector<16x128xf32>
    %130 = arith.mulf %128, %129 : vector<16x128xf32>
    %c8_i32_71 = arith.constant 8 : i32
    %131 = tpu.dynamic_rotate %123 by %c8_i32_71 dim 1 : vector<16x128xf32>, i32 -> vector<16x128xf32>
    %132 = vector.broadcast %3 : vector<1x128xf32> to vector<16x128xf32>
    %133 = arith.mulf %131, %132 : vector<16x128xf32>
    %c7_i32_72 = arith.constant 7 : i32
    %134 = tpu.dynamic_rotate %123 by %c7_i32_72 dim 1 : vector<16x128xf32>, i32 -> vector<16x128xf32>
    %135 = vector.broadcast %5 : vector<1x128xf32> to vector<16x128xf32>
    %136 = arith.mulf %134, %135 : vector<16x128xf32>
    %c1_i32_73 = arith.constant 1 : i32
    %137 = tpu.dynamic_rotate %123 by %c1_i32_73 dim 1 : vector<16x128xf32>, i32 -> vector<16x128xf32>
    %138 = vector.broadcast %7 : vector<1x128xf32> to vector<16x128xf32>
    %139 = arith.mulf %137, %138 : vector<16x128xf32>
    %c127_i32_74 = arith.constant 127 : i32
    %140 = tpu.dynamic_rotate %123 by %c127_i32_74 dim 1 : vector<16x128xf32>, i32 -> vector<16x128xf32>
    %141 = vector.broadcast %9 : vector<1x128xf32> to vector<16x128xf32>
    %142 = arith.mulf %140, %141 : vector<16x128xf32>
    %c121_i32_75 = arith.constant 121 : i32
    %143 = tpu.dynamic_rotate %123 by %c121_i32_75 dim 1 : vector<16x128xf32>, i32 -> vector<16x128xf32>
    %144 = vector.broadcast %11 : vector<1x128xf32> to vector<16x128xf32>
    %145 = arith.mulf %143, %144 : vector<16x128xf32>
    %c120_i32_76 = arith.constant 120 : i32
    %146 = tpu.dynamic_rotate %123 by %c120_i32_76 dim 1 : vector<16x128xf32>, i32 -> vector<16x128xf32>
    %147 = vector.broadcast %13 : vector<1x128xf32> to vector<16x128xf32>
    %148 = arith.mulf %146, %147 : vector<16x128xf32>
    %c119_i32_77 = arith.constant 119 : i32
    %149 = tpu.dynamic_rotate %123 by %c119_i32_77 dim 1 : vector<16x128xf32>, i32 -> vector<16x128xf32>
    %150 = vector.broadcast %15 : vector<1x128xf32> to vector<16x128xf32>
    %151 = arith.mulf %149, %150 : vector<16x128xf32>
    %152 = tpu.concatenate %130, %133, %136, %139, %123, %142, %145, %148, %151 in 0 : vector<16x128xf32>, vector<16x128xf32>, vector<16x128xf32>, vector<16x128xf32>, vector<16x128xf32>, vector<16x128xf32>, vector<16x128xf32>, vector<16x128xf32>, vector<16x128xf32> -> vector<144x128xf32>
    %153 = arith.truncf %152 : vector<144x128xf32> to vector<144x128xbf16>
    %cst_78 = arith.constant dense<0.000000e+00> : vector<16x128xf32>
    %154 = tpu.matmul %125, %153, %cst_78 {dimension_numbers = #tpu.dot_dimension_numbers<[1], [0], [0], [1], [0, 0, 1, 1], [], []>} : vector<16x144xbf16>, vector<144x128xbf16>, vector<16x128xf32> -> vector<16x128xf32>
    %155 = vector.broadcast %127 : vector<16x1xf32> to vector<16x128xf32>
    %156 = arith.addf %154, %155 : vector<16x128xf32>
    %cst_79 = arith.constant 0.000000e+00 : f32
    %157 = vector.broadcast %cst_79 : f32 to vector<16x128xf32>
    %158 = arith.maximumf %156, %157 : vector<16x128xf32>
    %c0_80 = arith.constant 0 : index
    %c3_81 = arith.constant 3 : index
    %c0_82 = arith.constant 0 : index
    %c0_83 = arith.constant 0 : index
    %159 = vector.load %arg6[%c0_80, %c3_81, %c0_82, %c0_83] : memref<1x4x16x144xbf16, #tpu.memory_space<vmem>>, vector<1x1x16x144xbf16>
    %160 = vector.shape_cast %159 : vector<1x1x16x144xbf16> to vector<16x144xbf16>
    %c0_84 = arith.constant 0 : index
    %c3_85 = arith.constant 3 : index
    %c0_86 = arith.constant 0 : index
    %c0_87 = arith.constant 0 : index
    %161 = vector.load %arg7[%c0_84, %c3_85, %c0_86, %c0_87] : memref<1x4x16x1xf32, #tpu.memory_space<vmem>>, vector<1x1x16x1xf32>
    %162 = vector.shape_cast %161 : vector<1x1x16x1xf32> to vector<16x1xf32>
    %c9_i32_88 = arith.constant 9 : i32
    %163 = tpu.dynamic_rotate %158 by %c9_i32_88 dim 1 : vector<16x128xf32>, i32 -> vector<16x128xf32>
    %164 = vector.broadcast %1 : vector<1x128xf32> to vector<16x128xf32>
    %165 = arith.mulf %163, %164 : vector<16x128xf32>
    %c8_i32_89 = arith.constant 8 : i32
    %166 = tpu.dynamic_rotate %158 by %c8_i32_89 dim 1 : vector<16x128xf32>, i32 -> vector<16x128xf32>
    %167 = vector.broadcast %3 : vector<1x128xf32> to vector<16x128xf32>
    %168 = arith.mulf %166, %167 : vector<16x128xf32>
    %c7_i32_90 = arith.constant 7 : i32
    %169 = tpu.dynamic_rotate %158 by %c7_i32_90 dim 1 : vector<16x128xf32>, i32 -> vector<16x128xf32>
    %170 = vector.broadcast %5 : vector<1x128xf32> to vector<16x128xf32>
    %171 = arith.mulf %169, %170 : vector<16x128xf32>
    %c1_i32_91 = arith.constant 1 : i32
    %172 = tpu.dynamic_rotate %158 by %c1_i32_91 dim 1 : vector<16x128xf32>, i32 -> vector<16x128xf32>
    %173 = vector.broadcast %7 : vector<1x128xf32> to vector<16x128xf32>
    %174 = arith.mulf %172, %173 : vector<16x128xf32>
    %c127_i32_92 = arith.constant 127 : i32
    %175 = tpu.dynamic_rotate %158 by %c127_i32_92 dim 1 : vector<16x128xf32>, i32 -> vector<16x128xf32>
    %176 = vector.broadcast %9 : vector<1x128xf32> to vector<16x128xf32>
    %177 = arith.mulf %175, %176 : vector<16x128xf32>
    %c121_i32_93 = arith.constant 121 : i32
    %178 = tpu.dynamic_rotate %158 by %c121_i32_93 dim 1 : vector<16x128xf32>, i32 -> vector<16x128xf32>
    %179 = vector.broadcast %11 : vector<1x128xf32> to vector<16x128xf32>
    %180 = arith.mulf %178, %179 : vector<16x128xf32>
    %c120_i32_94 = arith.constant 120 : i32
    %181 = tpu.dynamic_rotate %158 by %c120_i32_94 dim 1 : vector<16x128xf32>, i32 -> vector<16x128xf32>
    %182 = vector.broadcast %13 : vector<1x128xf32> to vector<16x128xf32>
    %183 = arith.mulf %181, %182 : vector<16x128xf32>
    %c119_i32_95 = arith.constant 119 : i32
    %184 = tpu.dynamic_rotate %158 by %c119_i32_95 dim 1 : vector<16x128xf32>, i32 -> vector<16x128xf32>
    %185 = vector.broadcast %15 : vector<1x128xf32> to vector<16x128xf32>
    %186 = arith.mulf %184, %185 : vector<16x128xf32>
    %187 = tpu.concatenate %165, %168, %171, %174, %158, %177, %180, %183, %186 in 0 : vector<16x128xf32>, vector<16x128xf32>, vector<16x128xf32>, vector<16x128xf32>, vector<16x128xf32>, vector<16x128xf32>, vector<16x128xf32>, vector<16x128xf32>, vector<16x128xf32> -> vector<144x128xf32>
    %188 = arith.truncf %187 : vector<144x128xf32> to vector<144x128xbf16>
    %cst_96 = arith.constant dense<0.000000e+00> : vector<16x128xf32>
    %189 = tpu.matmul %160, %188, %cst_96 {dimension_numbers = #tpu.dot_dimension_numbers<[1], [0], [0], [1], [0, 0, 1, 1], [], []>} : vector<16x144xbf16>, vector<144x128xbf16>, vector<16x128xf32> -> vector<16x128xf32>
    %190 = vector.broadcast %162 : vector<16x1xf32> to vector<16x128xf32>
    %191 = arith.addf %189, %190 : vector<16x128xf32>
    %192 = arith.addf %121, %191 : vector<16x128xf32>
    %cst_97 = arith.constant 0.000000e+00 : f32
    %193 = vector.broadcast %cst_97 : f32 to vector<16x128xf32>
    %194 = arith.maximumf %192, %193 : vector<16x128xf32>
    %c0_98 = arith.constant 0 : index
    %c0_99 = arith.constant 0 : index
    %c0_100 = arith.constant 0 : index
    %195 = vector.load %arg8[%c0_98, %c0_99, %c0_100] : memref<1x48x144xbf16, #tpu.memory_space<vmem>>, vector<1x48x144xbf16>
    %196 = vector.shape_cast %195 : vector<1x48x144xbf16> to vector<48x144xbf16>
    %c0_101 = arith.constant 0 : index
    %c0_102 = arith.constant 0 : index
    %c0_103 = arith.constant 0 : index
    %197 = vector.load %arg9[%c0_101, %c0_102, %c0_103] : memref<1x48x1xf32, #tpu.memory_space<vmem>>, vector<1x48x1xf32>
    %198 = vector.shape_cast %197 : vector<1x48x1xf32> to vector<48x1xf32>
    %c9_i32_104 = arith.constant 9 : i32
    %199 = tpu.dynamic_rotate %194 by %c9_i32_104 dim 1 : vector<16x128xf32>, i32 -> vector<16x128xf32>
    %200 = vector.broadcast %1 : vector<1x128xf32> to vector<16x128xf32>
    %201 = arith.mulf %199, %200 : vector<16x128xf32>
    %c8_i32_105 = arith.constant 8 : i32
    %202 = tpu.dynamic_rotate %194 by %c8_i32_105 dim 1 : vector<16x128xf32>, i32 -> vector<16x128xf32>
    %203 = vector.broadcast %3 : vector<1x128xf32> to vector<16x128xf32>
    %204 = arith.mulf %202, %203 : vector<16x128xf32>
    %c7_i32_106 = arith.constant 7 : i32
    %205 = tpu.dynamic_rotate %194 by %c7_i32_106 dim 1 : vector<16x128xf32>, i32 -> vector<16x128xf32>
    %206 = vector.broadcast %5 : vector<1x128xf32> to vector<16x128xf32>
    %207 = arith.mulf %205, %206 : vector<16x128xf32>
    %c1_i32_107 = arith.constant 1 : i32
    %208 = tpu.dynamic_rotate %194 by %c1_i32_107 dim 1 : vector<16x128xf32>, i32 -> vector<16x128xf32>
    %209 = vector.broadcast %7 : vector<1x128xf32> to vector<16x128xf32>
    %210 = arith.mulf %208, %209 : vector<16x128xf32>
    %c127_i32_108 = arith.constant 127 : i32
    %211 = tpu.dynamic_rotate %194 by %c127_i32_108 dim 1 : vector<16x128xf32>, i32 -> vector<16x128xf32>
    %212 = vector.broadcast %9 : vector<1x128xf32> to vector<16x128xf32>
    %213 = arith.mulf %211, %212 : vector<16x128xf32>
    %c121_i32_109 = arith.constant 121 : i32
    %214 = tpu.dynamic_rotate %194 by %c121_i32_109 dim 1 : vector<16x128xf32>, i32 -> vector<16x128xf32>
    %215 = vector.broadcast %11 : vector<1x128xf32> to vector<16x128xf32>
    %216 = arith.mulf %214, %215 : vector<16x128xf32>
    %c120_i32_110 = arith.constant 120 : i32
    %217 = tpu.dynamic_rotate %194 by %c120_i32_110 dim 1 : vector<16x128xf32>, i32 -> vector<16x128xf32>
    %218 = vector.broadcast %13 : vector<1x128xf32> to vector<16x128xf32>
    %219 = arith.mulf %217, %218 : vector<16x128xf32>
    %c119_i32_111 = arith.constant 119 : i32
    %220 = tpu.dynamic_rotate %194 by %c119_i32_111 dim 1 : vector<16x128xf32>, i32 -> vector<16x128xf32>
    %221 = vector.broadcast %15 : vector<1x128xf32> to vector<16x128xf32>
    %222 = arith.mulf %220, %221 : vector<16x128xf32>
    %223 = tpu.concatenate %201, %204, %207, %210, %194, %213, %216, %219, %222 in 0 : vector<16x128xf32>, vector<16x128xf32>, vector<16x128xf32>, vector<16x128xf32>, vector<16x128xf32>, vector<16x128xf32>, vector<16x128xf32>, vector<16x128xf32>, vector<16x128xf32> -> vector<144x128xf32>
    %224 = arith.truncf %223 : vector<144x128xf32> to vector<144x128xbf16>
    %cst_112 = arith.constant dense<0.000000e+00> : vector<48x128xf32>
    %225 = tpu.matmul %196, %224, %cst_112 {dimension_numbers = #tpu.dot_dimension_numbers<[1], [0], [0], [1], [0, 0, 1, 1], [], []>} : vector<48x144xbf16>, vector<144x128xbf16>, vector<48x128xf32> -> vector<48x128xf32>
    %226 = vector.broadcast %198 : vector<48x1xf32> to vector<48x128xf32>
    %227 = arith.addf %225, %226 : vector<48x128xf32>
    %c0_113 = arith.constant 0 : index
    %c0_114 = arith.constant 0 : index
    %c0_115 = arith.constant 0 : index
    %228 = vector.load %arg3[%c0_113, %c0_114, %c0_115] : memref<1x48x128xf32, #tpu.memory_space<vmem>>, vector<1x48x128xf32>
    %229 = vector.shape_cast %228 : vector<1x48x128xf32> to vector<48x128xf32>
    %230 = arith.addf %227, %229 : vector<48x128xf32>
    %c0_116 = arith.constant 0 : index
    %c0_117 = arith.constant 0 : index
    %c0_118 = arith.constant 0 : index
    %231 = vector.load %arg10[%c0_116, %c0_117, %c0_118] : memref<1x48x128xf32, #tpu.memory_space<vmem>>, vector<1x48x128xf32>
    %232 = vector.shape_cast %231 : vector<1x48x128xf32> to vector<48x128xf32>
    %233 = vector.shape_cast %230 : vector<48x128xf32> to vector<1x48x128xf32>
    tpu.vector_store %arg10[%c0_116, %c0_117, %c0_118], %233 {strides = array<i32>} : memref<1x48x128xf32, #tpu.memory_space<vmem>>, vector<1x48x128xf32>,
    return
  }
  func.func @transform_0(%arg0: i32) -> (i32, i32, i32) {
    %c0_i32 = arith.constant 0 : i32
    %c0_i32_0 = arith.constant 0 : i32
    %c0_i32_1 = arith.constant 0 : i32
    %c0_i32_2 = arith.constant 0 : i32
    return %c0_i32, %c0_i32_0, %c0_i32_1 : i32, i32, i32
  }
  func.func @transform_1(%arg0: i32) -> (i32, i32, i32) {
    %c0_i32 = arith.constant 0 : i32
    %c0_i32_0 = arith.constant 0 : i32
    %c0_i32_1 = arith.constant 0 : i32
    return %arg0, %c0_i32, %c0_i32_0 : i32, i32, i32
  }
  func.func @transform_2(%arg0: i32) -> (i32, i32, i32) {
    %c0_i32 = arith.constant 0 : i32
    %c0_i32_0 = arith.constant 0 : i32
    %c0_i32_1 = arith.constant 0 : i32
    return %arg0, %c0_i32, %c0_i32_0 : i32, i32, i32
  }
  func.func @transform_3(%arg0: i32) -> (i32, i32, i32) {
    %c0_i32 = arith.constant 0 : i32
    %c0_i32_0 = arith.constant 0 : i32
    %c0_i32_1 = arith.constant 0 : i32
    return %arg0, %c0_i32, %c0_i32_0 : i32, i32, i32
  }
  func.func @transform_4(%arg0: i32) -> (i32, i32, i32) {
    %c0_i32 = arith.constant 0 : i32
    %c0_i32_0 = arith.constant 0 : i32
    %c0_i32_1 = arith.constant 0 : i32
    return %arg0, %c0_i32, %c0_i32_0 : i32, i32, i32
  }
  func.func @transform_5(%arg0: i32) -> (i32, i32, i32, i32) {
    %c0_i32 = arith.constant 0 : i32
    %c0_i32_0 = arith.constant 0 : i32
    %c0_i32_1 = arith.constant 0 : i32
    %c0_i32_2 = arith.constant 0 : i32
    return %arg0, %c0_i32, %c0_i32_0, %c0_i32_1 : i32, i32, i32, i32
  }
  func.func @transform_6(%arg0: i32) -> (i32, i32, i32, i32) {
    %c0_i32 = arith.constant 0 : i32
    %c0_i32_0 = arith.constant 0 : i32
    %c0_i32_1 = arith.constant 0 : i32
    %c0_i32_2 = arith.constant 0 : i32
    return %arg0, %c0_i32, %c0_i32_0, %c0_i32_1 : i32, i32, i32, i32
  }
  func.func @transform_7(%arg0: i32) -> (i32, i32, i32) {
    %c0_i32 = arith.constant 0 : i32
    %c0_i32_0 = arith.constant 0 : i32
    %c0_i32_1 = arith.constant 0 : i32
    return %arg0, %c0_i32, %c0_i32_0 : i32, i32, i32
  }
  func.func @transform_8(%arg0: i32) -> (i32, i32, i32) {
    %c0_i32 = arith.constant 0 : i32
    %c0_i32_0 = arith.constant 0 : i32
    %c0_i32_1 = arith.constant 0 : i32
    return %arg0, %c0_i32, %c0_i32_0 : i32, i32, i32
  }
  func.func @transform_9(%arg0: i32) -> (i32, i32, i32) {
    %c0_i32 = arith.constant 0 : i32
    %c0_i32_0 = arith.constant 0 : i32
    %c0_i32_1 = arith.constant 0 : i32
    return %arg0, %c0_i32, %c0_i32_0 : i32, i32, i32
  }
}

module attributes {stable_mosaic.version = 11 : i64} {
  func.func @kernel(%arg0: i32, %arg1: memref<9x1x128xf32, #tpu.memory_space<vmem>>, %arg2: memref<48x128xf32, #tpu.memory_space<vmem>>, %arg3: memref<1x1x128xf32, #tpu.memory_space<vmem>>, %arg4: memref<64x144xbf16, #tpu.memory_space<vmem>>, %arg5: memref<64x144xbf16, #tpu.memory_space<vmem>>, %arg6: memref<64x1xf32, #tpu.memory_space<vmem>>, %arg7: memref<1x16x432xbf16, #tpu.memory_space<vmem>>, %arg8: memref<1x16x432xbf16, #tpu.memory_space<vmem>>, %arg9: memref<1x16x1xf32, #tpu.memory_space<vmem>>, %arg10: memref<1x48x144xbf16, #tpu.memory_space<vmem>>, %arg11: memref<1x48x1xf32, #tpu.memory_space<vmem>>, %arg12: memref<1x64x144xbf16, #tpu.memory_space<vmem>>, %arg13: memref<1x64x144xbf16, #tpu.memory_space<vmem>>, %arg14: memref<1x64x1xf32, #tpu.memory_space<vmem>>, %arg15: memref<1x2x144xbf16, #tpu.memory_space<vmem>>, %arg16: memref<1x2x1xf32, #tpu.memory_space<vmem>>, %arg17: memref<1x2x128xf32, #tpu.memory_space<vmem>>) attributes {dimension_semantics = [#tpu.dimension_semantics<parallel>], iteration_bounds = array<i64: 2>, scalar_prefetch = 0 : i64, scratch_operands = 0 : i64, tpu.core_type = #tpu.core_type<tc>, window_params = [{pipeline_mode = #tpu.pipeline_mode<synchronous>, transform_indices = @transform_0, window_bounds = array<i64: 9, 1, 128>}, {transform_indices = @transform_1, window_bounds = array<i64: 48, 128>}, {transform_indices = @transform_2, window_bounds = array<i64: 1, 1, 128>}, {pipeline_mode = #tpu.pipeline_mode<synchronous>, transform_indices = @transform_3, window_bounds = array<i64: 64, 144>}, {pipeline_mode = #tpu.pipeline_mode<synchronous>, transform_indices = @transform_4, window_bounds = array<i64: 64, 144>}, {pipeline_mode = #tpu.pipeline_mode<synchronous>, transform_indices = @transform_5, window_bounds = array<i64: 64, 1>}, {transform_indices = @transform_6, window_bounds = array<i64: 1, 16, 432>}, {transform_indices = @transform_7, window_bounds = array<i64: 1, 16, 432>}, {transform_indices = @transform_8, window_bounds = array<i64: 1, 16, 1>}, {transform_indices = @transform_9, window_bounds = array<i64: 1, 48, 144>}, {transform_indices = @transform_10, window_bounds = array<i64: 1, 48, 1>}, {transform_indices = @transform_11, window_bounds = array<i64: 1, 64, 144>}, {transform_indices = @transform_12, window_bounds = array<i64: 1, 64, 144>}, {transform_indices = @transform_13, window_bounds = array<i64: 1, 64, 1>}, {transform_indices = @transform_14, window_bounds = array<i64: 1, 2, 144>}, {transform_indices = @transform_15, window_bounds = array<i64: 1, 2, 1>}, {transform_indices = @transform_16, window_bounds = array<i64: 1, 2, 128>}]} {
    %c0 = arith.constant 0 : index
    %c0_0 = arith.constant 0 : index
    %c0_1 = arith.constant 0 : index
    %0 = vector.load %arg1[%c0, %c0_0, %c0_1] : memref<9x1x128xf32, #tpu.memory_space<vmem>>, vector<1x1x128xf32>
    %1 = vector.shape_cast %0 : vector<1x1x128xf32> to vector<1x128xf32>
    %c1 = arith.constant 1 : index
    %c0_2 = arith.constant 0 : index
    %c0_3 = arith.constant 0 : index
    %2 = vector.load %arg1[%c1, %c0_2, %c0_3] : memref<9x1x128xf32, #tpu.memory_space<vmem>>, vector<1x1x128xf32>
    %3 = vector.shape_cast %2 : vector<1x1x128xf32> to vector<1x128xf32>
    %c2 = arith.constant 2 : index
    %c0_4 = arith.constant 0 : index
    %c0_5 = arith.constant 0 : index
    %4 = vector.load %arg1[%c2, %c0_4, %c0_5] : memref<9x1x128xf32, #tpu.memory_space<vmem>>, vector<1x1x128xf32>
    %5 = vector.shape_cast %4 : vector<1x1x128xf32> to vector<1x128xf32>
    %c3 = arith.constant 3 : index
    %c0_6 = arith.constant 0 : index
    %c0_7 = arith.constant 0 : index
    %6 = vector.load %arg1[%c3, %c0_6, %c0_7] : memref<9x1x128xf32, #tpu.memory_space<vmem>>, vector<1x1x128xf32>
    %7 = vector.shape_cast %6 : vector<1x1x128xf32> to vector<1x128xf32>
    %c5 = arith.constant 5 : index
    %c0_8 = arith.constant 0 : index
    %c0_9 = arith.constant 0 : index
    %8 = vector.load %arg1[%c5, %c0_8, %c0_9] : memref<9x1x128xf32, #tpu.memory_space<vmem>>, vector<1x1x128xf32>
    %9 = vector.shape_cast %8 : vector<1x1x128xf32> to vector<1x128xf32>
    %c6 = arith.constant 6 : index
    %c0_10 = arith.constant 0 : index
    %c0_11 = arith.constant 0 : index
    %10 = vector.load %arg1[%c6, %c0_10, %c0_11] : memref<9x1x128xf32, #tpu.memory_space<vmem>>, vector<1x1x128xf32>
    %11 = vector.shape_cast %10 : vector<1x1x128xf32> to vector<1x128xf32>
    %c7 = arith.constant 7 : index
    %c0_12 = arith.constant 0 : index
    %c0_13 = arith.constant 0 : index
    %12 = vector.load %arg1[%c7, %c0_12, %c0_13] : memref<9x1x128xf32, #tpu.memory_space<vmem>>, vector<1x1x128xf32>
    %13 = vector.shape_cast %12 : vector<1x1x128xf32> to vector<1x128xf32>
    %c8 = arith.constant 8 : index
    %c0_14 = arith.constant 0 : index
    %c0_15 = arith.constant 0 : index
    %14 = vector.load %arg1[%c8, %c0_14, %c0_15] : memref<9x1x128xf32, #tpu.memory_space<vmem>>, vector<1x1x128xf32>
    %15 = vector.shape_cast %14 : vector<1x1x128xf32> to vector<1x128xf32>
    %c0_16 = arith.constant 0 : index
    %c0_17 = arith.constant 0 : index
    %16 = vector.load %arg2[%c0_16, %c0_17] : memref<48x128xf32, #tpu.memory_space<vmem>>, vector<48x128xf32>
    %c0_18 = arith.constant 0 : index
    %c0_19 = arith.constant 0 : index
    %17 = vector.load %arg4[%c0_18, %c0_19] : memref<64x144xbf16, #tpu.memory_space<vmem>>, vector<64x144xbf16>
    %c0_20 = arith.constant 0 : index
    %c0_21 = arith.constant 0 : index
    %18 = vector.load %arg5[%c0_20, %c0_21] : memref<64x144xbf16, #tpu.memory_space<vmem>>, vector<64x144xbf16>
    %c0_22 = arith.constant 0 : index
    %c0_23 = arith.constant 0 : index
    %19 = vector.load %arg6[%c0_22, %c0_23] : memref<64x1xf32, #tpu.memory_space<vmem>>, vector<64x1xf32>
    %20 = vector.extract_strided_slice %16 {offsets = [0, 0], sizes = [16, 128], strides = [1, 1]} : vector<48x128xf32> to vector<16x128xf32>
    %c9_i32 = arith.constant 9 : i32
    %21 = tpu.dynamic_rotate %20 by %c9_i32 dim 1 : vector<16x128xf32>, i32 -> vector<16x128xf32>
    %22 = vector.broadcast %1 : vector<1x128xf32> to vector<16x128xf32>
    %23 = arith.mulf %21, %22 : vector<16x128xf32>
    %c8_i32 = arith.constant 8 : i32
    %24 = tpu.dynamic_rotate %20 by %c8_i32 dim 1 : vector<16x128xf32>, i32 -> vector<16x128xf32>
    %25 = vector.broadcast %3 : vector<1x128xf32> to vector<16x128xf32>
    %26 = arith.mulf %24, %25 : vector<16x128xf32>
    %c7_i32 = arith.constant 7 : i32
    %27 = tpu.dynamic_rotate %20 by %c7_i32 dim 1 : vector<16x128xf32>, i32 -> vector<16x128xf32>
    %28 = vector.broadcast %5 : vector<1x128xf32> to vector<16x128xf32>
    %29 = arith.mulf %27, %28 : vector<16x128xf32>
    %c1_i32 = arith.constant 1 : i32
    %30 = tpu.dynamic_rotate %20 by %c1_i32 dim 1 : vector<16x128xf32>, i32 -> vector<16x128xf32>
    %31 = vector.broadcast %7 : vector<1x128xf32> to vector<16x128xf32>
    %32 = arith.mulf %30, %31 : vector<16x128xf32>
    %c127_i32 = arith.constant 127 : i32
    %33 = tpu.dynamic_rotate %20 by %c127_i32 dim 1 : vector<16x128xf32>, i32 -> vector<16x128xf32>
    %34 = vector.broadcast %9 : vector<1x128xf32> to vector<16x128xf32>
    %35 = arith.mulf %33, %34 : vector<16x128xf32>
    %c121_i32 = arith.constant 121 : i32
    %36 = tpu.dynamic_rotate %20 by %c121_i32 dim 1 : vector<16x128xf32>, i32 -> vector<16x128xf32>
    %37 = vector.broadcast %11 : vector<1x128xf32> to vector<16x128xf32>
    %38 = arith.mulf %36, %37 : vector<16x128xf32>
    %c120_i32 = arith.constant 120 : i32
    %39 = tpu.dynamic_rotate %20 by %c120_i32 dim 1 : vector<16x128xf32>, i32 -> vector<16x128xf32>
    %40 = vector.broadcast %13 : vector<1x128xf32> to vector<16x128xf32>
    %41 = arith.mulf %39, %40 : vector<16x128xf32>
    %c119_i32 = arith.constant 119 : i32
    %42 = tpu.dynamic_rotate %20 by %c119_i32 dim 1 : vector<16x128xf32>, i32 -> vector<16x128xf32>
    %43 = vector.broadcast %15 : vector<1x128xf32> to vector<16x128xf32>
    %44 = arith.mulf %42, %43 : vector<16x128xf32>
    %45 = tpu.concatenate %23, %26, %29, %32, %20, %35, %38, %41, %44 in 0 : vector<16x128xf32>, vector<16x128xf32>, vector<16x128xf32>, vector<16x128xf32>, vector<16x128xf32>, vector<16x128xf32>, vector<16x128xf32>, vector<16x128xf32>, vector<16x128xf32> -> vector<144x128xf32>
    %46 = arith.truncf %45 : vector<144x128xf32> to vector<144x128xbf16>
    %cst = arith.constant dense<0.000000e+00> : vector<64x128xf32>
    %47 = tpu.matmul %17, %46, %cst {dimension_numbers = #tpu.dot_dimension_numbers<[1], [0], [0], [1], [0, 0, 1, 1], [], []>} : vector<64x144xbf16>, vector<144x128xbf16>, vector<64x128xf32> -> vector<64x128xf32>
    %48 = vector.broadcast %19 : vector<64x1xf32> to vector<64x128xf32>
    %49 = arith.addf %47, %48 : vector<64x128xf32>
    %50 = vector.extract_strided_slice %16 {offsets = [16, 0], sizes = [16, 128], strides = [1, 1]} : vector<48x128xf32> to vector<16x128xf32>
    %c9_i32_24 = arith.constant 9 : i32
    %51 = tpu.dynamic_rotate %50 by %c9_i32_24 dim 1 : vector<16x128xf32>, i32 -> vector<16x128xf32>
    %52 = vector.broadcast %1 : vector<1x128xf32> to vector<16x128xf32>
    %53 = arith.mulf %51, %52 : vector<16x128xf32>
    %c8_i32_25 = arith.constant 8 : i32
    %54 = tpu.dynamic_rotate %50 by %c8_i32_25 dim 1 : vector<16x128xf32>, i32 -> vector<16x128xf32>
    %55 = vector.broadcast %3 : vector<1x128xf32> to vector<16x128xf32>
    %56 = arith.mulf %54, %55 : vector<16x128xf32>
    %c7_i32_26 = arith.constant 7 : i32
    %57 = tpu.dynamic_rotate %50 by %c7_i32_26 dim 1 : vector<16x128xf32>, i32 -> vector<16x128xf32>
    %58 = vector.broadcast %5 : vector<1x128xf32> to vector<16x128xf32>
    %59 = arith.mulf %57, %58 : vector<16x128xf32>
    %c1_i32_27 = arith.constant 1 : i32
    %60 = tpu.dynamic_rotate %50 by %c1_i32_27 dim 1 : vector<16x128xf32>, i32 -> vector<16x128xf32>
    %61 = vector.broadcast %7 : vector<1x128xf32> to vector<16x128xf32>
    %62 = arith.mulf %60, %61 : vector<16x128xf32>
    %c127_i32_28 = arith.constant 127 : i32
    %63 = tpu.dynamic_rotate %50 by %c127_i32_28 dim 1 : vector<16x128xf32>, i32 -> vector<16x128xf32>
    %64 = vector.broadcast %9 : vector<1x128xf32> to vector<16x128xf32>
    %65 = arith.mulf %63, %64 : vector<16x128xf32>
    %c121_i32_29 = arith.constant 121 : i32
    %66 = tpu.dynamic_rotate %50 by %c121_i32_29 dim 1 : vector<16x128xf32>, i32 -> vector<16x128xf32>
    %67 = vector.broadcast %11 : vector<1x128xf32> to vector<16x128xf32>
    %68 = arith.mulf %66, %67 : vector<16x128xf32>
    %c120_i32_30 = arith.constant 120 : i32
    %69 = tpu.dynamic_rotate %50 by %c120_i32_30 dim 1 : vector<16x128xf32>, i32 -> vector<16x128xf32>
    %70 = vector.broadcast %13 : vector<1x128xf32> to vector<16x128xf32>
    %71 = arith.mulf %69, %70 : vector<16x128xf32>
    %c119_i32_31 = arith.constant 119 : i32
    %72 = tpu.dynamic_rotate %50 by %c119_i32_31 dim 1 : vector<16x128xf32>, i32 -> vector<16x128xf32>
    %73 = vector.broadcast %15 : vector<1x128xf32> to vector<16x128xf32>
    %74 = arith.mulf %72, %73 : vector<16x128xf32>
    %75 = tpu.concatenate %53, %56, %59, %62, %50, %65, %68, %71, %74 in 0 : vector<16x128xf32>, vector<16x128xf32>, vector<16x128xf32>, vector<16x128xf32>, vector<16x128xf32>, vector<16x128xf32>, vector<16x128xf32>, vector<16x128xf32>, vector<16x128xf32> -> vector<144x128xf32>
    %76 = arith.truncf %75 : vector<144x128xf32> to vector<144x128xbf16>
    %cst_32 = arith.constant dense<0.000000e+00> : vector<64x128xf32>
    %77 = tpu.matmul %17, %76, %cst_32 {dimension_numbers = #tpu.dot_dimension_numbers<[1], [0], [0], [1], [0, 0, 1, 1], [], []>} : vector<64x144xbf16>, vector<144x128xbf16>, vector<64x128xf32> -> vector<64x128xf32>
    %78 = vector.broadcast %19 : vector<64x1xf32> to vector<64x128xf32>
    %79 = arith.addf %77, %78 : vector<64x128xf32>
    %80 = vector.extract_strided_slice %16 {offsets = [32, 0], sizes = [16, 128], strides = [1, 1]} : vector<48x128xf32> to vector<16x128xf32>
    %c9_i32_33 = arith.constant 9 : i32
    %81 = tpu.dynamic_rotate %80 by %c9_i32_33 dim 1 : vector<16x128xf32>, i32 -> vector<16x128xf32>
    %82 = vector.broadcast %1 : vector<1x128xf32> to vector<16x128xf32>
    %83 = arith.mulf %81, %82 : vector<16x128xf32>
    %c8_i32_34 = arith.constant 8 : i32
    %84 = tpu.dynamic_rotate %80 by %c8_i32_34 dim 1 : vector<16x128xf32>, i32 -> vector<16x128xf32>
    %85 = vector.broadcast %3 : vector<1x128xf32> to vector<16x128xf32>
    %86 = arith.mulf %84, %85 : vector<16x128xf32>
    %c7_i32_35 = arith.constant 7 : i32
    %87 = tpu.dynamic_rotate %80 by %c7_i32_35 dim 1 : vector<16x128xf32>, i32 -> vector<16x128xf32>
    %88 = vector.broadcast %5 : vector<1x128xf32> to vector<16x128xf32>
    %89 = arith.mulf %87, %88 : vector<16x128xf32>
    %c1_i32_36 = arith.constant 1 : i32
    %90 = tpu.dynamic_rotate %80 by %c1_i32_36 dim 1 : vector<16x128xf32>, i32 -> vector<16x128xf32>
    %91 = vector.broadcast %7 : vector<1x128xf32> to vector<16x128xf32>
    %92 = arith.mulf %90, %91 : vector<16x128xf32>
    %c127_i32_37 = arith.constant 127 : i32
    %93 = tpu.dynamic_rotate %80 by %c127_i32_37 dim 1 : vector<16x128xf32>, i32 -> vector<16x128xf32>
    %94 = vector.broadcast %9 : vector<1x128xf32> to vector<16x128xf32>
    %95 = arith.mulf %93, %94 : vector<16x128xf32>
    %c121_i32_38 = arith.constant 121 : i32
    %96 = tpu.dynamic_rotate %80 by %c121_i32_38 dim 1 : vector<16x128xf32>, i32 -> vector<16x128xf32>
    %97 = vector.broadcast %11 : vector<1x128xf32> to vector<16x128xf32>
    %98 = arith.mulf %96, %97 : vector<16x128xf32>
    %c120_i32_39 = arith.constant 120 : i32
    %99 = tpu.dynamic_rotate %80 by %c120_i32_39 dim 1 : vector<16x128xf32>, i32 -> vector<16x128xf32>
    %100 = vector.broadcast %13 : vector<1x128xf32> to vector<16x128xf32>
    %101 = arith.mulf %99, %100 : vector<16x128xf32>
    %c119_i32_40 = arith.constant 119 : i32
    %102 = tpu.dynamic_rotate %80 by %c119_i32_40 dim 1 : vector<16x128xf32>, i32 -> vector<16x128xf32>
    %103 = vector.broadcast %15 : vector<1x128xf32> to vector<16x128xf32>
    %104 = arith.mulf %102, %103 : vector<16x128xf32>
    %105 = tpu.concatenate %83, %86, %89, %92, %80, %95, %98, %101, %104 in 0 : vector<16x128xf32>, vector<16x128xf32>, vector<16x128xf32>, vector<16x128xf32>, vector<16x128xf32>, vector<16x128xf32>, vector<16x128xf32>, vector<16x128xf32>, vector<16x128xf32> -> vector<144x128xf32>
    %106 = arith.truncf %105 : vector<144x128xf32> to vector<144x128xbf16>
    %cst_41 = arith.constant dense<0.000000e+00> : vector<64x128xf32>
    %107 = tpu.matmul %17, %106, %cst_41 {dimension_numbers = #tpu.dot_dimension_numbers<[1], [0], [0], [1], [0, 0, 1, 1], [], []>} : vector<64x144xbf16>, vector<144x128xbf16>, vector<64x128xf32> -> vector<64x128xf32>
    %108 = vector.broadcast %19 : vector<64x1xf32> to vector<64x128xf32>
    %109 = arith.addf %107, %108 : vector<64x128xf32>
    %cst_42 = arith.constant 0.000000e+00 : f32
    %110 = vector.broadcast %cst_42 : f32 to vector<16x128xf32>
    %cst_43 = arith.constant 0.000000e+00 : f32
    %111 = vector.broadcast %cst_43 : f32 to vector<16x128xf32>
    %c9_i32_44 = arith.constant 9 : i32
    %112 = tpu.dynamic_rotate %110 by %c9_i32_44 dim 1 : vector<16x128xf32>, i32 -> vector<16x128xf32>
    %113 = vector.broadcast %1 : vector<1x128xf32> to vector<16x128xf32>
    %114 = arith.mulf %112, %113 : vector<16x128xf32>
    %c8_i32_45 = arith.constant 8 : i32
    %115 = tpu.dynamic_rotate %110 by %c8_i32_45 dim 1 : vector<16x128xf32>, i32 -> vector<16x128xf32>
    %116 = vector.broadcast %3 : vector<1x128xf32> to vector<16x128xf32>
    %117 = arith.mulf %115, %116 : vector<16x128xf32>
    %c7_i32_46 = arith.constant 7 : i32
    %118 = tpu.dynamic_rotate %110 by %c7_i32_46 dim 1 : vector<16x128xf32>, i32 -> vector<16x128xf32>
    %119 = vector.broadcast %5 : vector<1x128xf32> to vector<16x128xf32>
    %120 = arith.mulf %118, %119 : vector<16x128xf32>
    %c1_i32_47 = arith.constant 1 : i32
    %121 = tpu.dynamic_rotate %110 by %c1_i32_47 dim 1 : vector<16x128xf32>, i32 -> vector<16x128xf32>
    %122 = vector.broadcast %7 : vector<1x128xf32> to vector<16x128xf32>
    %123 = arith.mulf %121, %122 : vector<16x128xf32>
    %c127_i32_48 = arith.constant 127 : i32
    %124 = tpu.dynamic_rotate %110 by %c127_i32_48 dim 1 : vector<16x128xf32>, i32 -> vector<16x128xf32>
    %125 = vector.broadcast %9 : vector<1x128xf32> to vector<16x128xf32>
    %126 = arith.mulf %124, %125 : vector<16x128xf32>
    %c121_i32_49 = arith.constant 121 : i32
    %127 = tpu.dynamic_rotate %110 by %c121_i32_49 dim 1 : vector<16x128xf32>, i32 -> vector<16x128xf32>
    %128 = vector.broadcast %11 : vector<1x128xf32> to vector<16x128xf32>
    %129 = arith.mulf %127, %128 : vector<16x128xf32>
    %c120_i32_50 = arith.constant 120 : i32
    %130 = tpu.dynamic_rotate %110 by %c120_i32_50 dim 1 : vector<16x128xf32>, i32 -> vector<16x128xf32>
    %131 = vector.broadcast %13 : vector<1x128xf32> to vector<16x128xf32>
    %132 = arith.mulf %130, %131 : vector<16x128xf32>
    %c119_i32_51 = arith.constant 119 : i32
    %133 = tpu.dynamic_rotate %110 by %c119_i32_51 dim 1 : vector<16x128xf32>, i32 -> vector<16x128xf32>
    %134 = vector.broadcast %15 : vector<1x128xf32> to vector<16x128xf32>
    %135 = arith.mulf %133, %134 : vector<16x128xf32>
    %136 = tpu.concatenate %114, %117, %120, %123, %110, %126, %129, %132, %135 in 0 : vector<16x128xf32>, vector<16x128xf32>, vector<16x128xf32>, vector<16x128xf32>, vector<16x128xf32>, vector<16x128xf32>, vector<16x128xf32>, vector<16x128xf32>, vector<16x128xf32> -> vector<144x128xf32>
    %137 = arith.truncf %136 : vector<144x128xf32> to vector<144x128xbf16>
    %cst_52 = arith.constant dense<0.000000e+00> : vector<64x128xf32>
    %138 = tpu.matmul %18, %137, %cst_52 {dimension_numbers = #tpu.dot_dimension_numbers<[1], [0], [0], [1], [0, 0, 1, 1], [], []>} : vector<64x144xbf16>, vector<144x128xbf16>, vector<64x128xf32> -> vector<64x128xf32>
    %139 = arith.addf %49, %138 : vector<64x128xf32>
    %140 = vector.extract_strided_slice %139 {offsets = [0, 0], sizes = [16, 128], strides = [1, 1]} : vector<64x128xf32> to vector<16x128xf32>
    %cst_53 = arith.constant 5.000000e-01 : f32
    %141 = vector.broadcast %cst_53 : f32 to vector<16x128xf32>
    %142 = arith.mulf %141, %140 : vector<16x128xf32>
    %143 = math.tanh %142 : vector<16x128xf32>
    %cst_54 = arith.constant 1.000000e+00 : f32
    %144 = vector.broadcast %cst_54 : f32 to vector<16x128xf32>
    %145 = arith.addf %144, %143 : vector<16x128xf32>
    %cst_55 = arith.constant 5.000000e-01 : f32
    %146 = vector.broadcast %cst_55 : f32 to vector<16x128xf32>
    %147 = arith.mulf %146, %145 : vector<16x128xf32>
    %148 = vector.extract_strided_slice %139 {offsets = [16, 0], sizes = [16, 128], strides = [1, 1]} : vector<64x128xf32> to vector<16x128xf32>
    %cst_56 = arith.constant 5.000000e-01 : f32
    %149 = vector.broadcast %cst_56 : f32 to vector<16x128xf32>
    %150 = arith.mulf %149, %148 : vector<16x128xf32>
    %151 = math.tanh %150 : vector<16x128xf32>
    %cst_57 = arith.constant 1.000000e+00 : f32
    %152 = vector.broadcast %cst_57 : f32 to vector<16x128xf32>
    %153 = arith.addf %152, %151 : vector<16x128xf32>
    %cst_58 = arith.constant 5.000000e-01 : f32
    %154 = vector.broadcast %cst_58 : f32 to vector<16x128xf32>
    %155 = arith.mulf %154, %153 : vector<16x128xf32>
    %156 = vector.extract_strided_slice %139 {offsets = [32, 0], sizes = [16, 128], strides = [1, 1]} : vector<64x128xf32> to vector<16x128xf32>
    %157 = math.tanh %156 : vector<16x128xf32>
    %158 = vector.extract_strided_slice %139 {offsets = [48, 0], sizes = [16, 128], strides = [1, 1]} : vector<64x128xf32> to vector<16x128xf32>
    %cst_59 = arith.constant 5.000000e-01 : f32
    %159 = vector.broadcast %cst_59 : f32 to vector<16x128xf32>
    %160 = arith.mulf %159, %158 : vector<16x128xf32>
    %161 = math.tanh %160 : vector<16x128xf32>
    %cst_60 = arith.constant 1.000000e+00 : f32
    %162 = vector.broadcast %cst_60 : f32 to vector<16x128xf32>
    %163 = arith.addf %162, %161 : vector<16x128xf32>
    %cst_61 = arith.constant 5.000000e-01 : f32
    %164 = vector.broadcast %cst_61 : f32 to vector<16x128xf32>
    %165 = arith.mulf %164, %163 : vector<16x128xf32>
    %166 = arith.mulf %155, %111 : vector<16x128xf32>
    %167 = arith.mulf %147, %157 : vector<16x128xf32>
    %168 = arith.addf %166, %167 : vector<16x128xf32>
    %169 = math.tanh %168 : vector<16x128xf32>
    %170 = arith.mulf %165, %169 : vector<16x128xf32>
    %c9_i32_62 = arith.constant 9 : i32
    %171 = tpu.dynamic_rotate %170 by %c9_i32_62 dim 1 : vector<16x128xf32>, i32 -> vector<16x128xf32>
    %172 = vector.broadcast %1 : vector<1x128xf32> to vector<16x128xf32>
    %173 = arith.mulf %171, %172 : vector<16x128xf32>
    %c8_i32_63 = arith.constant 8 : i32
    %174 = tpu.dynamic_rotate %170 by %c8_i32_63 dim 1 : vector<16x128xf32>, i32 -> vector<16x128xf32>
    %175 = vector.broadcast %3 : vector<1x128xf32> to vector<16x128xf32>
    %176 = arith.mulf %174, %175 : vector<16x128xf32>
    %c7_i32_64 = arith.constant 7 : i32
    %177 = tpu.dynamic_rotate %170 by %c7_i32_64 dim 1 : vector<16x128xf32>, i32 -> vector<16x128xf32>
    %178 = vector.broadcast %5 : vector<1x128xf32> to vector<16x128xf32>
    %179 = arith.mulf %177, %178 : vector<16x128xf32>
    %c1_i32_65 = arith.constant 1 : i32
    %180 = tpu.dynamic_rotate %170 by %c1_i32_65 dim 1 : vector<16x128xf32>, i32 -> vector<16x128xf32>
    %181 = vector.broadcast %7 : vector<1x128xf32> to vector<16x128xf32>
    %182 = arith.mulf %180, %181 : vector<16x128xf32>
    %c127_i32_66 = arith.constant 127 : i32
    %183 = tpu.dynamic_rotate %170 by %c127_i32_66 dim 1 : vector<16x128xf32>, i32 -> vector<16x128xf32>
    %184 = vector.broadcast %9 : vector<1x128xf32> to vector<16x128xf32>
    %185 = arith.mulf %183, %184 : vector<16x128xf32>
    %c121_i32_67 = arith.constant 121 : i32
    %186 = tpu.dynamic_rotate %170 by %c121_i32_67 dim 1 : vector<16x128xf32>, i32 -> vector<16x128xf32>
    %187 = vector.broadcast %11 : vector<1x128xf32> to vector<16x128xf32>
    %188 = arith.mulf %186, %187 : vector<16x128xf32>
    %c120_i32_68 = arith.constant 120 : i32
    %189 = tpu.dynamic_rotate %170 by %c120_i32_68 dim 1 : vector<16x128xf32>, i32 -> vector<16x128xf32>
    %190 = vector.broadcast %13 : vector<1x128xf32> to vector<16x128xf32>
    %191 = arith.mulf %189, %190 : vector<16x128xf32>
    %c119_i32_69 = arith.constant 119 : i32
    %192 = tpu.dynamic_rotate %170 by %c119_i32_69 dim 1 : vector<16x128xf32>, i32 -> vector<16x128xf32>
    %193 = vector.broadcast %15 : vector<1x128xf32> to vector<16x128xf32>
    %194 = arith.mulf %192, %193 : vector<16x128xf32>
    %195 = tpu.concatenate %173, %176, %179, %182, %170, %185, %188, %191, %194 in 0 : vector<16x128xf32>, vector<16x128xf32>, vector<16x128xf32>, vector<16x128xf32>, vector<16x128xf32>, vector<16x128xf32>, vector<16x128xf32>, vector<16x128xf32>, vector<16x128xf32> -> vector<144x128xf32>
    %196 = arith.truncf %195 : vector<144x128xf32> to vector<144x128xbf16>
    %cst_70 = arith.constant dense<0.000000e+00> : vector<64x128xf32>
    %197 = tpu.matmul %18, %196, %cst_70 {dimension_numbers = #tpu.dot_dimension_numbers<[1], [0], [0], [1], [0, 0, 1, 1], [], []>} : vector<64x144xbf16>, vector<144x128xbf16>, vector<64x128xf32> -> vector<64x128xf32>
    %198 = arith.addf %79, %197 : vector<64x128xf32>
    %199 = vector.extract_strided_slice %198 {offsets = [0, 0], sizes = [16, 128], strides = [1, 1]} : vector<64x128xf32> to vector<16x128xf32>
    %cst_71 = arith.constant 5.000000e-01 : f32
    %200 = vector.broadcast %cst_71 : f32 to vector<16x128xf32>
    %201 = arith.mulf %200, %199 : vector<16x128xf32>
    %202 = math.tanh %201 : vector<16x128xf32>
    %cst_72 = arith.constant 1.000000e+00 : f32
    %203 = vector.broadcast %cst_72 : f32 to vector<16x128xf32>
    %204 = arith.addf %203, %202 : vector<16x128xf32>
    %cst_73 = arith.constant 5.000000e-01 : f32
    %205 = vector.broadcast %cst_73 : f32 to vector<16x128xf32>
    %206 = arith.mulf %205, %204 : vector<16x128xf32>
    %207 = vector.extract_strided_slice %198 {offsets = [16, 0], sizes = [16, 128], strides = [1, 1]} : vector<64x128xf32> to vector<16x128xf32>
    %cst_74 = arith.constant 5.000000e-01 : f32
    %208 = vector.broadcast %cst_74 : f32 to vector<16x128xf32>
    %209 = arith.mulf %208, %207 : vector<16x128xf32>
    %210 = math.tanh %209 : vector<16x128xf32>
    %cst_75 = arith.constant 1.000000e+00 : f32
    %211 = vector.broadcast %cst_75 : f32 to vector<16x128xf32>
    %212 = arith.addf %211, %210 : vector<16x128xf32>
    %cst_76 = arith.constant 5.000000e-01 : f32
    %213 = vector.broadcast %cst_76 : f32 to vector<16x128xf32>
    %214 = arith.mulf %213, %212 : vector<16x128xf32>
    %215 = vector.extract_strided_slice %198 {offsets = [32, 0], sizes = [16, 128], strides = [1, 1]} : vector<64x128xf32> to vector<16x128xf32>
    %216 = math.tanh %215 : vector<16x128xf32>
    %217 = vector.extract_strided_slice %198 {offsets = [48, 0], sizes = [16, 128], strides = [1, 1]} : vector<64x128xf32> to vector<16x128xf32>
    %cst_77 = arith.constant 5.000000e-01 : f32
    %218 = vector.broadcast %cst_77 : f32 to vector<16x128xf32>
    %219 = arith.mulf %218, %217 : vector<16x128xf32>
    %220 = math.tanh %219 : vector<16x128xf32>
    %cst_78 = arith.constant 1.000000e+00 : f32
    %221 = vector.broadcast %cst_78 : f32 to vector<16x128xf32>
    %222 = arith.addf %221, %220 : vector<16x128xf32>
    %cst_79 = arith.constant 5.000000e-01 : f32
    %223 = vector.broadcast %cst_79 : f32 to vector<16x128xf32>
    %224 = arith.mulf %223, %222 : vector<16x128xf32>
    %225 = arith.mulf %214, %168 : vector<16x128xf32>
    %226 = arith.mulf %206, %216 : vector<16x128xf32>
    %227 = arith.addf %225, %226 : vector<16x128xf32>
    %228 = math.tanh %227 : vector<16x128xf32>
    %229 = arith.mulf %224, %228 : vector<16x128xf32>
    %c9_i32_80 = arith.constant 9 : i32
    %230 = tpu.dynamic_rotate %229 by %c9_i32_80 dim 1 : vector<16x128xf32>, i32 -> vector<16x128xf32>
    %231 = vector.broadcast %1 : vector<1x128xf32> to vector<16x128xf32>
    %232 = arith.mulf %230, %231 : vector<16x128xf32>
    %c8_i32_81 = arith.constant 8 : i32
    %233 = tpu.dynamic_rotate %229 by %c8_i32_81 dim 1 : vector<16x128xf32>, i32 -> vector<16x128xf32>
    %234 = vector.broadcast %3 : vector<1x128xf32> to vector<16x128xf32>
    %235 = arith.mulf %233, %234 : vector<16x128xf32>
    %c7_i32_82 = arith.constant 7 : i32
    %236 = tpu.dynamic_rotate %229 by %c7_i32_82 dim 1 : vector<16x128xf32>, i32 -> vector<16x128xf32>
    %237 = vector.broadcast %5 : vector<1x128xf32> to vector<16x128xf32>
    %238 = arith.mulf %236, %237 : vector<16x128xf32>
    %c1_i32_83 = arith.constant 1 : i32
    %239 = tpu.dynamic_rotate %229 by %c1_i32_83 dim 1 : vector<16x128xf32>, i32 -> vector<16x128xf32>
    %240 = vector.broadcast %7 : vector<1x128xf32> to vector<16x128xf32>
    %241 = arith.mulf %239, %240 : vector<16x128xf32>
    %c127_i32_84 = arith.constant 127 : i32
    %242 = tpu.dynamic_rotate %229 by %c127_i32_84 dim 1 : vector<16x128xf32>, i32 -> vector<16x128xf32>
    %243 = vector.broadcast %9 : vector<1x128xf32> to vector<16x128xf32>
    %244 = arith.mulf %242, %243 : vector<16x128xf32>
    %c121_i32_85 = arith.constant 121 : i32
    %245 = tpu.dynamic_rotate %229 by %c121_i32_85 dim 1 : vector<16x128xf32>, i32 -> vector<16x128xf32>
    %246 = vector.broadcast %11 : vector<1x128xf32> to vector<16x128xf32>
    %247 = arith.mulf %245, %246 : vector<16x128xf32>
    %c120_i32_86 = arith.constant 120 : i32
    %248 = tpu.dynamic_rotate %229 by %c120_i32_86 dim 1 : vector<16x128xf32>, i32 -> vector<16x128xf32>
    %249 = vector.broadcast %13 : vector<1x128xf32> to vector<16x128xf32>
    %250 = arith.mulf %248, %249 : vector<16x128xf32>
    %c119_i32_87 = arith.constant 119 : i32
    %251 = tpu.dynamic_rotate %229 by %c119_i32_87 dim 1 : vector<16x128xf32>, i32 -> vector<16x128xf32>
    %252 = vector.broadcast %15 : vector<1x128xf32> to vector<16x128xf32>
    %253 = arith.mulf %251, %252 : vector<16x128xf32>
    %254 = tpu.concatenate %232, %235, %238, %241, %229, %244, %247, %250, %253 in 0 : vector<16x128xf32>, vector<16x128xf32>, vector<16x128xf32>, vector<16x128xf32>, vector<16x128xf32>, vector<16x128xf32>, vector<16x128xf32>, vector<16x128xf32>, vector<16x128xf32> -> vector<144x128xf32>
    %255 = arith.truncf %254 : vector<144x128xf32> to vector<144x128xbf16>
    %cst_88 = arith.constant dense<0.000000e+00> : vector<64x128xf32>
    %256 = tpu.matmul %18, %255, %cst_88 {dimension_numbers = #tpu.dot_dimension_numbers<[1], [0], [0], [1], [0, 0, 1, 1], [], []>} : vector<64x144xbf16>, vector<144x128xbf16>, vector<64x128xf32> -> vector<64x128xf32>
    %257 = arith.addf %109, %256 : vector<64x128xf32>
    %258 = vector.extract_strided_slice %257 {offsets = [0, 0], sizes = [16, 128], strides = [1, 1]} : vector<64x128xf32> to vector<16x128xf32>
    %cst_89 = arith.constant 5.000000e-01 : f32
    %259 = vector.broadcast %cst_89 : f32 to vector<16x128xf32>
    %260 = arith.mulf %259, %258 : vector<16x128xf32>
    %261 = math.tanh %260 : vector<16x128xf32>
    %cst_90 = arith.constant 1.000000e+00 : f32
    %262 = vector.broadcast %cst_90 : f32 to vector<16x128xf32>
    %263 = arith.addf %262, %261 : vector<16x128xf32>
    %cst_91 = arith.constant 5.000000e-01 : f32
    %264 = vector.broadcast %cst_91 : f32 to vector<16x128xf32>
    %265 = arith.mulf %264, %263 : vector<16x128xf32>
    %266 = vector.extract_strided_slice %257 {offsets = [16, 0], sizes = [16, 128], strides = [1, 1]} : vector<64x128xf32> to vector<16x128xf32>
    %cst_92 = arith.constant 5.000000e-01 : f32
    %267 = vector.broadcast %cst_92 : f32 to vector<16x128xf32>
    %268 = arith.mulf %267, %266 : vector<16x128xf32>
    %269 = math.tanh %268 : vector<16x128xf32>
    %cst_93 = arith.constant 1.000000e+00 : f32
    %270 = vector.broadcast %cst_93 : f32 to vector<16x128xf32>
    %271 = arith.addf %270, %269 : vector<16x128xf32>
    %cst_94 = arith.constant 5.000000e-01 : f32
    %272 = vector.broadcast %cst_94 : f32 to vector<16x128xf32>
    %273 = arith.mulf %272, %271 : vector<16x128xf32>
    %274 = vector.extract_strided_slice %257 {offsets = [32, 0], sizes = [16, 128], strides = [1, 1]} : vector<64x128xf32> to vector<16x128xf32>
    %275 = math.tanh %274 : vector<16x128xf32>
    %276 = vector.extract_strided_slice %257 {offsets = [48, 0], sizes = [16, 128], strides = [1, 1]} : vector<64x128xf32> to vector<16x128xf32>
    %cst_95 = arith.constant 5.000000e-01 : f32
    %277 = vector.broadcast %cst_95 : f32 to vector<16x128xf32>
    %278 = arith.mulf %277, %276 : vector<16x128xf32>
    %279 = math.tanh %278 : vector<16x128xf32>
    %cst_96 = arith.constant 1.000000e+00 : f32
    %280 = vector.broadcast %cst_96 : f32 to vector<16x128xf32>
    %281 = arith.addf %280, %279 : vector<16x128xf32>
    %cst_97 = arith.constant 5.000000e-01 : f32
    %282 = vector.broadcast %cst_97 : f32 to vector<16x128xf32>
    %283 = arith.mulf %282, %281 : vector<16x128xf32>
    %284 = arith.mulf %273, %227 : vector<16x128xf32>
    %285 = arith.mulf %265, %275 : vector<16x128xf32>
    %286 = arith.addf %284, %285 : vector<16x128xf32>
    %287 = math.tanh %286 : vector<16x128xf32>
    %288 = arith.mulf %283, %287 : vector<16x128xf32>
    %289 = tpu.concatenate %170, %229, %288 in 0 : vector<16x128xf32>, vector<16x128xf32>, vector<16x128xf32> -> vector<48x128xf32>
    %c0_98 = arith.constant 0 : index
    %c0_99 = arith.constant 0 : index
    %c0_100 = arith.constant 0 : index
    %290 = vector.load %arg7[%c0_98, %c0_99, %c0_100] : memref<1x16x432xbf16, #tpu.memory_space<vmem>>, vector<1x16x432xbf16>
    %291 = vector.shape_cast %290 : vector<1x16x432xbf16> to vector<16x432xbf16>
    %c9_i32_101 = arith.constant 9 : i32
    %292 = tpu.dynamic_rotate %16 by %c9_i32_101 dim 1 : vector<48x128xf32>, i32 -> vector<48x128xf32>
    %293 = vector.broadcast %1 : vector<1x128xf32> to vector<48x128xf32>
    %294 = arith.mulf %292, %293 : vector<48x128xf32>
    %c8_i32_102 = arith.constant 8 : i32
    %295 = tpu.dynamic_rotate %16 by %c8_i32_102 dim 1 : vector<48x128xf32>, i32 -> vector<48x128xf32>
    %296 = vector.broadcast %3 : vector<1x128xf32> to vector<48x128xf32>
    %297 = arith.mulf %295, %296 : vector<48x128xf32>
    %c7_i32_103 = arith.constant 7 : i32
    %298 = tpu.dynamic_rotate %16 by %c7_i32_103 dim 1 : vector<48x128xf32>, i32 -> vector<48x128xf32>
    %299 = vector.broadcast %5 : vector<1x128xf32> to vector<48x128xf32>
    %300 = arith.mulf %298, %299 : vector<48x128xf32>
    %c1_i32_104 = arith.constant 1 : i32
    %301 = tpu.dynamic_rotate %16 by %c1_i32_104 dim 1 : vector<48x128xf32>, i32 -> vector<48x128xf32>
    %302 = vector.broadcast %7 : vector<1x128xf32> to vector<48x128xf32>
    %303 = arith.mulf %301, %302 : vector<48x128xf32>
    %c127_i32_105 = arith.constant 127 : i32
    %304 = tpu.dynamic_rotate %16 by %c127_i32_105 dim 1 : vector<48x128xf32>, i32 -> vector<48x128xf32>
    %305 = vector.broadcast %9 : vector<1x128xf32> to vector<48x128xf32>
    %306 = arith.mulf %304, %305 : vector<48x128xf32>
    %c121_i32_106 = arith.constant 121 : i32
    %307 = tpu.dynamic_rotate %16 by %c121_i32_106 dim 1 : vector<48x128xf32>, i32 -> vector<48x128xf32>
    %308 = vector.broadcast %11 : vector<1x128xf32> to vector<48x128xf32>
    %309 = arith.mulf %307, %308 : vector<48x128xf32>
    %c120_i32_107 = arith.constant 120 : i32
    %310 = tpu.dynamic_rotate %16 by %c120_i32_107 dim 1 : vector<48x128xf32>, i32 -> vector<48x128xf32>
    %311 = vector.broadcast %13 : vector<1x128xf32> to vector<48x128xf32>
    %312 = arith.mulf %310, %311 : vector<48x128xf32>
    %c119_i32_108 = arith.constant 119 : i32
    %313 = tpu.dynamic_rotate %16 by %c119_i32_108 dim 1 : vector<48x128xf32>, i32 -> vector<48x128xf32>
    %314 = vector.broadcast %15 : vector<1x128xf32> to vector<48x128xf32>
    %315 = arith.mulf %313, %314 : vector<48x128xf32>
    %316 = tpu.concatenate %294, %297, %300, %303, %16, %306, %309, %312, %315 in 0 : vector<48x128xf32>, vector<48x128xf32>, vector<48x128xf32>, vector<48x128xf32>, vector<48x128xf32>, vector<48x128xf32>, vector<48x128xf32>, vector<48x128xf32>, vector<48x128xf32> -> vector<432x128xf32>
    %317 = arith.truncf %316 : vector<432x128xf32> to vector<432x128xbf16>
    %cst_109 = arith.constant dense<0.000000e+00> : vector<16x128xf32>
    %318 = tpu.matmul %291, %317, %cst_109 {dimension_numbers = #tpu.dot_dimension_numbers<[1], [0], [0], [1], [0, 0, 1, 1], [], []>} : vector<16x432xbf16>, vector<432x128xbf16>, vector<16x128xf32> -> vector<16x128xf32>
    %c0_110 = arith.constant 0 : index
    %c0_111 = arith.constant 0 : index
    %c0_112 = arith.constant 0 : index
    %319 = vector.load %arg8[%c0_110, %c0_111, %c0_112] : memref<1x16x432xbf16, #tpu.memory_space<vmem>>, vector<1x16x432xbf16>
    %320 = vector.shape_cast %319 : vector<1x16x432xbf16> to vector<16x432xbf16>
    %c9_i32_113 = arith.constant 9 : i32
    %321 = tpu.dynamic_rotate %289 by %c9_i32_113 dim 1 : vector<48x128xf32>, i32 -> vector<48x128xf32>
    %322 = vector.broadcast %1 : vector<1x128xf32> to vector<48x128xf32>
    %323 = arith.mulf %321, %322 : vector<48x128xf32>
    %c8_i32_114 = arith.constant 8 : i32
    %324 = tpu.dynamic_rotate %289 by %c8_i32_114 dim 1 : vector<48x128xf32>, i32 -> vector<48x128xf32>
    %325 = vector.broadcast %3 : vector<1x128xf32> to vector<48x128xf32>
    %326 = arith.mulf %324, %325 : vector<48x128xf32>
    %c7_i32_115 = arith.constant 7 : i32
    %327 = tpu.dynamic_rotate %289 by %c7_i32_115 dim 1 : vector<48x128xf32>, i32 -> vector<48x128xf32>
    %328 = vector.broadcast %5 : vector<1x128xf32> to vector<48x128xf32>
    %329 = arith.mulf %327, %328 : vector<48x128xf32>
    %c1_i32_116 = arith.constant 1 : i32
    %330 = tpu.dynamic_rotate %289 by %c1_i32_116 dim 1 : vector<48x128xf32>, i32 -> vector<48x128xf32>
    %331 = vector.broadcast %7 : vector<1x128xf32> to vector<48x128xf32>
    %332 = arith.mulf %330, %331 : vector<48x128xf32>
    %c127_i32_117 = arith.constant 127 : i32
    %333 = tpu.dynamic_rotate %289 by %c127_i32_117 dim 1 : vector<48x128xf32>, i32 -> vector<48x128xf32>
    %334 = vector.broadcast %9 : vector<1x128xf32> to vector<48x128xf32>
    %335 = arith.mulf %333, %334 : vector<48x128xf32>
    %c121_i32_118 = arith.constant 121 : i32
    %336 = tpu.dynamic_rotate %289 by %c121_i32_118 dim 1 : vector<48x128xf32>, i32 -> vector<48x128xf32>
    %337 = vector.broadcast %11 : vector<1x128xf32> to vector<48x128xf32>
    %338 = arith.mulf %336, %337 : vector<48x128xf32>
    %c120_i32_119 = arith.constant 120 : i32
    %339 = tpu.dynamic_rotate %289 by %c120_i32_119 dim 1 : vector<48x128xf32>, i32 -> vector<48x128xf32>
    %340 = vector.broadcast %13 : vector<1x128xf32> to vector<48x128xf32>
    %341 = arith.mulf %339, %340 : vector<48x128xf32>
    %c119_i32_120 = arith.constant 119 : i32
    %342 = tpu.dynamic_rotate %289 by %c119_i32_120 dim 1 : vector<48x128xf32>, i32 -> vector<48x128xf32>
    %343 = vector.broadcast %15 : vector<1x128xf32> to vector<48x128xf32>
    %344 = arith.mulf %342, %343 : vector<48x128xf32>
    %345 = tpu.concatenate %323, %326, %329, %332, %289, %335, %338, %341, %344 in 0 : vector<48x128xf32>, vector<48x128xf32>, vector<48x128xf32>, vector<48x128xf32>, vector<48x128xf32>, vector<48x128xf32>, vector<48x128xf32>, vector<48x128xf32>, vector<48x128xf32> -> vector<432x128xf32>
    %346 = arith.truncf %345 : vector<432x128xf32> to vector<432x128xbf16>
    %cst_121 = arith.constant dense<0.000000e+00> : vector<16x128xf32>
    %347 = tpu.matmul %320, %346, %cst_121 {dimension_numbers = #tpu.dot_dimension_numbers<[1], [0], [0], [1], [0, 0, 1, 1], [], []>} : vector<16x432xbf16>, vector<432x128xbf16>, vector<16x128xf32> -> vector<16x128xf32>
    %348 = arith.addf %318, %347 : vector<16x128xf32>
    %c0_122 = arith.constant 0 : index
    %c0_123 = arith.constant 0 : index
    %c0_124 = arith.constant 0 : index
    %349 = vector.load %arg9[%c0_122, %c0_123, %c0_124] : memref<1x16x1xf32, #tpu.memory_space<vmem>>, vector<1x16x1xf32>
    %350 = vector.shape_cast %349 : vector<1x16x1xf32> to vector<16x1xf32>
    %351 = vector.broadcast %350 : vector<16x1xf32> to vector<16x128xf32>
    %352 = arith.addf %348, %351 : vector<16x128xf32>
    %cst_125 = arith.constant 0.000000e+00 : f32
    %353 = vector.broadcast %cst_125 : f32 to vector<16x128xf32>
    %354 = arith.maximumf %352, %353 : vector<16x128xf32>
    %c0_126 = arith.constant 0 : index
    %c0_127 = arith.constant 0 : index
    %c0_128 = arith.constant 0 : index
    %355 = vector.load %arg10[%c0_126, %c0_127, %c0_128] : memref<1x48x144xbf16, #tpu.memory_space<vmem>>, vector<1x48x144xbf16>
    %356 = vector.shape_cast %355 : vector<1x48x144xbf16> to vector<48x144xbf16>
    %c0_129 = arith.constant 0 : index
    %c0_130 = arith.constant 0 : index
    %c0_131 = arith.constant 0 : index
    %357 = vector.load %arg11[%c0_129, %c0_130, %c0_131] : memref<1x48x1xf32, #tpu.memory_space<vmem>>, vector<1x48x1xf32>
    %358 = vector.shape_cast %357 : vector<1x48x1xf32> to vector<48x1xf32>
    %c9_i32_132 = arith.constant 9 : i32
    %359 = tpu.dynamic_rotate %354 by %c9_i32_132 dim 1 : vector<16x128xf32>, i32 -> vector<16x128xf32>
    %360 = vector.broadcast %1 : vector<1x128xf32> to vector<16x128xf32>
    %361 = arith.mulf %359, %360 : vector<16x128xf32>
    %c8_i32_133 = arith.constant 8 : i32
    %362 = tpu.dynamic_rotate %354 by %c8_i32_133 dim 1 : vector<16x128xf32>, i32 -> vector<16x128xf32>
    %363 = vector.broadcast %3 : vector<1x128xf32> to vector<16x128xf32>
    %364 = arith.mulf %362, %363 : vector<16x128xf32>
    %c7_i32_134 = arith.constant 7 : i32
    %365 = tpu.dynamic_rotate %354 by %c7_i32_134 dim 1 : vector<16x128xf32>, i32 -> vector<16x128xf32>
    %366 = vector.broadcast %5 : vector<1x128xf32> to vector<16x128xf32>
    %367 = arith.mulf %365, %366 : vector<16x128xf32>
    %c1_i32_135 = arith.constant 1 : i32
    %368 = tpu.dynamic_rotate %354 by %c1_i32_135 dim 1 : vector<16x128xf32>, i32 -> vector<16x128xf32>
    %369 = vector.broadcast %7 : vector<1x128xf32> to vector<16x128xf32>
    %370 = arith.mulf %368, %369 : vector<16x128xf32>
    %c127_i32_136 = arith.constant 127 : i32
    %371 = tpu.dynamic_rotate %354 by %c127_i32_136 dim 1 : vector<16x128xf32>, i32 -> vector<16x128xf32>
    %372 = vector.broadcast %9 : vector<1x128xf32> to vector<16x128xf32>
    %373 = arith.mulf %371, %372 : vector<16x128xf32>
    %c121_i32_137 = arith.constant 121 : i32
    %374 = tpu.dynamic_rotate %354 by %c121_i32_137 dim 1 : vector<16x128xf32>, i32 -> vector<16x128xf32>
    %375 = vector.broadcast %11 : vector<1x128xf32> to vector<16x128xf32>
    %376 = arith.mulf %374, %375 : vector<16x128xf32>
    %c120_i32_138 = arith.constant 120 : i32
    %377 = tpu.dynamic_rotate %354 by %c120_i32_138 dim 1 : vector<16x128xf32>, i32 -> vector<16x128xf32>
    %378 = vector.broadcast %13 : vector<1x128xf32> to vector<16x128xf32>
    %379 = arith.mulf %377, %378 : vector<16x128xf32>
    %c119_i32_139 = arith.constant 119 : i32
    %380 = tpu.dynamic_rotate %354 by %c119_i32_139 dim 1 : vector<16x128xf32>, i32 -> vector<16x128xf32>
    %381 = vector.broadcast %15 : vector<1x128xf32> to vector<16x128xf32>
    %382 = arith.mulf %380, %381 : vector<16x128xf32>
    %383 = tpu.concatenate %361, %364, %367, %370, %354, %373, %376, %379, %382 in 0 : vector<16x128xf32>, vector<16x128xf32>, vector<16x128xf32>, vector<16x128xf32>, vector<16x128xf32>, vector<16x128xf32>, vector<16x128xf32>, vector<16x128xf32>, vector<16x128xf32> -> vector<144x128xf32>
    %384 = arith.truncf %383 : vector<144x128xf32> to vector<144x128xbf16>
    %cst_140 = arith.constant dense<0.000000e+00> : vector<48x128xf32>
    %385 = tpu.matmul %356, %384, %cst_140 {dimension_numbers = #tpu.dot_dimension_numbers<[1], [0], [0], [1], [0, 0, 1, 1], [], []>} : vector<48x144xbf16>, vector<144x128xbf16>, vector<48x128xf32> -> vector<48x128xf32>
    %386 = vector.broadcast %358 : vector<48x1xf32> to vector<48x128xf32>
    %387 = arith.addf %385, %386 : vector<48x128xf32>
    %cst_141 = arith.constant 1.000000e+00 : f32
    %388 = vector.broadcast %cst_141 : f32 to vector<48x128xf32>
    %389 = arith.addf %388, %387 : vector<48x128xf32>
    %390 = arith.mulf %16, %389 : vector<48x128xf32>
    %c0_142 = arith.constant 0 : index
    %c0_143 = arith.constant 0 : index
    %c0_144 = arith.constant 0 : index
    %391 = vector.load %arg12[%c0_142, %c0_143, %c0_144] : memref<1x64x144xbf16, #tpu.memory_space<vmem>>, vector<1x64x144xbf16>
    %392 = vector.shape_cast %391 : vector<1x64x144xbf16> to vector<64x144xbf16>
    %c0_145 = arith.constant 0 : index
    %c0_146 = arith.constant 0 : index
    %c0_147 = arith.constant 0 : index
    %393 = vector.load %arg13[%c0_145, %c0_146, %c0_147] : memref<1x64x144xbf16, #tpu.memory_space<vmem>>, vector<1x64x144xbf16>
    %394 = vector.shape_cast %393 : vector<1x64x144xbf16> to vector<64x144xbf16>
    %c0_148 = arith.constant 0 : index
    %c0_149 = arith.constant 0 : index
    %c0_150 = arith.constant 0 : index
    %395 = vector.load %arg14[%c0_148, %c0_149, %c0_150] : memref<1x64x1xf32, #tpu.memory_space<vmem>>, vector<1x64x1xf32>
    %396 = vector.shape_cast %395 : vector<1x64x1xf32> to vector<64x1xf32>
    %397 = vector.extract_strided_slice %390 {offsets = [0, 0], sizes = [16, 128], strides = [1, 1]} : vector<48x128xf32> to vector<16x128xf32>
    %c9_i32_151 = arith.constant 9 : i32
    %398 = tpu.dynamic_rotate %397 by %c9_i32_151 dim 1 : vector<16x128xf32>, i32 -> vector<16x128xf32>
    %399 = vector.broadcast %1 : vector<1x128xf32> to vector<16x128xf32>
    %400 = arith.mulf %398, %399 : vector<16x128xf32>
    %c8_i32_152 = arith.constant 8 : i32
    %401 = tpu.dynamic_rotate %397 by %c8_i32_152 dim 1 : vector<16x128xf32>, i32 -> vector<16x128xf32>
    %402 = vector.broadcast %3 : vector<1x128xf32> to vector<16x128xf32>
    %403 = arith.mulf %401, %402 : vector<16x128xf32>
    %c7_i32_153 = arith.constant 7 : i32
    %404 = tpu.dynamic_rotate %397 by %c7_i32_153 dim 1 : vector<16x128xf32>, i32 -> vector<16x128xf32>
    %405 = vector.broadcast %5 : vector<1x128xf32> to vector<16x128xf32>
    %406 = arith.mulf %404, %405 : vector<16x128xf32>
    %c1_i32_154 = arith.constant 1 : i32
    %407 = tpu.dynamic_rotate %397 by %c1_i32_154 dim 1 : vector<16x128xf32>, i32 -> vector<16x128xf32>
    %408 = vector.broadcast %7 : vector<1x128xf32> to vector<16x128xf32>
    %409 = arith.mulf %407, %408 : vector<16x128xf32>
    %c127_i32_155 = arith.constant 127 : i32
    %410 = tpu.dynamic_rotate %397 by %c127_i32_155 dim 1 : vector<16x128xf32>, i32 -> vector<16x128xf32>
    %411 = vector.broadcast %9 : vector<1x128xf32> to vector<16x128xf32>
    %412 = arith.mulf %410, %411 : vector<16x128xf32>
    %c121_i32_156 = arith.constant 121 : i32
    %413 = tpu.dynamic_rotate %397 by %c121_i32_156 dim 1 : vector<16x128xf32>, i32 -> vector<16x128xf32>
    %414 = vector.broadcast %11 : vector<1x128xf32> to vector<16x128xf32>
    %415 = arith.mulf %413, %414 : vector<16x128xf32>
    %c120_i32_157 = arith.constant 120 : i32
    %416 = tpu.dynamic_rotate %397 by %c120_i32_157 dim 1 : vector<16x128xf32>, i32 -> vector<16x128xf32>
    %417 = vector.broadcast %13 : vector<1x128xf32> to vector<16x128xf32>
    %418 = arith.mulf %416, %417 : vector<16x128xf32>
    %c119_i32_158 = arith.constant 119 : i32
    %419 = tpu.dynamic_rotate %397 by %c119_i32_158 dim 1 : vector<16x128xf32>, i32 -> vector<16x128xf32>
    %420 = vector.broadcast %15 : vector<1x128xf32> to vector<16x128xf32>
    %421 = arith.mulf %419, %420 : vector<16x128xf32>
    %422 = tpu.concatenate %400, %403, %406, %409, %397, %412, %415, %418, %421 in 0 : vector<16x128xf32>, vector<16x128xf32>, vector<16x128xf32>, vector<16x128xf32>, vector<16x128xf32>, vector<16x128xf32>, vector<16x128xf32>, vector<16x128xf32>, vector<16x128xf32> -> vector<144x128xf32>
    %423 = arith.truncf %422 : vector<144x128xf32> to vector<144x128xbf16>
    %cst_159 = arith.constant dense<0.000000e+00> : vector<64x128xf32>
    %424 = tpu.matmul %392, %423, %cst_159 {dimension_numbers = #tpu.dot_dimension_numbers<[1], [0], [0], [1], [0, 0, 1, 1], [], []>} : vector<64x144xbf16>, vector<144x128xbf16>, vector<64x128xf32> -> vector<64x128xf32>
    %425 = vector.broadcast %396 : vector<64x1xf32> to vector<64x128xf32>
    %426 = arith.addf %424, %425 : vector<64x128xf32>
    %427 = vector.extract_strided_slice %390 {offsets = [16, 0], sizes = [16, 128], strides = [1, 1]} : vector<48x128xf32> to vector<16x128xf32>
    %c9_i32_160 = arith.constant 9 : i32
    %428 = tpu.dynamic_rotate %427 by %c9_i32_160 dim 1 : vector<16x128xf32>, i32 -> vector<16x128xf32>
    %429 = vector.broadcast %1 : vector<1x128xf32> to vector<16x128xf32>
    %430 = arith.mulf %428, %429 : vector<16x128xf32>
    %c8_i32_161 = arith.constant 8 : i32
    %431 = tpu.dynamic_rotate %427 by %c8_i32_161 dim 1 : vector<16x128xf32>, i32 -> vector<16x128xf32>
    %432 = vector.broadcast %3 : vector<1x128xf32> to vector<16x128xf32>
    %433 = arith.mulf %431, %432 : vector<16x128xf32>
    %c7_i32_162 = arith.constant 7 : i32
    %434 = tpu.dynamic_rotate %427 by %c7_i32_162 dim 1 : vector<16x128xf32>, i32 -> vector<16x128xf32>
    %435 = vector.broadcast %5 : vector<1x128xf32> to vector<16x128xf32>
    %436 = arith.mulf %434, %435 : vector<16x128xf32>
    %c1_i32_163 = arith.constant 1 : i32
    %437 = tpu.dynamic_rotate %427 by %c1_i32_163 dim 1 : vector<16x128xf32>, i32 -> vector<16x128xf32>
    %438 = vector.broadcast %7 : vector<1x128xf32> to vector<16x128xf32>
    %439 = arith.mulf %437, %438 : vector<16x128xf32>
    %c127_i32_164 = arith.constant 127 : i32
    %440 = tpu.dynamic_rotate %427 by %c127_i32_164 dim 1 : vector<16x128xf32>, i32 -> vector<16x128xf32>
    %441 = vector.broadcast %9 : vector<1x128xf32> to vector<16x128xf32>
    %442 = arith.mulf %440, %441 : vector<16x128xf32>
    %c121_i32_165 = arith.constant 121 : i32
    %443 = tpu.dynamic_rotate %427 by %c121_i32_165 dim 1 : vector<16x128xf32>, i32 -> vector<16x128xf32>
    %444 = vector.broadcast %11 : vector<1x128xf32> to vector<16x128xf32>
    %445 = arith.mulf %443, %444 : vector<16x128xf32>
    %c120_i32_166 = arith.constant 120 : i32
    %446 = tpu.dynamic_rotate %427 by %c120_i32_166 dim 1 : vector<16x128xf32>, i32 -> vector<16x128xf32>
    %447 = vector.broadcast %13 : vector<1x128xf32> to vector<16x128xf32>
    %448 = arith.mulf %446, %447 : vector<16x128xf32>
    %c119_i32_167 = arith.constant 119 : i32
    %449 = tpu.dynamic_rotate %427 by %c119_i32_167 dim 1 : vector<16x128xf32>, i32 -> vector<16x128xf32>
    %450 = vector.broadcast %15 : vector<1x128xf32> to vector<16x128xf32>
    %451 = arith.mulf %449, %450 : vector<16x128xf32>
    %452 = tpu.concatenate %430, %433, %436, %439, %427, %442, %445, %448, %451 in 0 : vector<16x128xf32>, vector<16x128xf32>, vector<16x128xf32>, vector<16x128xf32>, vector<16x128xf32>, vector<16x128xf32>, vector<16x128xf32>, vector<16x128xf32>, vector<16x128xf32> -> vector<144x128xf32>
    %453 = arith.truncf %452 : vector<144x128xf32> to vector<144x128xbf16>
    %cst_168 = arith.constant dense<0.000000e+00> : vector<64x128xf32>
    %454 = tpu.matmul %392, %453, %cst_168 {dimension_numbers = #tpu.dot_dimension_numbers<[1], [0], [0], [1], [0, 0, 1, 1], [], []>} : vector<64x144xbf16>, vector<144x128xbf16>, vector<64x128xf32> -> vector<64x128xf32>
    %455 = vector.broadcast %396 : vector<64x1xf32> to vector<64x128xf32>
    %456 = arith.addf %454, %455 : vector<64x128xf32>
    %457 = vector.extract_strided_slice %390 {offsets = [32, 0], sizes = [16, 128], strides = [1, 1]} : vector<48x128xf32> to vector<16x128xf32>
    %c9_i32_169 = arith.constant 9 : i32
    %458 = tpu.dynamic_rotate %457 by %c9_i32_169 dim 1 : vector<16x128xf32>, i32 -> vector<16x128xf32>
    %459 = vector.broadcast %1 : vector<1x128xf32> to vector<16x128xf32>
    %460 = arith.mulf %458, %459 : vector<16x128xf32>
    %c8_i32_170 = arith.constant 8 : i32
    %461 = tpu.dynamic_rotate %457 by %c8_i32_170 dim 1 : vector<16x128xf32>, i32 -> vector<16x128xf32>
    %462 = vector.broadcast %3 : vector<1x128xf32> to vector<16x128xf32>
    %463 = arith.mulf %461, %462 : vector<16x128xf32>
    %c7_i32_171 = arith.constant 7 : i32
    %464 = tpu.dynamic_rotate %457 by %c7_i32_171 dim 1 : vector<16x128xf32>, i32 -> vector<16x128xf32>
    %465 = vector.broadcast %5 : vector<1x128xf32> to vector<16x128xf32>
    %466 = arith.mulf %464, %465 : vector<16x128xf32>
    %c1_i32_172 = arith.constant 1 : i32
    %467 = tpu.dynamic_rotate %457 by %c1_i32_172 dim 1 : vector<16x128xf32>, i32 -> vector<16x128xf32>
    %468 = vector.broadcast %7 : vector<1x128xf32> to vector<16x128xf32>
    %469 = arith.mulf %467, %468 : vector<16x128xf32>
    %c127_i32_173 = arith.constant 127 : i32
    %470 = tpu.dynamic_rotate %457 by %c127_i32_173 dim 1 : vector<16x128xf32>, i32 -> vector<16x128xf32>
    %471 = vector.broadcast %9 : vector<1x128xf32> to vector<16x128xf32>
    %472 = arith.mulf %470, %471 : vector<16x128xf32>
    %c121_i32_174 = arith.constant 121 : i32
    %473 = tpu.dynamic_rotate %457 by %c121_i32_174 dim 1 : vector<16x128xf32>, i32 -> vector<16x128xf32>
    %474 = vector.broadcast %11 : vector<1x128xf32> to vector<16x128xf32>
    %475 = arith.mulf %473, %474 : vector<16x128xf32>
    %c120_i32_175 = arith.constant 120 : i32
    %476 = tpu.dynamic_rotate %457 by %c120_i32_175 dim 1 : vector<16x128xf32>, i32 -> vector<16x128xf32>
    %477 = vector.broadcast %13 : vector<1x128xf32> to vector<16x128xf32>
    %478 = arith.mulf %476, %477 : vector<16x128xf32>
    %c119_i32_176 = arith.constant 119 : i32
    %479 = tpu.dynamic_rotate %457 by %c119_i32_176 dim 1 : vector<16x128xf32>, i32 -> vector<16x128xf32>
    %480 = vector.broadcast %15 : vector<1x128xf32> to vector<16x128xf32>
    %481 = arith.mulf %479, %480 : vector<16x128xf32>
    %482 = tpu.concatenate %460, %463, %466, %469, %457, %472, %475, %478, %481 in 0 : vector<16x128xf32>, vector<16x128xf32>, vector<16x128xf32>, vector<16x128xf32>, vector<16x128xf32>, vector<16x128xf32>, vector<16x128xf32>, vector<16x128xf32>, vector<16x128xf32> -> vector<144x128xf32>
    %483 = arith.truncf %482 : vector<144x128xf32> to vector<144x128xbf16>
    %cst_177 = arith.constant dense<0.000000e+00> : vector<64x128xf32>
    %484 = tpu.matmul %392, %483, %cst_177 {dimension_numbers = #tpu.dot_dimension_numbers<[1], [0], [0], [1], [0, 0, 1, 1], [], []>} : vector<64x144xbf16>, vector<144x128xbf16>, vector<64x128xf32> -> vector<64x128xf32>
    %485 = vector.broadcast %396 : vector<64x1xf32> to vector<64x128xf32>
    %486 = arith.addf %484, %485 : vector<64x128xf32>
    %cst_178 = arith.constant 0.000000e+00 : f32
    %487 = vector.broadcast %cst_178 : f32 to vector<16x128xf32>
    %cst_179 = arith.constant 0.000000e+00 : f32
    %488 = vector.broadcast %cst_179 : f32 to vector<16x128xf32>
    %c9_i32_180 = arith.constant 9 : i32
    %489 = tpu.dynamic_rotate %487 by %c9_i32_180 dim 1 : vector<16x128xf32>, i32 -> vector<16x128xf32>
    %490 = vector.broadcast %1 : vector<1x128xf32> to vector<16x128xf32>
    %491 = arith.mulf %489, %490 : vector<16x128xf32>
    %c8_i32_181 = arith.constant 8 : i32
    %492 = tpu.dynamic_rotate %487 by %c8_i32_181 dim 1 : vector<16x128xf32>, i32 -> vector<16x128xf32>
    %493 = vector.broadcast %3 : vector<1x128xf32> to vector<16x128xf32>
    %494 = arith.mulf %492, %493 : vector<16x128xf32>
    %c7_i32_182 = arith.constant 7 : i32
    %495 = tpu.dynamic_rotate %487 by %c7_i32_182 dim 1 : vector<16x128xf32>, i32 -> vector<16x128xf32>
    %496 = vector.broadcast %5 : vector<1x128xf32> to vector<16x128xf32>
    %497 = arith.mulf %495, %496 : vector<16x128xf32>
    %c1_i32_183 = arith.constant 1 : i32
    %498 = tpu.dynamic_rotate %487 by %c1_i32_183 dim 1 : vector<16x128xf32>, i32 -> vector<16x128xf32>
    %499 = vector.broadcast %7 : vector<1x128xf32> to vector<16x128xf32>
    %500 = arith.mulf %498, %499 : vector<16x128xf32>
    %c127_i32_184 = arith.constant 127 : i32
    %501 = tpu.dynamic_rotate %487 by %c127_i32_184 dim 1 : vector<16x128xf32>, i32 -> vector<16x128xf32>
    %502 = vector.broadcast %9 : vector<1x128xf32> to vector<16x128xf32>
    %503 = arith.mulf %501, %502 : vector<16x128xf32>
    %c121_i32_185 = arith.constant 121 : i32
    %504 = tpu.dynamic_rotate %487 by %c121_i32_185 dim 1 : vector<16x128xf32>, i32 -> vector<16x128xf32>
    %505 = vector.broadcast %11 : vector<1x128xf32> to vector<16x128xf32>
    %506 = arith.mulf %504, %505 : vector<16x128xf32>
    %c120_i32_186 = arith.constant 120 : i32
    %507 = tpu.dynamic_rotate %487 by %c120_i32_186 dim 1 : vector<16x128xf32>, i32 -> vector<16x128xf32>
    %508 = vector.broadcast %13 : vector<1x128xf32> to vector<16x128xf32>
    %509 = arith.mulf %507, %508 : vector<16x128xf32>
    %c119_i32_187 = arith.constant 119 : i32
    %510 = tpu.dynamic_rotate %487 by %c119_i32_187 dim 1 : vector<16x128xf32>, i32 -> vector<16x128xf32>
    %511 = vector.broadcast %15 : vector<1x128xf32> to vector<16x128xf32>
    %512 = arith.mulf %510, %511 : vector<16x128xf32>
    %513 = tpu.concatenate %491, %494, %497, %500, %487, %503, %506, %509, %512 in 0 : vector<16x128xf32>, vector<16x128xf32>, vector<16x128xf32>, vector<16x128xf32>, vector<16x128xf32>, vector<16x128xf32>, vector<16x128xf32>, vector<16x128xf32>, vector<16x128xf32> -> vector<144x128xf32>
    %514 = arith.truncf %513 : vector<144x128xf32> to vector<144x128xbf16>
    %cst_188 = arith.constant dense<0.000000e+00> : vector<64x128xf32>
    %515 = tpu.matmul %394, %514, %cst_188 {dimension_numbers = #tpu.dot_dimension_numbers<[1], [0], [0], [1], [0, 0, 1, 1], [], []>} : vector<64x144xbf16>, vector<144x128xbf16>, vector<64x128xf32> -> vector<64x128xf32>
    %516 = arith.addf %426, %515 : vector<64x128xf32>
    %517 = vector.extract_strided_slice %516 {offsets = [0, 0], sizes = [16, 128], strides = [1, 1]} : vector<64x128xf32> to vector<16x128xf32>
    %cst_189 = arith.constant 5.000000e-01 : f32
    %518 = vector.broadcast %cst_189 : f32 to vector<16x128xf32>
    %519 = arith.mulf %518, %517 : vector<16x128xf32>
    %520 = math.tanh %519 : vector<16x128xf32>
    %cst_190 = arith.constant 1.000000e+00 : f32
    %521 = vector.broadcast %cst_190 : f32 to vector<16x128xf32>
    %522 = arith.addf %521, %520 : vector<16x128xf32>
    %cst_191 = arith.constant 5.000000e-01 : f32
    %523 = vector.broadcast %cst_191 : f32 to vector<16x128xf32>
    %524 = arith.mulf %523, %522 : vector<16x128xf32>
    %525 = vector.extract_strided_slice %516 {offsets = [16, 0], sizes = [16, 128], strides = [1, 1]} : vector<64x128xf32> to vector<16x128xf32>
    %cst_192 = arith.constant 5.000000e-01 : f32
    %526 = vector.broadcast %cst_192 : f32 to vector<16x128xf32>
    %527 = arith.mulf %526, %525 : vector<16x128xf32>
    %528 = math.tanh %527 : vector<16x128xf32>
    %cst_193 = arith.constant 1.000000e+00 : f32
    %529 = vector.broadcast %cst_193 : f32 to vector<16x128xf32>
    %530 = arith.addf %529, %528 : vector<16x128xf32>
    %cst_194 = arith.constant 5.000000e-01 : f32
    %531 = vector.broadcast %cst_194 : f32 to vector<16x128xf32>
    %532 = arith.mulf %531, %530 : vector<16x128xf32>
    %533 = vector.extract_strided_slice %516 {offsets = [32, 0], sizes = [16, 128], strides = [1, 1]} : vector<64x128xf32> to vector<16x128xf32>
    %534 = math.tanh %533 : vector<16x128xf32>
    %535 = vector.extract_strided_slice %516 {offsets = [48, 0], sizes = [16, 128], strides = [1, 1]} : vector<64x128xf32> to vector<16x128xf32>
    %cst_195 = arith.constant 5.000000e-01 : f32
    %536 = vector.broadcast %cst_195 : f32 to vector<16x128xf32>
    %537 = arith.mulf %536, %535 : vector<16x128xf32>
    %538 = math.tanh %537 : vector<16x128xf32>
    %cst_196 = arith.constant 1.000000e+00 : f32
    %539 = vector.broadcast %cst_196 : f32 to vector<16x128xf32>
    %540 = arith.addf %539, %538 : vector<16x128xf32>
    %cst_197 = arith.constant 5.000000e-01 : f32
    %541 = vector.broadcast %cst_197 : f32 to vector<16x128xf32>
    %542 = arith.mulf %541, %540 : vector<16x128xf32>
    %543 = arith.mulf %532, %488 : vector<16x128xf32>
    %544 = arith.mulf %524, %534 : vector<16x128xf32>
    %545 = arith.addf %543, %544 : vector<16x128xf32>
    %546 = math.tanh %545 : vector<16x128xf32>
    %547 = arith.mulf %542, %546 : vector<16x128xf32>
    %c9_i32_198 = arith.constant 9 : i32
    %548 = tpu.dynamic_rotate %547 by %c9_i32_198 dim 1 : vector<16x128xf32>, i32 -> vector<16x128xf32>
    %549 = vector.broadcast %1 : vector<1x128xf32> to vector<16x128xf32>
    %550 = arith.mulf %548, %549 : vector<16x128xf32>
    %c8_i32_199 = arith.constant 8 : i32
    %551 = tpu.dynamic_rotate %547 by %c8_i32_199 dim 1 : vector<16x128xf32>, i32 -> vector<16x128xf32>
    %552 = vector.broadcast %3 : vector<1x128xf32> to vector<16x128xf32>
    %553 = arith.mulf %551, %552 : vector<16x128xf32>
    %c7_i32_200 = arith.constant 7 : i32
    %554 = tpu.dynamic_rotate %547 by %c7_i32_200 dim 1 : vector<16x128xf32>, i32 -> vector<16x128xf32>
    %555 = vector.broadcast %5 : vector<1x128xf32> to vector<16x128xf32>
    %556 = arith.mulf %554, %555 : vector<16x128xf32>
    %c1_i32_201 = arith.constant 1 : i32
    %557 = tpu.dynamic_rotate %547 by %c1_i32_201 dim 1 : vector<16x128xf32>, i32 -> vector<16x128xf32>
    %558 = vector.broadcast %7 : vector<1x128xf32> to vector<16x128xf32>
    %559 = arith.mulf %557, %558 : vector<16x128xf32>
    %c127_i32_202 = arith.constant 127 : i32
    %560 = tpu.dynamic_rotate %547 by %c127_i32_202 dim 1 : vector<16x128xf32>, i32 -> vector<16x128xf32>
    %561 = vector.broadcast %9 : vector<1x128xf32> to vector<16x128xf32>
    %562 = arith.mulf %560, %561 : vector<16x128xf32>
    %c121_i32_203 = arith.constant 121 : i32
    %563 = tpu.dynamic_rotate %547 by %c121_i32_203 dim 1 : vector<16x128xf32>, i32 -> vector<16x128xf32>
    %564 = vector.broadcast %11 : vector<1x128xf32> to vector<16x128xf32>
    %565 = arith.mulf %563, %564 : vector<16x128xf32>
    %c120_i32_204 = arith.constant 120 : i32
    %566 = tpu.dynamic_rotate %547 by %c120_i32_204 dim 1 : vector<16x128xf32>, i32 -> vector<16x128xf32>
    %567 = vector.broadcast %13 : vector<1x128xf32> to vector<16x128xf32>
    %568 = arith.mulf %566, %567 : vector<16x128xf32>
    %c119_i32_205 = arith.constant 119 : i32
    %569 = tpu.dynamic_rotate %547 by %c119_i32_205 dim 1 : vector<16x128xf32>, i32 -> vector<16x128xf32>
    %570 = vector.broadcast %15 : vector<1x128xf32> to vector<16x128xf32>
    %571 = arith.mulf %569, %570 : vector<16x128xf32>
    %572 = tpu.concatenate %550, %553, %556, %559, %547, %562, %565, %568, %571 in 0 : vector<16x128xf32>, vector<16x128xf32>, vector<16x128xf32>, vector<16x128xf32>, vector<16x128xf32>, vector<16x128xf32>, vector<16x128xf32>, vector<16x128xf32>, vector<16x128xf32> -> vector<144x128xf32>
    %573 = arith.truncf %572 : vector<144x128xf32> to vector<144x128xbf16>
    %cst_206 = arith.constant dense<0.000000e+00> : vector<64x128xf32>
    %574 = tpu.matmul %394, %573, %cst_206 {dimension_numbers = #tpu.dot_dimension_numbers<[1], [0], [0], [1], [0, 0, 1, 1], [], []>} : vector<64x144xbf16>, vector<144x128xbf16>, vector<64x128xf32> -> vector<64x128xf32>
    %575 = arith.addf %456, %574 : vector<64x128xf32>
    %576 = vector.extract_strided_slice %575 {offsets = [0, 0], sizes = [16, 128], strides = [1, 1]} : vector<64x128xf32> to vector<16x128xf32>
    %cst_207 = arith.constant 5.000000e-01 : f32
    %577 = vector.broadcast %cst_207 : f32 to vector<16x128xf32>
    %578 = arith.mulf %577, %576 : vector<16x128xf32>
    %579 = math.tanh %578 : vector<16x128xf32>
    %cst_208 = arith.constant 1.000000e+00 : f32
    %580 = vector.broadcast %cst_208 : f32 to vector<16x128xf32>
    %581 = arith.addf %580, %579 : vector<16x128xf32>
    %cst_209 = arith.constant 5.000000e-01 : f32
    %582 = vector.broadcast %cst_209 : f32 to vector<16x128xf32>
    %583 = arith.mulf %582, %581 : vector<16x128xf32>
    %584 = vector.extract_strided_slice %575 {offsets = [16, 0], sizes = [16, 128], strides = [1, 1]} : vector<64x128xf32> to vector<16x128xf32>
    %cst_210 = arith.constant 5.000000e-01 : f32
    %585 = vector.broadcast %cst_210 : f32 to vector<16x128xf32>
    %586 = arith.mulf %585, %584 : vector<16x128xf32>
    %587 = math.tanh %586 : vector<16x128xf32>
    %cst_211 = arith.constant 1.000000e+00 : f32
    %588 = vector.broadcast %cst_211 : f32 to vector<16x128xf32>
    %589 = arith.addf %588, %587 : vector<16x128xf32>
    %cst_212 = arith.constant 5.000000e-01 : f32
    %590 = vector.broadcast %cst_212 : f32 to vector<16x128xf32>
    %591 = arith.mulf %590, %589 : vector<16x128xf32>
    %592 = vector.extract_strided_slice %575 {offsets = [32, 0], sizes = [16, 128], strides = [1, 1]} : vector<64x128xf32> to vector<16x128xf32>
    %593 = math.tanh %592 : vector<16x128xf32>
    %594 = vector.extract_strided_slice %575 {offsets = [48, 0], sizes = [16, 128], strides = [1, 1]} : vector<64x128xf32> to vector<16x128xf32>
    %cst_213 = arith.constant 5.000000e-01 : f32
    %595 = vector.broadcast %cst_213 : f32 to vector<16x128xf32>
    %596 = arith.mulf %595, %594 : vector<16x128xf32>
    %597 = math.tanh %596 : vector<16x128xf32>
    %cst_214 = arith.constant 1.000000e+00 : f32
    %598 = vector.broadcast %cst_214 : f32 to vector<16x128xf32>
    %599 = arith.addf %598, %597 : vector<16x128xf32>
    %cst_215 = arith.constant 5.000000e-01 : f32
    %600 = vector.broadcast %cst_215 : f32 to vector<16x128xf32>
    %601 = arith.mulf %600, %599 : vector<16x128xf32>
    %602 = arith.mulf %591, %545 : vector<16x128xf32>
    %603 = arith.mulf %583, %593 : vector<16x128xf32>
    %604 = arith.addf %602, %603 : vector<16x128xf32>
    %605 = math.tanh %604 : vector<16x128xf32>
    %606 = arith.mulf %601, %605 : vector<16x128xf32>
    %c9_i32_216 = arith.constant 9 : i32
    %607 = tpu.dynamic_rotate %606 by %c9_i32_216 dim 1 : vector<16x128xf32>, i32 -> vector<16x128xf32>
    %608 = vector.broadcast %1 : vector<1x128xf32> to vector<16x128xf32>
    %609 = arith.mulf %607, %608 : vector<16x128xf32>
    %c8_i32_217 = arith.constant 8 : i32
    %610 = tpu.dynamic_rotate %606 by %c8_i32_217 dim 1 : vector<16x128xf32>, i32 -> vector<16x128xf32>
    %611 = vector.broadcast %3 : vector<1x128xf32> to vector<16x128xf32>
    %612 = arith.mulf %610, %611 : vector<16x128xf32>
    %c7_i32_218 = arith.constant 7 : i32
    %613 = tpu.dynamic_rotate %606 by %c7_i32_218 dim 1 : vector<16x128xf32>, i32 -> vector<16x128xf32>
    %614 = vector.broadcast %5 : vector<1x128xf32> to vector<16x128xf32>
    %615 = arith.mulf %613, %614 : vector<16x128xf32>
    %c1_i32_219 = arith.constant 1 : i32
    %616 = tpu.dynamic_rotate %606 by %c1_i32_219 dim 1 : vector<16x128xf32>, i32 -> vector<16x128xf32>
    %617 = vector.broadcast %7 : vector<1x128xf32> to vector<16x128xf32>
    %618 = arith.mulf %616, %617 : vector<16x128xf32>
    %c127_i32_220 = arith.constant 127 : i32
    %619 = tpu.dynamic_rotate %606 by %c127_i32_220 dim 1 : vector<16x128xf32>, i32 -> vector<16x128xf32>
    %620 = vector.broadcast %9 : vector<1x128xf32> to vector<16x128xf32>
    %621 = arith.mulf %619, %620 : vector<16x128xf32>
    %c121_i32_221 = arith.constant 121 : i32
    %622 = tpu.dynamic_rotate %606 by %c121_i32_221 dim 1 : vector<16x128xf32>, i32 -> vector<16x128xf32>
    %623 = vector.broadcast %11 : vector<1x128xf32> to vector<16x128xf32>
    %624 = arith.mulf %622, %623 : vector<16x128xf32>
    %c120_i32_222 = arith.constant 120 : i32
    %625 = tpu.dynamic_rotate %606 by %c120_i32_222 dim 1 : vector<16x128xf32>, i32 -> vector<16x128xf32>
    %626 = vector.broadcast %13 : vector<1x128xf32> to vector<16x128xf32>
    %627 = arith.mulf %625, %626 : vector<16x128xf32>
    %c119_i32_223 = arith.constant 119 : i32
    %628 = tpu.dynamic_rotate %606 by %c119_i32_223 dim 1 : vector<16x128xf32>, i32 -> vector<16x128xf32>
    %629 = vector.broadcast %15 : vector<1x128xf32> to vector<16x128xf32>
    %630 = arith.mulf %628, %629 : vector<16x128xf32>
    %631 = tpu.concatenate %609, %612, %615, %618, %606, %621, %624, %627, %630 in 0 : vector<16x128xf32>, vector<16x128xf32>, vector<16x128xf32>, vector<16x128xf32>, vector<16x128xf32>, vector<16x128xf32>, vector<16x128xf32>, vector<16x128xf32>, vector<16x128xf32> -> vector<144x128xf32>
    %632 = arith.truncf %631 : vector<144x128xf32> to vector<144x128xbf16>
    %cst_224 = arith.constant dense<0.000000e+00> : vector<64x128xf32>
    %633 = tpu.matmul %394, %632, %cst_224 {dimension_numbers = #tpu.dot_dimension_numbers<[1], [0], [0], [1], [0, 0, 1, 1], [], []>} : vector<64x144xbf16>, vector<144x128xbf16>, vector<64x128xf32> -> vector<64x128xf32>
    %634 = arith.addf %486, %633 : vector<64x128xf32>
    %635 = vector.extract_strided_slice %634 {offsets = [0, 0], sizes = [16, 128], strides = [1, 1]} : vector<64x128xf32> to vector<16x128xf32>
    %cst_225 = arith.constant 5.000000e-01 : f32
    %636 = vector.broadcast %cst_225 : f32 to vector<16x128xf32>
    %637 = arith.mulf %636, %635 : vector<16x128xf32>
    %638 = math.tanh %637 : vector<16x128xf32>
    %cst_226 = arith.constant 1.000000e+00 : f32
    %639 = vector.broadcast %cst_226 : f32 to vector<16x128xf32>
    %640 = arith.addf %639, %638 : vector<16x128xf32>
    %cst_227 = arith.constant 5.000000e-01 : f32
    %641 = vector.broadcast %cst_227 : f32 to vector<16x128xf32>
    %642 = arith.mulf %641, %640 : vector<16x128xf32>
    %643 = vector.extract_strided_slice %634 {offsets = [16, 0], sizes = [16, 128], strides = [1, 1]} : vector<64x128xf32> to vector<16x128xf32>
    %cst_228 = arith.constant 5.000000e-01 : f32
    %644 = vector.broadcast %cst_228 : f32 to vector<16x128xf32>
    %645 = arith.mulf %644, %643 : vector<16x128xf32>
    %646 = math.tanh %645 : vector<16x128xf32>
    %cst_229 = arith.constant 1.000000e+00 : f32
    %647 = vector.broadcast %cst_229 : f32 to vector<16x128xf32>
    %648 = arith.addf %647, %646 : vector<16x128xf32>
    %cst_230 = arith.constant 5.000000e-01 : f32
    %649 = vector.broadcast %cst_230 : f32 to vector<16x128xf32>
    %650 = arith.mulf %649, %648 : vector<16x128xf32>
    %651 = vector.extract_strided_slice %634 {offsets = [32, 0], sizes = [16, 128], strides = [1, 1]} : vector<64x128xf32> to vector<16x128xf32>
    %652 = math.tanh %651 : vector<16x128xf32>
    %653 = vector.extract_strided_slice %634 {offsets = [48, 0], sizes = [16, 128], strides = [1, 1]} : vector<64x128xf32> to vector<16x128xf32>
    %cst_231 = arith.constant 5.000000e-01 : f32
    %654 = vector.broadcast %cst_231 : f32 to vector<16x128xf32>
    %655 = arith.mulf %654, %653 : vector<16x128xf32>
    %656 = math.tanh %655 : vector<16x128xf32>
    %cst_232 = arith.constant 1.000000e+00 : f32
    %657 = vector.broadcast %cst_232 : f32 to vector<16x128xf32>
    %658 = arith.addf %657, %656 : vector<16x128xf32>
    %cst_233 = arith.constant 5.000000e-01 : f32
    %659 = vector.broadcast %cst_233 : f32 to vector<16x128xf32>
    %660 = arith.mulf %659, %658 : vector<16x128xf32>
    %661 = arith.mulf %650, %604 : vector<16x128xf32>
    %662 = arith.mulf %642, %652 : vector<16x128xf32>
    %663 = arith.addf %661, %662 : vector<16x128xf32>
    %664 = math.tanh %663 : vector<16x128xf32>
    %665 = arith.mulf %660, %664 : vector<16x128xf32>
    %c0_234 = arith.constant 0 : index
    %c0_235 = arith.constant 0 : index
    %c0_236 = arith.constant 0 : index
    %666 = vector.load %arg15[%c0_234, %c0_235, %c0_236] : memref<1x2x144xbf16, #tpu.memory_space<vmem>>, vector<1x2x144xbf16>
    %667 = vector.shape_cast %666 : vector<1x2x144xbf16> to vector<2x144xbf16>
    %c0_237 = arith.constant 0 : index
    %c0_238 = arith.constant 0 : index
    %c0_239 = arith.constant 0 : index
    %668 = vector.load %arg16[%c0_237, %c0_238, %c0_239] : memref<1x2x1xf32, #tpu.memory_space<vmem>>, vector<1x2x1xf32>
    %669 = vector.shape_cast %668 : vector<1x2x1xf32> to vector<2x1xf32>
    %c9_i32_240 = arith.constant 9 : i32
    %670 = tpu.dynamic_rotate %665 by %c9_i32_240 dim 1 : vector<16x128xf32>, i32 -> vector<16x128xf32>
    %671 = vector.broadcast %1 : vector<1x128xf32> to vector<16x128xf32>
    %672 = arith.mulf %670, %671 : vector<16x128xf32>
    %c8_i32_241 = arith.constant 8 : i32
    %673 = tpu.dynamic_rotate %665 by %c8_i32_241 dim 1 : vector<16x128xf32>, i32 -> vector<16x128xf32>
    %674 = vector.broadcast %3 : vector<1x128xf32> to vector<16x128xf32>
    %675 = arith.mulf %673, %674 : vector<16x128xf32>
    %c7_i32_242 = arith.constant 7 : i32
    %676 = tpu.dynamic_rotate %665 by %c7_i32_242 dim 1 : vector<16x128xf32>, i32 -> vector<16x128xf32>
    %677 = vector.broadcast %5 : vector<1x128xf32> to vector<16x128xf32>
    %678 = arith.mulf %676, %677 : vector<16x128xf32>
    %c1_i32_243 = arith.constant 1 : i32
    %679 = tpu.dynamic_rotate %665 by %c1_i32_243 dim 1 : vector<16x128xf32>, i32 -> vector<16x128xf32>
    %680 = vector.broadcast %7 : vector<1x128xf32> to vector<16x128xf32>
    %681 = arith.mulf %679, %680 : vector<16x128xf32>
    %c127_i32_244 = arith.constant 127 : i32
    %682 = tpu.dynamic_rotate %665 by %c127_i32_244 dim 1 : vector<16x128xf32>, i32 -> vector<16x128xf32>
    %683 = vector.broadcast %9 : vector<1x128xf32> to vector<16x128xf32>
    %684 = arith.mulf %682, %683 : vector<16x128xf32>
    %c121_i32_245 = arith.constant 121 : i32
    %685 = tpu.dynamic_rotate %665 by %c121_i32_245 dim 1 : vector<16x128xf32>, i32 -> vector<16x128xf32>
    %686 = vector.broadcast %11 : vector<1x128xf32> to vector<16x128xf32>
    %687 = arith.mulf %685, %686 : vector<16x128xf32>
    %c120_i32_246 = arith.constant 120 : i32
    %688 = tpu.dynamic_rotate %665 by %c120_i32_246 dim 1 : vector<16x128xf32>, i32 -> vector<16x128xf32>
    %689 = vector.broadcast %13 : vector<1x128xf32> to vector<16x128xf32>
    %690 = arith.mulf %688, %689 : vector<16x128xf32>
    %c119_i32_247 = arith.constant 119 : i32
    %691 = tpu.dynamic_rotate %665 by %c119_i32_247 dim 1 : vector<16x128xf32>, i32 -> vector<16x128xf32>
    %692 = vector.broadcast %15 : vector<1x128xf32> to vector<16x128xf32>
    %693 = arith.mulf %691, %692 : vector<16x128xf32>
    %694 = tpu.concatenate %672, %675, %678, %681, %665, %684, %687, %690, %693 in 0 : vector<16x128xf32>, vector<16x128xf32>, vector<16x128xf32>, vector<16x128xf32>, vector<16x128xf32>, vector<16x128xf32>, vector<16x128xf32>, vector<16x128xf32>, vector<16x128xf32> -> vector<144x128xf32>
    %695 = arith.truncf %694 : vector<144x128xf32> to vector<144x128xbf16>
    %cst_248 = arith.constant dense<0.000000e+00> : vector<2x128xf32>
    %696 = tpu.matmul %667, %695, %cst_248 {dimension_numbers = #tpu.dot_dimension_numbers<[1], [0], [0], [1], [0, 0, 1, 1], [], []>} : vector<2x144xbf16>, vector<144x128xbf16>, vector<2x128xf32> -> vector<2x128xf32>
    %697 = vector.broadcast %669 : vector<2x1xf32> to vector<2x128xf32>
    %698 = arith.addf %696, %697 : vector<2x128xf32>
    %c0_249 = arith.constant 0 : index
    %c0_250 = arith.constant 0 : index
    %c0_251 = arith.constant 0 : index
    %699 = vector.load %arg3[%c0_249, %c0_250, %c0_251] : memref<1x1x128xf32, #tpu.memory_space<vmem>>, vector<1x1x128xf32>
    %700 = vector.shape_cast %699 : vector<1x1x128xf32> to vector<1x128xf32>
    %701 = vector.broadcast %700 : vector<1x128xf32> to vector<2x128xf32>
    %702 = arith.mulf %698, %701 : vector<2x128xf32>
    %c0_252 = arith.constant 0 : index
    %c0_253 = arith.constant 0 : index
    %c0_254 = arith.constant 0 : index
    %703 = vector.load %arg17[%c0_252, %c0_253, %c0_254] : memref<1x2x128xf32, #tpu.memory_space<vmem>>, vector<1x2x128xf32>
    %704 = vector.shape_cast %703 : vector<1x2x128xf32> to vector<2x128xf32>
    %705 = vector.shape_cast %702 : vector<2x128xf32> to vector<1x2x128xf32>
    tpu.vector_store %arg17[%c0_252, %c0_253, %c0_254], %705 {strides = array<i32>} : memref<1x2x128xf32, #tpu.memory_space<vmem>>, vector<1x2x128xf32>,
    return
  }
  func.func @transform_0(%arg0: i32) -> (i32, i32, i32) {
    %c0_i32 = arith.constant 0 : i32
    %c0_i32_0 = arith.constant 0 : i32
    %c0_i32_1 = arith.constant 0 : i32
    %c0_i32_2 = arith.constant 0 : i32
    return %c0_i32, %c0_i32_0, %c0_i32_1 : i32, i32, i32
  }
  func.func @transform_1(%arg0: i32) -> (i32, i32) {
    %c0_i32 = arith.constant 0 : i32
    %c0_i32_0 = arith.constant 0 : i32
    return %arg0, %c0_i32 : i32, i32
  }
  func.func @transform_2(%arg0: i32) -> (i32, i32, i32) {
    %c0_i32 = arith.constant 0 : i32
    %c0_i32_0 = arith.constant 0 : i32
    %c0_i32_1 = arith.constant 0 : i32
    return %arg0, %c0_i32, %c0_i32_0 : i32, i32, i32
  }
  func.func @transform_3(%arg0: i32) -> (i32, i32) {
    %c0_i32 = arith.constant 0 : i32
    %c0_i32_0 = arith.constant 0 : i32
    %c0_i32_1 = arith.constant 0 : i32
    return %c0_i32, %c0_i32_0 : i32, i32
  }
  func.func @transform_4(%arg0: i32) -> (i32, i32) {
    %c0_i32 = arith.constant 0 : i32
    %c0_i32_0 = arith.constant 0 : i32
    %c0_i32_1 = arith.constant 0 : i32
    return %c0_i32, %c0_i32_0 : i32, i32
  }
  func.func @transform_5(%arg0: i32) -> (i32, i32) {
    %c0_i32 = arith.constant 0 : i32
    %c0_i32_0 = arith.constant 0 : i32
    %c0_i32_1 = arith.constant 0 : i32
    return %c0_i32, %c0_i32_0 : i32, i32
  }
  func.func @transform_6(%arg0: i32) -> (i32, i32, i32) {
    %c0_i32 = arith.constant 0 : i32
    %c0_i32_0 = arith.constant 0 : i32
    %c0_i32_1 = arith.constant 0 : i32
    return %arg0, %c0_i32, %c0_i32_0 : i32, i32, i32
  }
  func.func @transform_7(%arg0: i32) -> (i32, i32, i32) {
    %c0_i32 = arith.constant 0 : i32
    %c0_i32_0 = arith.constant 0 : i32
    %c0_i32_1 = arith.constant 0 : i32
    return %arg0, %c0_i32, %c0_i32_0 : i32, i32, i32
  }
  func.func @transform_8(%arg0: i32) -> (i32, i32, i32) {
    %c0_i32 = arith.constant 0 : i32
    %c0_i32_0 = arith.constant 0 : i32
    %c0_i32_1 = arith.constant 0 : i32
    return %arg0, %c0_i32, %c0_i32_0 : i32, i32, i32
  }
  func.func @transform_9(%arg0: i32) -> (i32, i32, i32) {
    %c0_i32 = arith.constant 0 : i32
    %c0_i32_0 = arith.constant 0 : i32
    %c0_i32_1 = arith.constant 0 : i32
    return %arg0, %c0_i32, %c0_i32_0 : i32, i32, i32
  }
  func.func @transform_10(%arg0: i32) -> (i32, i32, i32) {
    %c0_i32 = arith.constant 0 : i32
    %c0_i32_0 = arith.constant 0 : i32
    %c0_i32_1 = arith.constant 0 : i32
    return %arg0, %c0_i32, %c0_i32_0 : i32, i32, i32
  }
  func.func @transform_11(%arg0: i32) -> (i32, i32, i32) {
    %c0_i32 = arith.constant 0 : i32
    %c0_i32_0 = arith.constant 0 : i32
    %c0_i32_1 = arith.constant 0 : i32
    return %arg0, %c0_i32, %c0_i32_0 : i32, i32, i32
  }
  func.func @transform_12(%arg0: i32) -> (i32, i32, i32) {
    %c0_i32 = arith.constant 0 : i32
    %c0_i32_0 = arith.constant 0 : i32
    %c0_i32_1 = arith.constant 0 : i32
    return %arg0, %c0_i32, %c0_i32_0 : i32, i32, i32
  }
  func.func @transform_13(%arg0: i32) -> (i32, i32, i32) {
    %c0_i32 = arith.constant 0 : i32
    %c0_i32_0 = arith.constant 0 : i32
    %c0_i32_1 = arith.constant 0 : i32
    return %arg0, %c0_i32, %c0_i32_0 : i32, i32, i32
  }
  func.func @transform_14(%arg0: i32) -> (i32, i32, i32) {
    %c0_i32 = arith.constant 0 : i32
    %c0_i32_0 = arith.constant 0 : i32
    %c0_i32_1 = arith.constant 0 : i32
    return %arg0, %c0_i32, %c0_i32_0 : i32, i32, i32
  }
  func.func @transform_15(%arg0: i32) -> (i32, i32, i32) {
    %c0_i32 = arith.constant 0 : i32
    %c0_i32_0 = arith.constant 0 : i32
    %c0_i32_1 = arith.constant 0 : i32
    return %arg0, %c0_i32, %c0_i32_0 : i32, i32, i32
  }
  func.func @transform_16(%arg0: i32) -> (i32, i32, i32) {
    %c0_i32 = arith.constant 0 : i32
    %c0_i32_0 = arith.constant 0 : i32
    %c0_i32_1 = arith.constant 0 : i32
    return %arg0, %c0_i32, %c0_i32_0 : i32, i32, i32
  }
}

</mosaic_0001>

<llo_original>
// kernel: model_forward.2
$region0: #{model_forward.2}
  #allocation0 [shape = 'u32[]', space=smem, size = 0x4, offset = 0x4, fixed_abs, tag = 'smem constant byte address 0x4 - core index']
  #allocation1 [shape = 'u32[72,128]{1,0:T(1,128)}', space=vmem, size = 0x9000, scoped, tag = 'internal scratch']
  %s0 = inlined_call_operand.vmem [shape: f32[9,1,128], index: 0, kind: input, shape index: {}]
  %s1 = inlined_call_operand.vmem [shape: f32[3,8,128], index: 1, kind: input, shape index: {}]
  %s2 = inlined_call_operand.vmem [shape: f32[3,48,128], index: 2, kind: input, shape index: {}]
  %s3 = inlined_call_operand.vmem [shape: bf16[3,16,72], index: 3, kind: input, shape index: {}]
  %s4 = inlined_call_operand.vmem [shape: f32[3,16,1], index: 4, kind: input, shape index: {}]
  %s5 = inlined_call_operand.vmem [shape: bf16[3,4,16,144], index: 5, kind: input, shape index: {}]
  %s6 = inlined_call_operand.vmem [shape: f32[3,4,16,1], index: 6, kind: input, shape index: {}]
  %s7 = inlined_call_operand.vmem [shape: bf16[3,48,144], index: 7, kind: input, shape index: {}]
  %s8 = inlined_call_operand.vmem [shape: f32[3,48,1], index: 8, kind: input, shape index: {}]
  %s9 = inlined_call_operand.vmem [shape: f32[3,48,128], index: 9, kind: output, shape index: {}]
  %s10 = sld [smem:[#allocation0]]
  $region69: #{model_forward.2} parent=0
    _
  %s12 = ssub.s32 1, %s10
  %s13 = scalar_select 0, %s12, %s10
  loop: start=0, step=1, limit=5
  $region2: #{model_forward.2} parent=0 // loop_pre_header
    _
  $region3: #{model_forward.2} parent=0 // loop_header
    %s15 = sphi 0, %s19
    %p16 = scmp.ge.s32.totalorder %s15, 5
    %s23 = sphi 0, %s23
    %s25 = sphi 0, %s23
    %s26 = sphi 0, %s25
    %s40 = sphi 0, %s26
    %s46 = sphi 0, %s48
    %s49 = sphi 0, %s46
    %s50 = sphi 0, %s49
    %s66 = sphi 0, %s50
    %s72 = sphi 0, %s74
    %s75 = sphi 0, %s72
    %s76 = sphi 0, %s75
    %s92 = sphi 0, %s76
    %s98 = sphi 0, %s100
    %s101 = sphi 0, %s98
    %s102 = sphi 0, %s101
    %s118 = sphi 0, %s102
    %s124 = sphi 0, %s126
    %s127 = sphi 0, %s124
    %s128 = sphi 0, %s127
    %s144 = sphi 0, %s128
    %s150 = sphi 0, %s152
    %s153 = sphi 0, %s150
    %s154 = sphi 0, %s153
    %s170 = sphi 0, %s154
    %s176 = sphi 0, %s178
    %s179 = sphi 0, %s176
    %s180 = sphi 0, %s179
    %s196 = sphi 0, %s180
    %s202 = sphi 0, %s204
    %s205 = sphi 0, %s202
    %s206 = sphi 0, %s205
    %s222 = sphi 0, %s206
    %s228 = sphi 0, %s230
    %s231 = sphi 0, %s228
    %s232 = sphi 0, %s231
    %s248 = sphi 0, %s232
    %s254 = sphi 0, %s256
    %s257 = sphi 0, %s254
    %s258 = sphi 0, %s257
    %s274 = sphi 0, %s258
  $region4: #{model_forward.2} parent=0 // loop_header_branch
    %18 = sbr.rel (%p16) target = $region8
  $region5: #{model_forward.2} parent=0 // loop_body
    %s20 = ssub.s32 %s15, 1
    %s21 = ssub.s32 %s15, 2
    %s22 = sadd.s32 %s15, 1
    %s24 = sadd.s32 %s23, 1
    %p27 = scmp.eq.s32.totalorder %s15, 2
    %p28 = scmp.ne.s32.totalorder %s23, %s25
    %p29 = scmp.eq.s32.totalorder %s15, 0
    %p30 = por %p28, %p29
    %p31 = scmp.ne.s32.totalorder %s23, %s25
    %p32 = scmp.eq.s32.totalorder %s20, 2
    %p33 = por %p31, %p32
    %p34 = scmp.ne.s32.totalorder %s25, %s26
    %p35 = scmp.eq.s32.totalorder %s20, 0
    %p36 = por %p34, %p35
    %p37 = scmp.ne.s32.totalorder %s25, %s26
    %p38 = scmp.eq.s32.totalorder %s21, 2
    %p39 = por %p37, %p38
    %p41 = scmp.ne.s32.totalorder %s26, %s40
    %p42 = scmp.eq.s32.totalorder %s21, 0
    %p43 = por %p41, %p42
    %s44 = ssub.s32 %s15, %s22
    %p45 = scmp.eq.s32.totalorder %s44, 0
    %s47 = sadd.s32 %s46, 1
    %s48 = scalar_select %p45, %s46, %s47
    %p51 = pneg %p45
    %p52 = scmp.eq.s32.totalorder %s15, 2
    %p53 = por %p51, %p52
    %p54 = scmp.ne.s32.totalorder %s46, %s49
    %p55 = scmp.eq.s32.totalorder %s15, 0
    %p56 = por %p54, %p55
    %p57 = scmp.ne.s32.totalorder %s46, %s49
    %p58 = scmp.eq.s32.totalorder %s20, 2
    %p59 = por %p57, %p58
    %p60 = scmp.ne.s32.totalorder %s49, %s50
    %p61 = scmp.eq.s32.totalorder %s20, 0
    %p62 = por %p60, %p61
    %p63 = scmp.ne.s32.totalorder %s49, %s50
    %p64 = scmp.eq.s32.totalorder %s21, 2
    %p65 = por %p63, %p64
    %p67 = scmp.ne.s32.totalorder %s50, %s66
    %p68 = scmp.eq.s32.totalorder %s21, 0
    %p69 = por %p67, %p68
    %s70 = ssub.s32 %s15, %s22
    %p71 = scmp.eq.s32.totalorder %s70, 0
    %s73 = sadd.s32 %s72, 1
    %s74 = scalar_select %p71, %s72, %s73
    %p77 = pneg %p71
    %p78 = scmp.eq.s32.totalorder %s15, 2
    %p79 = por %p77, %p78
    %p80 = scmp.ne.s32.totalorder %s72, %s75
    %p81 = scmp.eq.s32.totalorder %s15, 0
    %p82 = por %p80, %p81
    %p83 = scmp.ne.s32.totalorder %s72, %s75
    %p84 = scmp.eq.s32.totalorder %s20, 2
    %p85 = por %p83, %p84
    %p86 = scmp.ne.s32.totalorder %s75, %s76
    %p87 = scmp.eq.s32.totalorder %s20, 0
    %p88 = por %p86, %p87
    %p89 = scmp.ne.s32.totalorder %s75, %s76
    %p90 = scmp.eq.s32.totalorder %s21, 2
    %p91 = por %p89, %p90
    %p93 = scmp.ne.s32.totalorder %s76, %s92
    %p94 = scmp.eq.s32.totalorder %s21, 0
    %p95 = por %p93, %p94
    %s96 = ssub.s32 %s15, %s22
    %p97 = scmp.eq.s32.totalorder %s96, 0
    %s99 = sadd.s32 %s98, 1
    %s100 = scalar_select %p97, %s98, %s99
    %p103 = pneg %p97
    %p104 = scmp.eq.s32.totalorder %s15, 2
    %p105 = por %p103, %p104
    %p106 = scmp.ne.s32.totalorder %s98, %s101
    %p107 = scmp.eq.s32.totalorder %s15, 0
    %p108 = por %p106, %p107
    %p109 = scmp.ne.s32.totalorder %s98, %s101
    %p110 = scmp.eq.s32.totalorder %s20, 2
    %p111 = por %p109, %p110
    %p112 = scmp.ne.s32.totalorder %s101, %s102
    %p113 = scmp.eq.s32.totalorder %s20, 0
    %p114 = por %p112, %p113
    %p115 = scmp.ne.s32.totalorder %s101, %s102
    %p116 = scmp.eq.s32.totalorder %s21, 2
    %p117 = por %p115, %p116
    %p119 = scmp.ne.s32.totalorder %s102, %s118
    %p120 = scmp.eq.s32.totalorder %s21, 0
    %p121 = por %p119, %p120
    %s122 = ssub.s32 %s15, %s22
    %p123 = scmp.eq.s32.totalorder %s122, 0
    %s125 = sadd.s32 %s124, 1
    %s126 = scalar_select %p123, %s124, %s125
    %p129 = pneg %p123
    %p130 = scmp.eq.s32.totalorder %s15, 2
    %p131 = por %p129, %p130
    %p132 = scmp.ne.s32.totalorder %s124, %s127
    %p133 = scmp.eq.s32.totalorder %s15, 0
    %p134 = por %p132, %p133
    %p135 = scmp.ne.s32.totalorder %s124, %s127
    %p136 = scmp.eq.s32.totalorder %s20, 2
    %p137 = por %p135, %p136
    %p138 = scmp.ne.s32.totalorder %s127, %s128
    %p139 = scmp.eq.s32.totalorder %s20, 0
    %p140 = por %p138, %p139
    %p141 = scmp.ne.s32.totalorder %s127, %s128
    %p142 = scmp.eq.s32.totalorder %s21, 2
    %p143 = por %p141, %p142
    %p145 = scmp.ne.s32.totalorder %s128, %s144
    %p146 = scmp.eq.s32.totalorder %s21, 0
    %p147 = por %p145, %p146
    %s148 = ssub.s32 %s15, %s22
    %p149 = scmp.eq.s32.totalorder %s148, 0
    %s151 = sadd.s32 %s150, 1
    %s152 = scalar_select %p149, %s150, %s151
    %p155 = pneg %p149
    %p156 = scmp.eq.s32.totalorder %s15, 2
    %p157 = por %p155, %p156
    %p158 = scmp.ne.s32.totalorder %s150, %s153
    %p159 = scmp.eq.s32.totalorder %s15, 0
    %p160 = por %p158, %p159
    %p161 = scmp.ne.s32.totalorder %s150, %s153
    %p162 = scmp.eq.s32.totalorder %s20, 2
    %p163 = por %p161, %p162
    %p164 = scmp.ne.s32.totalorder %s153, %s154
    %p165 = scmp.eq.s32.totalorder %s20, 0
    %p166 = por %p164, %p165
    %p167 = scmp.ne.s32.totalorder %s153, %s154
    %p168 = scmp.eq.s32.totalorder %s21, 2
    %p169 = por %p167, %p168
    %p171 = scmp.ne.s32.totalorder %s154, %s170
    %p172 = scmp.eq.s32.totalorder %s21, 0
    %p173 = por %p171, %p172
    %s174 = ssub.s32 %s15, %s22
    %p175 = scmp.eq.s32.totalorder %s174, 0
    %s177 = sadd.s32 %s176, 1
    %s178 = scalar_select %p175, %s176, %s177
    %p181 = pneg %p175
    %p182 = scmp.eq.s32.totalorder %s15, 2
    %p183 = por %p181, %p182
    %p184 = scmp.ne.s32.totalorder %s176, %s179
    %p185 = scmp.eq.s32.totalorder %s15, 0
    %p186 = por %p184, %p185
    %p187 = scmp.ne.s32.totalorder %s176, %s179
    %p188 = scmp.eq.s32.totalorder %s20, 2
    %p189 = por %p187, %p188
    %p190 = scmp.ne.s32.totalorder %s179, %s180
    %p191 = scmp.eq.s32.totalorder %s20, 0
    %p192 = por %p190, %p191
    %p193 = scmp.ne.s32.totalorder %s179, %s180
    %p194 = scmp.eq.s32.totalorder %s21, 2
    %p195 = por %p193, %p194
    %p197 = scmp.ne.s32.totalorder %s180, %s196
    %p198 = scmp.eq.s32.totalorder %s21, 0
    %p199 = por %p197, %p198
    %s200 = ssub.s32 %s15, %s22
    %p201 = scmp.eq.s32.totalorder %s200, 0
    %s203 = sadd.s32 %s202, 1
    %s204 = scalar_select %p201, %s202, %s203
    %p207 = pneg %p201
    %p208 = scmp.eq.s32.totalorder %s15, 2
    %p209 = por %p207, %p208
    %p210 = scmp.ne.s32.totalorder %s202, %s205
    %p211 = scmp.eq.s32.totalorder %s15, 0
    %p212 = por %p210, %p211
    %p213 = scmp.ne.s32.totalorder %s202, %s205
    %p214 = scmp.eq.s32.totalorder %s20, 2
    %p215 = por %p213, %p214
    %p216 = scmp.ne.s32.totalorder %s205, %s206
    %p217 = scmp.eq.s32.totalorder %s20, 0
    %p218 = por %p216, %p217
    %p219 = scmp.ne.s32.totalorder %s205, %s206
    %p220 = scmp.eq.s32.totalorder %s21, 2
    %p221 = por %p219, %p220
    %p223 = scmp.ne.s32.totalorder %s206, %s222
    %p224 = scmp.eq.s32.totalorder %s21, 0
    %p225 = por %p223, %p224
    %s226 = ssub.s32 %s15, %s22
    %p227 = scmp.eq.s32.totalorder %s226, 0
    %s229 = sadd.s32 %s228, 1
    %s230 = scalar_select %p227, %s228, %s229
    %p233 = pneg %p227
    %p234 = scmp.eq.s32.totalorder %s15, 2
    %p235 = por %p233, %p234
    %p236 = scmp.ne.s32.totalorder %s228, %s231
    %p237 = scmp.eq.s32.totalorder %s15, 0
    %p238 = por %p236, %p237
    %p239 = scmp.ne.s32.totalorder %s228, %s231
    %p240 = scmp.eq.s32.totalorder %s20, 2
    %p241 = por %p239, %p240
    %p242 = scmp.ne.s32.totalorder %s231, %s232
    %p243 = scmp.eq.s32.totalorder %s20, 0
    %p244 = por %p242, %p243
    %p245 = scmp.ne.s32.totalorder %s231, %s232
    %p246 = scmp.eq.s32.totalorder %s21, 2
    %p247 = por %p245, %p246
    %p249 = scmp.ne.s32.totalorder %s232, %s248
    %p250 = scmp.eq.s32.totalorder %s21, 0
    %p251 = por %p249, %p250
    %s252 = ssub.s32 %s15, %s22
    %p253 = scmp.eq.s32.totalorder %s252, 0
    %s255 = sadd.s32 %s254, 1
    %s256 = scalar_select %p253, %s254, %s255
    %p259 = pneg %p253
    %p260 = scmp.eq.s32.totalorder %s15, 2
    %p261 = por %p259, %p260
    %p262 = scmp.ne.s32.totalorder %s254, %s257
    %p263 = scmp.eq.s32.totalorder %s15, 0
    %p264 = por %p262, %p263
    %p265 = scmp.ne.s32.totalorder %s254, %s257
    %p266 = scmp.eq.s32.totalorder %s20, 2
    %p267 = por %p265, %p266
    %p268 = scmp.ne.s32.totalorder %s257, %s258
    %p269 = scmp.eq.s32.totalorder %s20, 0
    %p270 = por %p268, %p269
    %p271 = scmp.ne.s32.totalorder %s257, %s258
    %p272 = scmp.eq.s32.totalorder %s21, 2
    %p273 = por %p271, %p272
    %p275 = scmp.ne.s32.totalorder %s258, %s274
    %p276 = scmp.eq.s32.totalorder %s21, 0
    %p277 = por %p275, %p276
    %p278 = scmp.le.s32.totalorder 1, %s15
    %p279 = scmp.lt.s32.totalorder %s15, 4
    %p280 = pnand %p278, %p279
    %p281 = pneg %p280
    // Predicated region
    $region9: #{model_forward.2} parent=5 // pred_check
      _
    $region10: #{model_forward.2} parent=5 // pred_check_branch
      %283 = sbr.rel (%p280) target = $region12
    $region11: #{model_forward.2} parent=5 // pred_region
      %s284 = ssub.s32 %s15, 1
      // Predicated region
      $region13: #{model_forward.2} parent=11 // pred_check
        %p285 = pneg %p36
      $region14: #{model_forward.2} parent=11 // pred_check_branch
        %287 = sbr.rel (%p285) target = $region16
      $region15: #{model_forward.2} parent=11 // pred_region
        _
      $region16: #{model_forward.2} parent=11 // pred_fallthru
        _
    $region12: #{model_forward.2} parent=5 // pred_fallthru
      _
    %p288 = scmp.lt.s32.totalorder %s15, 3
    // Predicated region
    $region17: #{model_forward.2} parent=5 // pred_check
      %p289 = pneg %p288
    $region18: #{model_forward.2} parent=5 // pred_check_branch
      %291 = sbr.rel (%p289) target = $region20
    $region19: #{model_forward.2} parent=5 // pred_region
      // Predicated region
      $region21: #{model_forward.2} parent=19 // pred_check
        %p292 = pneg %p56
      $region22: #{model_forward.2} parent=19 // pred_check_branch
        %294 = sbr.rel (%p292) target = $region24
      $region23: #{model_forward.2} parent=19 // pred_region
        %p295 = scmp.lt.s32.totalorder %s15, 2
        %s296 = scalar_select %p295, %s15, 2
        %s297 = smul.addr %s296, 8
        %s298 = scalar_lea.vmem %s1, %s297
      $region24: #{model_forward.2} parent=19 // pred_fallthru
        _
      // Predicated region
      $region25: #{model_forward.2} parent=19 // pred_check
        %p299 = pneg %p82
      $region26: #{model_forward.2} parent=19 // pred_check_branch
        %301 = sbr.rel (%p299) target = $region28
      $region27: #{model_forward.2} parent=19 // pred_region
        %p302 = scmp.lt.s32.totalorder %s15, 2
        %s303 = scalar_select %p302, %s15, 2
        %s304 = smul.addr %s303, 6
        %s305 = smul.addr %s304, 8
        %s306 = scalar_lea.vmem %s2, %s305
      $region28: #{model_forward.2} parent=19 // pred_fallthru
        _
      // Predicated region
      $region29: #{model_forward.2} parent=19 // pred_check
        %p307 = pneg %p108
      $region30: #{model_forward.2} parent=19 // pred_check_branch
        %309 = sbr.rel (%p307) target = $region32
      $region31: #{model_forward.2} parent=19 // pred_region
        %p310 = scmp.lt.s32.totalorder %s15, 2
        %s311 = scalar_select %p310, %s15, 2
        %s312 = smul.addr %s311, 2
        %s313 = smul.addr %s312, 4
        %s314 = scalar_lea.vmem %s3, %s313
      $region32: #{model_forward.2} parent=19 // pred_fallthru
        _
      // Predicated region
      $region33: #{model_forward.2} parent=19 // pred_check
        %p315 = pneg %p134
      $region34: #{model_forward.2} parent=19 // pred_check_branch
        %317 = sbr.rel (%p315) target = $region36
      $region35: #{model_forward.2} parent=19 // pred_region
        %p318 = scmp.lt.s32.totalorder %s15, 2
        %s319 = scalar_select %p318, %s15, 2
        %s320 = smul.addr %s319, 2
        %s321 = smul.addr %s320, 8
        %s322 = scalar_lea.vmem %s4, %s321
      $region36: #{model_forward.2} parent=19 // pred_fallthru
        _
      // Predicated region
      $region37: #{model_forward.2} parent=19 // pred_check
        %p323 = pneg %p160
      $region38: #{model_forward.2} parent=19 // pred_check_branch
        %325 = sbr.rel (%p323) target = $region40
      $region39: #{model_forward.2} parent=19 // pred_region
        %p326 = scmp.lt.s32.totalorder %s15, 2
        %s327 = scalar_select %p326, %s15, 2
        %s328 = smul.addr %s327, 16
        %s329 = smul.addr %s328, 4
        %s330 = scalar_lea.vmem %s5, %s329
      $region40: #{model_forward.2} parent=19 // pred_fallthru
        _
      // Predicated region
      $region41: #{model_forward.2} parent=19 // pred_check
        %p331 = pneg %p186
      $region42: #{model_forward.2} parent=19 // pred_check_branch
        %333 = sbr.rel (%p331) target = $region44
      $region43: #{model_forward.2} parent=19 // pred_region
        %p334 = scmp.lt.s32.totalorder %s15, 2
        %s335 = scalar_select %p334, %s15, 2
        %s336 = smul.addr %s335, 8
        %s337 = smul.addr %s336, 8
        %s338 = scalar_lea.vmem %s6, %s337
      $region44: #{model_forward.2} parent=19 // pred_fallthru
        _
      // Predicated region
      $region45: #{model_forward.2} parent=19 // pred_check
        %p339 = pneg %p212
      $region46: #{model_forward.2} parent=19 // pred_check_branch
        %341 = sbr.rel (%p339) target = $region48
      $region47: #{model_forward.2} parent=19 // pred_region
        %p342 = scmp.lt.s32.totalorder %s15, 2
        %s343 = scalar_select %p342, %s15, 2
        %s344 = smul.addr %s343, 12
        %s345 = smul.addr %s344, 4
        %s346 = scalar_lea.vmem %s7, %s345
      $region48: #{model_forward.2} parent=19 // pred_fallthru
        _
      // Predicated region
      $region49: #{model_forward.2} parent=19 // pred_check
        %p347 = pneg %p238
      $region50: #{model_forward.2} parent=19 // pred_check_branch
        %349 = sbr.rel (%p347) target = $region52
      $region51: #{model_forward.2} parent=19 // pred_region
        %p350 = scmp.lt.s32.totalorder %s15, 2
        %s351 = scalar_select %p350, %s15, 2
        %s352 = smul.addr %s351, 6
        %s353 = smul.addr %s352, 8
        %s354 = scalar_lea.vmem %s8, %s353
      $region52: #{model_forward.2} parent=19 // pred_fallthru
        _
    $region20: #{model_forward.2} parent=5 // pred_fallthru
      _
    %p355 = scmp.le.s32.totalorder 1, %s15
    %p356 = scmp.lt.s32.totalorder %s15, 4
    %p357 = pnand %p355, %p356
    %p358 = pneg %p357
    // Predicated region
    $region53: #{model_forward.2} parent=5 // pred_check
      _
    $region54: #{model_forward.2} parent=5 // pred_check_branch
      %360 = sbr.rel (%p357) target = $region56
    $region55: #{model_forward.2} parent=5 // pred_region
      %s361 = ssub.s32 %s15, 1
      %p362 = pneg %p36
      %p363 = pneg %p33
      %p364 = scmp.lt.s32.totalorder %s20, 2
      %s365 = scalar_select %p364, %s20, 2
      %s366 = smul.addr %s365, 8
      %s367 = scalar_lea.vmem %s1, %s366
      %p368 = pneg %p62
      %p369 = pneg %p59
      %p370 = scmp.lt.s32.totalorder %s20, 2
      %s371 = scalar_select %p370, %s20, 2
      %s372 = smul.addr %s371, 6
      %s373 = smul.addr %s372, 8
      %s374 = scalar_lea.vmem %s2, %s373
      %p375 = pneg %p88
      %p376 = pneg %p85
      %p377 = scmp.lt.s32.totalorder %s20, 2
      %s378 = scalar_select %p377, %s20, 2
      %s379 = smul.addr %s378, 2
      %s380 = smul.addr %s379, 4
      %s381 = scalar_lea.vmem %s3, %s380
      %p382 = pneg %p114
      %p383 = pneg %p111
      %p384 = scmp.lt.s32.totalorder %s20, 2
      %s385 = scalar_select %p384, %s20, 2
      %s386 = smul.addr %s385, 2
      %s387 = smul.addr %s386, 8
      %s388 = scalar_lea.vmem %s4, %s387
      %p389 = pneg %p140
      %p390 = pneg %p137
      %p391 = scmp.lt.s32.totalorder %s20, 2
      %s392 = scalar_select %p391, %s20, 2
      %s393 = smul.addr %s392, 16
      %s394 = smul.addr %s393, 4
      %s395 = scalar_lea.vmem %s5, %s394
      %p396 = pneg %p166
      %p397 = pneg %p163
      %p398 = scmp.lt.s32.totalorder %s20, 2
      %s399 = scalar_select %p398, %s20, 2
      %s400 = smul.addr %s399, 8
      %s401 = smul.addr %s400, 8
      %s402 = scalar_lea.vmem %s6, %s401
      %p403 = pneg %p192
      %p404 = pneg %p189
      %p405 = scmp.lt.s32.totalorder %s20, 2
      %s406 = scalar_select %p405, %s20, 2
      %s407 = smul.addr %s406, 12
      %s408 = smul.addr %s407, 4
      %s409 = scalar_lea.vmem %s7, %s408
      %p410 = pneg %p218
      %p411 = pneg %p215
      %p412 = scmp.lt.s32.totalorder %s20, 2
      %s413 = scalar_select %p412, %s20, 2
      %s414 = smul.addr %s413, 6
      %s415 = smul.addr %s414, 8
      %s416 = scalar_lea.vmem %s8, %s415
      %p417 = pneg %p244
      %p418 = pneg %p241
      %p419 = pneg %p270
      %p420 = pneg %p267
      %p421 = scmp.lt.s32.totalorder %s20, 2
      %s422 = scalar_select %p421, %s20, 2
      %s423 = smul.addr %s422, 6
      %s424 = smul.addr %s423, 8
      %s425 = scalar_lea.vmem %s9, %s424
      %p426 = scmp.lt.s32.totalorder %s20, 2
      %s427 = scalar_select %p426, %s20, 2
      %s428 = smul.addr %s427, 8
      %s429 = scalar_lea.vmem %s1, %s428
      %p430 = scmp.lt.s32.totalorder %s20, 2
      %s431 = scalar_select %p430, %s20, 2
      %s432 = smul.addr %s431, 6
      %s433 = smul.addr %s432, 8
      %s434 = scalar_lea.vmem %s2, %s433
      %p435 = scmp.lt.s32.totalorder %s20, 2
      %s436 = scalar_select %p435, %s20, 2
      %s437 = smul.addr %s436, 2
      %s438 = smul.addr %s437, 4
      %s439 = scalar_lea.vmem %s3, %s438
      %p440 = scmp.lt.s32.totalorder %s20, 2
      %s441 = scalar_select %p440, %s20, 2
      %s442 = smul.addr %s441, 2
      %s443 = smul.addr %s442, 8
      %s444 = scalar_lea.vmem %s4, %s443
      %p445 = scmp.lt.s32.totalorder %s20, 2
      %s446 = scalar_select %p445, %s20, 2
      %s447 = smul.addr %s446, 16
      %s448 = smul.addr %s447, 4
      %s449 = scalar_lea.vmem %s5, %s448
      %p450 = scmp.lt.s32.totalorder %s20, 2
      %s451 = scalar_select %p450, %s20, 2
      %s452 = smul.addr %s451, 8
      %s453 = smul.addr %s452, 8
      %s454 = scalar_lea.vmem %s6, %s453
      %p455 = scmp.lt.s32.totalorder %s20, 2
      %s456 = scalar_select %p455, %s20, 2
      %s457 = smul.addr %s456, 12
      %s458 = smul.addr %s457, 4
      %s459 = scalar_lea.vmem %s7, %s458
      %p460 = scmp.lt.s32.totalorder %s20, 2
      %s461 = scalar_select %p460, %s20, 2
      %s462 = smul.addr %s461, 6
      %s463 = smul.addr %s462, 8
      %s464 = scalar_lea.vmem %s8, %s463
      %p465 = scmp.lt.s32.totalorder %s20, 2
      %s466 = scalar_select %p465, %s20, 2
      %s467 = smul.addr %s466, 6
      %s468 = smul.addr %s467, 8
      %s469 = scalar_lea.vmem %s9, %s468
      %v471 = vld [vmem:[%s0] sm:$0x1]
      %s472 = scalar_lea.vmem %s0, 1
      %v473 = vld [vmem:[%s472] sm:$0x1]
      %s474 = scalar_lea.vmem %s0, 2
      %v475 = vld [vmem:[%s474] sm:$0x1]
      %s476 = scalar_lea.vmem %s0, 3
      %v477 = vld [vmem:[%s476] sm:$0x1]
      %s478 = scalar_lea.vmem %s0, 5
      %v479 = vld [vmem:[%s478] sm:$0x1]
      %s480 = scalar_lea.vmem %s0, 6
      %v481 = vld [vmem:[%s480] sm:$0x1]
      %s482 = scalar_lea.vmem %s0, 7
      %v483 = vld [vmem:[%s482] sm:$0x1]
      %s484 = scalar_lea.vmem %s0, 8
      %v485 = vld [vmem:[%s484] sm:$0x1]
      %v486 = vld [vmem:[%s429] sm:$0xff]
      %v487 = vld [vmem:[%s439] sm:$0xf]
      %v488 = vld [vmem:[%s439 + $0x4] sm:$0xf]
      %v489 = vld [vmem:[%s444] sm:$0xff]
      %v490 = vld [vmem:[%s444 + $0x8] sm:$0xff]
      %491 = vrot.lane.b32.xlu0 %v486, 9
      %v492 = vpop.permute.xlu0 %491
      %v494 = vperm.slane %v471, 0
      %v496 = vmul.f32 %v492, %v494
      %497 = vrot.lane.b32.xlu0 %v486, 8
      %v498 = vpop.permute.xlu0 %497
      %v500 = vperm.slane %v473, 0
      %v502 = vmul.f32 %v498, %v500
      %503 = vrot.lane.b32.xlu0 %v486, 7
      %v504 = vpop.permute.xlu0 %503
      %v506 = vperm.slane %v475, 0
      %v508 = vmul.f32 %v504, %v506
      %509 = vrot.lane.b32.xlu0 %v486, 1
      %v510 = vpop.permute.xlu0 %509
      %v512 = vperm.slane %v477, 0
      %v514 = vmul.f32 %v510, %v512
      %515 = vrot.lane.b32.xlu0 %v486, 127
      %v516 = vpop.permute.xlu0 %515
      %v518 = vperm.slane %v479, 0
      %v520 = vmul.f32 %v516, %v518
      %521 = vrot.lane.b32.xlu0 %v486, 121
      %v522 = vpop.permute.xlu0 %521
      %v524 = vperm.slane %v481, 0
      %v526 = vmul.f32 %v522, %v524
      %527 = vrot.lane.b32.xlu0 %v486, 120
      %v528 = vpop.permute.xlu0 %527
      %v530 = vperm.slane %v483, 0
      %v532 = vmul.f32 %v528, %v530
      %533 = vrot.lane.b32.xlu0 %v486, 119
      %v534 = vpop.permute.xlu0 %533
      %v536 = vperm.slane %v485, 0
      %v538 = vmul.f32 %v534, %v536
      %v539 = vpack.c.bf16 %v502, %v496
      %v540 = vpack.c.bf16 %v514, %v508
      %v541 = vpack.c.bf16 %v520, %v486
      %v542 = vpack.c.bf16 %v532, %v526
      %v543 = vpack.c.bf16 %v538, %v538
      %545 = vset.pattern.permute.xlu0 0
      %546 = vperm.xlu0 %545, %v489
      %v547 = vpop.permute.xlu0 %546
      %550 = vset.pattern.permute.xlu0 0
      %551 = vperm.xlu0 %550, %v490
      %v552 = vpop.permute.xlu0 %551
      %v556 = vunpack.c.l.b16 %v487
      %v557 = vunpack.c.l.b16 %v488
      %v558 = vpack.c.b16 %v557, %v556
      %vm559 = vcmask 588800
      %v561 = vsel %vm559, %v558, 0
      %vm563 = vcmask 1043456
      %v565 = vsel %vm563, %v543, 0
      %567 = vmatpush.bf16.msra.mxu0 0
      %568 = vmatpush.bf16.msra.mxu0 0
      %569 = vmatpush.bf16.msra.mxu0 0
      %570 = vmatpush.bf16.msra.mxu0 %v565
      %571 = vmatpush.bf16.msra.mxu0 %v542
      %572 = vmatpush.bf16.msra.mxu0 %v541
      %573 = vmatpush.bf16.msra.mxu0 %v540
      %574 = vmatpush.bf16.msra.mxu0 %v539
      %575 = vmatmul.bf16.gmra.mxu0 %v561
      %v576 = vpop.f32.mrf.mxu0
      %v577 = vadd.f32 %v547, %v576
      %v578 = vpop.f32.mrf.mxu0
      %v579 = vadd.f32 %v552, %v578
      %580 = vdwg.mxu0
      %v581 = vmax.f32 %v577, 0.0
      %v582 = vmax.f32 %v579, 0.0
      %v583 = vld [vmem:[%s449] sm:$0xff]
      %v584 = vld [vmem:[%s449 + $0x8] sm:$0xff]
      %v585 = vld [vmem:[%s454] sm:$0xff]
      %v586 = vld [vmem:[%s454 + $0x8] sm:$0xff]
      %587 = vrot.lane.b32.xlu0 %v581, 9
      %v588 = vpop.permute.xlu0 %587
      %589 = vrot.lane.b32.xlu0 %v582, 9
      %v590 = vpop.permute.xlu0 %589
      %v591 = vmul.f32 %v588, %v494
      %v592 = vmul.f32 %v590, %v494
      %593 = vrot.lane.b32.xlu0 %v581, 8
      %v594 = vpop.permute.xlu0 %593
      %595 = vrot.lane.b32.xlu0 %v582, 8
      %v596 = vpop.permute.xlu0 %595
      %v597 = vmul.f32 %v594, %v500
      %v598 = vmul.f32 %v596, %v500
      %599 = vrot.lane.b32.xlu0 %v581, 7
      %v600 = vpop.permute.xlu0 %599
      %601 = vrot.lane.b32.xlu0 %v582, 7
      %v602 = vpop.permute.xlu0 %601
      %v603 = vmul.f32 %v600, %v506
      %v604 = vmul.f32 %v602, %v506
      %605 = vrot.lane.b32.xlu0 %v581, 1
      %v606 = vpop.permute.xlu0 %605
      %607 = vrot.lane.b32.xlu0 %v582, 1
      %v608 = vpop.permute.xlu0 %607
      %v609 = vmul.f32 %v606, %v512
      %v610 = vmul.f32 %v608, %v512
      %611 = vrot.lane.b32.xlu0 %v581, 127
      %v612 = vpop.permute.xlu0 %611
      %613 = vrot.lane.b32.xlu0 %v582, 127
      %v614 = vpop.permute.xlu0 %613
      %v615 = vmul.f32 %v612, %v518
      %v616 = vmul.f32 %v614, %v518
      %617 = vrot.lane.b32.xlu0 %v581, 121
      %v618 = vpop.permute.xlu0 %617
      %619 = vrot.lane.b32.xlu0 %v582, 121
      %v620 = vpop.permute.xlu0 %619
      %v621 = vmul.f32 %v618, %v524
      %v622 = vmul.f32 %v620, %v524
      %623 = vrot.lane.b32.xlu0 %v581, 120
      %v624 = vpop.permute.xlu0 %623
      %625 = vrot.lane.b32.xlu0 %v582, 120
      %v626 = vpop.permute.xlu0 %625
      %v627 = vmul.f32 %v624, %v530
      %v628 = vmul.f32 %v626, %v530
      %629 = vrot.lane.b32.xlu0 %v581, 119
      %v630 = vpop.permute.xlu0 %629
      %631 = vrot.lane.b32.xlu0 %v582, 119
      %v632 = vpop.permute.xlu0 %631
      %v633 = vmul.f32 %v630, %v536
      %v634 = vmul.f32 %v632, %v536
      %v635 = vpack.c.bf16 %v592, %v591
      %v636 = vpack.c.bf16 %v598, %v597
      %v637 = vpack.c.bf16 %v604, %v603
      %v638 = vpack.c.bf16 %v610, %v609
      %v639 = vpack.c.bf16 %v582, %v581
      %v640 = vpack.c.bf16 %v616, %v615
      %v641 = vpack.c.bf16 %v622, %v621
      %v642 = vpack.c.bf16 %v628, %v627
      %v643 = vpack.c.bf16 %v634, %v633
      %645 = vset.pattern.permute.xlu0 0
      %646 = vperm.xlu0 %645, %v585
      %v647 = vpop.permute.xlu0 %646
      %650 = vset.pattern.permute.xlu0 0
      %651 = vperm.xlu0 %650, %v586
      %v652 = vpop.permute.xlu0 %651
      %v656 = vunpack.c.l.b16 %v583
      %v657 = vunpack.c.h.b16 %v583
      %v658 = vunpack.c.l.b16 %v584
      %v659 = vunpack.c.h.b16 %v584
      %v660 = vpack.c.b16 %v658, %v656
      %v661 = vpack.c.b16 %v659, %v657
      %vm663 = vcmask 130048
      %v665 = vsel %vm663, %v661, 0
      %667 = vmatpush.bf16.msra.mxu0 %v642
      %668 = vmatpush.bf16.msra.mxu0 %v641
      %669 = vmatpush.bf16.msra.mxu0 %v640
      %670 = vmatpush.bf16.msra.mxu0 %v639
      %671 = vmatpush.bf16.msra.mxu0 %v638
      %672 = vmatpush.bf16.msra.mxu0 %v637
      %673 = vmatpush.bf16.msra.mxu0 %v636
      %674 = vmatpush.bf16.msra.mxu0 %v635
      %675 = vmatmul.bf16.gmra.mxu0 %v660
      %v676 = vpop.f32.mrf.mxu0
      %v677 = vadd.f32 %v647, %v676
      %v678 = vpop.f32.mrf.mxu0
      %v679 = vadd.f32 %v652, %v678
      %680 = vdwg.mxu0
      %681 = vmatpush.bf16.msra.mxu0 0
      %682 = vmatpush.bf16.msra.mxu0 0
      %683 = vmatpush.bf16.msra.mxu0 0
      %684 = vmatpush.bf16.msra.mxu0 0
      %685 = vmatpush.bf16.msra.mxu0 0
      %686 = vmatpush.bf16.msra.mxu0 0
      %687 = vmatpush.bf16.msra.mxu0 0
      %688 = vmatpush.bf16.msra.mxu0 %v643
      %689 = vmatmul.bf16.gmra.mxu0 %v665
      %v690 = vpop.f32.mrf.mxu0
      %v691 = vadd.f32 %v677, %v690
      %v692 = vpop.f32.mrf.mxu0
      %v693 = vadd.f32 %v679, %v692
      %694 = vdwg.mxu0
      %v695 = vmax.f32 %v691, 0.0
      %v696 = vmax.f32 %v693, 0.0
      %s697 = scalar_lea.vmem %s449, 16
      %v698 = vld [vmem:[%s697] sm:$0xff]
      %v699 = vld [vmem:[%s697 + $0x8] sm:$0xff]
      %s700 = scalar_lea.vmem %s454, 16
      %v701 = vld [vmem:[%s700] sm:$0xff]
      %v702 = vld [vmem:[%s700 + $0x8] sm:$0xff]
      %703 = vrot.lane.b32.xlu0 %v695, 9
      %v704 = vpop.permute.xlu0 %703
      %705 = vrot.lane.b32.xlu0 %v696, 9
      %v706 = vpop.permute.xlu0 %705
      %v707 = vmul.f32 %v704, %v494
      %v708 = vmul.f32 %v706, %v494
      %709 = vrot.lane.b32.xlu0 %v695, 8
      %v710 = vpop.permute.xlu0 %709
      %711 = vrot.lane.b32.xlu0 %v696, 8
      %v712 = vpop.permute.xlu0 %711
      %v713 = vmul.f32 %v710, %v500
      %v714 = vmul.f32 %v712, %v500
      %715 = vrot.lane.b32.xlu0 %v695, 7
      %v716 = vpop.permute.xlu0 %715
      %717 = vrot.lane.b32.xlu0 %v696, 7
      %v718 = vpop.permute.xlu0 %717
      %v719 = vmul.f32 %v716, %v506
      %v720 = vmul.f32 %v718, %v506
      %721 = vrot.lane.b32.xlu0 %v695, 1
      %v722 = vpop.permute.xlu0 %721
      %723 = vrot.lane.b32.xlu0 %v696, 1
      %v724 = vpop.permute.xlu0 %723
      %v725 = vmul.f32 %v722, %v512
      %v726 = vmul.f32 %v724, %v512
      %727 = vrot.lane.b32.xlu0 %v695, 127
      %v728 = vpop.permute.xlu0 %727
      %729 = vrot.lane.b32.xlu0 %v696, 127
      %v730 = vpop.permute.xlu0 %729
      %v731 = vmul.f32 %v728, %v518
      %v732 = vmul.f32 %v730, %v518
      %733 = vrot.lane.b32.xlu0 %v695, 121
      %v734 = vpop.permute.xlu0 %733
      %735 = vrot.lane.b32.xlu0 %v696, 121
      %v736 = vpop.permute.xlu0 %735
      %v737 = vmul.f32 %v734, %v524
      %v738 = vmul.f32 %v736, %v524
      %739 = vrot.lane.b32.xlu0 %v695, 120
      %v740 = vpop.permute.xlu0 %739
      %741 = vrot.lane.b32.xlu0 %v696, 120
      %v742 = vpop.permute.xlu0 %741
      %v743 = vmul.f32 %v740, %v530
      %v744 = vmul.f32 %v742, %v530
      %745 = vrot.lane.b32.xlu0 %v695, 119
      %v746 = vpop.permute.xlu0 %745
      %747 = vrot.lane.b32.xlu0 %v696, 119
      %v748 = vpop.permute.xlu0 %747
      %v749 = vmul.f32 %v746, %v536
      %v750 = vmul.f32 %v748, %v536
      %v751 = vpack.c.bf16 %v708, %v707
      %v752 = vpack.c.bf16 %v714, %v713
      %v753 = vpack.c.bf16 %v720, %v719
      %v754 = vpack.c.bf16 %v726, %v725
      %v755 = vpack.c.bf16 %v696, %v695
      %v756 = vpack.c.bf16 %v732, %v731
      %v757 = vpack.c.bf16 %v738, %v737
      %v758 = vpack.c.bf16 %v744, %v743
      %v759 = vpack.c.bf16 %v750, %v749
      %761 = vset.pattern.permute.xlu0 0
      %762 = vperm.xlu0 %761, %v701
      %v763 = vpop.permute.xlu0 %762
      %766 = vset.pattern.permute.xlu0 0
      %767 = vperm.xlu0 %766, %v702
      %v768 = vpop.permute.xlu0 %767
      %v772 = vunpack.c.l.b16 %v698
      %v773 = vunpack.c.h.b16 %v698
      %v774 = vunpack.c.l.b16 %v699
      %v775 = vunpack.c.h.b16 %v699
      %v776 = vpack.c.b16 %v774, %v772
      %v777 = vpack.c.b16 %v775, %v773
      %v780 = vsel %vm663, %v777, 0
      %782 = vmatpush.bf16.msra.mxu0 %v758
      %783 = vmatpush.bf16.msra.mxu0 %v757
      %784 = vmatpush.bf16.msra.mxu0 %v756
      %785 = vmatpush.bf16.msra.mxu0 %v755
      %786 = vmatpush.bf16.msra.mxu0 %v754
      %787 = vmatpush.bf16.msra.mxu0 %v753
      %788 = vmatpush.bf16.msra.mxu0 %v752
      %789 = vmatpush.bf16.msra.mxu0 %v751
      %790 = vmatmul.bf16.gmra.mxu0 %v776
      %v791 = vpop.f32.mrf.mxu0
      %v792 = vadd.f32 %v763, %v791
      %v793 = vpop.f32.mrf.mxu0
      %v794 = vadd.f32 %v768, %v793
      %795 = vdwg.mxu0
      %796 = vmatpush.bf16.msra.mxu0 0
      %797 = vmatpush.bf16.msra.mxu0 0
      %798 = vmatpush.bf16.msra.mxu0 0
      %799 = vmatpush.bf16.msra.mxu0 0
      %800 = vmatpush.bf16.msra.mxu0 0
      %801 = vmatpush.bf16.msra.mxu0 0
      %802 = vmatpush.bf16.msra.mxu0 0
      %803 = vmatpush.bf16.msra.mxu0 %v759
      %804 = vmatmul.bf16.gmra.mxu0 %v780
      %v805 = vpop.f32.mrf.mxu0
      %v806 = vadd.f32 %v792, %v805
      %v807 = vpop.f32.mrf.mxu0
      %v808 = vadd.f32 %v794, %v807
      %809 = vdwg.mxu0
      %v810 = vadd.f32 %v577, %v806
      %v811 = vadd.f32 %v579, %v808
      %v812 = vmax.f32 %v810, 0.0
      %v813 = vmax.f32 %v811, 0.0
      %s814 = scalar_lea.vmem %s449, 32
      %v815 = vld [vmem:[%s814] sm:$0xff]
      %v816 = vld [vmem:[%s814 + $0x8] sm:$0xff]
      %s817 = scalar_lea.vmem %s454, 32
      %v818 = vld [vmem:[%s817] sm:$0xff]
      %v819 = vld [vmem:[%s817 + $0x8] sm:$0xff]
      %820 = vrot.lane.b32.xlu0 %v812, 9
      %v821 = vpop.permute.xlu0 %820
      %822 = vrot.lane.b32.xlu0 %v813, 9
      %v823 = vpop.permute.xlu0 %822
      %v824 = vmul.f32 %v821, %v494
      %v825 = vmul.f32 %v823, %v494
      %826 = vrot.lane.b32.xlu0 %v812, 8
      %v827 = vpop.permute.xlu0 %826
      %828 = vrot.lane.b32.xlu0 %v813, 8
      %v829 = vpop.permute.xlu0 %828
      %v830 = vmul.f32 %v827, %v500
      %v831 = vmul.f32 %v829, %v500
      %832 = vrot.lane.b32.xlu0 %v812, 7
      %v833 = vpop.permute.xlu0 %832
      %834 = vrot.lane.b32.xlu0 %v813, 7
      %v835 = vpop.permute.xlu0 %834
      %v836 = vmul.f32 %v833, %v506
      %v837 = vmul.f32 %v835, %v506
      %838 = vrot.lane.b32.xlu0 %v812, 1
      %v839 = vpop.permute.xlu0 %838
      %840 = vrot.lane.b32.xlu0 %v813, 1
      %v841 = vpop.permute.xlu0 %840
      %v842 = vmul.f32 %v839, %v512
      %v843 = vmul.f32 %v841, %v512
      %844 = vrot.lane.b32.xlu0 %v812, 127
      %v845 = vpop.permute.xlu0 %844
      %846 = vrot.lane.b32.xlu0 %v813, 127
      %v847 = vpop.permute.xlu0 %846
      %v848 = vmul.f32 %v845, %v518
      %v849 = vmul.f32 %v847, %v518
      %850 = vrot.lane.b32.xlu0 %v812, 121
      %v851 = vpop.permute.xlu0 %850
      %852 = vrot.lane.b32.xlu0 %v813, 121
      %v853 = vpop.permute.xlu0 %852
      %v854 = vmul.f32 %v851, %v524
      %v855 = vmul.f32 %v853, %v524
      %856 = vrot.lane.b32.xlu0 %v812, 120
      %v857 = vpop.permute.xlu0 %856
      %858 = vrot.lane.b32.xlu0 %v813, 120
      %v859 = vpop.permute.xlu0 %858
      %v860 = vmul.f32 %v857, %v530
      %v861 = vmul.f32 %v859, %v530
      %862 = vrot.lane.b32.xlu0 %v812, 119
      %v863 = vpop.permute.xlu0 %862
      %864 = vrot.lane.b32.xlu0 %v813, 119
      %v865 = vpop.permute.xlu0 %864
      %v866 = vmul.f32 %v863, %v536
      %v867 = vmul.f32 %v865, %v536
      %v868 = vpack.c.bf16 %v825, %v824
      %v869 = vpack.c.bf16 %v831, %v830
      %v870 = vpack.c.bf16 %v837, %v836
      %v871 = vpack.c.bf16 %v843, %v842
      %v872 = vpack.c.bf16 %v813, %v812
      %v873 = vpack.c.bf16 %v849, %v848
      %v874 = vpack.c.bf16 %v855, %v854
      %v875 = vpack.c.bf16 %v861, %v860
      %v876 = vpack.c.bf16 %v867, %v866
      %878 = vset.pattern.permute.xlu0 0
      %879 = vperm.xlu0 %878, %v818
      %v880 = vpop.permute.xlu0 %879
      %883 = vset.pattern.permute.xlu0 0
      %884 = vperm.xlu0 %883, %v819
      %v885 = vpop.permute.xlu0 %884
      %v889 = vunpack.c.l.b16 %v815
      %v890 = vunpack.c.h.b16 %v815
      %v891 = vunpack.c.l.b16 %v816
      %v892 = vunpack.c.h.b16 %v816
      %v893 = vpack.c.b16 %v891, %v889
      %v894 = vpack.c.b16 %v892, %v890
      %v897 = vsel %vm663, %v894, 0
      %899 = vmatpush.bf16.msra.mxu0 %v875
      %900 = vmatpush.bf16.msra.mxu0 %v874
      %901 = vmatpush.bf16.msra.mxu0 %v873
      %902 = vmatpush.bf16.msra.mxu0 %v872
      %903 = vmatpush.bf16.msra.mxu0 %v871
      %904 = vmatpush.bf16.msra.mxu0 %v870
      %905 = vmatpush.bf16.msra.mxu0 %v869
      %906 = vmatpush.bf16.msra.mxu0 %v868
      %907 = vmatmul.bf16.gmra.mxu0 %v893
      %v908 = vpop.f32.mrf.mxu0
      %v909 = vadd.f32 %v880, %v908
      %v910 = vpop.f32.mrf.mxu0
      %v911 = vadd.f32 %v885, %v910
      %912 = vdwg.mxu0
      %913 = vmatpush.bf16.msra.mxu0 0
      %914 = vmatpush.bf16.msra.mxu0 0
      %915 = vmatpush.bf16.msra.mxu0 0
      %916 = vmatpush.bf16.msra.mxu0 0
      %917 = vmatpush.bf16.msra.mxu0 0
      %918 = vmatpush.bf16.msra.mxu0 0
      %919 = vmatpush.bf16.msra.mxu0 0
      %920 = vmatpush.bf16.msra.mxu0 %v876
      %921 = vmatmul.bf16.gmra.mxu0 %v897
      %v922 = vpop.f32.mrf.mxu0
      %v923 = vadd.f32 %v909, %v922
      %v924 = vpop.f32.mrf.mxu0
      %v925 = vadd.f32 %v911, %v924
      %926 = vdwg.mxu0
      %v927 = vmax.f32 %v923, 0.0
      %v928 = vmax.f32 %v925, 0.0
      %s929 = scalar_lea.vmem %s449, 48
      %v930 = vld [vmem:[%s929] sm:$0xff]
      %v931 = vld [vmem:[%s929 + $0x8] sm:$0xff]
      %s932 = scalar_lea.vmem %s454, 48
      %v933 = vld [vmem:[%s932] sm:$0xff]
      %v934 = vld [vmem:[%s932 + $0x8] sm:$0xff]
      %935 = vrot.lane.b32.xlu0 %v927, 9
      %v936 = vpop.permute.xlu0 %935
      %937 = vrot.lane.b32.xlu0 %v928, 9
      %v938 = vpop.permute.xlu0 %937
      %v939 = vmul.f32 %v936, %v494
      %v940 = vmul.f32 %v938, %v494
      %941 = vrot.lane.b32.xlu0 %v927, 8
      %v942 = vpop.permute.xlu0 %941
      %943 = vrot.lane.b32.xlu0 %v928, 8
      %v944 = vpop.permute.xlu0 %943
      %v945 = vmul.f32 %v942, %v500
      %v946 = vmul.f32 %v944, %v500
      %947 = vrot.lane.b32.xlu0 %v927, 7
      %v948 = vpop.permute.xlu0 %947
      %949 = vrot.lane.b32.xlu0 %v928, 7
      %v950 = vpop.permute.xlu0 %949
      %v951 = vmul.f32 %v948, %v506
      %v952 = vmul.f32 %v950, %v506
      %953 = vrot.lane.b32.xlu0 %v927, 1
      %v954 = vpop.permute.xlu0 %953
      %955 = vrot.lane.b32.xlu0 %v928, 1
      %v956 = vpop.permute.xlu0 %955
      %v957 = vmul.f32 %v954, %v512
      %v958 = vmul.f32 %v956, %v512
      %959 = vrot.lane.b32.xlu0 %v927, 127
      %v960 = vpop.permute.xlu0 %959
      %961 = vrot.lane.b32.xlu0 %v928, 127
      %v962 = vpop.permute.xlu0 %961
      %v963 = vmul.f32 %v960, %v518
      %v964 = vmul.f32 %v962, %v518
      %965 = vrot.lane.b32.xlu0 %v927, 121
      %v966 = vpop.permute.xlu0 %965
      %967 = vrot.lane.b32.xlu0 %v928, 121
      %v968 = vpop.permute.xlu0 %967
      %v969 = vmul.f32 %v966, %v524
      %v970 = vmul.f32 %v968, %v524
      %971 = vrot.lane.b32.xlu0 %v927, 120
      %v972 = vpop.permute.xlu0 %971
      %973 = vrot.lane.b32.xlu0 %v928, 120
      %v974 = vpop.permute.xlu0 %973
      %v975 = vmul.f32 %v972, %v530
      %v976 = vmul.f32 %v974, %v530
      %977 = vrot.lane.b32.xlu0 %v927, 119
      %v978 = vpop.permute.xlu0 %977
      %979 = vrot.lane.b32.xlu0 %v928, 119
      %v980 = vpop.permute.xlu0 %979
      %v981 = vmul.f32 %v978, %v536
      %v982 = vmul.f32 %v980, %v536
      %v983 = vpack.c.bf16 %v940, %v939
      %v984 = vpack.c.bf16 %v946, %v945
      %v985 = vpack.c.bf16 %v952, %v951
      %v986 = vpack.c.bf16 %v958, %v957
      %v987 = vpack.c.bf16 %v928, %v927
      %v988 = vpack.c.bf16 %v964, %v963
      %v989 = vpack.c.bf16 %v970, %v969
      %v990 = vpack.c.bf16 %v976, %v975
      %v991 = vpack.c.bf16 %v982, %v981
      %993 = vset.pattern.permute.xlu0 0
      %994 = vperm.xlu0 %993, %v933
      %v995 = vpop.permute.xlu0 %994
      %998 = vset.pattern.permute.xlu0 0
      %999 = vperm.xlu0 %998, %v934
      %v1000 = vpop.permute.xlu0 %999
      %v1004 = vunpack.c.l.b16 %v930
      %v1005 = vunpack.c.h.b16 %v930
      %v1006 = vunpack.c.l.b16 %v931
      %v1007 = vunpack.c.h.b16 %v931
      %v1008 = vpack.c.b16 %v1006, %v1004
      %v1009 = vpack.c.b16 %v1007, %v1005
      %v1012 = vsel %vm663, %v1009, 0
      %1014 = vmatpush.bf16.msra.mxu0 %v990
      %1015 = vmatpush.bf16.msra.mxu0 %v989
      %1016 = vmatpush.bf16.msra.mxu0 %v988
      %1017 = vmatpush.bf16.msra.mxu0 %v987
      %1018 = vmatpush.bf16.msra.mxu0 %v986
      %1019 = vmatpush.bf16.msra.mxu0 %v985
      %1020 = vmatpush.bf16.msra.mxu0 %v984
      %1021 = vmatpush.bf16.msra.mxu0 %v983
      %1022 = vmatmul.bf16.gmra.mxu0 %v1008
      %v1023 = vpop.f32.mrf.mxu0
      %v1024 = vadd.f32 %v995, %v1023
      %v1025 = vpop.f32.mrf.mxu0
      %v1026 = vadd.f32 %v1000, %v1025
      %1027 = vdwg.mxu0
      %1028 = vmatpush.bf16.msra.mxu0 0
      %1029 = vmatpush.bf16.msra.mxu0 0
      %1030 = vmatpush.bf16.msra.mxu0 0
      %1031 = vmatpush.bf16.msra.mxu0 0
      %1032 = vmatpush.bf16.msra.mxu0 0
      %1033 = vmatpush.bf16.msra.mxu0 0
      %1034 = vmatpush.bf16.msra.mxu0 0
      %1035 = vmatpush.bf16.msra.mxu0 %v991
      %1036 = vmatmul.bf16.gmra.mxu0 %v1012
      %v1037 = vpop.f32.mrf.mxu0
      %v1038 = vadd.f32 %v1024, %v1037
      %v1039 = vpop.f32.mrf.mxu0
      %v1040 = vadd.f32 %v1026, %v1039
      %1041 = vdwg.mxu0
      %v1042 = vadd.f32 %v810, %v1038
      %v1043 = vadd.f32 %v811, %v1040
      %v1044 = vmax.f32 %v1042, 0.0
      %v1045 = vmax.f32 %v1043, 0.0
      %v1046 = vld [vmem:[%s459] sm:$0xff]
      %v1047 = vld [vmem:[%s459 + $0x8] sm:$0xff]
      %v1048 = vld [vmem:[%s459 + $0x10] sm:$0xff]
      %v1049 = vld [vmem:[%s459 + $0x18] sm:$0xff]
      %v1050 = vld [vmem:[%s459 + $0x20] sm:$0xff]
      %v1051 = vld [vmem:[%s459 + $0x28] sm:$0xff]
      %v1052 = vld [vmem:[%s464] sm:$0xff]
      %v1053 = vld [vmem:[%s464 + $0x8] sm:$0xff]
      %v1054 = vld [vmem:[%s464 + $0x10] sm:$0xff]
      %v1055 = vld [vmem:[%s464 + $0x18] sm:$0xff]
      %v1056 = vld [vmem:[%s464 + $0x20] sm:$0xff]
      %v1057 = vld [vmem:[%s464 + $0x28] sm:$0xff]
      %1058 = vrot.lane.b32.xlu0 %v1044, 9
      %v1059 = vpop.permute.xlu0 %1058
      %1060 = vrot.lane.b32.xlu0 %v1045, 9
      %v1061 = vpop.permute.xlu0 %1060
      %v1062 = vmul.f32 %v1059, %v494
      %v1063 = vmul.f32 %v1061, %v494
      %1064 = vrot.lane.b32.xlu0 %v1044, 8
      %v1065 = vpop.permute.xlu0 %1064
      %1066 = vrot.lane.b32.xlu0 %v1045, 8
      %v1067 = vpop.permute.xlu0 %1066
      %v1068 = vmul.f32 %v1065, %v500
      %v1069 = vmul.f32 %v1067, %v500
      %1070 = vrot.lane.b32.xlu0 %v1044, 7
      %v1071 = vpop.permute.xlu0 %1070
      %1072 = vrot.lane.b32.xlu0 %v1045, 7
      %v1073 = vpop.permute.xlu0 %1072
      %v1074 = vmul.f32 %v1071, %v506
      %v1075 = vmul.f32 %v1073, %v506
      %1076 = vrot.lane.b32.xlu0 %v1044, 1
      %v1077 = vpop.permute.xlu0 %1076
      %1078 = vrot.lane.b32.xlu0 %v1045, 1
      %v1079 = vpop.permute.xlu0 %1078
      %v1080 = vmul.f32 %v1077, %v512
      %v1081 = vmul.f32 %v1079, %v512
      %1082 = vrot.lane.b32.xlu0 %v1044, 127
      %v1083 = vpop.permute.xlu0 %1082
      %1084 = vrot.lane.b32.xlu0 %v1045, 127
      %v1085 = vpop.permute.xlu0 %1084
      %v1086 = vmul.f32 %v1083, %v518
      %v1087 = vmul.f32 %v1085, %v518
      %1088 = vrot.lane.b32.xlu0 %v1044, 121
      %v1089 = vpop.permute.xlu0 %1088
      %1090 = vrot.lane.b32.xlu0 %v1045, 121
      %v1091 = vpop.permute.xlu0 %1090
      %v1092 = vmul.f32 %v1089, %v524
      %v1093 = vmul.f32 %v1091, %v524
      %1094 = vrot.lane.b32.xlu0 %v1044, 120
      %v1095 = vpop.permute.xlu0 %1094
      %1096 = vrot.lane.b32.xlu0 %v1045, 120
      %v1097 = vpop.permute.xlu0 %1096
      %v1098 = vmul.f32 %v1095, %v530
      %v1099 = vmul.f32 %v1097, %v530
      %1100 = vrot.lane.b32.xlu0 %v1044, 119
      %v1101 = vpop.permute.xlu0 %1100
      %1102 = vrot.lane.b32.xlu0 %v1045, 119
      %v1103 = vpop.permute.xlu0 %1102
      %v1104 = vmul.f32 %v1101, %v536
      %v1105 = vmul.f32 %v1103, %v536
      %v1106 = vpack.c.bf16 %v1063, %v1062
      %v1107 = vpack.c.bf16 %v1069, %v1068
      %v1108 = vpack.c.bf16 %v1075, %v1074
      %v1109 = vpack.c.bf16 %v1081, %v1080
      %v1110 = vpack.c.bf16 %v1045, %v1044
      %v1111 = vpack.c.bf16 %v1087, %v1086
      %v1112 = vpack.c.bf16 %v1093, %v1092
      %v1113 = vpack.c.bf16 %v1099, %v1098
      %v1114 = vpack.c.bf16 %v1105, %v1104
      %1116 = vset.pattern.permute.xlu0 0
      %1117 = vperm.xlu0 %1116, %v1052
      %v1118 = vpop.permute.xlu0 %1117
      %1121 = vset.pattern.permute.xlu0 0
      %1122 = vperm.xlu0 %1121, %v1053
      %v1123 = vpop.permute.xlu0 %1122
      %1126 = vset.pattern.permute.xlu0 0
      %1127 = vperm.xlu0 %1126, %v1054
      %v1128 = vpop.permute.xlu0 %1127
      %1131 = vset.pattern.permute.xlu0 0
      %1132 = vperm.xlu0 %1131, %v1055
      %v1133 = vpop.permute.xlu0 %1132
      %1136 = vset.pattern.permute.xlu0 0
      %1137 = vperm.xlu0 %1136, %v1056
      %v1138 = vpop.permute.xlu0 %1137
      %1141 = vset.pattern.permute.xlu0 0
      %1142 = vperm.xlu0 %1141, %v1057
      %v1143 = vpop.permute.xlu0 %1142
      %v1151 = vunpack.c.l.b16 %v1046
      %v1152 = vunpack.c.h.b16 %v1046
      %v1153 = vunpack.c.l.b16 %v1047
      %v1154 = vunpack.c.h.b16 %v1047
      %v1155 = vunpack.c.l.b16 %v1048
      %v1156 = vunpack.c.h.b16 %v1048
      %v1157 = vunpack.c.l.b16 %v1049
      %v1158 = vunpack.c.h.b16 %v1049
      %v1159 = vunpack.c.l.b16 %v1050
      %v1160 = vunpack.c.h.b16 %v1050
      %v1161 = vunpack.c.l.b16 %v1051
      %v1162 = vunpack.c.h.b16 %v1051
      %v1163 = vpack.c.b16 %v1153, %v1151
      %v1164 = vpack.c.b16 %v1154, %v1152
      %v1165 = vpack.c.b16 %v1157, %v1155
      %v1166 = vpack.c.b16 %v1158, %v1156
      %v1167 = vpack.c.b16 %v1161, %v1159
      %v1168 = vpack.c.b16 %v1162, %v1160
      %v1173 = vsel %vm663, %v1164, 0
      %v1176 = vsel %vm663, %v1166, 0
      %v1179 = vsel %vm663, %v1168, 0
      %1181 = vmatpush.bf16.msra.mxu0 %v1113
      %1182 = vmatpush.bf16.msra.mxu0 %v1112
      %1183 = vmatpush.bf16.msra.mxu0 %v1111
      %1184 = vmatpush.bf16.msra.mxu0 %v1110
      %1185 = vmatpush.bf16.msra.mxu0 %v1109
      %1186 = vmatpush.bf16.msra.mxu0 %v1108
      %1187 = vmatpush.bf16.msra.mxu0 %v1107
      %1188 = vmatpush.bf16.msra.mxu0 %v1106
      %1189 = vmatmul.bf16.gmra.mxu0 %v1163
      %v1190 = vpop.f32.mrf.mxu0
      %v1191 = vadd.f32 %v1118, %v1190
      %v1192 = vpop.f32.mrf.mxu0
      %v1193 = vadd.f32 %v1123, %v1192
      %1194 = vmatmul.bf16.gmra.mxu0 %v1165
      %v1195 = vpop.f32.mrf.mxu0
      %v1196 = vadd.f32 %v1128, %v1195
      %v1197 = vpop.f32.mrf.mxu0
      %v1198 = vadd.f32 %v1133, %v1197
      %1199 = vmatmul.bf16.gmra.mxu0 %v1167
      %v1200 = vpop.f32.mrf.mxu0
      %v1201 = vadd.f32 %v1138, %v1200
      %v1202 = vpop.f32.mrf.mxu0
      %v1203 = vadd.f32 %v1143, %v1202
      %1204 = vdwg.mxu0
      %1205 = vmatpush.bf16.msra.mxu0 0
      %1206 = vmatpush.bf16.msra.mxu0 0
      %1207 = vmatpush.bf16.msra.mxu0 0
      %1208 = vmatpush.bf16.msra.mxu0 0
      %1209 = vmatpush.bf16.msra.mxu0 0
      %1210 = vmatpush.bf16.msra.mxu0 0
      %1211 = vmatpush.bf16.msra.mxu0 0
      %1212 = vmatpush.bf16.msra.mxu0 %v1114
      %1213 = vmatmul.bf16.gmra.mxu0 %v1173
      %v1214 = vpop.f32.mrf.mxu0
      %v1215 = vadd.f32 %v1191, %v1214
      %v1216 = vpop.f32.mrf.mxu0
      %v1217 = vadd.f32 %v1193, %v1216
      %1218 = vmatmul.bf16.gmra.mxu0 %v1176
      %v1219 = vpop.f32.mrf.mxu0
      %v1220 = vadd.f32 %v1196, %v1219
      %v1221 = vpop.f32.mrf.mxu0
      %v1222 = vadd.f32 %v1198, %v1221
      %1223 = vmatmul.bf16.gmra.mxu0 %v1179
      %v1224 = vpop.f32.mrf.mxu0
      %v1225 = vadd.f32 %v1201, %v1224
      %v1226 = vpop.f32.mrf.mxu0
      %v1227 = vadd.f32 %v1203, %v1226
      %1228 = vdwg.mxu0
      %v1229 = vld [vmem:[%s434] sm:$0xff]
      %v1230 = vld [vmem:[%s434 + $0x8] sm:$0xff]
      %v1231 = vld [vmem:[%s434 + $0x10] sm:$0xff]
      %v1232 = vld [vmem:[%s434 + $0x18] sm:$0xff]
      %v1233 = vld [vmem:[%s434 + $0x20] sm:$0xff]
      %v1234 = vld [vmem:[%s434 + $0x28] sm:$0xff]
      %v1235 = vadd.f32 %v1215, %v1229
      %v1236 = vadd.f32 %v1217, %v1230
      %v1237 = vadd.f32 %v1220, %v1231
      %v1238 = vadd.f32 %v1222, %v1232
      %v1239 = vadd.f32 %v1225, %v1233
      %v1240 = vadd.f32 %v1227, %v1234
      %1241 = vst [vmem:[%s469] sm:$0xff] %v1235
      %1242 = vst [vmem:[%s469 + $0x8] sm:$0xff] %v1236
      %1243 = vst [vmem:[%s469 + $0x10] sm:$0xff] %v1237
      %1244 = vst [vmem:[%s469 + $0x18] sm:$0xff] %v1238
      %1245 = vst [vmem:[%s469 + $0x20] sm:$0xff] %v1239
      %1246 = vst [vmem:[%s469 + $0x28] sm:$0xff] %v1240
      %p1247 = scmp.lt.s32.totalorder %s20, 2
      %s1248 = scalar_select %p1247, %s20, 2
      %s1249 = smul.addr %s1248, 6
      %s1250 = smul.addr %s1249, 8
      %s1251 = scalar_lea.vmem %s9, %s1250
      // Predicated region
      $region57: #{model_forward.2} parent=55 // pred_check
        %p1252 = pneg %p267
      $region58: #{model_forward.2} parent=55 // pred_check_branch
        %1254 = sbr.rel (%p1252) target = $region60
      $region59: #{model_forward.2} parent=55 // pred_region
        _
      $region60: #{model_forward.2} parent=55 // pred_fallthru
        _
    $region56: #{model_forward.2} parent=5 // pred_fallthru
      _
    %p1255 = scmp.le.s32.totalorder 2, %s15
    // Predicated region
    $region61: #{model_forward.2} parent=5 // pred_check
      %p1256 = pneg %p1255
    $region62: #{model_forward.2} parent=5 // pred_check_branch
      %1258 = sbr.rel (%p1256) target = $region64
    $region63: #{model_forward.2} parent=5 // pred_region
      %s1259 = ssub.s32 %s15, 2
      // Predicated region
      $region65: #{model_forward.2} parent=63 // pred_check
        %p1260 = pneg %p273
      $region66: #{model_forward.2} parent=63 // pred_check_branch
        %1262 = sbr.rel (%p1260) target = $region68
      $region67: #{model_forward.2} parent=63 // pred_region
        %p1263 = scmp.lt.s32.totalorder %s21, 2
        %s1264 = scalar_select %p1263, %s21, 2
        %s1265 = smul.addr %s1264, 6
        %s1266 = smul.addr %s1265, 8
        %s1267 = scalar_lea.vmem %s9, %s1266
      $region68: #{model_forward.2} parent=63 // pred_fallthru
        _
    $region64: #{model_forward.2} parent=5 // pred_fallthru
      _
  $region6: #{model_forward.2} parent=0 // loop_footer
    %s19 = sadd.s32 1, %s15
  $region7: #{model_forward.2} parent=0 // loop_footer_branch
    %14 = sbr.rel target = $region3
  $region8: #{model_forward.2} parent=0 // loop_exit
    _

// kernel: model_forward.3
$region0: #{model_forward.3}
  #allocation0 [shape = 'u32[]', space=smem, size = 0x4, offset = 0x4, fixed_abs, tag = 'smem constant byte address 0x4 - core index']
  #allocation1 [shape = 'u32[72,128]{1,0:T(1,128)}', space=vmem, size = 0x9000, scoped, tag = 'internal scratch']
  %s0 = inlined_call_operand.vmem [shape: f32[9,1,128], index: 0, kind: input, shape index: {}]
  %s1 = inlined_call_operand.vmem [shape: f32[96,128], index: 1, kind: input, shape index: {}]
  %s2 = inlined_call_operand.vmem [shape: f32[2,1,128], index: 2, kind: input, shape index: {}]
  %s3 = inlined_call_operand.vmem [shape: bf16[64,144], index: 3, kind: input, shape index: {}]
  %s4 = inlined_call_operand.vmem [shape: bf16[64,144], index: 4, kind: input, shape index: {}]
  %s5 = inlined_call_operand.vmem [shape: f32[64,1], index: 5, kind: input, shape index: {}]
  %s6 = inlined_call_operand.vmem [shape: bf16[2,16,432], index: 6, kind: input, shape index: {}]
  %s7 = inlined_call_operand.vmem [shape: bf16[2,16,432], index: 7, kind: input, shape index: {}]
  %s8 = inlined_call_operand.vmem [shape: f32[2,16,1], index: 8, kind: input, shape index: {}]
  %s9 = inlined_call_operand.vmem [shape: bf16[2,48,144], index: 9, kind: input, shape index: {}]
  %s10 = inlined_call_operand.vmem [shape: f32[2,48,1], index: 10, kind: input, shape index: {}]
  %s11 = inlined_call_operand.vmem [shape: bf16[2,64,144], index: 11, kind: input, shape index: {}]
  %s12 = inlined_call_operand.vmem [shape: bf16[2,64,144], index: 12, kind: input, shape index: {}]
  %s13 = inlined_call_operand.vmem [shape: f32[2,64,1], index: 13, kind: input, shape index: {}]
  %s14 = inlined_call_operand.vmem [shape: bf16[2,2,144], index: 14, kind: input, shape index: {}]
  %s15 = inlined_call_operand.vmem [shape: f32[2,2,1], index: 15, kind: input, shape index: {}]
  %s16 = inlined_call_operand.vmem [shape: f32[2,2,128], index: 16, kind: output, shape index: {}]
  %s17 = sld [smem:[#allocation0]]
  $region97: #{model_forward.3} parent=0
    _
  %s19 = ssub.s32 1, %s17
  %s20 = scalar_select 0, %s19, %s17
  loop: start=0, step=1, limit=4
  $region2: #{model_forward.3} parent=0 // loop_pre_header
    _
  $region3: #{model_forward.3} parent=0 // loop_header
    %s22 = sphi 0, %s26
    %p23 = scmp.ge.s32.totalorder %s22, 4
    %s30 = sphi 0, %s30
    %s32 = sphi 0, %s30
    %s33 = sphi 0, %s32
    %s47 = sphi 0, %s33
    %s53 = sphi 0, %s55
    %s56 = sphi 0, %s53
    %s57 = sphi 0, %s56
    %s73 = sphi 0, %s57
    %s79 = sphi 0, %s81
    %s82 = sphi 0, %s79
    %s83 = sphi 0, %s82
    %s99 = sphi 0, %s83
    %s103 = sphi 0, %s103
    %s105 = sphi 0, %s103
    %s106 = sphi 0, %s105
    %s120 = sphi 0, %s106
    %s124 = sphi 0, %s124
    %s126 = sphi 0, %s124
    %s127 = sphi 0, %s126
    %s141 = sphi 0, %s127
    %s145 = sphi 0, %s145
    %s147 = sphi 0, %s145
    %s148 = sphi 0, %s147
    %s162 = sphi 0, %s148
    %s168 = sphi 0, %s170
    %s171 = sphi 0, %s168
    %s172 = sphi 0, %s171
    %s188 = sphi 0, %s172
    %s194 = sphi 0, %s196
    %s197 = sphi 0, %s194
    %s198 = sphi 0, %s197
    %s214 = sphi 0, %s198
    %s220 = sphi 0, %s222
    %s223 = sphi 0, %s220
    %s224 = sphi 0, %s223
    %s240 = sphi 0, %s224
    %s246 = sphi 0, %s248
    %s249 = sphi 0, %s246
    %s250 = sphi 0, %s249
    %s266 = sphi 0, %s250
    %s272 = sphi 0, %s274
    %s275 = sphi 0, %s272
    %s276 = sphi 0, %s275
    %s292 = sphi 0, %s276
    %s298 = sphi 0, %s300
    %s301 = sphi 0, %s298
    %s302 = sphi 0, %s301
    %s318 = sphi 0, %s302
    %s324 = sphi 0, %s326
    %s327 = sphi 0, %s324
    %s328 = sphi 0, %s327
    %s344 = sphi 0, %s328
    %s350 = sphi 0, %s352
    %s353 = sphi 0, %s350
    %s354 = sphi 0, %s353
    %s370 = sphi 0, %s354
    %s376 = sphi 0, %s378
    %s379 = sphi 0, %s376
    %s380 = sphi 0, %s379
    %s396 = sphi 0, %s380
    %s402 = sphi 0, %s404
    %s405 = sphi 0, %s402
    %s406 = sphi 0, %s405
    %s422 = sphi 0, %s406
    %s428 = sphi 0, %s430
    %s431 = sphi 0, %s428
    %s432 = sphi 0, %s431
    %s448 = sphi 0, %s432
  $region4: #{model_forward.3} parent=0 // loop_header_branch
    %25 = sbr.rel (%p23) target = $region8
  $region5: #{model_forward.3} parent=0 // loop_body
    %s27 = ssub.s32 %s22, 1
    %s28 = ssub.s32 %s22, 2
    %s29 = sadd.s32 %s22, 1
    %s31 = sadd.s32 %s30, 1
    %p34 = scmp.eq.s32.totalorder %s22, 1
    %p35 = scmp.ne.s32.totalorder %s30, %s32
    %p36 = scmp.eq.s32.totalorder %s22, 0
    %p37 = por %p35, %p36
    %p38 = scmp.ne.s32.totalorder %s30, %s32
    %p39 = scmp.eq.s32.totalorder %s27, 1
    %p40 = por %p38, %p39
    %p41 = scmp.ne.s32.totalorder %s32, %s33
    %p42 = scmp.eq.s32.totalorder %s27, 0
    %p43 = por %p41, %p42
    %p44 = scmp.ne.s32.totalorder %s32, %s33
    %p45 = scmp.eq.s32.totalorder %s28, 1
    %p46 = por %p44, %p45
    %p48 = scmp.ne.s32.totalorder %s33, %s47
    %p49 = scmp.eq.s32.totalorder %s28, 0
    %p50 = por %p48, %p49
    %s51 = ssub.s32 %s22, %s29
    %p52 = scmp.eq.s32.totalorder %s51, 0
    %s54 = sadd.s32 %s53, 1
    %s55 = scalar_select %p52, %s53, %s54
    %p58 = pneg %p52
    %p59 = scmp.eq.s32.totalorder %s22, 1
    %p60 = por %p58, %p59
    %p61 = scmp.ne.s32.totalorder %s53, %s56
    %p62 = scmp.eq.s32.totalorder %s22, 0
    %p63 = por %p61, %p62
    %p64 = scmp.ne.s32.totalorder %s53, %s56
    %p65 = scmp.eq.s32.totalorder %s27, 1
    %p66 = por %p64, %p65
    %p67 = scmp.ne.s32.totalorder %s56, %s57
    %p68 = scmp.eq.s32.totalorder %s27, 0
    %p69 = por %p67, %p68
    %p70 = scmp.ne.s32.totalorder %s56, %s57
    %p71 = scmp.eq.s32.totalorder %s28, 1
    %p72 = por %p70, %p71
    %p74 = scmp.ne.s32.totalorder %s57, %s73
    %p75 = scmp.eq.s32.totalorder %s28, 0
    %p76 = por %p74, %p75
    %s77 = ssub.s32 %s22, %s29
    %p78 = scmp.eq.s32.totalorder %s77, 0
    %s80 = sadd.s32 %s79, 1
    %s81 = scalar_select %p78, %s79, %s80
    %p84 = pneg %p78
    %p85 = scmp.eq.s32.totalorder %s22, 1
    %p86 = por %p84, %p85
    %p87 = scmp.ne.s32.totalorder %s79, %s82
    %p88 = scmp.eq.s32.totalorder %s22, 0
    %p89 = por %p87, %p88
    %p90 = scmp.ne.s32.totalorder %s79, %s82
    %p91 = scmp.eq.s32.totalorder %s27, 1
    %p92 = por %p90, %p91
    %p93 = scmp.ne.s32.totalorder %s82, %s83
    %p94 = scmp.eq.s32.totalorder %s27, 0
    %p95 = por %p93, %p94
    %p96 = scmp.ne.s32.totalorder %s82, %s83
    %p97 = scmp.eq.s32.totalorder %s28, 1
    %p98 = por %p96, %p97
    %p100 = scmp.ne.s32.totalorder %s83, %s99
    %p101 = scmp.eq.s32.totalorder %s28, 0
    %p102 = por %p100, %p101
    %s104 = sadd.s32 %s103, 1
    %p107 = scmp.eq.s32.totalorder %s22, 1
    %p108 = scmp.ne.s32.totalorder %s103, %s105
    %p109 = scmp.eq.s32.totalorder %s22, 0
    %p110 = por %p108, %p109
    %p111 = scmp.ne.s32.totalorder %s103, %s105
    %p112 = scmp.eq.s32.totalorder %s27, 1
    %p113 = por %p111, %p112
    %p114 = scmp.ne.s32.totalorder %s105, %s106
    %p115 = scmp.eq.s32.totalorder %s27, 0
    %p116 = por %p114, %p115
    %p117 = scmp.ne.s32.totalorder %s105, %s106
    %p118 = scmp.eq.s32.totalorder %s28, 1
    %p119 = por %p117, %p118
    %p121 = scmp.ne.s32.totalorder %s106, %s120
    %p122 = scmp.eq.s32.totalorder %s28, 0
    %p123 = por %p121, %p122
    %s125 = sadd.s32 %s124, 1
    %p128 = scmp.eq.s32.totalorder %s22, 1
    %p129 = scmp.ne.s32.totalorder %s124, %s126
    %p130 = scmp.eq.s32.totalorder %s22, 0
    %p131 = por %p129, %p130
    %p132 = scmp.ne.s32.totalorder %s124, %s126
    %p133 = scmp.eq.s32.totalorder %s27, 1
    %p134 = por %p132, %p133
    %p135 = scmp.ne.s32.totalorder %s126, %s127
    %p136 = scmp.eq.s32.totalorder %s27, 0
    %p137 = por %p135, %p136
    %p138 = scmp.ne.s32.totalorder %s126, %s127
    %p139 = scmp.eq.s32.totalorder %s28, 1
    %p140 = por %p138, %p139
    %p142 = scmp.ne.s32.totalorder %s127, %s141
    %p143 = scmp.eq.s32.totalorder %s28, 0
    %p144 = por %p142, %p143
    %s146 = sadd.s32 %s145, 1
    %p149 = scmp.eq.s32.totalorder %s22, 1
    %p150 = scmp.ne.s32.totalorder %s145, %s147
    %p151 = scmp.eq.s32.totalorder %s22, 0
    %p152 = por %p150, %p151
    %p153 = scmp.ne.s32.totalorder %s145, %s147
    %p154 = scmp.eq.s32.totalorder %s27, 1
    %p155 = por %p153, %p154
    %p156 = scmp.ne.s32.totalorder %s147, %s148
    %p157 = scmp.eq.s32.totalorder %s27, 0
    %p158 = por %p156, %p157
    %p159 = scmp.ne.s32.totalorder %s147, %s148
    %p160 = scmp.eq.s32.totalorder %s28, 1
    %p161 = por %p159, %p160
    %p163 = scmp.ne.s32.totalorder %s148, %s162
    %p164 = scmp.eq.s32.totalorder %s28, 0
    %p165 = por %p163, %p164
    %s166 = ssub.s32 %s22, %s29
    %p167 = scmp.eq.s32.totalorder %s166, 0
    %s169 = sadd.s32 %s168, 1
    %s170 = scalar_select %p167, %s168, %s169
    %p173 = pneg %p167
    %p174 = scmp.eq.s32.totalorder %s22, 1
    %p175 = por %p173, %p174
    %p176 = scmp.ne.s32.totalorder %s168, %s171
    %p177 = scmp.eq.s32.totalorder %s22, 0
    %p178 = por %p176, %p177
    %p179 = scmp.ne.s32.totalorder %s168, %s171
    %p180 = scmp.eq.s32.totalorder %s27, 1
    %p181 = por %p179, %p180
    %p182 = scmp.ne.s32.totalorder %s171, %s172
    %p183 = scmp.eq.s32.totalorder %s27, 0
    %p184 = por %p182, %p183
    %p185 = scmp.ne.s32.totalorder %s171, %s172
    %p186 = scmp.eq.s32.totalorder %s28, 1
    %p187 = por %p185, %p186
    %p189 = scmp.ne.s32.totalorder %s172, %s188
    %p190 = scmp.eq.s32.totalorder %s28, 0
    %p191 = por %p189, %p190
    %s192 = ssub.s32 %s22, %s29
    %p193 = scmp.eq.s32.totalorder %s192, 0
    %s195 = sadd.s32 %s194, 1
    %s196 = scalar_select %p193, %s194, %s195
    %p199 = pneg %p193
    %p200 = scmp.eq.s32.totalorder %s22, 1
    %p201 = por %p199, %p200
    %p202 = scmp.ne.s32.totalorder %s194, %s197
    %p203 = scmp.eq.s32.totalorder %s22, 0
    %p204 = por %p202, %p203
    %p205 = scmp.ne.s32.totalorder %s194, %s197
    %p206 = scmp.eq.s32.totalorder %s27, 1
    %p207 = por %p205, %p206
    %p208 = scmp.ne.s32.totalorder %s197, %s198
    %p209 = scmp.eq.s32.totalorder %s27, 0
    %p210 = por %p208, %p209
    %p211 = scmp.ne.s32.totalorder %s197, %s198
    %p212 = scmp.eq.s32.totalorder %s28, 1
    %p213 = por %p211, %p212
    %p215 = scmp.ne.s32.totalorder %s198, %s214
    %p216 = scmp.eq.s32.totalorder %s28, 0
    %p217 = por %p215, %p216
    %s218 = ssub.s32 %s22, %s29
    %p219 = scmp.eq.s32.totalorder %s218, 0
    %s221 = sadd.s32 %s220, 1
    %s222 = scalar_select %p219, %s220, %s221
    %p225 = pneg %p219
    %p226 = scmp.eq.s32.totalorder %s22, 1
    %p227 = por %p225, %p226
    %p228 = scmp.ne.s32.totalorder %s220, %s223
    %p229 = scmp.eq.s32.totalorder %s22, 0
    %p230 = por %p228, %p229
    %p231 = scmp.ne.s32.totalorder %s220, %s223
    %p232 = scmp.eq.s32.totalorder %s27, 1
    %p233 = por %p231, %p232
    %p234 = scmp.ne.s32.totalorder %s223, %s224
    %p235 = scmp.eq.s32.totalorder %s27, 0
    %p236 = por %p234, %p235
    %p237 = scmp.ne.s32.totalorder %s223, %s224
    %p238 = scmp.eq.s32.totalorder %s28, 1
    %p239 = por %p237, %p238
    %p241 = scmp.ne.s32.totalorder %s224, %s240
    %p242 = scmp.eq.s32.totalorder %s28, 0
    %p243 = por %p241, %p242
    %s244 = ssub.s32 %s22, %s29
    %p245 = scmp.eq.s32.totalorder %s244, 0
    %s247 = sadd.s32 %s246, 1
    %s248 = scalar_select %p245, %s246, %s247
    %p251 = pneg %p245
    %p252 = scmp.eq.s32.totalorder %s22, 1
    %p253 = por %p251, %p252
    %p254 = scmp.ne.s32.totalorder %s246, %s249
    %p255 = scmp.eq.s32.totalorder %s22, 0
    %p256 = por %p254, %p255
    %p257 = scmp.ne.s32.totalorder %s246, %s249
    %p258 = scmp.eq.s32.totalorder %s27, 1
    %p259 = por %p257, %p258
    %p260 = scmp.ne.s32.totalorder %s249, %s250
    %p261 = scmp.eq.s32.totalorder %s27, 0
    %p262 = por %p260, %p261
    %p263 = scmp.ne.s32.totalorder %s249, %s250
    %p264 = scmp.eq.s32.totalorder %s28, 1
    %p265 = por %p263, %p264
    %p267 = scmp.ne.s32.totalorder %s250, %s266
    %p268 = scmp.eq.s32.totalorder %s28, 0
    %p269 = por %p267, %p268
    %s270 = ssub.s32 %s22, %s29
    %p271 = scmp.eq.s32.totalorder %s270, 0
    %s273 = sadd.s32 %s272, 1
    %s274 = scalar_select %p271, %s272, %s273
    %p277 = pneg %p271
    %p278 = scmp.eq.s32.totalorder %s22, 1
    %p279 = por %p277, %p278
    %p280 = scmp.ne.s32.totalorder %s272, %s275
    %p281 = scmp.eq.s32.totalorder %s22, 0
    %p282 = por %p280, %p281
    %p283 = scmp.ne.s32.totalorder %s272, %s275
    %p284 = scmp.eq.s32.totalorder %s27, 1
    %p285 = por %p283, %p284
    %p286 = scmp.ne.s32.totalorder %s275, %s276
    %p287 = scmp.eq.s32.totalorder %s27, 0
    %p288 = por %p286, %p287
    %p289 = scmp.ne.s32.totalorder %s275, %s276
    %p290 = scmp.eq.s32.totalorder %s28, 1
    %p291 = por %p289, %p290
    %p293 = scmp.ne.s32.totalorder %s276, %s292
    %p294 = scmp.eq.s32.totalorder %s28, 0
    %p295 = por %p293, %p294
    %s296 = ssub.s32 %s22, %s29
    %p297 = scmp.eq.s32.totalorder %s296, 0
    %s299 = sadd.s32 %s298, 1
    %s300 = scalar_select %p297, %s298, %s299
    %p303 = pneg %p297
    %p304 = scmp.eq.s32.totalorder %s22, 1
    %p305 = por %p303, %p304
    %p306 = scmp.ne.s32.totalorder %s298, %s301
    %p307 = scmp.eq.s32.totalorder %s22, 0
    %p308 = por %p306, %p307
    %p309 = scmp.ne.s32.totalorder %s298, %s301
    %p310 = scmp.eq.s32.totalorder %s27, 1
    %p311 = por %p309, %p310
    %p312 = scmp.ne.s32.totalorder %s301, %s302
    %p313 = scmp.eq.s32.totalorder %s27, 0
    %p314 = por %p312, %p313
    %p315 = scmp.ne.s32.totalorder %s301, %s302
    %p316 = scmp.eq.s32.totalorder %s28, 1
    %p317 = por %p315, %p316
    %p319 = scmp.ne.s32.totalorder %s302, %s318
    %p320 = scmp.eq.s32.totalorder %s28, 0
    %p321 = por %p319, %p320
    %s322 = ssub.s32 %s22, %s29
    %p323 = scmp.eq.s32.totalorder %s322, 0
    %s325 = sadd.s32 %s324, 1
    %s326 = scalar_select %p323, %s324, %s325
    %p329 = pneg %p323
    %p330 = scmp.eq.s32.totalorder %s22, 1
    %p331 = por %p329, %p330
    %p332 = scmp.ne.s32.totalorder %s324, %s327
    %p333 = scmp.eq.s32.totalorder %s22, 0
    %p334 = por %p332, %p333
    %p335 = scmp.ne.s32.totalorder %s324, %s327
    %p336 = scmp.eq.s32.totalorder %s27, 1
    %p337 = por %p335, %p336
    %p338 = scmp.ne.s32.totalorder %s327, %s328
    %p339 = scmp.eq.s32.totalorder %s27, 0
    %p340 = por %p338, %p339
    %p341 = scmp.ne.s32.totalorder %s327, %s328
    %p342 = scmp.eq.s32.totalorder %s28, 1
    %p343 = por %p341, %p342
    %p345 = scmp.ne.s32.totalorder %s328, %s344
    %p346 = scmp.eq.s32.totalorder %s28, 0
    %p347 = por %p345, %p346
    %s348 = ssub.s32 %s22, %s29
    %p349 = scmp.eq.s32.totalorder %s348, 0
    %s351 = sadd.s32 %s350, 1
    %s352 = scalar_select %p349, %s350, %s351
    %p355 = pneg %p349
    %p356 = scmp.eq.s32.totalorder %s22, 1
    %p357 = por %p355, %p356
    %p358 = scmp.ne.s32.totalorder %s350, %s353
    %p359 = scmp.eq.s32.totalorder %s22, 0
    %p360 = por %p358, %p359
    %p361 = scmp.ne.s32.totalorder %s350, %s353
    %p362 = scmp.eq.s32.totalorder %s27, 1
    %p363 = por %p361, %p362
    %p364 = scmp.ne.s32.totalorder %s353, %s354
    %p365 = scmp.eq.s32.totalorder %s27, 0
    %p366 = por %p364, %p365
    %p367 = scmp.ne.s32.totalorder %s353, %s354
    %p368 = scmp.eq.s32.totalorder %s28, 1
    %p369 = por %p367, %p368
    %p371 = scmp.ne.s32.totalorder %s354, %s370
    %p372 = scmp.eq.s32.totalorder %s28, 0
    %p373 = por %p371, %p372
    %s374 = ssub.s32 %s22, %s29
    %p375 = scmp.eq.s32.totalorder %s374, 0
    %s377 = sadd.s32 %s376, 1
    %s378 = scalar_select %p375, %s376, %s377
    %p381 = pneg %p375
    %p382 = scmp.eq.s32.totalorder %s22, 1
    %p383 = por %p381, %p382
    %p384 = scmp.ne.s32.totalorder %s376, %s379
    %p385 = scmp.eq.s32.totalorder %s22, 0
    %p386 = por %p384, %p385
    %p387 = scmp.ne.s32.totalorder %s376, %s379
    %p388 = scmp.eq.s32.totalorder %s27, 1
    %p389 = por %p387, %p388
    %p390 = scmp.ne.s32.totalorder %s379, %s380
    %p391 = scmp.eq.s32.totalorder %s27, 0
    %p392 = por %p390, %p391
    %p393 = scmp.ne.s32.totalorder %s379, %s380
    %p394 = scmp.eq.s32.totalorder %s28, 1
    %p395 = por %p393, %p394
    %p397 = scmp.ne.s32.totalorder %s380, %s396
    %p398 = scmp.eq.s32.totalorder %s28, 0
    %p399 = por %p397, %p398
    %s400 = ssub.s32 %s22, %s29
    %p401 = scmp.eq.s32.totalorder %s400, 0
    %s403 = sadd.s32 %s402, 1
    %s404 = scalar_select %p401, %s402, %s403
    %p407 = pneg %p401
    %p408 = scmp.eq.s32.totalorder %s22, 1
    %p409 = por %p407, %p408
    %p410 = scmp.ne.s32.totalorder %s402, %s405
    %p411 = scmp.eq.s32.totalorder %s22, 0
    %p412 = por %p410, %p411
    %p413 = scmp.ne.s32.totalorder %s402, %s405
    %p414 = scmp.eq.s32.totalorder %s27, 1
    %p415 = por %p413, %p414
    %p416 = scmp.ne.s32.totalorder %s405, %s406
    %p417 = scmp.eq.s32.totalorder %s27, 0
    %p418 = por %p416, %p417
    %p419 = scmp.ne.s32.totalorder %s405, %s406
    %p420 = scmp.eq.s32.totalorder %s28, 1
    %p421 = por %p419, %p420
    %p423 = scmp.ne.s32.totalorder %s406, %s422
    %p424 = scmp.eq.s32.totalorder %s28, 0
    %p425 = por %p423, %p424
    %s426 = ssub.s32 %s22, %s29
    %p427 = scmp.eq.s32.totalorder %s426, 0
    %s429 = sadd.s32 %s428, 1
    %s430 = scalar_select %p427, %s428, %s429
    %p433 = pneg %p427
    %p434 = scmp.eq.s32.totalorder %s22, 1
    %p435 = por %p433, %p434
    %p436 = scmp.ne.s32.totalorder %s428, %s431
    %p437 = scmp.eq.s32.totalorder %s22, 0
    %p438 = por %p436, %p437
    %p439 = scmp.ne.s32.totalorder %s428, %s431
    %p440 = scmp.eq.s32.totalorder %s27, 1
    %p441 = por %p439, %p440
    %p442 = scmp.ne.s32.totalorder %s431, %s432
    %p443 = scmp.eq.s32.totalorder %s27, 0
    %p444 = por %p442, %p443
    %p445 = scmp.ne.s32.totalorder %s431, %s432
    %p446 = scmp.eq.s32.totalorder %s28, 1
    %p447 = por %p445, %p446
    %p449 = scmp.ne.s32.totalorder %s432, %s448
    %p450 = scmp.eq.s32.totalorder %s28, 0
    %p451 = por %p449, %p450
    %p452 = scmp.le.s32.totalorder 1, %s22
    %p453 = scmp.lt.s32.totalorder %s22, 3
    %p454 = pnand %p452, %p453
    %p455 = pneg %p454
    // Predicated region
    $region9: #{model_forward.3} parent=5 // pred_check
      _
    $region10: #{model_forward.3} parent=5 // pred_check_branch
      %457 = sbr.rel (%p454) target = $region12
    $region11: #{model_forward.3} parent=5 // pred_region
      %s458 = ssub.s32 %s22, 1
      // Predicated region
      $region13: #{model_forward.3} parent=11 // pred_check
        %p459 = pneg %p43
      $region14: #{model_forward.3} parent=11 // pred_check_branch
        %461 = sbr.rel (%p459) target = $region16
      $region15: #{model_forward.3} parent=11 // pred_region
        _
      $region16: #{model_forward.3} parent=11 // pred_fallthru
        _
      // Predicated region
      $region17: #{model_forward.3} parent=11 // pred_check
        %p462 = pneg %p116
      $region18: #{model_forward.3} parent=11 // pred_check_branch
        %464 = sbr.rel (%p462) target = $region20
      $region19: #{model_forward.3} parent=11 // pred_region
        _
      $region20: #{model_forward.3} parent=11 // pred_fallthru
        _
      // Predicated region
      $region21: #{model_forward.3} parent=11 // pred_check
        %p465 = pneg %p137
      $region22: #{model_forward.3} parent=11 // pred_check_branch
        %467 = sbr.rel (%p465) target = $region24
      $region23: #{model_forward.3} parent=11 // pred_region
        _
      $region24: #{model_forward.3} parent=11 // pred_fallthru
        _
      // Predicated region
      $region25: #{model_forward.3} parent=11 // pred_check
        %p468 = pneg %p158
      $region26: #{model_forward.3} parent=11 // pred_check_branch
        %470 = sbr.rel (%p468) target = $region28
      $region27: #{model_forward.3} parent=11 // pred_region
        _
      $region28: #{model_forward.3} parent=11 // pred_fallthru
        _
    $region12: #{model_forward.3} parent=5 // pred_fallthru
      _
    %p471 = scmp.lt.s32.totalorder %s22, 2
    // Predicated region
    $region29: #{model_forward.3} parent=5 // pred_check
      %p472 = pneg %p471
    $region30: #{model_forward.3} parent=5 // pred_check_branch
      %474 = sbr.rel (%p472) target = $region32
    $region31: #{model_forward.3} parent=5 // pred_region
      // Predicated region
      $region33: #{model_forward.3} parent=31 // pred_check
        %p475 = pneg %p63
      $region34: #{model_forward.3} parent=31 // pred_check_branch
        %477 = sbr.rel (%p475) target = $region36
      $region35: #{model_forward.3} parent=31 // pred_region
        %s478 = smul.u32 6, %s22
        %p479 = scmp.lt.s32.totalorder %s478, 11
        %s480 = scalar_select %p479, %s478, 11
        %s481 = smul.addr %s480, 8
        %s482 = scalar_lea.vmem %s1, %s481
        %s483 = smul.u32 6, %s22
      $region36: #{model_forward.3} parent=31 // pred_fallthru
        _
      // Predicated region
      $region37: #{model_forward.3} parent=31 // pred_check
        %p484 = pneg %p89
      $region38: #{model_forward.3} parent=31 // pred_check_branch
        %486 = sbr.rel (%p484) target = $region40
      $region39: #{model_forward.3} parent=31 // pred_region
        %p487 = scmp.lt.s32.totalorder %s22, 1
        %s488 = scalar_select %p487, %s22, 1
        %s489 = scalar_lea.vmem %s2, %s488
      $region40: #{model_forward.3} parent=31 // pred_fallthru
        _
      // Predicated region
      $region41: #{model_forward.3} parent=31 // pred_check
        %p490 = pneg %p178
      $region42: #{model_forward.3} parent=31 // pred_check_branch
        %492 = sbr.rel (%p490) target = $region44
      $region43: #{model_forward.3} parent=31 // pred_region
        %p493 = scmp.lt.s32.totalorder %s22, 1
        %s494 = scalar_select %p493, %s22, 1
        %s495 = smul.addr %s494, 8
        %s496 = smul.addr %s495, 4
        %s497 = scalar_lea.vmem %s6, %s496
      $region44: #{model_forward.3} parent=31 // pred_fallthru
        _
      // Predicated region
      $region45: #{model_forward.3} parent=31 // pred_check
        %p498 = pneg %p204
      $region46: #{model_forward.3} parent=31 // pred_check_branch
        %500 = sbr.rel (%p498) target = $region48
      $region47: #{model_forward.3} parent=31 // pred_region
        %p501 = scmp.lt.s32.totalorder %s22, 1
        %s502 = scalar_select %p501, %s22, 1
        %s503 = smul.addr %s502, 8
        %s504 = smul.addr %s503, 4
        %s505 = scalar_lea.vmem %s7, %s504
      $region48: #{model_forward.3} parent=31 // pred_fallthru
        _
      // Predicated region
      $region49: #{model_forward.3} parent=31 // pred_check
        %p506 = pneg %p230
      $region50: #{model_forward.3} parent=31 // pred_check_branch
        %508 = sbr.rel (%p506) target = $region52
      $region51: #{model_forward.3} parent=31 // pred_region
        %p509 = scmp.lt.s32.totalorder %s22, 1
        %s510 = scalar_select %p509, %s22, 1
        %s511 = smul.addr %s510, 2
        %s512 = smul.addr %s511, 8
        %s513 = scalar_lea.vmem %s8, %s512
      $region52: #{model_forward.3} parent=31 // pred_fallthru
        _
      // Predicated region
      $region53: #{model_forward.3} parent=31 // pred_check
        %p514 = pneg %p256
      $region54: #{model_forward.3} parent=31 // pred_check_branch
        %516 = sbr.rel (%p514) target = $region56
      $region55: #{model_forward.3} parent=31 // pred_region
        %p517 = scmp.lt.s32.totalorder %s22, 1
        %s518 = scalar_select %p517, %s22, 1
        %s519 = smul.addr %s518, 12
        %s520 = smul.addr %s519, 4
        %s521 = scalar_lea.vmem %s9, %s520
      $region56: #{model_forward.3} parent=31 // pred_fallthru
        _
      // Predicated region
      $region57: #{model_forward.3} parent=31 // pred_check
        %p522 = pneg %p282
      $region58: #{model_forward.3} parent=31 // pred_check_branch
        %524 = sbr.rel (%p522) target = $region60
      $region59: #{model_forward.3} parent=31 // pred_region
        %p525 = scmp.lt.s32.totalorder %s22, 1
        %s526 = scalar_select %p525, %s22, 1
        %s527 = smul.addr %s526, 6
        %s528 = smul.addr %s527, 8
        %s529 = scalar_lea.vmem %s10, %s528
      $region60: #{model_forward.3} parent=31 // pred_fallthru
        _
      // Predicated region
      $region61: #{model_forward.3} parent=31 // pred_check
        %p530 = pneg %p308
      $region62: #{model_forward.3} parent=31 // pred_check_branch
        %532 = sbr.rel (%p530) target = $region64
      $region63: #{model_forward.3} parent=31 // pred_region
        %p533 = scmp.lt.s32.totalorder %s22, 1
        %s534 = scalar_select %p533, %s22, 1
        %s535 = smul.addr %s534, 16
        %s536 = smul.addr %s535, 4
        %s537 = scalar_lea.vmem %s11, %s536
      $region64: #{model_forward.3} parent=31 // pred_fallthru
        _
      // Predicated region
      $region65: #{model_forward.3} parent=31 // pred_check
        %p538 = pneg %p334
      $region66: #{model_forward.3} parent=31 // pred_check_branch
        %540 = sbr.rel (%p538) target = $region68
      $region67: #{model_forward.3} parent=31 // pred_region
        %p541 = scmp.lt.s32.totalorder %s22, 1
        %s542 = scalar_select %p541, %s22, 1
        %s543 = smul.addr %s542, 16
        %s544 = smul.addr %s543, 4
        %s545 = scalar_lea.vmem %s12, %s544
      $region68: #{model_forward.3} parent=31 // pred_fallthru
        _
      // Predicated region
      $region69: #{model_forward.3} parent=31 // pred_check
        %p546 = pneg %p360
      $region70: #{model_forward.3} parent=31 // pred_check_branch
        %548 = sbr.rel (%p546) target = $region72
      $region71: #{model_forward.3} parent=31 // pred_region
        %p549 = scmp.lt.s32.totalorder %s22, 1
        %s550 = scalar_select %p549, %s22, 1
        %s551 = smul.addr %s550, 8
        %s552 = smul.addr %s551, 8
        %s553 = scalar_lea.vmem %s13, %s552
      $region72: #{model_forward.3} parent=31 // pred_fallthru
        _
      // Predicated region
      $region73: #{model_forward.3} parent=31 // pred_check
        %p554 = pneg %p386
      $region74: #{model_forward.3} parent=31 // pred_check_branch
        %556 = sbr.rel (%p554) target = $region76
      $region75: #{model_forward.3} parent=31 // pred_region
        %p557 = scmp.lt.s32.totalorder %s22, 1
        %s558 = scalar_select %p557, %s22, 1
        %s559 = smul.addr %s558, 2
        %s560 = scalar_lea.vmem %s14, %s559
      $region76: #{model_forward.3} parent=31 // pred_fallthru
        _
      // Predicated region
      $region77: #{model_forward.3} parent=31 // pred_check
        %p561 = pneg %p412
      $region78: #{model_forward.3} parent=31 // pred_check_branch
        %563 = sbr.rel (%p561) target = $region80
      $region79: #{model_forward.3} parent=31 // pred_region
        %p564 = scmp.lt.s32.totalorder %s22, 1
        %s565 = scalar_select %p564, %s22, 1
        %s566 = smul.addr %s565, 2
        %s567 = scalar_lea.vmem %s15, %s566
      $region80: #{model_forward.3} parent=31 // pred_fallthru
        _
    $region32: #{model_forward.3} parent=5 // pred_fallthru
      _
    %p568 = scmp.le.s32.totalorder 1, %s22
    %p569 = scmp.lt.s32.totalorder %s22, 3
    %p570 = pnand %p568, %p569
    %p571 = pneg %p570
    // Predicated region
    $region81: #{model_forward.3} parent=5 // pred_check
      _
    $region82: #{model_forward.3} parent=5 // pred_check_branch
      %573 = sbr.rel (%p570) target = $region84
    $region83: #{model_forward.3} parent=5 // pred_region
      %s574 = ssub.s32 %s22, 1
      %p575 = pneg %p43
      %p576 = pneg %p40
      %s577 = smul.u32 6, %s27
      %p578 = scmp.lt.s32.totalorder %s577, 11
      %s579 = scalar_select %p578, %s577, 11
      %s580 = smul.addr %s579, 8
      %s581 = scalar_lea.vmem %s1, %s580
      %p582 = pneg %p69
      %p583 = pneg %p66
      %p584 = scmp.lt.s32.totalorder %s27, 1
      %s585 = scalar_select %p584, %s27, 1
      %s586 = scalar_lea.vmem %s2, %s585
      %p587 = pneg %p95
      %p588 = pneg %p92
      %p589 = pneg %p116
      %p590 = pneg %p113
      %p591 = pneg %p137
      %p592 = pneg %p134
      %p593 = pneg %p158
      %p594 = pneg %p155
      %p595 = scmp.lt.s32.totalorder %s27, 1
      %s596 = scalar_select %p595, %s27, 1
      %s597 = smul.addr %s596, 8
      %s598 = smul.addr %s597, 4
      %s599 = scalar_lea.vmem %s6, %s598
      %p600 = pneg %p184
      %p601 = pneg %p181
      %p602 = scmp.lt.s32.totalorder %s27, 1
      %s603 = scalar_select %p602, %s27, 1
      %s604 = smul.addr %s603, 8
      %s605 = smul.addr %s604, 4
      %s606 = scalar_lea.vmem %s7, %s605
      %p607 = pneg %p210
      %p608 = pneg %p207
      %p609 = scmp.lt.s32.totalorder %s27, 1
      %s610 = scalar_select %p609, %s27, 1
      %s611 = smul.addr %s610, 2
      %s612 = smul.addr %s611, 8
      %s613 = scalar_lea.vmem %s8, %s612
      %p614 = pneg %p236
      %p615 = pneg %p233
      %p616 = scmp.lt.s32.totalorder %s27, 1
      %s617 = scalar_select %p616, %s27, 1
      %s618 = smul.addr %s617, 12
      %s619 = smul.addr %s618, 4
      %s620 = scalar_lea.vmem %s9, %s619
      %p621 = pneg %p262
      %p622 = pneg %p259
      %p623 = scmp.lt.s32.totalorder %s27, 1
      %s624 = scalar_select %p623, %s27, 1
      %s625 = smul.addr %s624, 6
      %s626 = smul.addr %s625, 8
      %s627 = scalar_lea.vmem %s10, %s626
      %p628 = pneg %p288
      %p629 = pneg %p285
      %p630 = scmp.lt.s32.totalorder %s27, 1
      %s631 = scalar_select %p630, %s27, 1
      %s632 = smul.addr %s631, 16
      %s633 = smul.addr %s632, 4
      %s634 = scalar_lea.vmem %s11, %s633
      %p635 = pneg %p314
      %p636 = pneg %p311
      %p637 = scmp.lt.s32.totalorder %s27, 1
      %s638 = scalar_select %p637, %s27, 1
      %s639 = smul.addr %s638, 16
      %s640 = smul.addr %s639, 4
      %s641 = scalar_lea.vmem %s12, %s640
      %p642 = pneg %p340
      %p643 = pneg %p337
      %p644 = scmp.lt.s32.totalorder %s27, 1
      %s645 = scalar_select %p644, %s27, 1
      %s646 = smul.addr %s645, 8
      %s647 = smul.addr %s646, 8
      %s648 = scalar_lea.vmem %s13, %s647
      %p649 = pneg %p366
      %p650 = pneg %p363
      %p651 = scmp.lt.s32.totalorder %s27, 1
      %s652 = scalar_select %p651, %s27, 1
      %s653 = smul.addr %s652, 2
      %s654 = scalar_lea.vmem %s14, %s653
      %p655 = pneg %p392
      %p656 = pneg %p389
      %p657 = scmp.lt.s32.totalorder %s27, 1
      %s658 = scalar_select %p657, %s27, 1
      %s659 = smul.addr %s658, 2
      %s660 = scalar_lea.vmem %s15, %s659
      %p661 = pneg %p418
      %p662 = pneg %p415
      %p663 = pneg %p444
      %p664 = pneg %p441
      %p665 = scmp.lt.s32.totalorder %s27, 1
      %s666 = scalar_select %p665, %s27, 1
      %s667 = smul.addr %s666, 2
      %s668 = scalar_lea.vmem %s16, %s667
      %s669 = smul.u32 6, %s27
      %p670 = scmp.lt.s32.totalorder %s669, 11
      %s671 = scalar_select %p670, %s669, 11
      %s672 = smul.addr %s671, 8
      %s673 = scalar_lea.vmem %s1, %s672
      %s674 = smul.u32 6, %s27
      %p675 = scmp.lt.s32.totalorder %s27, 1
      %s676 = scalar_select %p675, %s27, 1
      %s677 = scalar_lea.vmem %s2, %s676
      %p678 = scmp.lt.s32.totalorder %s27, 1
      %s679 = scalar_select %p678, %s27, 1
      %s680 = smul.addr %s679, 8
      %s681 = smul.addr %s680, 4
      %s682 = scalar_lea.vmem %s6, %s681
      %p683 = scmp.lt.s32.totalorder %s27, 1
      %s684 = scalar_select %p683, %s27, 1
      %s685 = smul.addr %s684, 8
      %s686 = smul.addr %s685, 4
      %s687 = scalar_lea.vmem %s7, %s686
      %p688 = scmp.lt.s32.totalorder %s27, 1
      %s689 = scalar_select %p688, %s27, 1
      %s690 = smul.addr %s689, 2
      %s691 = smul.addr %s690, 8
      %s692 = scalar_lea.vmem %s8, %s691
      %p693 = scmp.lt.s32.totalorder %s27, 1
      %s694 = scalar_select %p693, %s27, 1
      %s695 = smul.addr %s694, 12
      %s696 = smul.addr %s695, 4
      %s697 = scalar_lea.vmem %s9, %s696
      %p698 = scmp.lt.s32.totalorder %s27, 1
      %s699 = scalar_select %p698, %s27, 1
      %s700 = smul.addr %s699, 6
      %s701 = smul.addr %s700, 8
      %s702 = scalar_lea.vmem %s10, %s701
      %p703 = scmp.lt.s32.totalorder %s27, 1
      %s704 = scalar_select %p703, %s27, 1
      %s705 = smul.addr %s704, 16
      %s706 = smul.addr %s705, 4
      %s707 = scalar_lea.vmem %s11, %s706
      %p708 = scmp.lt.s32.totalorder %s27, 1
      %s709 = scalar_select %p708, %s27, 1
      %s710 = smul.addr %s709, 16
      %s711 = smul.addr %s710, 4
      %s712 = scalar_lea.vmem %s12, %s711
      %p713 = scmp.lt.s32.totalorder %s27, 1
      %s714 = scalar_select %p713, %s27, 1
      %s715 = smul.addr %s714, 8
      %s716 = smul.addr %s715, 8
      %s717 = scalar_lea.vmem %s13, %s716
      %p718 = scmp.lt.s32.totalorder %s27, 1
      %s719 = scalar_select %p718, %s27, 1
      %s720 = smul.addr %s719, 2
      %s721 = scalar_lea.vmem %s14, %s720
      %p722 = scmp.lt.s32.totalorder %s27, 1
      %s723 = scalar_select %p722, %s27, 1
      %s724 = smul.addr %s723, 2
      %s725 = scalar_lea.vmem %s15, %s724
      %p726 = scmp.lt.s32.totalorder %s27, 1
      %s727 = scalar_select %p726, %s27, 1
      %s728 = smul.addr %s727, 2
      %s729 = scalar_lea.vmem %s16, %s728
      %v731 = vld [vmem:[%s0] sm:$0x1]
      %s732 = scalar_lea.vmem %s0, 1
      %v733 = vld [vmem:[%s732] sm:$0x1]
      %s734 = scalar_lea.vmem %s0, 2
      %v735 = vld [vmem:[%s734] sm:$0x1]
      %s736 = scalar_lea.vmem %s0, 3
      %v737 = vld [vmem:[%s736] sm:$0x1]
      %s738 = scalar_lea.vmem %s0, 5
      %v739 = vld [vmem:[%s738] sm:$0x1]
      %s740 = scalar_lea.vmem %s0, 6
      %v741 = vld [vmem:[%s740] sm:$0x1]
      %s742 = scalar_lea.vmem %s0, 7
      %v743 = vld [vmem:[%s742] sm:$0x1]
      %s744 = scalar_lea.vmem %s0, 8
      %v745 = vld [vmem:[%s744] sm:$0x1]
      %v746 = vld [vmem:[%s673] sm:$0xff]
      %v747 = vld [vmem:[%s673 + $0x8] sm:$0xff]
      %v748 = vld [vmem:[%s673 + $0x10] sm:$0xff]
      %v749 = vld [vmem:[%s673 + $0x18] sm:$0xff]
      %v750 = vld [vmem:[%s673 + $0x20] sm:$0xff]
      %v751 = vld [vmem:[%s673 + $0x28] sm:$0xff]
      %v752 = vld [vmem:[%s3] sm:$0xff]
      %v753 = vld [vmem:[%s3 + $0x8] sm:$0xff]
      %v754 = vld [vmem:[%s3 + $0x10] sm:$0xff]
      %v755 = vld [vmem:[%s3 + $0x18] sm:$0xff]
      %v756 = vld [vmem:[%s3 + $0x20] sm:$0xff]
      %v757 = vld [vmem:[%s3 + $0x28] sm:$0xff]
      %v758 = vld [vmem:[%s3 + $0x30] sm:$0xff]
      %v759 = vld [vmem:[%s3 + $0x38] sm:$0xff]
      %v760 = vld [vmem:[%s4] sm:$0xff]
      %v761 = vld [vmem:[%s4 + $0x8] sm:$0xff]
      %v762 = vld [vmem:[%s4 + $0x10] sm:$0xff]
      %v763 = vld [vmem:[%s4 + $0x18] sm:$0xff]
      %v764 = vld [vmem:[%s4 + $0x20] sm:$0xff]
      %v765 = vld [vmem:[%s4 + $0x28] sm:$0xff]
      %v766 = vld [vmem:[%s4 + $0x30] sm:$0xff]
      %v767 = vld [vmem:[%s4 + $0x38] sm:$0xff]
      %v768 = vld [vmem:[%s5] sm:$0xff]
      %v769 = vld [vmem:[%s5 + $0x8] sm:$0xff]
      %v770 = vld [vmem:[%s5 + $0x10] sm:$0xff]
      %v771 = vld [vmem:[%s5 + $0x18] sm:$0xff]
      %v772 = vld [vmem:[%s5 + $0x20] sm:$0xff]
      %v773 = vld [vmem:[%s5 + $0x28] sm:$0xff]
      %v774 = vld [vmem:[%s5 + $0x30] sm:$0xff]
      %v775 = vld [vmem:[%s5 + $0x38] sm:$0xff]
      %776 = vrot.lane.b32.xlu0 %v746, 9
      %v777 = vpop.permute.xlu0 %776
      %778 = vrot.lane.b32.xlu0 %v747, 9
      %v779 = vpop.permute.xlu0 %778
      %v781 = vperm.slane %v731, 0
      %v783 = vmul.f32 %v777, %v781
      %v784 = vmul.f32 %v779, %v781
      %785 = vrot.lane.b32.xlu0 %v746, 8
      %v786 = vpop.permute.xlu0 %785
      %787 = vrot.lane.b32.xlu0 %v747, 8
      %v788 = vpop.permute.xlu0 %787
      %v790 = vperm.slane %v733, 0
      %v792 = vmul.f32 %v786, %v790
      %v793 = vmul.f32 %v788, %v790
      %794 = vrot.lane.b32.xlu0 %v746, 7
      %v795 = vpop.permute.xlu0 %794
      %796 = vrot.lane.b32.xlu0 %v747, 7
      %v797 = vpop.permute.xlu0 %796
      %v799 = vperm.slane %v735, 0
      %v801 = vmul.f32 %v795, %v799
      %v802 = vmul.f32 %v797, %v799
      %803 = vrot.lane.b32.xlu0 %v746, 1
      %v804 = vpop.permute.xlu0 %803
      %805 = vrot.lane.b32.xlu0 %v747, 1
      %v806 = vpop.permute.xlu0 %805
      %v808 = vperm.slane %v737, 0
      %v810 = vmul.f32 %v804, %v808
      %v811 = vmul.f32 %v806, %v808
      %812 = vrot.lane.b32.xlu0 %v746, 127
      %v813 = vpop.permute.xlu0 %812
      %814 = vrot.lane.b32.xlu0 %v747, 127
      %v815 = vpop.permute.xlu0 %814
      %v817 = vperm.slane %v739, 0
      %v819 = vmul.f32 %v813, %v817
      %v820 = vmul.f32 %v815, %v817
      %821 = vrot.lane.b32.xlu0 %v746, 121
      %v822 = vpop.permute.xlu0 %821
      %823 = vrot.lane.b32.xlu0 %v747, 121
      %v824 = vpop.permute.xlu0 %823
      %v826 = vperm.slane %v741, 0
      %v828 = vmul.f32 %v822, %v826
      %v829 = vmul.f32 %v824, %v826
      %830 = vrot.lane.b32.xlu0 %v746, 120
      %v831 = vpop.permute.xlu0 %830
      %832 = vrot.lane.b32.xlu0 %v747, 120
      %v833 = vpop.permute.xlu0 %832
      %v835 = vperm.slane %v743, 0
      %v837 = vmul.f32 %v831, %v835
      %v838 = vmul.f32 %v833, %v835
      %839 = vrot.lane.b32.xlu0 %v746, 119
      %v840 = vpop.permute.xlu0 %839
      %841 = vrot.lane.b32.xlu0 %v747, 119
      %v842 = vpop.permute.xlu0 %841
      %v844 = vperm.slane %v745, 0
      %v846 = vmul.f32 %v840, %v844
      %v847 = vmul.f32 %v842, %v844
      %v848 = vpack.c.bf16 %v784, %v783
      %v849 = vpack.c.bf16 %v793, %v792
      %v850 = vpack.c.bf16 %v802, %v801
      %v851 = vpack.c.bf16 %v811, %v810
      %v852 = vpack.c.bf16 %v747, %v746
      %v853 = vpack.c.bf16 %v820, %v819
      %v854 = vpack.c.bf16 %v829, %v828
      %v855 = vpack.c.bf16 %v838, %v837
      %v856 = vpack.c.bf16 %v847, %v846
      %858 = vset.pattern.permute.xlu0 0
      %859 = vperm.xlu0 %858, %v768
      %v860 = vpop.permute.xlu0 %859
      %863 = vset.pattern.permute.xlu0 0
      %864 = vperm.xlu0 %863, %v769
      %v865 = vpop.permute.xlu0 %864
      %868 = vset.pattern.permute.xlu0 0
      %869 = vperm.xlu0 %868, %v770
      %v870 = vpop.permute.xlu0 %869
      %873 = vset.pattern.permute.xlu0 0
      %874 = vperm.xlu0 %873, %v771
      %v875 = vpop.permute.xlu0 %874
      %878 = vset.pattern.permute.xlu0 0
      %879 = vperm.xlu0 %878, %v772
      %v880 = vpop.permute.xlu0 %879
      %883 = vset.pattern.permute.xlu0 0
      %884 = vperm.xlu0 %883, %v773
      %v885 = vpop.permute.xlu0 %884
      %888 = vset.pattern.permute.xlu0 0
      %889 = vperm.xlu0 %888, %v774
      %v890 = vpop.permute.xlu0 %889
      %893 = vset.pattern.permute.xlu0 0
      %894 = vperm.xlu0 %893, %v775
      %v895 = vpop.permute.xlu0 %894
      %v905 = vunpack.c.l.b16 %v752
      %v906 = vunpack.c.h.b16 %v752
      %v907 = vunpack.c.l.b16 %v753
      %v908 = vunpack.c.h.b16 %v753
      %v909 = vunpack.c.l.b16 %v754
      %v910 = vunpack.c.h.b16 %v754
      %v911 = vunpack.c.l.b16 %v755
      %v912 = vunpack.c.h.b16 %v755
      %v913 = vunpack.c.l.b16 %v756
      %v914 = vunpack.c.h.b16 %v756
      %v915 = vunpack.c.l.b16 %v757
      %v916 = vunpack.c.h.b16 %v757
      %v917 = vunpack.c.l.b16 %v758
      %v918 = vunpack.c.h.b16 %v758
      %v919 = vunpack.c.l.b16 %v759
      %v920 = vunpack.c.h.b16 %v759
      %v921 = vpack.c.b16 %v907, %v905
      %v922 = vpack.c.b16 %v908, %v906
      %v923 = vpack.c.b16 %v911, %v909
      %v924 = vpack.c.b16 %v912, %v910
      %v925 = vpack.c.b16 %v915, %v913
      %v926 = vpack.c.b16 %v916, %v914
      %v927 = vpack.c.b16 %v919, %v917
      %v928 = vpack.c.b16 %v920, %v918
      %vm933 = vcmask 130048
      %v935 = vsel %vm933, %v922, 0
      %v938 = vsel %vm933, %v924, 0
      %v941 = vsel %vm933, %v926, 0
      %v944 = vsel %vm933, %v928, 0
      %946 = vmatpush.bf16.msra.mxu0 %v855
      %947 = vmatpush.bf16.msra.mxu0 %v854
      %948 = vmatpush.bf16.msra.mxu0 %v853
      %949 = vmatpush.bf16.msra.mxu0 %v852
      %950 = vmatpush.bf16.msra.mxu0 %v851
      %951 = vmatpush.bf16.msra.mxu0 %v850
      %952 = vmatpush.bf16.msra.mxu0 %v849
      %953 = vmatpush.bf16.msra.mxu0 %v848
      %954 = vmatmul.bf16.gmra.mxu0 %v921
      %v955 = vpop.f32.mrf.mxu0
      %v956 = vadd.f32 %v860, %v955
      %v957 = vpop.f32.mrf.mxu0
      %v958 = vadd.f32 %v865, %v957
      %959 = vmatmul.bf16.gmra.mxu0 %v923
      %v960 = vpop.f32.mrf.mxu0
      %v961 = vadd.f32 %v870, %v960
      %v962 = vpop.f32.mrf.mxu0
      %v963 = vadd.f32 %v875, %v962
      %964 = vmatmul.bf16.gmra.mxu0 %v925
      %v965 = vpop.f32.mrf.mxu0
      %v966 = vadd.f32 %v880, %v965
      %v967 = vpop.f32.mrf.mxu0
      %v968 = vadd.f32 %v885, %v967
      %969 = vmatmul.bf16.gmra.mxu0 %v927
      %v970 = vpop.f32.mrf.mxu0
      %v971 = vadd.f32 %v890, %v970
      %v972 = vpop.f32.mrf.mxu0
      %v973 = vadd.f32 %v895, %v972
      %974 = vdwg.mxu0
      %975 = vmatpush.bf16.msra.mxu0 0
      %976 = vmatpush.bf16.msra.mxu0 0
      %977 = vmatpush.bf16.msra.mxu0 0
      %978 = vmatpush.bf16.msra.mxu0 0
      %979 = vmatpush.bf16.msra.mxu0 0
      %980 = vmatpush.bf16.msra.mxu0 0
      %981 = vmatpush.bf16.msra.mxu0 0
      %982 = vmatpush.bf16.msra.mxu0 %v856
      %983 = vmatmul.bf16.gmra.mxu0 %v935
      %v984 = vpop.f32.mrf.mxu0
      %v985 = vadd.f32 %v956, %v984
      %v986 = vpop.f32.mrf.mxu0
      %v987 = vadd.f32 %v958, %v986
      %988 = vmatmul.bf16.gmra.mxu0 %v938
      %v989 = vpop.f32.mrf.mxu0
      %v990 = vadd.f32 %v961, %v989
      %v991 = vpop.f32.mrf.mxu0
      %v992 = vadd.f32 %v963, %v991
      %993 = vmatmul.bf16.gmra.mxu0 %v941
      %v994 = vpop.f32.mrf.mxu0
      %v995 = vadd.f32 %v966, %v994
      %v996 = vpop.f32.mrf.mxu0
      %v997 = vadd.f32 %v968, %v996
      %998 = vmatmul.bf16.gmra.mxu0 %v944
      %v999 = vpop.f32.mrf.mxu0
      %v1000 = vadd.f32 %v971, %v999
      %v1001 = vpop.f32.mrf.mxu0
      %v1002 = vadd.f32 %v973, %v1001
      %1003 = vdwg.mxu0
      %1004 = vrot.lane.b32.xlu0 %v748, 9
      %v1005 = vpop.permute.xlu0 %1004
      %1006 = vrot.lane.b32.xlu0 %v749, 9
      %v1007 = vpop.permute.xlu0 %1006
      %v1008 = vmul.f32 %v1005, %v781
      %v1009 = vmul.f32 %v1007, %v781
      %1010 = vrot.lane.b32.xlu0 %v748, 8
      %v1011 = vpop.permute.xlu0 %1010
      %1012 = vrot.lane.b32.xlu0 %v749, 8
      %v1013 = vpop.permute.xlu0 %1012
      %v1014 = vmul.f32 %v1011, %v790
      %v1015 = vmul.f32 %v1013, %v790
      %1016 = vrot.lane.b32.xlu0 %v748, 7
      %v1017 = vpop.permute.xlu0 %1016
      %1018 = vrot.lane.b32.xlu0 %v749, 7
      %v1019 = vpop.permute.xlu0 %1018
      %v1020 = vmul.f32 %v1017, %v799
      %v1021 = vmul.f32 %v1019, %v799
      %1022 = vrot.lane.b32.xlu0 %v748, 1
      %v1023 = vpop.permute.xlu0 %1022
      %1024 = vrot.lane.b32.xlu0 %v749, 1
      %v1025 = vpop.permute.xlu0 %1024
      %v1026 = vmul.f32 %v1023, %v808
      %v1027 = vmul.f32 %v1025, %v808
      %1028 = vrot.lane.b32.xlu0 %v748, 127
      %v1029 = vpop.permute.xlu0 %1028
      %1030 = vrot.lane.b32.xlu0 %v749, 127
      %v1031 = vpop.permute.xlu0 %1030
      %v1032 = vmul.f32 %v1029, %v817
      %v1033 = vmul.f32 %v1031, %v817
      %1034 = vrot.lane.b32.xlu0 %v748, 121
      %v1035 = vpop.permute.xlu0 %1034
      %1036 = vrot.lane.b32.xlu0 %v749, 121
      %v1037 = vpop.permute.xlu0 %1036
      %v1038 = vmul.f32 %v1035, %v826
      %v1039 = vmul.f32 %v1037, %v826
      %1040 = vrot.lane.b32.xlu0 %v748, 120
      %v1041 = vpop.permute.xlu0 %1040
      %1042 = vrot.lane.b32.xlu0 %v749, 120
      %v1043 = vpop.permute.xlu0 %1042
      %v1044 = vmul.f32 %v1041, %v835
      %v1045 = vmul.f32 %v1043, %v835
      %1046 = vrot.lane.b32.xlu0 %v748, 119
      %v1047 = vpop.permute.xlu0 %1046
      %1048 = vrot.lane.b32.xlu0 %v749, 119
      %v1049 = vpop.permute.xlu0 %1048
      %v1050 = vmul.f32 %v1047, %v844
      %v1051 = vmul.f32 %v1049, %v844
      %v1052 = vpack.c.bf16 %v1009, %v1008
      %v1053 = vpack.c.bf16 %v1015, %v1014
      %v1054 = vpack.c.bf16 %v1021, %v1020
      %v1055 = vpack.c.bf16 %v1027, %v1026
      %v1056 = vpack.c.bf16 %v749, %v748
      %v1057 = vpack.c.bf16 %v1033, %v1032
      %v1058 = vpack.c.bf16 %v1039, %v1038
      %v1059 = vpack.c.bf16 %v1045, %v1044
      %v1060 = vpack.c.bf16 %v1051, %v1050
      %1061 = vmatpush.bf16.msra.mxu0 %v1059
      %1062 = vmatpush.bf16.msra.mxu0 %v1058
      %1063 = vmatpush.bf16.msra.mxu0 %v1057
      %1064 = vmatpush.bf16.msra.mxu0 %v1056
      %1065 = vmatpush.bf16.msra.mxu0 %v1055
      %1066 = vmatpush.bf16.msra.mxu0 %v1054
      %1067 = vmatpush.bf16.msra.mxu0 %v1053
      %1068 = vmatpush.bf16.msra.mxu0 %v1052
      %1069 = vmatmul.bf16.gmra.mxu0 %v921
      %v1070 = vpop.f32.mrf.mxu0
      %v1071 = vadd.f32 %v860, %v1070
      %v1072 = vpop.f32.mrf.mxu0
      %v1073 = vadd.f32 %v865, %v1072
      %1074 = vmatmul.bf16.gmra.mxu0 %v923
      %v1075 = vpop.f32.mrf.mxu0
      %v1076 = vadd.f32 %v870, %v1075
      %v1077 = vpop.f32.mrf.mxu0
      %v1078 = vadd.f32 %v875, %v1077
      %1079 = vmatmul.bf16.gmra.mxu0 %v925
      %v1080 = vpop.f32.mrf.mxu0
      %v1081 = vadd.f32 %v880, %v1080
      %v1082 = vpop.f32.mrf.mxu0
      %v1083 = vadd.f32 %v885, %v1082
      %1084 = vmatmul.bf16.gmra.mxu0 %v927
      %v1085 = vpop.f32.mrf.mxu0
      %v1086 = vadd.f32 %v890, %v1085
      %v1087 = vpop.f32.mrf.mxu0
      %v1088 = vadd.f32 %v895, %v1087
      %1089 = vdwg.mxu0
      %1090 = vmatpush.bf16.msra.mxu0 0
      %1091 = vmatpush.bf16.msra.mxu0 0
      %1092 = vmatpush.bf16.msra.mxu0 0
      %1093 = vmatpush.bf16.msra.mxu0 0
      %1094 = vmatpush.bf16.msra.mxu0 0
      %1095 = vmatpush.bf16.msra.mxu0 0
      %1096 = vmatpush.bf16.msra.mxu0 0
      %1097 = vmatpush.bf16.msra.mxu0 %v1060
      %1098 = vmatmul.bf16.gmra.mxu0 %v935
      %v1099 = vpop.f32.mrf.mxu0
      %v1100 = vadd.f32 %v1071, %v1099
      %v1101 = vpop.f32.mrf.mxu0
      %v1102 = vadd.f32 %v1073, %v1101
      %1103 = vmatmul.bf16.gmra.mxu0 %v938
      %v1104 = vpop.f32.mrf.mxu0
      %v1105 = vadd.f32 %v1076, %v1104
      %v1106 = vpop.f32.mrf.mxu0
      %v1107 = vadd.f32 %v1078, %v1106
      %1108 = vmatmul.bf16.gmra.mxu0 %v941
      %v1109 = vpop.f32.mrf.mxu0
      %v1110 = vadd.f32 %v1081, %v1109
      %v1111 = vpop.f32.mrf.mxu0
      %v1112 = vadd.f32 %v1083, %v1111
      %1113 = vmatmul.bf16.gmra.mxu0 %v944
      %v1114 = vpop.f32.mrf.mxu0
      %v1115 = vadd.f32 %v1086, %v1114
      %v1116 = vpop.f32.mrf.mxu0
      %v1117 = vadd.f32 %v1088, %v1116
      %1118 = vdwg.mxu0
      %1119 = vrot.lane.b32.xlu0 %v750, 9
      %v1120 = vpop.permute.xlu0 %1119
      %1121 = vrot.lane.b32.xlu0 %v751, 9
      %v1122 = vpop.permute.xlu0 %1121
      %v1123 = vmul.f32 %v1120, %v781
      %v1124 = vmul.f32 %v1122, %v781
      %1125 = vrot.lane.b32.xlu0 %v750, 8
      %v1126 = vpop.permute.xlu0 %1125
      %1127 = vrot.lane.b32.xlu0 %v751, 8
      %v1128 = vpop.permute.xlu0 %1127
      %v1129 = vmul.f32 %v1126, %v790
      %v1130 = vmul.f32 %v1128, %v790
      %1131 = vrot.lane.b32.xlu0 %v750, 7
      %v1132 = vpop.permute.xlu0 %1131
      %1133 = vrot.lane.b32.xlu0 %v751, 7
      %v1134 = vpop.permute.xlu0 %1133
      %v1135 = vmul.f32 %v1132, %v799
      %v1136 = vmul.f32 %v1134, %v799
      %1137 = vrot.lane.b32.xlu0 %v750, 1
      %v1138 = vpop.permute.xlu0 %1137
      %1139 = vrot.lane.b32.xlu0 %v751, 1
      %v1140 = vpop.permute.xlu0 %1139
      %v1141 = vmul.f32 %v1138, %v808
      %v1142 = vmul.f32 %v1140, %v808
      %1143 = vrot.lane.b32.xlu0 %v750, 127
      %v1144 = vpop.permute.xlu0 %1143
      %1145 = vrot.lane.b32.xlu0 %v751, 127
      %v1146 = vpop.permute.xlu0 %1145
      %v1147 = vmul.f32 %v1144, %v817
      %v1148 = vmul.f32 %v1146, %v817
      %1149 = vrot.lane.b32.xlu0 %v750, 121
      %v1150 = vpop.permute.xlu0 %1149
      %1151 = vrot.lane.b32.xlu0 %v751, 121
      %v1152 = vpop.permute.xlu0 %1151
      %v1153 = vmul.f32 %v1150, %v826
      %v1154 = vmul.f32 %v1152, %v826
      %1155 = vrot.lane.b32.xlu0 %v750, 120
      %v1156 = vpop.permute.xlu0 %1155
      %1157 = vrot.lane.b32.xlu0 %v751, 120
      %v1158 = vpop.permute.xlu0 %1157
      %v1159 = vmul.f32 %v1156, %v835
      %v1160 = vmul.f32 %v1158, %v835
      %1161 = vrot.lane.b32.xlu0 %v750, 119
      %v1162 = vpop.permute.xlu0 %1161
      %1163 = vrot.lane.b32.xlu0 %v751, 119
      %v1164 = vpop.permute.xlu0 %1163
      %v1165 = vmul.f32 %v1162, %v844
      %v1166 = vmul.f32 %v1164, %v844
      %v1167 = vpack.c.bf16 %v1124, %v1123
      %v1168 = vpack.c.bf16 %v1130, %v1129
      %v1169 = vpack.c.bf16 %v1136, %v1135
      %v1170 = vpack.c.bf16 %v1142, %v1141
      %v1171 = vpack.c.bf16 %v751, %v750
      %v1172 = vpack.c.bf16 %v1148, %v1147
      %v1173 = vpack.c.bf16 %v1154, %v1153
      %v1174 = vpack.c.bf16 %v1160, %v1159
      %v1175 = vpack.c.bf16 %v1166, %v1165
      %1176 = vmatpush.bf16.msra.mxu0 %v1174
      %1177 = vmatpush.bf16.msra.mxu0 %v1173
      %1178 = vmatpush.bf16.msra.mxu0 %v1172
      %1179 = vmatpush.bf16.msra.mxu0 %v1171
      %1180 = vmatpush.bf16.msra.mxu0 %v1170
      %1181 = vmatpush.bf16.msra.mxu0 %v1169
      %1182 = vmatpush.bf16.msra.mxu0 %v1168
      %1183 = vmatpush.bf16.msra.mxu0 %v1167
      %1184 = vmatmul.bf16.gmra.mxu0 %v921
      %v1185 = vpop.f32.mrf.mxu0
      %v1186 = vadd.f32 %v860, %v1185
      %v1187 = vpop.f32.mrf.mxu0
      %v1188 = vadd.f32 %v865, %v1187
      %1189 = vmatmul.bf16.gmra.mxu0 %v923
      %v1190 = vpop.f32.mrf.mxu0
      %v1191 = vadd.f32 %v870, %v1190
      %v1192 = vpop.f32.mrf.mxu0
      %v1193 = vadd.f32 %v875, %v1192
      %1194 = vmatmul.bf16.gmra.mxu0 %v925
      %v1195 = vpop.f32.mrf.mxu0
      %v1196 = vadd.f32 %v880, %v1195
      %v1197 = vpop.f32.mrf.mxu0
      %v1198 = vadd.f32 %v885, %v1197
      %1199 = vmatmul.bf16.gmra.mxu0 %v927
      %v1200 = vpop.f32.mrf.mxu0
      %v1201 = vadd.f32 %v890, %v1200
      %v1202 = vpop.f32.mrf.mxu0
      %v1203 = vadd.f32 %v895, %v1202
      %1204 = vdwg.mxu0
      %1205 = vmatpush.bf16.msra.mxu0 0
      %1206 = vmatpush.bf16.msra.mxu0 0
      %1207 = vmatpush.bf16.msra.mxu0 0
      %1208 = vmatpush.bf16.msra.mxu0 0
      %1209 = vmatpush.bf16.msra.mxu0 0
      %1210 = vmatpush.bf16.msra.mxu0 0
      %1211 = vmatpush.bf16.msra.mxu0 0
      %1212 = vmatpush.bf16.msra.mxu0 %v1175
      %1213 = vmatmul.bf16.gmra.mxu0 %v935
      %v1214 = vpop.f32.mrf.mxu0
      %v1215 = vadd.f32 %v1186, %v1214
      %v1216 = vpop.f32.mrf.mxu0
      %v1217 = vadd.f32 %v1188, %v1216
      %1218 = vmatmul.bf16.gmra.mxu0 %v938
      %v1219 = vpop.f32.mrf.mxu0
      %v1220 = vadd.f32 %v1191, %v1219
      %v1221 = vpop.f32.mrf.mxu0
      %v1222 = vadd.f32 %v1193, %v1221
      %1223 = vmatmul.bf16.gmra.mxu0 %v941
      %v1224 = vpop.f32.mrf.mxu0
      %v1225 = vadd.f32 %v1196, %v1224
      %v1226 = vpop.f32.mrf.mxu0
      %v1227 = vadd.f32 %v1198, %v1226
      %1228 = vmatmul.bf16.gmra.mxu0 %v944
      %v1229 = vpop.f32.mrf.mxu0
      %v1230 = vadd.f32 %v1201, %v1229
      %v1231 = vpop.f32.mrf.mxu0
      %v1232 = vadd.f32 %v1203, %v1231
      %1233 = vdwg.mxu0
      %1234 = vrot.lane.b32.xlu0 0.0, 9
      %v1235 = vpop.permute.xlu0 %1234
      %v1236 = vmul.f32 %v1235, %v781
      %1237 = vrot.lane.b32.xlu0 0.0, 8
      %v1238 = vpop.permute.xlu0 %1237
      %v1239 = vmul.f32 %v1238, %v790
      %1240 = vrot.lane.b32.xlu0 0.0, 7
      %v1241 = vpop.permute.xlu0 %1240
      %v1242 = vmul.f32 %v1241, %v799
      %1243 = vrot.lane.b32.xlu0 0.0, 1
      %v1244 = vpop.permute.xlu0 %1243
      %v1245 = vmul.f32 %v1244, %v808
      %1246 = vrot.lane.b32.xlu0 0.0, 127
      %v1247 = vpop.permute.xlu0 %1246
      %v1248 = vmul.f32 %v1247, %v817
      %1249 = vrot.lane.b32.xlu0 0.0, 121
      %v1250 = vpop.permute.xlu0 %1249
      %v1251 = vmul.f32 %v1250, %v826
      %1252 = vrot.lane.b32.xlu0 0.0, 120
      %v1253 = vpop.permute.xlu0 %1252
      %v1254 = vmul.f32 %v1253, %v835
      %1255 = vrot.lane.b32.xlu0 0.0, 119
      %v1256 = vpop.permute.xlu0 %1255
      %v1257 = vmul.f32 %v1256, %v844
      %v1258 = vpack.c.bf16 %v1236, %v1236
      %v1259 = vpack.c.bf16 %v1239, %v1239
      %v1260 = vpack.c.bf16 %v1242, %v1242
      %v1261 = vpack.c.bf16 %v1245, %v1245
      %v1262 = vpack.c.bf16 0.0, 0.0
      %v1263 = vpack.c.bf16 %v1248, %v1248
      %v1264 = vpack.c.bf16 %v1251, %v1251
      %v1265 = vpack.c.bf16 %v1254, %v1254
      %v1266 = vpack.c.bf16 %v1257, %v1257
      %v1275 = vunpack.c.l.b16 %v760
      %v1276 = vunpack.c.h.b16 %v760
      %v1277 = vunpack.c.l.b16 %v761
      %v1278 = vunpack.c.h.b16 %v761
      %v1279 = vunpack.c.l.b16 %v762
      %v1280 = vunpack.c.h.b16 %v762
      %v1281 = vunpack.c.l.b16 %v763
      %v1282 = vunpack.c.h.b16 %v763
      %v1283 = vunpack.c.l.b16 %v764
      %v1284 = vunpack.c.h.b16 %v764
      %v1285 = vunpack.c.l.b16 %v765
      %v1286 = vunpack.c.h.b16 %v765
      %v1287 = vunpack.c.l.b16 %v766
      %v1288 = vunpack.c.h.b16 %v766
      %v1289 = vunpack.c.l.b16 %v767
      %v1290 = vunpack.c.h.b16 %v767
      %v1291 = vpack.c.b16 %v1277, %v1275
      %v1292 = vpack.c.b16 %v1278, %v1276
      %v1293 = vpack.c.b16 %v1281, %v1279
      %v1294 = vpack.c.b16 %v1282, %v1280
      %v1295 = vpack.c.b16 %v1285, %v1283
      %v1296 = vpack.c.b16 %v1286, %v1284
      %v1297 = vpack.c.b16 %v1289, %v1287
      %v1298 = vpack.c.b16 %v1290, %v1288
      %v1304 = vsel %vm933, %v1292, 0
      %v1307 = vsel %vm933, %v1294, 0
      %v1310 = vsel %vm933, %v1296, 0
      %v1313 = vsel %vm933, %v1298, 0
      %1315 = vmatpush.bf16.msra.mxu0 %v1265
      %1316 = vmatpush.bf16.msra.mxu0 %v1264
      %1317 = vmatpush.bf16.msra.mxu0 %v1263
      %1318 = vmatpush.bf16.msra.mxu0 %v1262
      %1319 = vmatpush.bf16.msra.mxu0 %v1261
      %1320 = vmatpush.bf16.msra.mxu0 %v1260
      %1321 = vmatpush.bf16.msra.mxu0 %v1259
      %1322 = vmatpush.bf16.msra.mxu0 %v1258
      %1323 = vmatmul.bf16.gmra.mxu0 %v1291
      %v1324 = vpop.f32.mrf.mxu0
      %v1325 = vadd.f32 0.0, %v1324
      %v1326 = vpop.f32.mrf.mxu0
      %v1327 = vadd.f32 0.0, %v1326
      %1328 = vmatmul.bf16.gmra.mxu0 %v1293
      %v1329 = vpop.f32.mrf.mxu0
      %v1330 = vadd.f32 0.0, %v1329
      %v1331 = vpop.f32.mrf.mxu0
      %v1332 = vadd.f32 0.0, %v1331
      %1333 = vmatmul.bf16.gmra.mxu0 %v1295
      %v1334 = vpop.f32.mrf.mxu0
      %v1335 = vadd.f32 0.0, %v1334
      %v1336 = vpop.f32.mrf.mxu0
      %v1337 = vadd.f32 0.0, %v1336
      %1338 = vmatmul.bf16.gmra.mxu0 %v1297
      %v1339 = vpop.f32.mrf.mxu0
      %v1340 = vadd.f32 0.0, %v1339
      %v1341 = vpop.f32.mrf.mxu0
      %v1342 = vadd.f32 0.0, %v1341
      %1343 = vdwg.mxu0
      %1344 = vmatpush.bf16.msra.mxu0 0
      %1345 = vmatpush.bf16.msra.mxu0 0
      %1346 = vmatpush.bf16.msra.mxu0 0
      %1347 = vmatpush.bf16.msra.mxu0 0
      %1348 = vmatpush.bf16.msra.mxu0 0
      %1349 = vmatpush.bf16.msra.mxu0 0
      %1350 = vmatpush.bf16.msra.mxu0 0
      %1351 = vmatpush.bf16.msra.mxu0 %v1266
      %1352 = vmatmul.bf16.gmra.mxu0 %v1304
      %v1353 = vpop.f32.mrf.mxu0
      %v1354 = vadd.f32 %v1325, %v1353
      %v1355 = vpop.f32.mrf.mxu0
      %v1356 = vadd.f32 %v1327, %v1355
      %1357 = vmatmul.bf16.gmra.mxu0 %v1307
      %v1358 = vpop.f32.mrf.mxu0
      %v1359 = vadd.f32 %v1330, %v1358
      %v1360 = vpop.f32.mrf.mxu0
      %v1361 = vadd.f32 %v1332, %v1360
      %1362 = vmatmul.bf16.gmra.mxu0 %v1310
      %v1363 = vpop.f32.mrf.mxu0
      %v1364 = vadd.f32 %v1335, %v1363
      %v1365 = vpop.f32.mrf.mxu0
      %v1366 = vadd.f32 %v1337, %v1365
      %1367 = vmatmul.bf16.gmra.mxu0 %v1313
      %v1368 = vpop.f32.mrf.mxu0
      %v1369 = vadd.f32 %v1340, %v1368
      %v1370 = vpop.f32.mrf.mxu0
      %v1371 = vadd.f32 %v1342, %v1370
      %1372 = vdwg.mxu0
      %v1373 = vadd.f32 %v985, %v1354
      %v1374 = vadd.f32 %v987, %v1356
      %v1375 = vadd.f32 %v990, %v1359
      %v1376 = vadd.f32 %v992, %v1361
      %v1377 = vadd.f32 %v995, %v1364
      %v1378 = vadd.f32 %v997, %v1366
      %v1379 = vadd.f32 %v1000, %v1369
      %v1380 = vadd.f32 %v1002, %v1371
      %v1381 = vmul.f32 %v1373, 0.5
      %v1382 = vmul.f32 %v1374, 0.5
      %v1383 = vtanh.pop %v1381
      %v1384 = vtanh.pop %v1382
      %v1385 = vadd.f32 %v1383, 1.0
      %v1386 = vadd.f32 %v1384, 1.0
      %v1387 = vmul.f32 %v1385, 0.5
      %v1388 = vmul.f32 %v1386, 0.5
      %v1389 = vmul.f32 %v1375, 0.5
      %v1390 = vmul.f32 %v1376, 0.5
      %v1391 = vtanh.pop %v1389
      %v1392 = vtanh.pop %v1390
      %v1393 = vadd.f32 %v1391, 1.0
      %v1394 = vadd.f32 %v1392, 1.0
      %v1395 = vmul.f32 %v1393, 0.5
      %v1396 = vmul.f32 %v1394, 0.5
      %v1397 = vtanh.pop %v1377
      %v1398 = vtanh.pop %v1378
      %v1399 = vmul.f32 %v1379, 0.5
      %v1400 = vmul.f32 %v1380, 0.5
      %v1401 = vtanh.pop %v1399
      %v1402 = vtanh.pop %v1400
      %v1403 = vadd.f32 %v1401, 1.0
      %v1404 = vadd.f32 %v1402, 1.0
      %v1405 = vmul.f32 %v1403, 0.5
      %v1406 = vmul.f32 %v1404, 0.5
      %v1407 = vmul.f32 %v1395, 0.0
      %v1408 = vmul.f32 %v1396, 0.0
      %v1409 = vmul.f32 %v1387, %v1397
      %v1410 = vmul.f32 %v1388, %v1398
      %v1411 = vadd.f32 %v1407, %v1409
      %v1412 = vadd.f32 %v1408, %v1410
      %v1413 = vtanh.pop %v1411
      %v1414 = vtanh.pop %v1412
      %v1415 = vmul.f32 %v1405, %v1413
      %v1416 = vmul.f32 %v1406, %v1414
      %1417 = vrot.lane.b32.xlu0 %v1415, 9
      %v1418 = vpop.permute.xlu0 %1417
      %1419 = vrot.lane.b32.xlu0 %v1416, 9
      %v1420 = vpop.permute.xlu0 %1419
      %v1421 = vmul.f32 %v1418, %v781
      %v1422 = vmul.f32 %v1420, %v781
      %1423 = vrot.lane.b32.xlu0 %v1415, 8
      %v1424 = vpop.permute.xlu0 %1423
      %1425 = vrot.lane.b32.xlu0 %v1416, 8
      %v1426 = vpop.permute.xlu0 %1425
      %v1427 = vmul.f32 %v1424, %v790
      %v1428 = vmul.f32 %v1426, %v790
      %1429 = vrot.lane.b32.xlu0 %v1415, 7
      %v1430 = vpop.permute.xlu0 %1429
      %1431 = vrot.lane.b32.xlu0 %v1416, 7
      %v1432 = vpop.permute.xlu0 %1431
      %v1433 = vmul.f32 %v1430, %v799
      %v1434 = vmul.f32 %v1432, %v799
      %1435 = vrot.lane.b32.xlu0 %v1415, 1
      %v1436 = vpop.permute.xlu0 %1435
      %1437 = vrot.lane.b32.xlu0 %v1416, 1
      %v1438 = vpop.permute.xlu0 %1437
      %v1439 = vmul.f32 %v1436, %v808
      %v1440 = vmul.f32 %v1438, %v808
      %1441 = vrot.lane.b32.xlu0 %v1415, 127
      %v1442 = vpop.permute.xlu0 %1441
      %1443 = vrot.lane.b32.xlu0 %v1416, 127
      %v1444 = vpop.permute.xlu0 %1443
      %v1445 = vmul.f32 %v1442, %v817
      %v1446 = vmul.f32 %v1444, %v817
      %1447 = vrot.lane.b32.xlu0 %v1415, 121
      %v1448 = vpop.permute.xlu0 %1447
      %1449 = vrot.lane.b32.xlu0 %v1416, 121
      %v1450 = vpop.permute.xlu0 %1449
      %v1451 = vmul.f32 %v1448, %v826
      %v1452 = vmul.f32 %v1450, %v826
      %1453 = vrot.lane.b32.xlu0 %v1415, 120
      %v1454 = vpop.permute.xlu0 %1453
      %1455 = vrot.lane.b32.xlu0 %v1416, 120
      %v1456 = vpop.permute.xlu0 %1455
      %v1457 = vmul.f32 %v1454, %v835
      %v1458 = vmul.f32 %v1456, %v835
      %1459 = vrot.lane.b32.xlu0 %v1415, 119
      %v1460 = vpop.permute.xlu0 %1459
      %1461 = vrot.lane.b32.xlu0 %v1416, 119
      %v1462 = vpop.permute.xlu0 %1461
      %v1463 = vmul.f32 %v1460, %v844
      %v1464 = vmul.f32 %v1462, %v844
      %v1465 = vpack.c.bf16 %v1422, %v1421
      %v1466 = vpack.c.bf16 %v1428, %v1427
      %v1467 = vpack.c.bf16 %v1434, %v1433
      %v1468 = vpack.c.bf16 %v1440, %v1439
      %v1469 = vpack.c.bf16 %v1416, %v1415
      %v1470 = vpack.c.bf16 %v1446, %v1445
      %v1471 = vpack.c.bf16 %v1452, %v1451
      %v1472 = vpack.c.bf16 %v1458, %v1457
      %v1473 = vpack.c.bf16 %v1464, %v1463
      %1474 = vmatpush.bf16.msra.mxu0 %v1472
      %1475 = vmatpush.bf16.msra.mxu0 %v1471
      %1476 = vmatpush.bf16.msra.mxu0 %v1470
      %1477 = vmatpush.bf16.msra.mxu0 %v1469
      %1478 = vmatpush.bf16.msra.mxu0 %v1468
      %1479 = vmatpush.bf16.msra.mxu0 %v1467
      %1480 = vmatpush.bf16.msra.mxu0 %v1466
      %1481 = vmatpush.bf16.msra.mxu0 %v1465
      %1482 = vmatmul.bf16.gmra.mxu0 %v1291
      %v1483 = vpop.f32.mrf.mxu0
      %v1484 = vadd.f32 0.0, %v1483
      %v1485 = vpop.f32.mrf.mxu0
      %v1486 = vadd.f32 0.0, %v1485
      %1487 = vmatmul.bf16.gmra.mxu0 %v1293
      %v1488 = vpop.f32.mrf.mxu0
      %v1489 = vadd.f32 0.0, %v1488
      %v1490 = vpop.f32.mrf.mxu0
      %v1491 = vadd.f32 0.0, %v1490
      %1492 = vmatmul.bf16.gmra.mxu0 %v1295
      %v1493 = vpop.f32.mrf.mxu0
      %v1494 = vadd.f32 0.0, %v1493
      %v1495 = vpop.f32.mrf.mxu0
      %v1496 = vadd.f32 0.0, %v1495
      %1497 = vmatmul.bf16.gmra.mxu0 %v1297
      %v1498 = vpop.f32.mrf.mxu0
      %v1499 = vadd.f32 0.0, %v1498
      %v1500 = vpop.f32.mrf.mxu0
      %v1501 = vadd.f32 0.0, %v1500
      %1502 = vdwg.mxu0
      %1503 = vmatpush.bf16.msra.mxu0 0
      %1504 = vmatpush.bf16.msra.mxu0 0
      %1505 = vmatpush.bf16.msra.mxu0 0
      %1506 = vmatpush.bf16.msra.mxu0 0
      %1507 = vmatpush.bf16.msra.mxu0 0
      %1508 = vmatpush.bf16.msra.mxu0 0
      %1509 = vmatpush.bf16.msra.mxu0 0
      %1510 = vmatpush.bf16.msra.mxu0 %v1473
      %1511 = vmatmul.bf16.gmra.mxu0 %v1304
      %v1512 = vpop.f32.mrf.mxu0
      %v1513 = vadd.f32 %v1484, %v1512
      %v1514 = vpop.f32.mrf.mxu0
      %v1515 = vadd.f32 %v1486, %v1514
      %1516 = vmatmul.bf16.gmra.mxu0 %v1307
      %v1517 = vpop.f32.mrf.mxu0
      %v1518 = vadd.f32 %v1489, %v1517
      %v1519 = vpop.f32.mrf.mxu0
      %v1520 = vadd.f32 %v1491, %v1519
      %1521 = vmatmul.bf16.gmra.mxu0 %v1310
      %v1522 = vpop.f32.mrf.mxu0
      %v1523 = vadd.f32 %v1494, %v1522
      %v1524 = vpop.f32.mrf.mxu0
      %v1525 = vadd.f32 %v1496, %v1524
      %1526 = vmatmul.bf16.gmra.mxu0 %v1313
      %v1527 = vpop.f32.mrf.mxu0
      %v1528 = vadd.f32 %v1499, %v1527
      %v1529 = vpop.f32.mrf.mxu0
      %v1530 = vadd.f32 %v1501, %v1529
      %1531 = vdwg.mxu0
      %v1532 = vadd.f32 %v1100, %v1513
      %v1533 = vadd.f32 %v1102, %v1515
      %v1534 = vadd.f32 %v1105, %v1518
      %v1535 = vadd.f32 %v1107, %v1520
      %v1536 = vadd.f32 %v1110, %v1523
      %v1537 = vadd.f32 %v1112, %v1525
      %v1538 = vadd.f32 %v1115, %v1528
      %v1539 = vadd.f32 %v1117, %v1530
      %v1540 = vmul.f32 %v1532, 0.5
      %v1541 = vmul.f32 %v1533, 0.5
      %v1542 = vtanh.pop %v1540
      %v1543 = vtanh.pop %v1541
      %v1544 = vadd.f32 %v1542, 1.0
      %v1545 = vadd.f32 %v1543, 1.0
      %v1546 = vmul.f32 %v1544, 0.5
      %v1547 = vmul.f32 %v1545, 0.5
      %v1548 = vmul.f32 %v1534, 0.5
      %v1549 = vmul.f32 %v1535, 0.5
      %v1550 = vtanh.pop %v1548
      %v1551 = vtanh.pop %v1549
      %v1552 = vadd.f32 %v1550, 1.0
      %v1553 = vadd.f32 %v1551, 1.0
      %v1554 = vmul.f32 %v1552, 0.5
      %v1555 = vmul.f32 %v1553, 0.5
      %v1556 = vtanh.pop %v1536
      %v1557 = vtanh.pop %v1537
      %v1558 = vmul.f32 %v1538, 0.5
      %v1559 = vmul.f32 %v1539, 0.5
      %v1560 = vtanh.pop %v1558
      %v1561 = vtanh.pop %v1559
      %v1562 = vadd.f32 %v1560, 1.0
      %v1563 = vadd.f32 %v1561, 1.0
      %v1564 = vmul.f32 %v1562, 0.5
      %v1565 = vmul.f32 %v1563, 0.5
      %v1566 = vmul.f32 %v1554, %v1411
      %v1567 = vmul.f32 %v1555, %v1412
      %v1568 = vmul.f32 %v1546, %v1556
      %v1569 = vmul.f32 %v1547, %v1557
      %v1570 = vadd.f32 %v1566, %v1568
      %v1571 = vadd.f32 %v1567, %v1569
      %v1572 = vtanh.pop %v1570
      %v1573 = vtanh.pop %v1571
      %v1574 = vmul.f32 %v1564, %v1572
      %v1575 = vmul.f32 %v1565, %v1573
      %1576 = vrot.lane.b32.xlu0 %v1574, 9
      %v1577 = vpop.permute.xlu0 %1576
      %1578 = vrot.lane.b32.xlu0 %v1575, 9
      %v1579 = vpop.permute.xlu0 %1578
      %v1580 = vmul.f32 %v1577, %v781
      %v1581 = vmul.f32 %v1579, %v781
      %1582 = vrot.lane.b32.xlu0 %v1574, 8
      %v1583 = vpop.permute.xlu0 %1582
      %1584 = vrot.lane.b32.xlu0 %v1575, 8
      %v1585 = vpop.permute.xlu0 %1584
      %v1586 = vmul.f32 %v1583, %v790
      %v1587 = vmul.f32 %v1585, %v790
      %1588 = vrot.lane.b32.xlu0 %v1574, 7
      %v1589 = vpop.permute.xlu0 %1588
      %1590 = vrot.lane.b32.xlu0 %v1575, 7
      %v1591 = vpop.permute.xlu0 %1590
      %v1592 = vmul.f32 %v1589, %v799
      %v1593 = vmul.f32 %v1591, %v799
      %1594 = vrot.lane.b32.xlu0 %v1574, 1
      %v1595 = vpop.permute.xlu0 %1594
      %1596 = vrot.lane.b32.xlu0 %v1575, 1
      %v1597 = vpop.permute.xlu0 %1596
      %v1598 = vmul.f32 %v1595, %v808
      %v1599 = vmul.f32 %v1597, %v808
      %1600 = vrot.lane.b32.xlu0 %v1574, 127
      %v1601 = vpop.permute.xlu0 %1600
      %1602 = vrot.lane.b32.xlu0 %v1575, 127
      %v1603 = vpop.permute.xlu0 %1602
      %v1604 = vmul.f32 %v1601, %v817
      %v1605 = vmul.f32 %v1603, %v817
      %1606 = vrot.lane.b32.xlu0 %v1574, 121
      %v1607 = vpop.permute.xlu0 %1606
      %1608 = vrot.lane.b32.xlu0 %v1575, 121
      %v1609 = vpop.permute.xlu0 %1608
      %v1610 = vmul.f32 %v1607, %v826
      %v1611 = vmul.f32 %v1609, %v826
      %1612 = vrot.lane.b32.xlu0 %v1574, 120
      %v1613 = vpop.permute.xlu0 %1612
      %1614 = vrot.lane.b32.xlu0 %v1575, 120
      %v1615 = vpop.permute.xlu0 %1614
      %v1616 = vmul.f32 %v1613, %v835
      %v1617 = vmul.f32 %v1615, %v835
      %1618 = vrot.lane.b32.xlu0 %v1574, 119
      %v1619 = vpop.permute.xlu0 %1618
      %1620 = vrot.lane.b32.xlu0 %v1575, 119
      %v1621 = vpop.permute.xlu0 %1620
      %v1622 = vmul.f32 %v1619, %v844
      %v1623 = vmul.f32 %v1621, %v844
      %v1624 = vpack.c.bf16 %v1581, %v1580
      %v1625 = vpack.c.bf16 %v1587, %v1586
      %v1626 = vpack.c.bf16 %v1593, %v1592
      %v1627 = vpack.c.bf16 %v1599, %v1598
      %v1628 = vpack.c.bf16 %v1575, %v1574
      %v1629 = vpack.c.bf16 %v1605, %v1604
      %v1630 = vpack.c.bf16 %v1611, %v1610
      %v1631 = vpack.c.bf16 %v1617, %v1616
      %v1632 = vpack.c.bf16 %v1623, %v1622
      %1633 = vmatpush.bf16.msra.mxu0 %v1631
      %1634 = vmatpush.bf16.msra.mxu0 %v1630
      %1635 = vmatpush.bf16.msra.mxu0 %v1629
      %1636 = vmatpush.bf16.msra.mxu0 %v1628
      %1637 = vmatpush.bf16.msra.mxu0 %v1627
      %1638 = vmatpush.bf16.msra.mxu0 %v1626
      %1639 = vmatpush.bf16.msra.mxu0 %v1625
      %1640 = vmatpush.bf16.msra.mxu0 %v1624
      %1641 = vmatmul.bf16.gmra.mxu0 %v1291
      %v1642 = vpop.f32.mrf.mxu0
      %v1643 = vadd.f32 0.0, %v1642
      %v1644 = vpop.f32.mrf.mxu0
      %v1645 = vadd.f32 0.0, %v1644
      %1646 = vmatmul.bf16.gmra.mxu0 %v1293
      %v1647 = vpop.f32.mrf.mxu0
      %v1648 = vadd.f32 0.0, %v1647
      %v1649 = vpop.f32.mrf.mxu0
      %v1650 = vadd.f32 0.0, %v1649
      %1651 = vmatmul.bf16.gmra.mxu0 %v1295
      %v1652 = vpop.f32.mrf.mxu0
      %v1653 = vadd.f32 0.0, %v1652
      %v1654 = vpop.f32.mrf.mxu0
      %v1655 = vadd.f32 0.0, %v1654
      %1656 = vmatmul.bf16.gmra.mxu0 %v1297
      %v1657 = vpop.f32.mrf.mxu0
      %v1658 = vadd.f32 0.0, %v1657
      %v1659 = vpop.f32.mrf.mxu0
      %v1660 = vadd.f32 0.0, %v1659
      %1661 = vdwg.mxu0
      %1662 = vmatpush.bf16.msra.mxu0 0
      %1663 = vmatpush.bf16.msra.mxu0 0
      %1664 = vmatpush.bf16.msra.mxu0 0
      %1665 = vmatpush.bf16.msra.mxu0 0
      %1666 = vmatpush.bf16.msra.mxu0 0
      %1667 = vmatpush.bf16.msra.mxu0 0
      %1668 = vmatpush.bf16.msra.mxu0 0
      %1669 = vmatpush.bf16.msra.mxu0 %v1632
      %1670 = vmatmul.bf16.gmra.mxu0 %v1304
      %v1671 = vpop.f32.mrf.mxu0
      %v1672 = vadd.f32 %v1643, %v1671
      %v1673 = vpop.f32.mrf.mxu0
      %v1674 = vadd.f32 %v1645, %v1673
      %1675 = vmatmul.bf16.gmra.mxu0 %v1307
      %v1676 = vpop.f32.mrf.mxu0
      %v1677 = vadd.f32 %v1648, %v1676
      %v1678 = vpop.f32.mrf.mxu0
      %v1679 = vadd.f32 %v1650, %v1678
      %1680 = vmatmul.bf16.gmra.mxu0 %v1310
      %v1681 = vpop.f32.mrf.mxu0
      %v1682 = vadd.f32 %v1653, %v1681
      %v1683 = vpop.f32.mrf.mxu0
      %v1684 = vadd.f32 %v1655, %v1683
      %1685 = vmatmul.bf16.gmra.mxu0 %v1313
      %v1686 = vpop.f32.mrf.mxu0
      %v1687 = vadd.f32 %v1658, %v1686
      %v1688 = vpop.f32.mrf.mxu0
      %v1689 = vadd.f32 %v1660, %v1688
      %1690 = vdwg.mxu0
      %v1691 = vadd.f32 %v1215, %v1672
      %v1692 = vadd.f32 %v1217, %v1674
      %v1693 = vadd.f32 %v1220, %v1677
      %v1694 = vadd.f32 %v1222, %v1679
      %v1695 = vadd.f32 %v1225, %v1682
      %v1696 = vadd.f32 %v1227, %v1684
      %v1697 = vadd.f32 %v1230, %v1687
      %v1698 = vadd.f32 %v1232, %v1689
      %v1699 = vmul.f32 %v1691, 0.5
      %v1700 = vmul.f32 %v1692, 0.5
      %v1701 = vtanh.pop %v1699
      %v1702 = vtanh.pop %v1700
      %v1703 = vadd.f32 %v1701, 1.0
      %v1704 = vadd.f32 %v1702, 1.0
      %v1705 = vmul.f32 %v1703, 0.5
      %v1706 = vmul.f32 %v1704, 0.5
      %v1707 = vmul.f32 %v1693, 0.5
      %v1708 = vmul.f32 %v1694, 0.5
      %v1709 = vtanh.pop %v1707
      %v1710 = vtanh.pop %v1708
      %v1711 = vadd.f32 %v1709, 1.0
      %v1712 = vadd.f32 %v1710, 1.0
      %v1713 = vmul.f32 %v1711, 0.5
      %v1714 = vmul.f32 %v1712, 0.5
      %v1715 = vtanh.pop %v1695
      %v1716 = vtanh.pop %v1696
      %v1717 = vmul.f32 %v1697, 0.5
      %v1718 = vmul.f32 %v1698, 0.5
      %v1719 = vtanh.pop %v1717
      %v1720 = vtanh.pop %v1718
      %v1721 = vadd.f32 %v1719, 1.0
      %v1722 = vadd.f32 %v1720, 1.0
      %v1723 = vmul.f32 %v1721, 0.5
      %v1724 = vmul.f32 %v1722, 0.5
      %v1725 = vmul.f32 %v1713, %v1570
      %v1726 = vmul.f32 %v1714, %v1571
      %v1727 = vmul.f32 %v1705, %v1715
      %v1728 = vmul.f32 %v1706, %v1716
      %v1729 = vadd.f32 %v1725, %v1727
      %v1730 = vadd.f32 %v1726, %v1728
      %v1731 = vtanh.pop %v1729
      %v1732 = vtanh.pop %v1730
      %v1733 = vmul.f32 %v1723, %v1731
      %v1734 = vmul.f32 %v1724, %v1732
      %v1735 = vld [vmem:[%s682] sm:$0xff]
      %v1736 = vld [vmem:[%s682 + $0x8] sm:$0xff]
      %v1737 = vld [vmem:[%s682 + $0x10] sm:$0xff]
      %v1738 = vld [vmem:[%s682 + $0x18] sm:$0xff]
      %v1739 = vld [vmem:[%s687] sm:$0xff]
      %v1740 = vld [vmem:[%s687 + $0x8] sm:$0xff]
      %v1741 = vld [vmem:[%s687 + $0x10] sm:$0xff]
      %v1742 = vld [vmem:[%s687 + $0x18] sm:$0xff]
      %1743 = vrot.lane.b32.xlu0 %v1733, 9
      %v1744 = vpop.permute.xlu0 %1743
      %1745 = vrot.lane.b32.xlu0 %v1734, 9
      %v1746 = vpop.permute.xlu0 %1745
      %v1747 = vmul.f32 %v1744, %v781
      %v1748 = vmul.f32 %v1746, %v781
      %1749 = vrot.lane.b32.xlu0 %v1733, 8
      %v1750 = vpop.permute.xlu0 %1749
      %1751 = vrot.lane.b32.xlu0 %v1734, 8
      %v1752 = vpop.permute.xlu0 %1751
      %v1753 = vmul.f32 %v1750, %v790
      %v1754 = vmul.f32 %v1752, %v790
      %1755 = vrot.lane.b32.xlu0 %v1733, 7
      %v1756 = vpop.permute.xlu0 %1755
      %1757 = vrot.lane.b32.xlu0 %v1734, 7
      %v1758 = vpop.permute.xlu0 %1757
      %v1759 = vmul.f32 %v1756, %v799
      %v1760 = vmul.f32 %v1758, %v799
      %1761 = vrot.lane.b32.xlu0 %v1733, 1
      %v1762 = vpop.permute.xlu0 %1761
      %1763 = vrot.lane.b32.xlu0 %v1734, 1
      %v1764 = vpop.permute.xlu0 %1763
      %v1765 = vmul.f32 %v1762, %v808
      %v1766 = vmul.f32 %v1764, %v808
      %1767 = vrot.lane.b32.xlu0 %v1733, 127
      %v1768 = vpop.permute.xlu0 %1767
      %1769 = vrot.lane.b32.xlu0 %v1734, 127
      %v1770 = vpop.permute.xlu0 %1769
      %v1771 = vmul.f32 %v1768, %v817
      %v1772 = vmul.f32 %v1770, %v817
      %1773 = vrot.lane.b32.xlu0 %v1733, 121
      %v1774 = vpop.permute.xlu0 %1773
      %1775 = vrot.lane.b32.xlu0 %v1734, 121
      %v1776 = vpop.permute.xlu0 %1775
      %v1777 = vmul.f32 %v1774, %v826
      %v1778 = vmul.f32 %v1776, %v826
      %1779 = vrot.lane.b32.xlu0 %v1733, 120
      %v1780 = vpop.permute.xlu0 %1779
      %1781 = vrot.lane.b32.xlu0 %v1734, 120
      %v1782 = vpop.permute.xlu0 %1781
      %v1783 = vmul.f32 %v1780, %v835
      %v1784 = vmul.f32 %v1782, %v835
      %1785 = vrot.lane.b32.xlu0 %v1733, 119
      %v1786 = vpop.permute.xlu0 %1785
      %1787 = vrot.lane.b32.xlu0 %v1734, 119
      %v1788 = vpop.permute.xlu0 %1787
      %v1789 = vmul.f32 %v1786, %v844
      %v1790 = vmul.f32 %v1788, %v844
      %v1791 = vpack.c.bf16 %v1748, %v1747
      %v1792 = vpack.c.bf16 %v1754, %v1753
      %v1793 = vpack.c.bf16 %v1760, %v1759
      %v1794 = vpack.c.bf16 %v1766, %v1765
      %v1795 = vpack.c.bf16 %v1734, %v1733
      %v1796 = vpack.c.bf16 %v1772, %v1771
      %v1797 = vpack.c.bf16 %v1778, %v1777
      %v1798 = vpack.c.bf16 %v1784, %v1783
      %v1799 = vpack.c.bf16 %v1790, %v1789
      %v1804 = vunpack.c.l.b16 %v1739
      %v1805 = vunpack.c.h.b16 %v1739
      %v1806 = vunpack.c.l.b16 %v1740
      %v1807 = vunpack.c.h.b16 %v1740
      %v1808 = vunpack.c.l.b16 %v1741
      %v1809 = vunpack.c.h.b16 %v1741
      %v1810 = vunpack.c.l.b16 %v1742
      %v1811 = vunpack.c.h.b16 %v1742
      %v1812 = vpack.c.b16 %v1808, %v1804
      %v1813 = vpack.c.b16 %v1809, %v1805
      %v1814 = vpack.c.b16 %v1810, %v1806
      %v1815 = vpack.c.b16 %v1811, %v1807
      %vm1819 = vcmask 392192
      %v1821 = vsel %vm1819, %v1815, 0
      %1823 = vmatpush.bf16.msra.mxu0 %v1626
      %1824 = vmatpush.bf16.msra.mxu0 %v1467
      %1825 = vmatpush.bf16.msra.mxu0 %v1792
      %1826 = vmatpush.bf16.msra.mxu0 %v1625
      %1827 = vmatpush.bf16.msra.mxu0 %v1466
      %1828 = vmatpush.bf16.msra.mxu0 %v1791
      %1829 = vmatpush.bf16.msra.mxu0 %v1624
      %1830 = vmatpush.bf16.msra.mxu0 %v1465
      %1831 = vmatmul.bf16.gmra.mxu0 %v1812
      %v1832 = vpop.f32.mrf.mxu0
      %v1833 = vadd.f32 0.0, %v1832
      %v1834 = vpop.f32.mrf.mxu0
      %v1835 = vadd.f32 0.0, %v1834
      %1836 = vdwg.mxu0
      %1837 = vmatpush.bf16.msra.mxu0 %v1470
      %1838 = vmatpush.bf16.msra.mxu0 %v1795
      %1839 = vmatpush.bf16.msra.mxu0 %v1628
      %1840 = vmatpush.bf16.msra.mxu0 %v1469
      %1841 = vmatpush.bf16.msra.mxu0 %v1794
      %1842 = vmatpush.bf16.msra.mxu0 %v1627
      %1843 = vmatpush.bf16.msra.mxu0 %v1468
      %1844 = vmatpush.bf16.msra.mxu0 %v1793
      %1845 = vmatmul.bf16.gmra.mxu0 %v1813
      %v1846 = vpop.f32.mrf.mxu0
      %v1847 = vadd.f32 %v1833, %v1846
      %v1848 = vpop.f32.mrf.mxu0
      %v1849 = vadd.f32 %v1835, %v1848
      %1850 = vdwg.mxu0
      %1851 = vmatpush.bf16.msra.mxu0 %v1798
      %1852 = vmatpush.bf16.msra.mxu0 %v1631
      %1853 = vmatpush.bf16.msra.mxu0 %v1472
      %1854 = vmatpush.bf16.msra.mxu0 %v1797
      %1855 = vmatpush.bf16.msra.mxu0 %v1630
      %1856 = vmatpush.bf16.msra.mxu0 %v1471
      %1857 = vmatpush.bf16.msra.mxu0 %v1796
      %1858 = vmatpush.bf16.msra.mxu0 %v1629
      %1859 = vmatmul.bf16.gmra.mxu0 %v1814
      %v1860 = vpop.f32.mrf.mxu0
      %v1861 = vadd.f32 %v1847, %v1860
      %v1862 = vpop.f32.mrf.mxu0
      %v1863 = vadd.f32 %v1849, %v1862
      %1864 = vdwg.mxu0
      %1865 = vmatpush.bf16.msra.mxu0 0
      %1866 = vmatpush.bf16.msra.mxu0 0
      %1867 = vmatpush.bf16.msra.mxu0 0
      %1868 = vmatpush.bf16.msra.mxu0 0
      %1869 = vmatpush.bf16.msra.mxu0 0
      %1870 = vmatpush.bf16.msra.mxu0 %v1799
      %1871 = vmatpush.bf16.msra.mxu0 %v1632
      %1872 = vmatpush.bf16.msra.mxu0 %v1473
      %1873 = vmatmul.bf16.gmra.mxu0 %v1821
      %v1874 = vpop.f32.mrf.mxu0
      %v1875 = vadd.f32 %v1861, %v1874
      %v1876 = vpop.f32.mrf.mxu0
      %v1877 = vadd.f32 %v1863, %v1876
      %1878 = vdwg.mxu0
      %v1883 = vunpack.c.l.b16 %v1735
      %v1884 = vunpack.c.h.b16 %v1735
      %v1885 = vunpack.c.l.b16 %v1736
      %v1886 = vunpack.c.h.b16 %v1736
      %v1887 = vunpack.c.l.b16 %v1737
      %v1888 = vunpack.c.h.b16 %v1737
      %v1889 = vunpack.c.l.b16 %v1738
      %v1890 = vunpack.c.h.b16 %v1738
      %v1891 = vpack.c.b16 %v1887, %v1883
      %v1892 = vpack.c.b16 %v1888, %v1884
      %v1893 = vpack.c.b16 %v1889, %v1885
      %v1894 = vpack.c.b16 %v1890, %v1886
      %v1899 = vsel %vm1819, %v1894, 0
      %1901 = vmatpush.bf16.msra.mxu0 %v1054
      %1902 = vmatpush.bf16.msra.mxu0 %v850
      %1903 = vmatpush.bf16.msra.mxu0 %v1168
      %1904 = vmatpush.bf16.msra.mxu0 %v1053
      %1905 = vmatpush.bf16.msra.mxu0 %v849
      %1906 = vmatpush.bf16.msra.mxu0 %v1167
      %1907 = vmatpush.bf16.msra.mxu0 %v1052
      %1908 = vmatpush.bf16.msra.mxu0 %v848
      %1909 = vmatmul.bf16.gmra.mxu0 %v1891
      %v1910 = vpop.f32.mrf.mxu0
      %v1911 = vadd.f32 %v1875, %v1910
      %v1912 = vpop.f32.mrf.mxu0
      %v1913 = vadd.f32 %v1877, %v1912
      %1914 = vdwg.mxu0
      %1915 = vmatpush.bf16.msra.mxu0 %v853
      %1916 = vmatpush.bf16.msra.mxu0 %v1171
      %1917 = vmatpush.bf16.msra.mxu0 %v1056
      %1918 = vmatpush.bf16.msra.mxu0 %v852
      %1919 = vmatpush.bf16.msra.mxu0 %v1170
      %1920 = vmatpush.bf16.msra.mxu0 %v1055
      %1921 = vmatpush.bf16.msra.mxu0 %v851
      %1922 = vmatpush.bf16.msra.mxu0 %v1169
      %1923 = vmatmul.bf16.gmra.mxu0 %v1892
      %v1924 = vpop.f32.mrf.mxu0
      %v1925 = vadd.f32 %v1911, %v1924
      %v1926 = vpop.f32.mrf.mxu0
      %v1927 = vadd.f32 %v1913, %v1926
      %1928 = vdwg.mxu0
      %1929 = vmatpush.bf16.msra.mxu0 %v1174
      %1930 = vmatpush.bf16.msra.mxu0 %v1059
      %1931 = vmatpush.bf16.msra.mxu0 %v855
      %1932 = vmatpush.bf16.msra.mxu0 %v1173
      %1933 = vmatpush.bf16.msra.mxu0 %v1058
      %1934 = vmatpush.bf16.msra.mxu0 %v854
      %1935 = vmatpush.bf16.msra.mxu0 %v1172
      %1936 = vmatpush.bf16.msra.mxu0 %v1057
      %1937 = vmatmul.bf16.gmra.mxu0 %v1893
      %v1938 = vpop.f32.mrf.mxu0
      %v1939 = vadd.f32 %v1925, %v1938
      %v1940 = vpop.f32.mrf.mxu0
      %v1941 = vadd.f32 %v1927, %v1940
      %1942 = vdwg.mxu0
      %1943 = vmatpush.bf16.msra.mxu0 0
      %1944 = vmatpush.bf16.msra.mxu0 0
      %1945 = vmatpush.bf16.msra.mxu0 0
      %1946 = vmatpush.bf16.msra.mxu0 0
      %1947 = vmatpush.bf16.msra.mxu0 0
      %1948 = vmatpush.bf16.msra.mxu0 %v1175
      %1949 = vmatpush.bf16.msra.mxu0 %v1060
      %1950 = vmatpush.bf16.msra.mxu0 %v856
      %1951 = vmatmul.bf16.gmra.mxu0 %v1899
      %v1952 = vpop.f32.mrf.mxu0
      %v1953 = vadd.f32 %v1939, %v1952
      %v1954 = vpop.f32.mrf.mxu0
      %v1955 = vadd.f32 %v1941, %v1954
      %1956 = vdwg.mxu0
      %v1957 = vld [vmem:[%s692] sm:$0xff]
      %v1958 = vld [vmem:[%s692 + $0x8] sm:$0xff]
      %1960 = vset.pattern.permute.xlu0 0
      %1961 = vperm.xlu0 %1960, %v1957
      %v1962 = vpop.permute.xlu0 %1961
      %1965 = vset.pattern.permute.xlu0 0
      %1966 = vperm.xlu0 %1965, %v1958
      %v1967 = vpop.permute.xlu0 %1966
      %v1969 = vadd.f32 %v1953, %v1962
      %v1970 = vadd.f32 %v1955, %v1967
      %v1971 = vmax.f32 %v1969, 0.0
      %v1972 = vmax.f32 %v1970, 0.0
      %v1973 = vld [vmem:[%s697] sm:$0xff]
      %v1974 = vld [vmem:[%s697 + $0x8] sm:$0xff]
      %v1975 = vld [vmem:[%s697 + $0x10] sm:$0xff]
      %v1976 = vld [vmem:[%s697 + $0x18] sm:$0xff]
      %v1977 = vld [vmem:[%s697 + $0x20] sm:$0xff]
      %v1978 = vld [vmem:[%s697 + $0x28] sm:$0xff]
      %v1979 = vld [vmem:[%s702] sm:$0xff]
      %v1980 = vld [vmem:[%s702 + $0x8] sm:$0xff]
      %v1981 = vld [vmem:[%s702 + $0x10] sm:$0xff]
      %v1982 = vld [vmem:[%s702 + $0x18] sm:$0xff]
      %v1983 = vld [vmem:[%s702 + $0x20] sm:$0xff]
      %v1984 = vld [vmem:[%s702 + $0x28] sm:$0xff]
      %1985 = vrot.lane.b32.xlu0 %v1971, 9
      %v1986 = vpop.permute.xlu0 %1985
      %1987 = vrot.lane.b32.xlu0 %v1972, 9
      %v1988 = vpop.permute.xlu0 %1987
      %v1989 = vmul.f32 %v1986, %v781
      %v1990 = vmul.f32 %v1988, %v781
      %1991 = vrot.lane.b32.xlu0 %v1971, 8
      %v1992 = vpop.permute.xlu0 %1991
      %1993 = vrot.lane.b32.xlu0 %v1972, 8
      %v1994 = vpop.permute.xlu0 %1993
      %v1995 = vmul.f32 %v1992, %v790
      %v1996 = vmul.f32 %v1994, %v790
      %1997 = vrot.lane.b32.xlu0 %v1971, 7
      %v1998 = vpop.permute.xlu0 %1997
      %1999 = vrot.lane.b32.xlu0 %v1972, 7
      %v2000 = vpop.permute.xlu0 %1999
      %v2001 = vmul.f32 %v1998, %v799
      %v2002 = vmul.f32 %v2000, %v799
      %2003 = vrot.lane.b32.xlu0 %v1971, 1
      %v2004 = vpop.permute.xlu0 %2003
      %2005 = vrot.lane.b32.xlu0 %v1972, 1
      %v2006 = vpop.permute.xlu0 %2005
      %v2007 = vmul.f32 %v2004, %v808
      %v2008 = vmul.f32 %v2006, %v808
      %2009 = vrot.lane.b32.xlu0 %v1971, 127
      %v2010 = vpop.permute.xlu0 %2009
      %2011 = vrot.lane.b32.xlu0 %v1972, 127
      %v2012 = vpop.permute.xlu0 %2011
      %v2013 = vmul.f32 %v2010, %v817
      %v2014 = vmul.f32 %v2012, %v817
      %2015 = vrot.lane.b32.xlu0 %v1971, 121
      %v2016 = vpop.permute.xlu0 %2015
      %2017 = vrot.lane.b32.xlu0 %v1972, 121
      %v2018 = vpop.permute.xlu0 %2017
      %v2019 = vmul.f32 %v2016, %v826
      %v2020 = vmul.f32 %v2018, %v826
      %2021 = vrot.lane.b32.xlu0 %v1971, 120
      %v2022 = vpop.permute.xlu0 %2021
      %2023 = vrot.lane.b32.xlu0 %v1972, 120
      %v2024 = vpop.permute.xlu0 %2023
      %v2025 = vmul.f32 %v2022, %v835
      %v2026 = vmul.f32 %v2024, %v835
      %2027 = vrot.lane.b32.xlu0 %v1971, 119
      %v2028 = vpop.permute.xlu0 %2027
      %2029 = vrot.lane.b32.xlu0 %v1972, 119
      %v2030 = vpop.permute.xlu0 %2029
      %v2031 = vmul.f32 %v2028, %v844
      %v2032 = vmul.f32 %v2030, %v844
      %v2033 = vpack.c.bf16 %v1990, %v1989
      %v2034 = vpack.c.bf16 %v1996, %v1995
      %v2035 = vpack.c.bf16 %v2002, %v2001
      %v2036 = vpack.c.bf16 %v2008, %v2007
      %v2037 = vpack.c.bf16 %v1972, %v1971
      %v2038 = vpack.c.bf16 %v2014, %v2013
      %v2039 = vpack.c.bf16 %v2020, %v2019
      %v2040 = vpack.c.bf16 %v2026, %v2025
      %v2041 = vpack.c.bf16 %v2032, %v2031
      %2043 = vset.pattern.permute.xlu0 0
      %2044 = vperm.xlu0 %2043, %v1979
      %v2045 = vpop.permute.xlu0 %2044
      %2048 = vset.pattern.permute.xlu0 0
      %2049 = vperm.xlu0 %2048, %v1980
      %v2050 = vpop.permute.xlu0 %2049
      %2053 = vset.pattern.permute.xlu0 0
      %2054 = vperm.xlu0 %2053, %v1981
      %v2055 = vpop.permute.xlu0 %2054
      %2058 = vset.pattern.permute.xlu0 0
      %2059 = vperm.xlu0 %2058, %v1982
      %v2060 = vpop.permute.xlu0 %2059
      %2063 = vset.pattern.permute.xlu0 0
      %2064 = vperm.xlu0 %2063, %v1983
      %v2065 = vpop.permute.xlu0 %2064
      %2068 = vset.pattern.permute.xlu0 0
      %2069 = vperm.xlu0 %2068, %v1984
      %v2070 = vpop.permute.xlu0 %2069
      %v2078 = vunpack.c.l.b16 %v1973
      %v2079 = vunpack.c.h.b16 %v1973
      %v2080 = vunpack.c.l.b16 %v1974
      %v2081 = vunpack.c.h.b16 %v1974
      %v2082 = vunpack.c.l.b16 %v1975
      %v2083 = vunpack.c.h.b16 %v1975
      %v2084 = vunpack.c.l.b16 %v1976
      %v2085 = vunpack.c.h.b16 %v1976
      %v2086 = vunpack.c.l.b16 %v1977
      %v2087 = vunpack.c.h.b16 %v1977
      %v2088 = vunpack.c.l.b16 %v1978
      %v2089 = vunpack.c.h.b16 %v1978
      %v2090 = vpack.c.b16 %v2080, %v2078
      %v2091 = vpack.c.b16 %v2081, %v2079
      %v2092 = vpack.c.b16 %v2084, %v2082
      %v2093 = vpack.c.b16 %v2085, %v2083
      %v2094 = vpack.c.b16 %v2088, %v2086
      %v2095 = vpack.c.b16 %v2089, %v2087
      %v2100 = vsel %vm933, %v2091, 0
      %v2103 = vsel %vm933, %v2093, 0
      %v2106 = vsel %vm933, %v2095, 0
      %2108 = vmatpush.bf16.msra.mxu0 %v2040
      %2109 = vmatpush.bf16.msra.mxu0 %v2039
      %2110 = vmatpush.bf16.msra.mxu0 %v2038
      %2111 = vmatpush.bf16.msra.mxu0 %v2037
      %2112 = vmatpush.bf16.msra.mxu0 %v2036
      %2113 = vmatpush.bf16.msra.mxu0 %v2035
      %2114 = vmatpush.bf16.msra.mxu0 %v2034
      %2115 = vmatpush.bf16.msra.mxu0 %v2033
      %2116 = vmatmul.bf16.gmra.mxu0 %v2090
      %v2117 = vpop.f32.mrf.mxu0
      %v2118 = vadd.f32 %v2045, %v2117
      %v2119 = vpop.f32.mrf.mxu0
      %v2120 = vadd.f32 %v2050, %v2119
      %2121 = vmatmul.bf16.gmra.mxu0 %v2092
      %v2122 = vpop.f32.mrf.mxu0
      %v2123 = vadd.f32 %v2055, %v2122
      %v2124 = vpop.f32.mrf.mxu0
      %v2125 = vadd.f32 %v2060, %v2124
      %2126 = vmatmul.bf16.gmra.mxu0 %v2094
      %v2127 = vpop.f32.mrf.mxu0
      %v2128 = vadd.f32 %v2065, %v2127
      %v2129 = vpop.f32.mrf.mxu0
      %v2130 = vadd.f32 %v2070, %v2129
      %2131 = vdwg.mxu0
      %2132 = vmatpush.bf16.msra.mxu0 0
      %2133 = vmatpush.bf16.msra.mxu0 0
      %2134 = vmatpush.bf16.msra.mxu0 0
      %2135 = vmatpush.bf16.msra.mxu0 0
      %2136 = vmatpush.bf16.msra.mxu0 0
      %2137 = vmatpush.bf16.msra.mxu0 0
      %2138 = vmatpush.bf16.msra.mxu0 0
      %2139 = vmatpush.bf16.msra.mxu0 %v2041
      %2140 = vmatmul.bf16.gmra.mxu0 %v2100
      %v2141 = vpop.f32.mrf.mxu0
      %v2142 = vadd.f32 %v2118, %v2141
      %v2143 = vpop.f32.mrf.mxu0
      %v2144 = vadd.f32 %v2120, %v2143
      %2145 = vmatmul.bf16.gmra.mxu0 %v2103
      %v2146 = vpop.f32.mrf.mxu0
      %v2147 = vadd.f32 %v2123, %v2146
      %v2148 = vpop.f32.mrf.mxu0
      %v2149 = vadd.f32 %v2125, %v2148
      %2150 = vmatmul.bf16.gmra.mxu0 %v2106
      %v2151 = vpop.f32.mrf.mxu0
      %v2152 = vadd.f32 %v2128, %v2151
      %v2153 = vpop.f32.mrf.mxu0
      %v2154 = vadd.f32 %v2130, %v2153
      %2155 = vdwg.mxu0
      %v2156 = vadd.f32 %v2142, 1.0
      %v2157 = vadd.f32 %v2144, 1.0
      %v2158 = vadd.f32 %v2147, 1.0
      %v2159 = vadd.f32 %v2149, 1.0
      %v2160 = vadd.f32 %v2152, 1.0
      %v2161 = vadd.f32 %v2154, 1.0
      %v2162 = vmul.f32 %v746, %v2156
      %v2163 = vmul.f32 %v747, %v2157
      %v2164 = vmul.f32 %v748, %v2158
      %v2165 = vmul.f32 %v749, %v2159
      %v2166 = vmul.f32 %v750, %v2160
      %v2167 = vmul.f32 %v751, %v2161
      %v2168 = vld [vmem:[%s707] sm:$0xff]
      %v2169 = vld [vmem:[%s707 + $0x8] sm:$0xff]
      %v2170 = vld [vmem:[%s707 + $0x10] sm:$0xff]
      %v2171 = vld [vmem:[%s707 + $0x18] sm:$0xff]
      %v2172 = vld [vmem:[%s707 + $0x20] sm:$0xff]
      %v2173 = vld [vmem:[%s707 + $0x28] sm:$0xff]
      %v2174 = vld [vmem:[%s707 + $0x30] sm:$0xff]
      %v2175 = vld [vmem:[%s707 + $0x38] sm:$0xff]
      %v2176 = vld [vmem:[%s712] sm:$0xff]
      %v2177 = vld [vmem:[%s712 + $0x8] sm:$0xff]
      %v2178 = vld [vmem:[%s712 + $0x10] sm:$0xff]
      %v2179 = vld [vmem:[%s712 + $0x18] sm:$0xff]
      %v2180 = vld [vmem:[%s712 + $0x20] sm:$0xff]
      %v2181 = vld [vmem:[%s712 + $0x28] sm:$0xff]
      %v2182 = vld [vmem:[%s712 + $0x30] sm:$0xff]
      %v2183 = vld [vmem:[%s712 + $0x38] sm:$0xff]
      %v2184 = vld [vmem:[%s717] sm:$0xff]
      %v2185 = vld [vmem:[%s717 + $0x8] sm:$0xff]
      %v2186 = vld [vmem:[%s717 + $0x10] sm:$0xff]
      %v2187 = vld [vmem:[%s717 + $0x18] sm:$0xff]
      %v2188 = vld [vmem:[%s717 + $0x20] sm:$0xff]
      %v2189 = vld [vmem:[%s717 + $0x28] sm:$0xff]
      %v2190 = vld [vmem:[%s717 + $0x30] sm:$0xff]
      %v2191 = vld [vmem:[%s717 + $0x38] sm:$0xff]
      %2192 = vrot.lane.b32.xlu0 %v2162, 9
      %v2193 = vpop.permute.xlu0 %2192
      %2194 = vrot.lane.b32.xlu0 %v2163, 9
      %v2195 = vpop.permute.xlu0 %2194
      %v2196 = vmul.f32 %v2193, %v781
      %v2197 = vmul.f32 %v2195, %v781
      %2198 = vrot.lane.b32.xlu0 %v2162, 8
      %v2199 = vpop.permute.xlu0 %2198
      %2200 = vrot.lane.b32.xlu0 %v2163, 8
      %v2201 = vpop.permute.xlu0 %2200
      %v2202 = vmul.f32 %v2199, %v790
      %v2203 = vmul.f32 %v2201, %v790
      %2204 = vrot.lane.b32.xlu0 %v2162, 7
      %v2205 = vpop.permute.xlu0 %2204
      %2206 = vrot.lane.b32.xlu0 %v2163, 7
      %v2207 = vpop.permute.xlu0 %2206
      %v2208 = vmul.f32 %v2205, %v799
      %v2209 = vmul.f32 %v2207, %v799
      %2210 = vrot.lane.b32.xlu0 %v2162, 1
      %v2211 = vpop.permute.xlu0 %2210
      %2212 = vrot.lane.b32.xlu0 %v2163, 1
      %v2213 = vpop.permute.xlu0 %2212
      %v2214 = vmul.f32 %v2211, %v808
      %v2215 = vmul.f32 %v2213, %v808
      %2216 = vrot.lane.b32.xlu0 %v2162, 127
      %v2217 = vpop.permute.xlu0 %2216
      %2218 = vrot.lane.b32.xlu0 %v2163, 127
      %v2219 = vpop.permute.xlu0 %2218
      %v2220 = vmul.f32 %v2217, %v817
      %v2221 = vmul.f32 %v2219, %v817
      %2222 = vrot.lane.b32.xlu0 %v2162, 121
      %v2223 = vpop.permute.xlu0 %2222
      %2224 = vrot.lane.b32.xlu0 %v2163, 121
      %v2225 = vpop.permute.xlu0 %2224
      %v2226 = vmul.f32 %v2223, %v826
      %v2227 = vmul.f32 %v2225, %v826
      %2228 = vrot.lane.b32.xlu0 %v2162, 120
      %v2229 = vpop.permute.xlu0 %2228
      %2230 = vrot.lane.b32.xlu0 %v2163, 120
      %v2231 = vpop.permute.xlu0 %2230
      %v2232 = vmul.f32 %v2229, %v835
      %v2233 = vmul.f32 %v2231, %v835
      %2234 = vrot.lane.b32.xlu0 %v2162, 119
      %v2235 = vpop.permute.xlu0 %2234
      %2236 = vrot.lane.b32.xlu0 %v2163, 119
      %v2237 = vpop.permute.xlu0 %2236
      %v2238 = vmul.f32 %v2235, %v844
      %v2239 = vmul.f32 %v2237, %v844
      %v2240 = vpack.c.bf16 %v2197, %v2196
      %v2241 = vpack.c.bf16 %v2203, %v2202
      %v2242 = vpack.c.bf16 %v2209, %v2208
      %v2243 = vpack.c.bf16 %v2215, %v2214
      %v2244 = vpack.c.bf16 %v2163, %v2162
      %v2245 = vpack.c.bf16 %v2221, %v2220
      %v2246 = vpack.c.bf16 %v2227, %v2226
      %v2247 = vpack.c.bf16 %v2233, %v2232
      %v2248 = vpack.c.bf16 %v2239, %v2238
      %2250 = vset.pattern.permute.xlu0 0
      %2251 = vperm.xlu0 %2250, %v2184
      %v2252 = vpop.permute.xlu0 %2251
      %2255 = vset.pattern.permute.xlu0 0
      %2256 = vperm.xlu0 %2255, %v2185
      %v2257 = vpop.permute.xlu0 %2256
      %2260 = vset.pattern.permute.xlu0 0
      %2261 = vperm.xlu0 %2260, %v2186
      %v2262 = vpop.permute.xlu0 %2261
      %2265 = vset.pattern.permute.xlu0 0
      %2266 = vperm.xlu0 %2265, %v2187
      %v2267 = vpop.permute.xlu0 %2266
      %2270 = vset.pattern.permute.xlu0 0
      %2271 = vperm.xlu0 %2270, %v2188
      %v2272 = vpop.permute.xlu0 %2271
      %2275 = vset.pattern.permute.xlu0 0
      %2276 = vperm.xlu0 %2275, %v2189
      %v2277 = vpop.permute.xlu0 %2276
      %2280 = vset.pattern.permute.xlu0 0
      %2281 = vperm.xlu0 %2280, %v2190
      %v2282 = vpop.permute.xlu0 %2281
      %2285 = vset.pattern.permute.xlu0 0
      %2286 = vperm.xlu0 %2285, %v2191
      %v2287 = vpop.permute.xlu0 %2286
      %v2297 = vunpack.c.l.b16 %v2168
      %v2298 = vunpack.c.h.b16 %v2168
      %v2299 = vunpack.c.l.b16 %v2169
      %v2300 = vunpack.c.h.b16 %v2169
      %v2301 = vunpack.c.l.b16 %v2170
      %v2302 = vunpack.c.h.b16 %v2170
      %v2303 = vunpack.c.l.b16 %v2171
      %v2304 = vunpack.c.h.b16 %v2171
      %v2305 = vunpack.c.l.b16 %v2172
      %v2306 = vunpack.c.h.b16 %v2172
      %v2307 = vunpack.c.l.b16 %v2173
      %v2308 = vunpack.c.h.b16 %v2173
      %v2309 = vunpack.c.l.b16 %v2174
      %v2310 = vunpack.c.h.b16 %v2174
      %v2311 = vunpack.c.l.b16 %v2175
      %v2312 = vunpack.c.h.b16 %v2175
      %v2313 = vpack.c.b16 %v2299, %v2297
      %v2314 = vpack.c.b16 %v2300, %v2298
      %v2315 = vpack.c.b16 %v2303, %v2301
      %v2316 = vpack.c.b16 %v2304, %v2302
      %v2317 = vpack.c.b16 %v2307, %v2305
      %v2318 = vpack.c.b16 %v2308, %v2306
      %v2319 = vpack.c.b16 %v2311, %v2309
      %v2320 = vpack.c.b16 %v2312, %v2310
      %v2326 = vsel %vm933, %v2314, 0
      %v2329 = vsel %vm933, %v2316, 0
      %v2332 = vsel %vm933, %v2318, 0
      %v2335 = vsel %vm933, %v2320, 0
      %2337 = vmatpush.bf16.msra.mxu0 %v2247
      %2338 = vmatpush.bf16.msra.mxu0 %v2246
      %2339 = vmatpush.bf16.msra.mxu0 %v2245
      %2340 = vmatpush.bf16.msra.mxu0 %v2244
      %2341 = vmatpush.bf16.msra.mxu0 %v2243
      %2342 = vmatpush.bf16.msra.mxu0 %v2242
      %2343 = vmatpush.bf16.msra.mxu0 %v2241
      %2344 = vmatpush.bf16.msra.mxu0 %v2240
      %2345 = vmatmul.bf16.gmra.mxu0 %v2313
      %v2346 = vpop.f32.mrf.mxu0
      %v2347 = vadd.f32 %v2252, %v2346
      %v2348 = vpop.f32.mrf.mxu0
      %v2349 = vadd.f32 %v2257, %v2348
      %2350 = vmatmul.bf16.gmra.mxu0 %v2315
      %v2351 = vpop.f32.mrf.mxu0
      %v2352 = vadd.f32 %v2262, %v2351
      %v2353 = vpop.f32.mrf.mxu0
      %v2354 = vadd.f32 %v2267, %v2353
      %2355 = vmatmul.bf16.gmra.mxu0 %v2317
      %v2356 = vpop.f32.mrf.mxu0
      %v2357 = vadd.f32 %v2272, %v2356
      %v2358 = vpop.f32.mrf.mxu0
      %v2359 = vadd.f32 %v2277, %v2358
      %2360 = vmatmul.bf16.gmra.mxu0 %v2319
      %v2361 = vpop.f32.mrf.mxu0
      %v2362 = vadd.f32 %v2282, %v2361
      %v2363 = vpop.f32.mrf.mxu0
      %v2364 = vadd.f32 %v2287, %v2363
      %2365 = vdwg.mxu0
      %2366 = vmatpush.bf16.msra.mxu0 0
      %2367 = vmatpush.bf16.msra.mxu0 0
      %2368 = vmatpush.bf16.msra.mxu0 0
      %2369 = vmatpush.bf16.msra.mxu0 0
      %2370 = vmatpush.bf16.msra.mxu0 0
      %2371 = vmatpush.bf16.msra.mxu0 0
      %2372 = vmatpush.bf16.msra.mxu0 0
      %2373 = vmatpush.bf16.msra.mxu0 %v2248
      %2374 = vmatmul.bf16.gmra.mxu0 %v2326
      %v2375 = vpop.f32.mrf.mxu0
      %v2376 = vadd.f32 %v2347, %v2375
      %v2377 = vpop.f32.mrf.mxu0
      %v2378 = vadd.f32 %v2349, %v2377
      %2379 = vmatmul.bf16.gmra.mxu0 %v2329
      %v2380 = vpop.f32.mrf.mxu0
      %v2381 = vadd.f32 %v2352, %v2380
      %v2382 = vpop.f32.mrf.mxu0
      %v2383 = vadd.f32 %v2354, %v2382
      %2384 = vmatmul.bf16.gmra.mxu0 %v2332
      %v2385 = vpop.f32.mrf.mxu0
      %v2386 = vadd.f32 %v2357, %v2385
      %v2387 = vpop.f32.mrf.mxu0
      %v2388 = vadd.f32 %v2359, %v2387
      %2389 = vmatmul.bf16.gmra.mxu0 %v2335
      %v2390 = vpop.f32.mrf.mxu0
      %v2391 = vadd.f32 %v2362, %v2390
      %v2392 = vpop.f32.mrf.mxu0
      %v2393 = vadd.f32 %v2364, %v2392
      %2394 = vdwg.mxu0
      %2395 = vrot.lane.b32.xlu0 %v2164, 9
      %v2396 = vpop.permute.xlu0 %2395
      %2397 = vrot.lane.b32.xlu0 %v2165, 9
      %v2398 = vpop.permute.xlu0 %2397
      %v2399 = vmul.f32 %v2396, %v781
      %v2400 = vmul.f32 %v2398, %v781
      %2401 = vrot.lane.b32.xlu0 %v2164, 8
      %v2402 = vpop.permute.xlu0 %2401
      %2403 = vrot.lane.b32.xlu0 %v2165, 8
      %v2404 = vpop.permute.xlu0 %2403
      %v2405 = vmul.f32 %v2402, %v790
      %v2406 = vmul.f32 %v2404, %v790
      %2407 = vrot.lane.b32.xlu0 %v2164, 7
      %v2408 = vpop.permute.xlu0 %2407
      %2409 = vrot.lane.b32.xlu0 %v2165, 7
      %v2410 = vpop.permute.xlu0 %2409
      %v2411 = vmul.f32 %v2408, %v799
      %v2412 = vmul.f32 %v2410, %v799
      %2413 = vrot.lane.b32.xlu0 %v2164, 1
      %v2414 = vpop.permute.xlu0 %2413
      %2415 = vrot.lane.b32.xlu0 %v2165, 1
      %v2416 = vpop.permute.xlu0 %2415
      %v2417 = vmul.f32 %v2414, %v808
      %v2418 = vmul.f32 %v2416, %v808
      %2419 = vrot.lane.b32.xlu0 %v2164, 127
      %v2420 = vpop.permute.xlu0 %2419
      %2421 = vrot.lane.b32.xlu0 %v2165, 127
      %v2422 = vpop.permute.xlu0 %2421
      %v2423 = vmul.f32 %v2420, %v817
      %v2424 = vmul.f32 %v2422, %v817
      %2425 = vrot.lane.b32.xlu0 %v2164, 121
      %v2426 = vpop.permute.xlu0 %2425
      %2427 = vrot.lane.b32.xlu0 %v2165, 121
      %v2428 = vpop.permute.xlu0 %2427
      %v2429 = vmul.f32 %v2426, %v826
      %v2430 = vmul.f32 %v2428, %v826
      %2431 = vrot.lane.b32.xlu0 %v2164, 120
      %v2432 = vpop.permute.xlu0 %2431
      %2433 = vrot.lane.b32.xlu0 %v2165, 120
      %v2434 = vpop.permute.xlu0 %2433
      %v2435 = vmul.f32 %v2432, %v835
      %v2436 = vmul.f32 %v2434, %v835
      %2437 = vrot.lane.b32.xlu0 %v2164, 119
      %v2438 = vpop.permute.xlu0 %2437
      %2439 = vrot.lane.b32.xlu0 %v2165, 119
      %v2440 = vpop.permute.xlu0 %2439
      %v2441 = vmul.f32 %v2438, %v844
      %v2442 = vmul.f32 %v2440, %v844
      %v2443 = vpack.c.bf16 %v2400, %v2399
      %v2444 = vpack.c.bf16 %v2406, %v2405
      %v2445 = vpack.c.bf16 %v2412, %v2411
      %v2446 = vpack.c.bf16 %v2418, %v2417
      %v2447 = vpack.c.bf16 %v2165, %v2164
      %v2448 = vpack.c.bf16 %v2424, %v2423
      %v2449 = vpack.c.bf16 %v2430, %v2429
      %v2450 = vpack.c.bf16 %v2436, %v2435
      %v2451 = vpack.c.bf16 %v2442, %v2441
      %2452 = vmatpush.bf16.msra.mxu0 %v2450
      %2453 = vmatpush.bf16.msra.mxu0 %v2449
      %2454 = vmatpush.bf16.msra.mxu0 %v2448
      %2455 = vmatpush.bf16.msra.mxu0 %v2447
      %2456 = vmatpush.bf16.msra.mxu0 %v2446
      %2457 = vmatpush.bf16.msra.mxu0 %v2445
      %2458 = vmatpush.bf16.msra.mxu0 %v2444
      %2459 = vmatpush.bf16.msra.mxu0 %v2443
      %2460 = vmatmul.bf16.gmra.mxu0 %v2313
      %v2461 = vpop.f32.mrf.mxu0
      %v2462 = vadd.f32 %v2252, %v2461
      %v2463 = vpop.f32.mrf.mxu0
      %v2464 = vadd.f32 %v2257, %v2463
      %2465 = vmatmul.bf16.gmra.mxu0 %v2315
      %v2466 = vpop.f32.mrf.mxu0
      %v2467 = vadd.f32 %v2262, %v2466
      %v2468 = vpop.f32.mrf.mxu0
      %v2469 = vadd.f32 %v2267, %v2468
      %2470 = vmatmul.bf16.gmra.mxu0 %v2317
      %v2471 = vpop.f32.mrf.mxu0
      %v2472 = vadd.f32 %v2272, %v2471
      %v2473 = vpop.f32.mrf.mxu0
      %v2474 = vadd.f32 %v2277, %v2473
      %2475 = vmatmul.bf16.gmra.mxu0 %v2319
      %v2476 = vpop.f32.mrf.mxu0
      %v2477 = vadd.f32 %v2282, %v2476
      %v2478 = vpop.f32.mrf.mxu0
      %v2479 = vadd.f32 %v2287, %v2478
      %2480 = vdwg.mxu0
      %2481 = vmatpush.bf16.msra.mxu0 0
      %2482 = vmatpush.bf16.msra.mxu0 0
      %2483 = vmatpush.bf16.msra.mxu0 0
      %2484 = vmatpush.bf16.msra.mxu0 0
      %2485 = vmatpush.bf16.msra.mxu0 0
      %2486 = vmatpush.bf16.msra.mxu0 0
      %2487 = vmatpush.bf16.msra.mxu0 0
      %2488 = vmatpush.bf16.msra.mxu0 %v2451
      %2489 = vmatmul.bf16.gmra.mxu0 %v2326
      %v2490 = vpop.f32.mrf.mxu0
      %v2491 = vadd.f32 %v2462, %v2490
      %v2492 = vpop.f32.mrf.mxu0
      %v2493 = vadd.f32 %v2464, %v2492
      %2494 = vmatmul.bf16.gmra.mxu0 %v2329
      %v2495 = vpop.f32.mrf.mxu0
      %v2496 = vadd.f32 %v2467, %v2495
      %v2497 = vpop.f32.mrf.mxu0
      %v2498 = vadd.f32 %v2469, %v2497
      %2499 = vmatmul.bf16.gmra.mxu0 %v2332
      %v2500 = vpop.f32.mrf.mxu0
      %v2501 = vadd.f32 %v2472, %v2500
      %v2502 = vpop.f32.mrf.mxu0
      %v2503 = vadd.f32 %v2474, %v2502
      %2504 = vmatmul.bf16.gmra.mxu0 %v2335
      %v2505 = vpop.f32.mrf.mxu0
      %v2506 = vadd.f32 %v2477, %v2505
      %v2507 = vpop.f32.mrf.mxu0
      %v2508 = vadd.f32 %v2479, %v2507
      %2509 = vdwg.mxu0
      %2510 = vrot.lane.b32.xlu0 %v2166, 9
      %v2511 = vpop.permute.xlu0 %2510
      %2512 = vrot.lane.b32.xlu0 %v2167, 9
      %v2513 = vpop.permute.xlu0 %2512
      %v2514 = vmul.f32 %v2511, %v781
      %v2515 = vmul.f32 %v2513, %v781
      %2516 = vrot.lane.b32.xlu0 %v2166, 8
      %v2517 = vpop.permute.xlu0 %2516
      %2518 = vrot.lane.b32.xlu0 %v2167, 8
      %v2519 = vpop.permute.xlu0 %2518
      %v2520 = vmul.f32 %v2517, %v790
      %v2521 = vmul.f32 %v2519, %v790
      %2522 = vrot.lane.b32.xlu0 %v2166, 7
      %v2523 = vpop.permute.xlu0 %2522
      %2524 = vrot.lane.b32.xlu0 %v2167, 7
      %v2525 = vpop.permute.xlu0 %2524
      %v2526 = vmul.f32 %v2523, %v799
      %v2527 = vmul.f32 %v2525, %v799
      %2528 = vrot.lane.b32.xlu0 %v2166, 1
      %v2529 = vpop.permute.xlu0 %2528
      %2530 = vrot.lane.b32.xlu0 %v2167, 1
      %v2531 = vpop.permute.xlu0 %2530
      %v2532 = vmul.f32 %v2529, %v808
      %v2533 = vmul.f32 %v2531, %v808
      %2534 = vrot.lane.b32.xlu0 %v2166, 127
      %v2535 = vpop.permute.xlu0 %2534
      %2536 = vrot.lane.b32.xlu0 %v2167, 127
      %v2537 = vpop.permute.xlu0 %2536
      %v2538 = vmul.f32 %v2535, %v817
      %v2539 = vmul.f32 %v2537, %v817
      %2540 = vrot.lane.b32.xlu0 %v2166, 121
      %v2541 = vpop.permute.xlu0 %2540
      %2542 = vrot.lane.b32.xlu0 %v2167, 121
      %v2543 = vpop.permute.xlu0 %2542
      %v2544 = vmul.f32 %v2541, %v826
      %v2545 = vmul.f32 %v2543, %v826
      %2546 = vrot.lane.b32.xlu0 %v2166, 120
      %v2547 = vpop.permute.xlu0 %2546
      %2548 = vrot.lane.b32.xlu0 %v2167, 120
      %v2549 = vpop.permute.xlu0 %2548
      %v2550 = vmul.f32 %v2547, %v835
      %v2551 = vmul.f32 %v2549, %v835
      %2552 = vrot.lane.b32.xlu0 %v2166, 119
      %v2553 = vpop.permute.xlu0 %2552
      %2554 = vrot.lane.b32.xlu0 %v2167, 119
      %v2555 = vpop.permute.xlu0 %2554
      %v2556 = vmul.f32 %v2553, %v844
      %v2557 = vmul.f32 %v2555, %v844
      %v2558 = vpack.c.bf16 %v2515, %v2514
      %v2559 = vpack.c.bf16 %v2521, %v2520
      %v2560 = vpack.c.bf16 %v2527, %v2526
      %v2561 = vpack.c.bf16 %v2533, %v2532
      %v2562 = vpack.c.bf16 %v2167, %v2166
      %v2563 = vpack.c.bf16 %v2539, %v2538
      %v2564 = vpack.c.bf16 %v2545, %v2544
      %v2565 = vpack.c.bf16 %v2551, %v2550
      %v2566 = vpack.c.bf16 %v2557, %v2556
      %2567 = vmatpush.bf16.msra.mxu0 %v2565
      %2568 = vmatpush.bf16.msra.mxu0 %v2564
      %2569 = vmatpush.bf16.msra.mxu0 %v2563
      %2570 = vmatpush.bf16.msra.mxu0 %v2562
      %2571 = vmatpush.bf16.msra.mxu0 %v2561
      %2572 = vmatpush.bf16.msra.mxu0 %v2560
      %2573 = vmatpush.bf16.msra.mxu0 %v2559
      %2574 = vmatpush.bf16.msra.mxu0 %v2558
      %2575 = vmatmul.bf16.gmra.mxu0 %v2313
      %v2576 = vpop.f32.mrf.mxu0
      %v2577 = vadd.f32 %v2252, %v2576
      %v2578 = vpop.f32.mrf.mxu0
      %v2579 = vadd.f32 %v2257, %v2578
      %2580 = vmatmul.bf16.gmra.mxu0 %v2315
      %v2581 = vpop.f32.mrf.mxu0
      %v2582 = vadd.f32 %v2262, %v2581
      %v2583 = vpop.f32.mrf.mxu0
      %v2584 = vadd.f32 %v2267, %v2583
      %2585 = vmatmul.bf16.gmra.mxu0 %v2317
      %v2586 = vpop.f32.mrf.mxu0
      %v2587 = vadd.f32 %v2272, %v2586
      %v2588 = vpop.f32.mrf.mxu0
      %v2589 = vadd.f32 %v2277, %v2588
      %2590 = vmatmul.bf16.gmra.mxu0 %v2319
      %v2591 = vpop.f32.mrf.mxu0
      %v2592 = vadd.f32 %v2282, %v2591
      %v2593 = vpop.f32.mrf.mxu0
      %v2594 = vadd.f32 %v2287, %v2593
      %2595 = vdwg.mxu0
      %2596 = vmatpush.bf16.msra.mxu0 0
      %2597 = vmatpush.bf16.msra.mxu0 0
      %2598 = vmatpush.bf16.msra.mxu0 0
      %2599 = vmatpush.bf16.msra.mxu0 0
      %2600 = vmatpush.bf16.msra.mxu0 0
      %2601 = vmatpush.bf16.msra.mxu0 0
      %2602 = vmatpush.bf16.msra.mxu0 0
      %2603 = vmatpush.bf16.msra.mxu0 %v2566
      %2604 = vmatmul.bf16.gmra.mxu0 %v2326
      %v2605 = vpop.f32.mrf.mxu0
      %v2606 = vadd.f32 %v2577, %v2605
      %v2607 = vpop.f32.mrf.mxu0
      %v2608 = vadd.f32 %v2579, %v2607
      %2609 = vmatmul.bf16.gmra.mxu0 %v2329
      %v2610 = vpop.f32.mrf.mxu0
      %v2611 = vadd.f32 %v2582, %v2610
      %v2612 = vpop.f32.mrf.mxu0
      %v2613 = vadd.f32 %v2584, %v2612
      %2614 = vmatmul.bf16.gmra.mxu0 %v2332
      %v2615 = vpop.f32.mrf.mxu0
      %v2616 = vadd.f32 %v2587, %v2615
      %v2617 = vpop.f32.mrf.mxu0
      %v2618 = vadd.f32 %v2589, %v2617
      %2619 = vmatmul.bf16.gmra.mxu0 %v2335
      %v2620 = vpop.f32.mrf.mxu0
      %v2621 = vadd.f32 %v2592, %v2620
      %v2622 = vpop.f32.mrf.mxu0
      %v2623 = vadd.f32 %v2594, %v2622
      %2624 = vdwg.mxu0
      %v2633 = vunpack.c.l.b16 %v2176
      %v2634 = vunpack.c.h.b16 %v2176
      %v2635 = vunpack.c.l.b16 %v2177
      %v2636 = vunpack.c.h.b16 %v2177
      %v2637 = vunpack.c.l.b16 %v2178
      %v2638 = vunpack.c.h.b16 %v2178
      %v2639 = vunpack.c.l.b16 %v2179
      %v2640 = vunpack.c.h.b16 %v2179
      %v2641 = vunpack.c.l.b16 %v2180
      %v2642 = vunpack.c.h.b16 %v2180
      %v2643 = vunpack.c.l.b16 %v2181
      %v2644 = vunpack.c.h.b16 %v2181
      %v2645 = vunpack.c.l.b16 %v2182
      %v2646 = vunpack.c.h.b16 %v2182
      %v2647 = vunpack.c.l.b16 %v2183
      %v2648 = vunpack.c.h.b16 %v2183
      %v2649 = vpack.c.b16 %v2635, %v2633
      %v2650 = vpack.c.b16 %v2636, %v2634
      %v2651 = vpack.c.b16 %v2639, %v2637
      %v2652 = vpack.c.b16 %v2640, %v2638
      %v2653 = vpack.c.b16 %v2643, %v2641
      %v2654 = vpack.c.b16 %v2644, %v2642
      %v2655 = vpack.c.b16 %v2647, %v2645
      %v2656 = vpack.c.b16 %v2648, %v2646
      %v2662 = vsel %vm933, %v2650, 0
      %v2665 = vsel %vm933, %v2652, 0
      %v2668 = vsel %vm933, %v2654, 0
      %v2671 = vsel %vm933, %v2656, 0
      %2673 = vmatpush.bf16.msra.mxu0 %v1265
      %2674 = vmatpush.bf16.msra.mxu0 %v1264
      %2675 = vmatpush.bf16.msra.mxu0 %v1263
      %2676 = vmatpush.bf16.msra.mxu0 %v1262
      %2677 = vmatpush.bf16.msra.mxu0 %v1261
      %2678 = vmatpush.bf16.msra.mxu0 %v1260
      %2679 = vmatpush.bf16.msra.mxu0 %v1259
      %2680 = vmatpush.bf16.msra.mxu0 %v1258
      %2681 = vmatmul.bf16.gmra.mxu0 %v2649
      %v2682 = vpop.f32.mrf.mxu0
      %v2683 = vadd.f32 0.0, %v2682
      %v2684 = vpop.f32.mrf.mxu0
      %v2685 = vadd.f32 0.0, %v2684
      %2686 = vmatmul.bf16.gmra.mxu0 %v2651
      %v2687 = vpop.f32.mrf.mxu0
      %v2688 = vadd.f32 0.0, %v2687
      %v2689 = vpop.f32.mrf.mxu0
      %v2690 = vadd.f32 0.0, %v2689
      %2691 = vmatmul.bf16.gmra.mxu0 %v2653
      %v2692 = vpop.f32.mrf.mxu0
      %v2693 = vadd.f32 0.0, %v2692
      %v2694 = vpop.f32.mrf.mxu0
      %v2695 = vadd.f32 0.0, %v2694
      %2696 = vmatmul.bf16.gmra.mxu0 %v2655
      %v2697 = vpop.f32.mrf.mxu0
      %v2698 = vadd.f32 0.0, %v2697
      %v2699 = vpop.f32.mrf.mxu0
      %v2700 = vadd.f32 0.0, %v2699
      %2701 = vdwg.mxu0
      %2702 = vmatpush.bf16.msra.mxu0 0
      %2703 = vmatpush.bf16.msra.mxu0 0
      %2704 = vmatpush.bf16.msra.mxu0 0
      %2705 = vmatpush.bf16.msra.mxu0 0
      %2706 = vmatpush.bf16.msra.mxu0 0
      %2707 = vmatpush.bf16.msra.mxu0 0
      %2708 = vmatpush.bf16.msra.mxu0 0
      %2709 = vmatpush.bf16.msra.mxu0 %v1266
      %2710 = vmatmul.bf16.gmra.mxu0 %v2662
      %v2711 = vpop.f32.mrf.mxu0
      %v2712 = vadd.f32 %v2683, %v2711
      %v2713 = vpop.f32.mrf.mxu0
      %v2714 = vadd.f32 %v2685, %v2713
      %2715 = vmatmul.bf16.gmra.mxu0 %v2665
      %v2716 = vpop.f32.mrf.mxu0
      %v2717 = vadd.f32 %v2688, %v2716
      %v2718 = vpop.f32.mrf.mxu0
      %v2719 = vadd.f32 %v2690, %v2718
      %2720 = vmatmul.bf16.gmra.mxu0 %v2668
      %v2721 = vpop.f32.mrf.mxu0
      %v2722 = vadd.f32 %v2693, %v2721
      %v2723 = vpop.f32.mrf.mxu0
      %v2724 = vadd.f32 %v2695, %v2723
      %2725 = vmatmul.bf16.gmra.mxu0 %v2671
      %v2726 = vpop.f32.mrf.mxu0
      %v2727 = vadd.f32 %v2698, %v2726
      %v2728 = vpop.f32.mrf.mxu0
      %v2729 = vadd.f32 %v2700, %v2728
      %2730 = vdwg.mxu0
      %v2731 = vadd.f32 %v2376, %v2712
      %v2732 = vadd.f32 %v2378, %v2714
      %v2733 = vadd.f32 %v2381, %v2717
      %v2734 = vadd.f32 %v2383, %v2719
      %v2735 = vadd.f32 %v2386, %v2722
      %v2736 = vadd.f32 %v2388, %v2724
      %v2737 = vadd.f32 %v2391, %v2727
      %v2738 = vadd.f32 %v2393, %v2729
      %v2739 = vmul.f32 %v2731, 0.5
      %v2740 = vmul.f32 %v2732, 0.5
      %v2741 = vtanh.pop %v2739
      %v2742 = vtanh.pop %v2740
      %v2743 = vadd.f32 %v2741, 1.0
      %v2744 = vadd.f32 %v2742, 1.0
      %v2745 = vmul.f32 %v2743, 0.5
      %v2746 = vmul.f32 %v2744, 0.5
      %v2747 = vmul.f32 %v2733, 0.5
      %v2748 = vmul.f32 %v2734, 0.5
      %v2749 = vtanh.pop %v2747
      %v2750 = vtanh.pop %v2748
      %v2751 = vadd.f32 %v2749, 1.0
      %v2752 = vadd.f32 %v2750, 1.0
      %v2753 = vmul.f32 %v2751, 0.5
      %v2754 = vmul.f32 %v2752, 0.5
      %v2755 = vtanh.pop %v2735
      %v2756 = vtanh.pop %v2736
      %v2757 = vmul.f32 %v2737, 0.5
      %v2758 = vmul.f32 %v2738, 0.5
      %v2759 = vtanh.pop %v2757
      %v2760 = vtanh.pop %v2758
      %v2761 = vadd.f32 %v2759, 1.0
      %v2762 = vadd.f32 %v2760, 1.0
      %v2763 = vmul.f32 %v2761, 0.5
      %v2764 = vmul.f32 %v2762, 0.5
      %v2765 = vmul.f32 %v2753, 0.0
      %v2766 = vmul.f32 %v2754, 0.0
      %v2767 = vmul.f32 %v2745, %v2755
      %v2768 = vmul.f32 %v2746, %v2756
      %v2769 = vadd.f32 %v2765, %v2767
      %v2770 = vadd.f32 %v2766, %v2768
      %v2771 = vtanh.pop %v2769
      %v2772 = vtanh.pop %v2770
      %v2773 = vmul.f32 %v2763, %v2771
      %v2774 = vmul.f32 %v2764, %v2772
      %2775 = vrot.lane.b32.xlu0 %v2773, 9
      %v2776 = vpop.permute.xlu0 %2775
      %2777 = vrot.lane.b32.xlu0 %v2774, 9
      %v2778 = vpop.permute.xlu0 %2777
      %v2779 = vmul.f32 %v2776, %v781
      %v2780 = vmul.f32 %v2778, %v781
      %2781 = vrot.lane.b32.xlu0 %v2773, 8
      %v2782 = vpop.permute.xlu0 %2781
      %2783 = vrot.lane.b32.xlu0 %v2774, 8
      %v2784 = vpop.permute.xlu0 %2783
      %v2785 = vmul.f32 %v2782, %v790
      %v2786 = vmul.f32 %v2784, %v790
      %2787 = vrot.lane.b32.xlu0 %v2773, 7
      %v2788 = vpop.permute.xlu0 %2787
      %2789 = vrot.lane.b32.xlu0 %v2774, 7
      %v2790 = vpop.permute.xlu0 %2789
      %v2791 = vmul.f32 %v2788, %v799
      %v2792 = vmul.f32 %v2790, %v799
      %2793 = vrot.lane.b32.xlu0 %v2773, 1
      %v2794 = vpop.permute.xlu0 %2793
      %2795 = vrot.lane.b32.xlu0 %v2774, 1
      %v2796 = vpop.permute.xlu0 %2795
      %v2797 = vmul.f32 %v2794, %v808
      %v2798 = vmul.f32 %v2796, %v808
      %2799 = vrot.lane.b32.xlu0 %v2773, 127
      %v2800 = vpop.permute.xlu0 %2799
      %2801 = vrot.lane.b32.xlu0 %v2774, 127
      %v2802 = vpop.permute.xlu0 %2801
      %v2803 = vmul.f32 %v2800, %v817
      %v2804 = vmul.f32 %v2802, %v817
      %2805 = vrot.lane.b32.xlu0 %v2773, 121
      %v2806 = vpop.permute.xlu0 %2805
      %2807 = vrot.lane.b32.xlu0 %v2774, 121
      %v2808 = vpop.permute.xlu0 %2807
      %v2809 = vmul.f32 %v2806, %v826
      %v2810 = vmul.f32 %v2808, %v826
      %2811 = vrot.lane.b32.xlu0 %v2773, 120
      %v2812 = vpop.permute.xlu0 %2811
      %2813 = vrot.lane.b32.xlu0 %v2774, 120
      %v2814 = vpop.permute.xlu0 %2813
      %v2815 = vmul.f32 %v2812, %v835
      %v2816 = vmul.f32 %v2814, %v835
      %2817 = vrot.lane.b32.xlu0 %v2773, 119
      %v2818 = vpop.permute.xlu0 %2817
      %2819 = vrot.lane.b32.xlu0 %v2774, 119
      %v2820 = vpop.permute.xlu0 %2819
      %v2821 = vmul.f32 %v2818, %v844
      %v2822 = vmul.f32 %v2820, %v844
      %v2823 = vpack.c.bf16 %v2780, %v2779
      %v2824 = vpack.c.bf16 %v2786, %v2785
      %v2825 = vpack.c.bf16 %v2792, %v2791
      %v2826 = vpack.c.bf16 %v2798, %v2797
      %v2827 = vpack.c.bf16 %v2774, %v2773
      %v2828 = vpack.c.bf16 %v2804, %v2803
      %v2829 = vpack.c.bf16 %v2810, %v2809
      %v2830 = vpack.c.bf16 %v2816, %v2815
      %v2831 = vpack.c.bf16 %v2822, %v2821
      %2832 = vmatpush.bf16.msra.mxu0 %v2830
      %2833 = vmatpush.bf16.msra.mxu0 %v2829
      %2834 = vmatpush.bf16.msra.mxu0 %v2828
      %2835 = vmatpush.bf16.msra.mxu0 %v2827
      %2836 = vmatpush.bf16.msra.mxu0 %v2826
      %2837 = vmatpush.bf16.msra.mxu0 %v2825
      %2838 = vmatpush.bf16.msra.mxu0 %v2824
      %2839 = vmatpush.bf16.msra.mxu0 %v2823
      %2840 = vmatmul.bf16.gmra.mxu0 %v2649
      %v2841 = vpop.f32.mrf.mxu0
      %v2842 = vadd.f32 0.0, %v2841
      %v2843 = vpop.f32.mrf.mxu0
      %v2844 = vadd.f32 0.0, %v2843
      %2845 = vmatmul.bf16.gmra.mxu0 %v2651
      %v2846 = vpop.f32.mrf.mxu0
      %v2847 = vadd.f32 0.0, %v2846
      %v2848 = vpop.f32.mrf.mxu0
      %v2849 = vadd.f32 0.0, %v2848
      %2850 = vmatmul.bf16.gmra.mxu0 %v2653
      %v2851 = vpop.f32.mrf.mxu0
      %v2852 = vadd.f32 0.0, %v2851
      %v2853 = vpop.f32.mrf.mxu0
      %v2854 = vadd.f32 0.0, %v2853
      %2855 = vmatmul.bf16.gmra.mxu0 %v2655
      %v2856 = vpop.f32.mrf.mxu0
      %v2857 = vadd.f32 0.0, %v2856
      %v2858 = vpop.f32.mrf.mxu0
      %v2859 = vadd.f32 0.0, %v2858
      %2860 = vdwg.mxu0
      %2861 = vmatpush.bf16.msra.mxu0 0
      %2862 = vmatpush.bf16.msra.mxu0 0
      %2863 = vmatpush.bf16.msra.mxu0 0
      %2864 = vmatpush.bf16.msra.mxu0 0
      %2865 = vmatpush.bf16.msra.mxu0 0
      %2866 = vmatpush.bf16.msra.mxu0 0
      %2867 = vmatpush.bf16.msra.mxu0 0
      %2868 = vmatpush.bf16.msra.mxu0 %v2831
      %2869 = vmatmul.bf16.gmra.mxu0 %v2662
      %v2870 = vpop.f32.mrf.mxu0
      %v2871 = vadd.f32 %v2842, %v2870
      %v2872 = vpop.f32.mrf.mxu0
      %v2873 = vadd.f32 %v2844, %v2872
      %2874 = vmatmul.bf16.gmra.mxu0 %v2665
      %v2875 = vpop.f32.mrf.mxu0
      %v2876 = vadd.f32 %v2847, %v2875
      %v2877 = vpop.f32.mrf.mxu0
      %v2878 = vadd.f32 %v2849, %v2877
      %2879 = vmatmul.bf16.gmra.mxu0 %v2668
      %v2880 = vpop.f32.mrf.mxu0
      %v2881 = vadd.f32 %v2852, %v2880
      %v2882 = vpop.f32.mrf.mxu0
      %v2883 = vadd.f32 %v2854, %v2882
      %2884 = vmatmul.bf16.gmra.mxu0 %v2671
      %v2885 = vpop.f32.mrf.mxu0
      %v2886 = vadd.f32 %v2857, %v2885
      %v2887 = vpop.f32.mrf.mxu0
      %v2888 = vadd.f32 %v2859, %v2887
      %2889 = vdwg.mxu0
      %v2890 = vadd.f32 %v2491, %v2871
      %v2891 = vadd.f32 %v2493, %v2873
      %v2892 = vadd.f32 %v2496, %v2876
      %v2893 = vadd.f32 %v2498, %v2878
      %v2894 = vadd.f32 %v2501, %v2881
      %v2895 = vadd.f32 %v2503, %v2883
      %v2896 = vadd.f32 %v2506, %v2886
      %v2897 = vadd.f32 %v2508, %v2888
      %v2898 = vmul.f32 %v2890, 0.5
      %v2899 = vmul.f32 %v2891, 0.5
      %v2900 = vtanh.pop %v2898
      %v2901 = vtanh.pop %v2899
      %v2902 = vadd.f32 %v2900, 1.0
      %v2903 = vadd.f32 %v2901, 1.0
      %v2904 = vmul.f32 %v2902, 0.5
      %v2905 = vmul.f32 %v2903, 0.5
      %v2906 = vmul.f32 %v2892, 0.5
      %v2907 = vmul.f32 %v2893, 0.5
      %v2908 = vtanh.pop %v2906
      %v2909 = vtanh.pop %v2907
      %v2910 = vadd.f32 %v2908, 1.0
      %v2911 = vadd.f32 %v2909, 1.0
      %v2912 = vmul.f32 %v2910, 0.5
      %v2913 = vmul.f32 %v2911, 0.5
      %v2914 = vtanh.pop %v2894
      %v2915 = vtanh.pop %v2895
      %v2916 = vmul.f32 %v2896, 0.5
      %v2917 = vmul.f32 %v2897, 0.5
      %v2918 = vtanh.pop %v2916
      %v2919 = vtanh.pop %v2917
      %v2920 = vadd.f32 %v2918, 1.0
      %v2921 = vadd.f32 %v2919, 1.0
      %v2922 = vmul.f32 %v2920, 0.5
      %v2923 = vmul.f32 %v2921, 0.5
      %v2924 = vmul.f32 %v2912, %v2769
      %v2925 = vmul.f32 %v2913, %v2770
      %v2926 = vmul.f32 %v2904, %v2914
      %v2927 = vmul.f32 %v2905, %v2915
      %v2928 = vadd.f32 %v2924, %v2926
      %v2929 = vadd.f32 %v2925, %v2927
      %v2930 = vtanh.pop %v2928
      %v2931 = vtanh.pop %v2929
      %v2932 = vmul.f32 %v2922, %v2930
      %v2933 = vmul.f32 %v2923, %v2931
      %2934 = vrot.lane.b32.xlu0 %v2932, 9
      %v2935 = vpop.permute.xlu0 %2934
      %2936 = vrot.lane.b32.xlu0 %v2933, 9
      %v2937 = vpop.permute.xlu0 %2936
      %v2938 = vmul.f32 %v2935, %v781
      %v2939 = vmul.f32 %v2937, %v781
      %2940 = vrot.lane.b32.xlu0 %v2932, 8
      %v2941 = vpop.permute.xlu0 %2940
      %2942 = vrot.lane.b32.xlu0 %v2933, 8
      %v2943 = vpop.permute.xlu0 %2942
      %v2944 = vmul.f32 %v2941, %v790
      %v2945 = vmul.f32 %v2943, %v790
      %2946 = vrot.lane.b32.xlu0 %v2932, 7
      %v2947 = vpop.permute.xlu0 %2946
      %2948 = vrot.lane.b32.xlu0 %v2933, 7
      %v2949 = vpop.permute.xlu0 %2948
      %v2950 = vmul.f32 %v2947, %v799
      %v2951 = vmul.f32 %v2949, %v799
      %2952 = vrot.lane.b32.xlu0 %v2932, 1
      %v2953 = vpop.permute.xlu0 %2952
      %2954 = vrot.lane.b32.xlu0 %v2933, 1
      %v2955 = vpop.permute.xlu0 %2954
      %v2956 = vmul.f32 %v2953, %v808
      %v2957 = vmul.f32 %v2955, %v808
      %2958 = vrot.lane.b32.xlu0 %v2932, 127
      %v2959 = vpop.permute.xlu0 %2958
      %2960 = vrot.lane.b32.xlu0 %v2933, 127
      %v2961 = vpop.permute.xlu0 %2960
      %v2962 = vmul.f32 %v2959, %v817
      %v2963 = vmul.f32 %v2961, %v817
      %2964 = vrot.lane.b32.xlu0 %v2932, 121
      %v2965 = vpop.permute.xlu0 %2964
      %2966 = vrot.lane.b32.xlu0 %v2933, 121
      %v2967 = vpop.permute.xlu0 %2966
      %v2968 = vmul.f32 %v2965, %v826
      %v2969 = vmul.f32 %v2967, %v826
      %2970 = vrot.lane.b32.xlu0 %v2932, 120
      %v2971 = vpop.permute.xlu0 %2970
      %2972 = vrot.lane.b32.xlu0 %v2933, 120
      %v2973 = vpop.permute.xlu0 %2972
      %v2974 = vmul.f32 %v2971, %v835
      %v2975 = vmul.f32 %v2973, %v835
      %2976 = vrot.lane.b32.xlu0 %v2932, 119
      %v2977 = vpop.permute.xlu0 %2976
      %2978 = vrot.lane.b32.xlu0 %v2933, 119
      %v2979 = vpop.permute.xlu0 %2978
      %v2980 = vmul.f32 %v2977, %v844
      %v2981 = vmul.f32 %v2979, %v844
      %v2982 = vpack.c.bf16 %v2939, %v2938
      %v2983 = vpack.c.bf16 %v2945, %v2944
      %v2984 = vpack.c.bf16 %v2951, %v2950
      %v2985 = vpack.c.bf16 %v2957, %v2956
      %v2986 = vpack.c.bf16 %v2933, %v2932
      %v2987 = vpack.c.bf16 %v2963, %v2962
      %v2988 = vpack.c.bf16 %v2969, %v2968
      %v2989 = vpack.c.bf16 %v2975, %v2974
      %v2990 = vpack.c.bf16 %v2981, %v2980
      %2991 = vmatpush.bf16.msra.mxu0 %v2989
      %2992 = vmatpush.bf16.msra.mxu0 %v2988
      %2993 = vmatpush.bf16.msra.mxu0 %v2987
      %2994 = vmatpush.bf16.msra.mxu0 %v2986
      %2995 = vmatpush.bf16.msra.mxu0 %v2985
      %2996 = vmatpush.bf16.msra.mxu0 %v2984
      %2997 = vmatpush.bf16.msra.mxu0 %v2983
      %2998 = vmatpush.bf16.msra.mxu0 %v2982
      %2999 = vmatmul.bf16.gmra.mxu0 %v2649
      %v3000 = vpop.f32.mrf.mxu0
      %v3001 = vadd.f32 0.0, %v3000
      %v3002 = vpop.f32.mrf.mxu0
      %v3003 = vadd.f32 0.0, %v3002
      %3004 = vmatmul.bf16.gmra.mxu0 %v2651
      %v3005 = vpop.f32.mrf.mxu0
      %v3006 = vadd.f32 0.0, %v3005
      %v3007 = vpop.f32.mrf.mxu0
      %v3008 = vadd.f32 0.0, %v3007
      %3009 = vmatmul.bf16.gmra.mxu0 %v2653
      %v3010 = vpop.f32.mrf.mxu0
      %v3011 = vadd.f32 0.0, %v3010
      %v3012 = vpop.f32.mrf.mxu0
      %v3013 = vadd.f32 0.0, %v3012
      %3014 = vmatmul.bf16.gmra.mxu0 %v2655
      %v3015 = vpop.f32.mrf.mxu0
      %v3016 = vadd.f32 0.0, %v3015
      %v3017 = vpop.f32.mrf.mxu0
      %v3018 = vadd.f32 0.0, %v3017
      %3019 = vdwg.mxu0
      %3020 = vmatpush.bf16.msra.mxu0 0
      %3021 = vmatpush.bf16.msra.mxu0 0
      %3022 = vmatpush.bf16.msra.mxu0 0
      %3023 = vmatpush.bf16.msra.mxu0 0
      %3024 = vmatpush.bf16.msra.mxu0 0
      %3025 = vmatpush.bf16.msra.mxu0 0
      %3026 = vmatpush.bf16.msra.mxu0 0
      %3027 = vmatpush.bf16.msra.mxu0 %v2990
      %3028 = vmatmul.bf16.gmra.mxu0 %v2662
      %v3029 = vpop.f32.mrf.mxu0
      %v3030 = vadd.f32 %v3001, %v3029
      %v3031 = vpop.f32.mrf.mxu0
      %v3032 = vadd.f32 %v3003, %v3031
      %3033 = vmatmul.bf16.gmra.mxu0 %v2665
      %v3034 = vpop.f32.mrf.mxu0
      %v3035 = vadd.f32 %v3006, %v3034
      %v3036 = vpop.f32.mrf.mxu0
      %v3037 = vadd.f32 %v3008, %v3036
      %3038 = vmatmul.bf16.gmra.mxu0 %v2668
      %v3039 = vpop.f32.mrf.mxu0
      %v3040 = vadd.f32 %v3011, %v3039
      %v3041 = vpop.f32.mrf.mxu0
      %v3042 = vadd.f32 %v3013, %v3041
      %3043 = vmatmul.bf16.gmra.mxu0 %v2671
      %v3044 = vpop.f32.mrf.mxu0
      %v3045 = vadd.f32 %v3016, %v3044
      %v3046 = vpop.f32.mrf.mxu0
      %v3047 = vadd.f32 %v3018, %v3046
      %3048 = vdwg.mxu0
      %v3049 = vadd.f32 %v2606, %v3030
      %v3050 = vadd.f32 %v2608, %v3032
      %v3051 = vadd.f32 %v2611, %v3035
      %v3052 = vadd.f32 %v2613, %v3037
      %v3053 = vadd.f32 %v2616, %v3040
      %v3054 = vadd.f32 %v2618, %v3042
      %v3055 = vadd.f32 %v2621, %v3045
      %v3056 = vadd.f32 %v2623, %v3047
      %v3057 = vmul.f32 %v3049, 0.5
      %v3058 = vmul.f32 %v3050, 0.5
      %v3059 = vtanh.pop %v3057
      %v3060 = vtanh.pop %v3058
      %v3061 = vadd.f32 %v3059, 1.0
      %v3062 = vadd.f32 %v3060, 1.0
      %v3063 = vmul.f32 %v3061, 0.5
      %v3064 = vmul.f32 %v3062, 0.5
      %v3065 = vmul.f32 %v3051, 0.5
      %v3066 = vmul.f32 %v3052, 0.5
      %v3067 = vtanh.pop %v3065
      %v3068 = vtanh.pop %v3066
      %v3069 = vadd.f32 %v3067, 1.0
      %v3070 = vadd.f32 %v3068, 1.0
      %v3071 = vmul.f32 %v3069, 0.5
      %v3072 = vmul.f32 %v3070, 0.5
      %v3073 = vtanh.pop %v3053
      %v3074 = vtanh.pop %v3054
      %v3075 = vmul.f32 %v3055, 0.5
      %v3076 = vmul.f32 %v3056, 0.5
      %v3077 = vtanh.pop %v3075
      %v3078 = vtanh.pop %v3076
      %v3079 = vadd.f32 %v3077, 1.0
      %v3080 = vadd.f32 %v3078, 1.0
      %v3081 = vmul.f32 %v3079, 0.5
      %v3082 = vmul.f32 %v3080, 0.5
      %v3083 = vmul.f32 %v3071, %v2928
      %v3084 = vmul.f32 %v3072, %v2929
      %v3085 = vmul.f32 %v3063, %v3073
      %v3086 = vmul.f32 %v3064, %v3074
      %v3087 = vadd.f32 %v3083, %v3085
      %v3088 = vadd.f32 %v3084, %v3086
      %v3089 = vtanh.pop %v3087
      %v3090 = vtanh.pop %v3088
      %v3091 = vmul.f32 %v3081, %v3089
      %v3092 = vmul.f32 %v3082, %v3090
      %v3093 = vld [vmem:[%s721] sm:$0x3]
      %v3094 = vld [vmem:[%s725] sm:$0x3]
      %3095 = vrot.lane.b32.xlu0 %v3091, 9
      %v3096 = vpop.permute.xlu0 %3095
      %3097 = vrot.lane.b32.xlu0 %v3092, 9
      %v3098 = vpop.permute.xlu0 %3097
      %v3099 = vmul.f32 %v3096, %v781
      %v3100 = vmul.f32 %v3098, %v781
      %3101 = vrot.lane.b32.xlu0 %v3091, 8
      %v3102 = vpop.permute.xlu0 %3101
      %3103 = vrot.lane.b32.xlu0 %v3092, 8
      %v3104 = vpop.permute.xlu0 %3103
      %v3105 = vmul.f32 %v3102, %v790
      %v3106 = vmul.f32 %v3104, %v790
      %3107 = vrot.lane.b32.xlu0 %v3091, 7
      %v3108 = vpop.permute.xlu0 %3107
      %3109 = vrot.lane.b32.xlu0 %v3092, 7
      %v3110 = vpop.permute.xlu0 %3109
      %v3111 = vmul.f32 %v3108, %v799
      %v3112 = vmul.f32 %v3110, %v799
      %3113 = vrot.lane.b32.xlu0 %v3091, 1
      %v3114 = vpop.permute.xlu0 %3113
      %3115 = vrot.lane.b32.xlu0 %v3092, 1
      %v3116 = vpop.permute.xlu0 %3115
      %v3117 = vmul.f32 %v3114, %v808
      %v3118 = vmul.f32 %v3116, %v808
      %3119 = vrot.lane.b32.xlu0 %v3091, 127
      %v3120 = vpop.permute.xlu0 %3119
      %3121 = vrot.lane.b32.xlu0 %v3092, 127
      %v3122 = vpop.permute.xlu0 %3121
      %v3123 = vmul.f32 %v3120, %v817
      %v3124 = vmul.f32 %v3122, %v817
      %3125 = vrot.lane.b32.xlu0 %v3091, 121
      %v3126 = vpop.permute.xlu0 %3125
      %3127 = vrot.lane.b32.xlu0 %v3092, 121
      %v3128 = vpop.permute.xlu0 %3127
      %v3129 = vmul.f32 %v3126, %v826
      %v3130 = vmul.f32 %v3128, %v826
      %3131 = vrot.lane.b32.xlu0 %v3091, 120
      %v3132 = vpop.permute.xlu0 %3131
      %3133 = vrot.lane.b32.xlu0 %v3092, 120
      %v3134 = vpop.permute.xlu0 %3133
      %v3135 = vmul.f32 %v3132, %v835
      %v3136 = vmul.f32 %v3134, %v835
      %3137 = vrot.lane.b32.xlu0 %v3091, 119
      %v3138 = vpop.permute.xlu0 %3137
      %3139 = vrot.lane.b32.xlu0 %v3092, 119
      %v3140 = vpop.permute.xlu0 %3139
      %v3141 = vmul.f32 %v3138, %v844
      %v3142 = vmul.f32 %v3140, %v844
      %v3143 = vpack.c.bf16 %v3100, %v3099
      %v3144 = vpack.c.bf16 %v3106, %v3105
      %v3145 = vpack.c.bf16 %v3112, %v3111
      %v3146 = vpack.c.bf16 %v3118, %v3117
      %v3147 = vpack.c.bf16 %v3092, %v3091
      %v3148 = vpack.c.bf16 %v3124, %v3123
      %v3149 = vpack.c.bf16 %v3130, %v3129
      %v3150 = vpack.c.bf16 %v3136, %v3135
      %v3151 = vpack.c.bf16 %v3142, %v3141
      %3153 = vset.pattern.permute.xlu0 0
      %3154 = vperm.xlu0 %3153, %v3094
      %v3155 = vpop.permute.xlu0 %3154
      %3158 = vst [vmem:[#allocation1] ss:$9 sm:$0xff] %v3093
      %v3159 = vld [vmem:[#allocation1] sm:$0xff]
      %v3160 = vld [vmem:[#allocation1 + $0x9] sm:$0xff]
      %v3162 = vsel %vm933, %v3160, 0
      %3164 = vmatpush.bf16.msra.mxu0 %v3150
      %3165 = vmatpush.bf16.msra.mxu0 %v3149
      %3166 = vmatpush.bf16.msra.mxu0 %v3148
      %3167 = vmatpush.bf16.msra.mxu0 %v3147
      %3168 = vmatpush.bf16.msra.mxu0 %v3146
      %3169 = vmatpush.bf16.msra.mxu0 %v3145
      %3170 = vmatpush.bf16.msra.mxu0 %v3144
      %3171 = vmatpush.bf16.msra.mxu0 %v3143
      %3172 = vmatmul.bf16.gmra.mxu0 %v3159
      %v3173 = vpop.f32.mrf.mxu0
      %v3174 = vadd.f32 %v3155, %v3173
      %v3175 = vpop.f32.mrf.mxu0
      %3176 = vdwg.mxu0
      %3177 = vmatpush.bf16.msra.mxu0 0
      %3178 = vmatpush.bf16.msra.mxu0 0
      %3179 = vmatpush.bf16.msra.mxu0 0
      %3180 = vmatpush.bf16.msra.mxu0 0
      %3181 = vmatpush.bf16.msra.mxu0 0
      %3182 = vmatpush.bf16.msra.mxu0 0
      %3183 = vmatpush.bf16.msra.mxu0 0
      %3184 = vmatpush.bf16.msra.mxu0 %v3151
      %3185 = vmatmul.bf16.gmra.mxu0 %v3162
      %v3186 = vpop.f32.mrf.mxu0
      %v3187 = vadd.f32 %v3174, %v3186
      %v3188 = vpop.f32.mrf.mxu0
      %3189 = vdwg.mxu0
      %v3190 = vld [vmem:[%s677] sm:$0x1]
      %v3192 = vperm.slane %v3190, 0
      %v3194 = vmul.f32 %v3187, %v3192
      %3195 = vst [vmem:[%s729] sm:$0x3] %v3194
      %p3196 = scmp.lt.s32.totalorder %s27, 1
      %s3197 = scalar_select %p3196, %s27, 1
      %s3198 = smul.addr %s3197, 2
      %s3199 = scalar_lea.vmem %s16, %s3198
      // Predicated region
      $region85: #{model_forward.3} parent=83 // pred_check
        %p3200 = pneg %p441
      $region86: #{model_forward.3} parent=83 // pred_check_branch
        %3202 = sbr.rel (%p3200) target = $region88
      $region87: #{model_forward.3} parent=83 // pred_region
        _
      $region88: #{model_forward.3} parent=83 // pred_fallthru
        _
    $region84: #{model_forward.3} parent=5 // pred_fallthru
      _
    %p3203 = scmp.le.s32.totalorder 2, %s22
    // Predicated region
    $region89: #{model_forward.3} parent=5 // pred_check
      %p3204 = pneg %p3203
    $region90: #{model_forward.3} parent=5 // pred_check_branch
      %3206 = sbr.rel (%p3204) target = $region92
    $region91: #{model_forward.3} parent=5 // pred_region
      %s3207 = ssub.s32 %s22, 2
      // Predicated region
      $region93: #{model_forward.3} parent=91 // pred_check
        %p3208 = pneg %p447
      $region94: #{model_forward.3} parent=91 // pred_check_branch
        %3210 = sbr.rel (%p3208) target = $region96
      $region95: #{model_forward.3} parent=91 // pred_region
        %p3211 = scmp.lt.s32.totalorder %s28, 1
        %s3212 = scalar_select %p3211, %s28, 1
        %s3213 = smul.addr %s3212, 2
        %s3214 = scalar_lea.vmem %s16, %s3213
      $region96: #{model_forward.3} parent=91 // pred_fallthru
        _
    $region92: #{model_forward.3} parent=5 // pred_fallthru
      _
  $region6: #{model_forward.3} parent=0 // loop_footer
    %s26 = sadd.s32 1, %s22
  $region7: #{model_forward.3} parent=0 // loop_footer_branch
    %21 = sbr.rel target = $region3
  $region8: #{model_forward.3} parent=0 // loop_exit
    _

</llo_original>
